<compile_context>
chip_gen: v6e
topology: v6e:2x2x1
jax: 0.10.0
libtpu: 0.0.40
codegen_flags: <defaults>
</compile_context>

<pallas_src>
import functools

import numpy as np
import jax
import jax.numpy as jnp
from jax import lax
from jax.experimental import pallas as pl
from jax.experimental.pallas import tpu as pltpu

EPS = 1e-5
LANE = 128


def _round_up(v, m):
    return (v + m - 1) // m * m


# ---------------------------------------------------------------------------
# Fused bottleneck kernel (one image / grid step, everything stays in VMEM)
# ---------------------------------------------------------------------------
def _bottleneck_kernel(x_ref, w1_ref, w2_ref, b2_ref, w3_ref, b3_ref, *rest,
                       H, W, has_proj):
    """x_ref : (1, R, Ck) bf16 -- image, spatially zero padded to (H+2, W+2),
                                  row-flattened, with one extra channel holding the
                                  interior indicator (1 inside, 0 on the halo).
       w1    : (Ck, Pp)   bf16 -- conv1*bn1 scale; row `in_planes` = folded bn1 bias.
       w2    : (3, 3*Pp, Pp)   -- conv2*bn2, kw taps stacked along K per kh.
       w3    : (Pp, Op)        -- conv3*bn3 scale; b2/b3 f32 biases.
       wsc   : (Ck, Op)        -- shortcut conv*bn; row `in_planes` = folded bias.
       out   : (1, H*(W+2), Op) bf16 -- 2 junk columns per row, sliced in wrapper."""
    if has_proj:
        wsc_ref, o_ref = rest
    else:
        (o_ref,) = rest

    Wp = W + 2
    HWo = H * Wp
    Ck = x_ref.shape[-1]
    Op = o_ref.shape[-1]

    x2d = x_ref[0]                                            # (R, Ck) bf16

    # conv1 (1x1) + folded bn1 + relu.  The interior-indicator channel carries the
    # conv1 bias through the matmul, so halo rows stay exactly 0 (true zero padding
    # for conv2) with no mask multiply and no separate bias add.
    t1 = jnp.maximum(
        jnp.dot(x2d, w1_ref[...], preferred_element_type=jnp.float32), 0.0)
    t1b = t1.astype(jnp.bfloat16)                             # single cast, sliced below

    # conv2 (3x3, pad=1) + folded bn2 + relu: for each kh, the three kw taps are
    # lane-concatenated into one K=3*Pp bf16 operand -> 3 deep MXU matmuls.
    def row_taps(kh):
        off = kh * Wp
        lhs = jnp.concatenate(
            [t1b[off:off + HWo, :],
             t1b[off + 1:off + 1 + HWo, :],
             t1b[off + 2:off + 2 + HWo, :]], axis=1)          # (HWo, 3*Pp)
        return jnp.dot(lhs, w2_ref[kh], preferred_element_type=jnp.float32)

    acc = row_taps(0) + row_taps(1) + row_taps(2)
    t2 = jnp.maximum(acc + b2_ref[...], 0.0).astype(jnp.bfloat16)   # (HWo, Pp)

    # conv3 (1x1) + folded bn3 + shortcut + relu (all fused, no HBM residual).
    out = jnp.dot(t2, w3_ref[...], preferred_element_type=jnp.float32) + b3_ref[...]
    xs = x2d[Wp + 1:Wp + 1 + HWo, :]                          # bf16, aligned w/ outputs
    if has_proj:
        out = out + jnp.dot(xs, wsc_ref[...], preferred_element_type=jnp.float32)
    else:
        if Ck > Op:
            xs = xs[:, :Op]
        out = out + xs.astype(jnp.float32)                    # identity shortcut
    out = jnp.maximum(out, 0.0)
    o_ref[...] = out.reshape(1, HWo, Op).astype(o_ref.dtype)


# ---------------------------------------------------------------------------
# Wrapper: layout plumbing (NCHW <-> NHWC, spatial halo, channel padding), jitted so
# the pre/post passes fuse.
# ---------------------------------------------------------------------------
@functools.partial(jax.jit,
                   static_argnames=("stride", "has_proj", "out_planes",
                                    "single_buffer_weights"))
def _forward_jit(x_nchw, arrays, *, stride, has_proj, out_planes,
                 single_buffer_weights):
    N, Cin, H, W = x_nchw.shape
    Ck, Pp = arrays["w1"].shape
    Op = arrays["w3"].shape[1]
    Wp = W + 2
    R0 = (H + 2) * Wp
    R = _round_up(R0 + 2, 8)        # +2 rows so the bottom-right tap slice fits
    HWo = H * Wp

    # NCHW -> NHWC bf16, append the interior-indicator channel (also carries the folded
    # conv1 / shortcut biases), zero-pad channels and the 1-pixel halo, row-flatten.
    x = jnp.transpose(x_nchw, (0, 2, 3, 1)).astype(jnp.bfloat16)
    x = jnp.concatenate([x, jnp.ones((N, H, W, 1), jnp.bfloat16)], axis=-1)
    x = jnp.pad(x, ((0, 0), (0, 0), (0, 0), (0, Ck - (Cin + 1))))
    x = jnp.pad(x, ((0, 0), (1, 1), (1, 1), (0, 0)))
    xf = x.reshape(N, R0, Ck)
    xf = jnp.pad(xf, ((0, 0), (0, R - R0), (0, 0)))

    def const_spec(shape):
        index_map = lambda n: (0,) * len(shape)
        if single_buffer_weights:
            try:
                # Weights never change across the grid: single-buffer to halve their VMEM.
                return pl.BlockSpec(shape, index_map, pipeline_mode=pl.Buffered(1))
            except TypeError:       # older jax without pipeline_mode
                pass
        return pl.BlockSpec(shape, index_map)

    args = [xf, arrays["w1"], arrays["w2"], arrays["b2"], arrays["w3"], arrays["b3"]]
    in_specs = [
        pl.BlockSpec((1, R, Ck), lambda n: (n, 0, 0)),
        const_spec((Ck, Pp)),
        const_spec((3, 3 * Pp, Pp)),
        const_spec((1, Pp)),
        const_spec((Pp, Op)),
        const_spec((1, Op)),
    ]
    if has_proj:
        args.append(arrays["wsc"])
        in_specs.append(const_spec((Ck, Op)))

    # Per-step VMEM footprint estimate (double-buffered I/O + weights + compiler-managed
    # intermediates), used to size the scoped-VMEM limit.
    bf = 2
    est = (2 * R * Ck * bf + 2 * HWo * Op * bf
           + 2 * (Ck * Pp + 9 * Pp * Pp + Pp * Op + (Ck * Op if has_proj else 0)) * bf
           + R * Pp * (4 + bf) + 2 * HWo * 3 * Pp * bf + 2 * HWo * Pp * 4
           + HWo * Pp * bf + HWo * Op * 4)
    vmem_limit = int(min(max(2 * est, 32 * 1024 * 1024), 48 * 1024 * 1024))

    kernel = functools.partial(_bottleneck_kernel, H=H, W=W, has_proj=has_proj)
    out = pl.pallas_call(
        kernel,
        out_shape=jax.ShapeDtypeStruct((N, HWo, Op), jnp.bfloat16),
        grid=(N,),
        in_specs=in_specs,
        out_specs=pl.BlockSpec((1, HWo, Op), lambda n: (n, 0, 0)),
        compiler_params=pltpu.CompilerParams(
            dimension_semantics=("parallel",),
            vmem_limit_bytes=vmem_limit),
    )(*args)

    # Junk-column slice, stride subsample (exact: everything after the 3x3 conv is
    # pointwise), channel slice, NCHW transpose and the f32 cast fuse into one pass.
    # TODO(synk): for stride>1 blocks subsample before conv3 inside the kernel, and add
    #             a row-tile grid axis for very large H*W on v7x; not needed here.
    out = out.reshape(N, H, Wp, Op)[:, ::stride, :W:stride, :out_planes]
    return jnp.transpose(out, (0, 3, 1, 2)).astype(jnp.float32)


def bottleneck_robust_forward(x_nchw, kp):
    common = dict(stride=kp["stride"], has_proj=kp["has_proj"],
                  out_planes=kp["out_planes"])
    try:
        return _forward_jit(x_nchw, kp["arrays"],
                            single_buffer_weights=True, **common)
    except Exception:
        # pl.Buffered(1) not supported on this jax/libtpu -> plain double-buffering.
        return _forward_jit(x_nchw, kp["arrays"],
                            single_buffer_weights=False, **common)


# ---------------------------------------------------------------------------
# Parameter setup: fold eval-mode BN into weights, pad to lane-dense, cast bf16
# ---------------------------------------------------------------------------
def _fold_bn(gamma, beta, mean, var, eps=EPS):
    scale = gamma / jnp.sqrt(var + eps)
    return scale, beta - mean * scale


def init_block_params(key, in_planes, planes, stride, expansion=4):
    out_planes = expansion * planes
    has_proj = (stride != 1) or (in_planes != out_planes)
    Pp = _round_up(planes, LANE)
    Op = _round_up(out_planes, LANE)
    Ck = _round_up(in_planes + 1, LANE)        # +1: interior-indicator / bias channel

    ks = jax.random.split(key, 8)

    def conv_w(k, kh, kw, cin, cout):
        fan_in = kh * kw * cin
        return jax.random.normal(k, (kh, kw, cin, cout), jnp.float32) / np.sqrt(fan_in)

    def bn(k, c):
        k1, k2, k3, k4 = jax.random.split(k, 4)
        gamma = 1.0 + 0.1 * jax.random.normal(k1, (c,), jnp.float32)
        beta = 0.1 * jax.random.normal(k2, (c,), jnp.float32)
        mean = 0.1 * jax.random.normal(k3, (c,), jnp.float32)
        var = jax.random.uniform(k4, (c,), jnp.float32, minval=0.5, maxval=1.5)
        return _fold_bn(gamma, beta, mean, var)

    w1 = conv_w(ks[0], 1, 1, in_planes, planes)
    w2 = conv_w(ks[1], 3, 3, planes, planes)
    w3 = conv_w(ks[2], 1, 1, planes, out_planes)
    s1, b1 = bn(ks[3], planes)
    s2, b2 = bn(ks[4], planes)
    s3, b3 = bn(ks[5], out_planes)

    w1f = w1[0, 0] * s1[None, :]                       # (in_planes, planes)
    w2f = w2 * s2[None, None, None, :]                 # (3, 3, planes, planes)
    w3f = w3[0, 0] * s3[None, :]                       # (planes, out_planes)

    # conv1 weight with bn1 bias folded into the interior-indicator channel row.
    w1a = jnp.zeros((Ck, Pp), jnp.float32)
    w1a = w1a.at[:in_planes, :planes].set(w1f)
    w1a = w1a.at[in_planes, :planes].set(b1)

    # conv2 weights: for each kh, stack the three kw taps along K (lane-concat operand).
    def pad_tap(t):
        return jnp.pad(t, ((0, Pp - planes), (0, Pp - planes)))
    w2a = jnp.stack([jnp.concatenate([pad_tap(w2f[kh, kw]) for kw in range(3)], axis=0)
                     for kh in range(3)], axis=0)      # (3, 3*Pp, Pp)

    w3a = jnp.pad(w3f, ((0, Pp - planes), (0, Op - out_planes)))

    arrays = {
        "w1": w1a.astype(jnp.bfloat16),
        "w2": w2a.astype(jnp.bfloat16),
        "b2": jnp.pad(b2[None, :], ((0, 0), (0, Pp - planes))),
        "w3": w3a.astype(jnp.bfloat16),
        "b3": jnp.pad(b3[None, :], ((0, 0), (0, Op - out_planes))),
    }

    ref = {
        "stride": stride, "has_proj": has_proj,
        "w1": w1f[None, None].astype(jnp.bfloat16), "b1": b1,
        "w2": w2f.astype(jnp.bfloat16), "b2": b2,
        "w3": w3f[None, None].astype(jnp.bfloat16), "b3": b3,
    }
    if has_proj:
        wsc = conv_w(ks[6], 1, 1, in_planes, out_planes)
        ssc, bsc = bn(ks[7], out_planes)
        wscf = wsc[0, 0] * ssc[None, :]
        wsca = jnp.zeros((Ck, Op), jnp.float32)
        wsca = wsca.at[:in_planes, :out_planes].set(wscf)
        wsca = wsca.at[in_planes, :out_planes].set(bsc)   # fold shortcut-BN bias
        arrays["wsc"] = wsca.astype(jnp.bfloat16)
        ref["wsc"] = wscf[None, None].astype(jnp.bfloat16)
        ref["bsc"] = bsc

    kp = {"stride": stride, "has_proj": has_proj, "out_planes": out_planes,
          "arrays": arrays}
    return kp, ref


# ---------------------------------------------------------------------------
# Pure-JAX reference (same folded bf16 weights / f32 accumulation)
# ---------------------------------------------------------------------------
def reference_forward(x_nchw, ref):
    x = jnp.transpose(x_nchw, (0, 2, 3, 1)).astype(jnp.bfloat16)
    s = ref["stride"]

    def conv(v, w, stride, pad):
        return lax.conv_general_dilated(
            v, w, (stride, stride), pad,
            dimension_numbers=("NHWC", "HWIO", "NHWC"),
            preferred_element_type=jnp.float32)

    t1 = jnp.maximum(conv(x, ref["w1"], 1, "VALID") + ref["b1"], 0.0).astype(jnp.bfloat16)
    t2 = jnp.maximum(conv(t1, ref["w2"], s, ((1, 1), (1, 1))) + ref["b2"], 0.0
                     ).astype(jnp.bfloat16)
    out = conv(t2, ref["w3"], 1, "VALID") + ref["b3"]
    if ref["has_proj"]:
        sc = conv(x, ref["wsc"], s, "VALID") + ref["bsc"]
    else:
        sc = x.astype(jnp.float32)
    out = jnp.maximum(out + sc, 0.0)
    return jnp.transpose(out, (0, 3, 1, 2))


if __name__ == "__main__":
    key = jax.random.PRNGKey(0)
    N, H, W = 2, 16, 16
    configs = [
        (16, 8, 1),   # projection shortcut, stride 1 (primary config)
        (16, 8, 2),   # projection shortcut, stride 2
        (32, 8, 1),   # identity shortcut (in_planes == 4*planes)
    ]
    for idx, (in_planes, planes, stride) in enumerate(configs):
        kx, kparams = jax.random.split(jax.random.fold_in(key, idx))
        x = jax.random.normal(kx, (N, in_planes, H, W), jnp.float32)  # NCHW
        kp, ref = init_block_params(kparams, in_planes, planes, stride)

        out = jax.block_until_ready(bottleneck_robust_forward(x, kp))
        expect = jax.block_until_ready(reference_forward(x, ref))

        Ho = (H + 2 - 3) // stride + 1
        assert out.shape == (N, 4 * planes, Ho, Ho), out.shape
        err = float(jnp.max(jnp.abs(out - expect)))
        assert jnp.allclose(out, expect, atol=2e-2, rtol=2e-2), err

    print("KERNEL_OK")
</pallas_src>

<mosaic_0001>
module attributes {stable_mosaic.version = 11 : i64} {
  func.func @_bottleneck_kernel(%arg0: i32, %arg1: memref<1x328x128xbf16, #tpu.memory_space<vmem>>, %arg2: memref<128x128xbf16, #tpu.memory_space<vmem>>, %arg3: memref<3x384x128xbf16, #tpu.memory_space<vmem>>, %arg4: memref<1x128xf32, #tpu.memory_space<vmem>>, %arg5: memref<128x128xbf16, #tpu.memory_space<vmem>>, %arg6: memref<1x128xf32, #tpu.memory_space<vmem>>, %arg7: memref<128x128xbf16, #tpu.memory_space<vmem>>, %arg8: memref<1x288x128xbf16, #tpu.memory_space<vmem>>) attributes {dimension_semantics = [#tpu.dimension_semantics<parallel>], iteration_bounds = array<i64: 2>, scalar_prefetch = 0 : i64, scratch_operands = 0 : i64, tpu.core_type = #tpu.core_type<tc>, window_params = [{transform_indices = @transform_0, window_bounds = array<i64: 1, 328, 128>}, {pipeline_mode = #tpu.pipeline_mode<synchronous>, transform_indices = @transform_1, window_bounds = array<i64: 128, 128>}, {pipeline_mode = #tpu.pipeline_mode<synchronous>, transform_indices = @transform_2, window_bounds = array<i64: 3, 384, 128>}, {pipeline_mode = #tpu.pipeline_mode<synchronous>, transform_indices = @transform_3, window_bounds = array<i64: 1, 128>}, {pipeline_mode = #tpu.pipeline_mode<synchronous>, transform_indices = @transform_4, window_bounds = array<i64: 128, 128>}, {pipeline_mode = #tpu.pipeline_mode<synchronous>, transform_indices = @transform_5, window_bounds = array<i64: 1, 128>}, {pipeline_mode = #tpu.pipeline_mode<synchronous>, transform_indices = @transform_6, window_bounds = array<i64: 128, 128>}, {transform_indices = @transform_7, window_bounds = array<i64: 1, 288, 128>}]} {
    %c0 = arith.constant 0 : index
    %c0_0 = arith.constant 0 : index
    %c0_1 = arith.constant 0 : index
    %0 = vector.load %arg1[%c0, %c0_0, %c0_1] : memref<1x328x128xbf16, #tpu.memory_space<vmem>>, vector<1x328x128xbf16>
    %1 = vector.shape_cast %0 : vector<1x328x128xbf16> to vector<328x128xbf16>
    %c0_2 = arith.constant 0 : index
    %c0_3 = arith.constant 0 : index
    %2 = vector.load %arg2[%c0_2, %c0_3] : memref<128x128xbf16, #tpu.memory_space<vmem>>, vector<128x128xbf16>
    %cst = arith.constant dense<0.000000e+00> : vector<328x128xf32>
    %3 = tpu.matmul %1, %2, %cst {dimension_numbers = #tpu.dot_dimension_numbers<[1], [0], [0], [1], [0, 0, 1, 1], [], []>} : vector<328x128xbf16>, vector<128x128xbf16>, vector<328x128xf32> -> vector<328x128xf32>
    %cst_4 = arith.constant 0.000000e+00 : f32
    %4 = vector.broadcast %cst_4 : f32 to vector<328x128xf32>
    %5 = arith.maximumf %3, %4 : vector<328x128xf32>
    %6 = arith.truncf %5 : vector<328x128xf32> to vector<328x128xbf16>
    %7 = vector.extract_strided_slice %6 {offsets = [0, 0], sizes = [288, 128], strides = [1, 1]} : vector<328x128xbf16> to vector<288x128xbf16>
    %8 = vector.extract_strided_slice %6 {offsets = [1, 0], sizes = [288, 128], strides = [1, 1]} : vector<328x128xbf16> to vector<288x128xbf16>
    %9 = vector.extract_strided_slice %6 {offsets = [2, 0], sizes = [288, 128], strides = [1, 1]} : vector<328x128xbf16> to vector<288x128xbf16>
    %10 = tpu.concatenate %7, %8, %9 in 1 : vector<288x128xbf16>, vector<288x128xbf16>, vector<288x128xbf16> -> vector<288x384xbf16>
    %c0_5 = arith.constant 0 : index
    %c0_6 = arith.constant 0 : index
    %c0_7 = arith.constant 0 : index
    %11 = vector.load %arg3[%c0_5, %c0_6, %c0_7] : memref<3x384x128xbf16, #tpu.memory_space<vmem>>, vector<1x384x128xbf16>
    %12 = vector.shape_cast %11 : vector<1x384x128xbf16> to vector<384x128xbf16>
    %cst_8 = arith.constant dense<0.000000e+00> : vector<288x128xf32>
    %13 = tpu.matmul %10, %12, %cst_8 {dimension_numbers = #tpu.dot_dimension_numbers<[1], [0], [0], [1], [0, 0, 1, 1], [], []>} : vector<288x384xbf16>, vector<384x128xbf16>, vector<288x128xf32> -> vector<288x128xf32>
    %14 = vector.extract_strided_slice %6 {offsets = [18, 0], sizes = [288, 128], strides = [1, 1]} : vector<328x128xbf16> to vector<288x128xbf16>
    %15 = vector.extract_strided_slice %6 {offsets = [19, 0], sizes = [288, 128], strides = [1, 1]} : vector<328x128xbf16> to vector<288x128xbf16>
    %16 = vector.extract_strided_slice %6 {offsets = [20, 0], sizes = [288, 128], strides = [1, 1]} : vector<328x128xbf16> to vector<288x128xbf16>
    %17 = tpu.concatenate %14, %15, %16 in 1 : vector<288x128xbf16>, vector<288x128xbf16>, vector<288x128xbf16> -> vector<288x384xbf16>
    %c1 = arith.constant 1 : index
    %c0_9 = arith.constant 0 : index
    %c0_10 = arith.constant 0 : index
    %18 = vector.load %arg3[%c1, %c0_9, %c0_10] : memref<3x384x128xbf16, #tpu.memory_space<vmem>>, vector<1x384x128xbf16>
    %19 = vector.shape_cast %18 : vector<1x384x128xbf16> to vector<384x128xbf16>
    %cst_11 = arith.constant dense<0.000000e+00> : vector<288x128xf32>
    %20 = tpu.matmul %17, %19, %cst_11 {dimension_numbers = #tpu.dot_dimension_numbers<[1], [0], [0], [1], [0, 0, 1, 1], [], []>} : vector<288x384xbf16>, vector<384x128xbf16>, vector<288x128xf32> -> vector<288x128xf32>
    %21 = arith.addf %13, %20 : vector<288x128xf32>
    %22 = vector.extract_strided_slice %6 {offsets = [36, 0], sizes = [288, 128], strides = [1, 1]} : vector<328x128xbf16> to vector<288x128xbf16>
    %23 = vector.extract_strided_slice %6 {offsets = [37, 0], sizes = [288, 128], strides = [1, 1]} : vector<328x128xbf16> to vector<288x128xbf16>
    %24 = vector.extract_strided_slice %6 {offsets = [38, 0], sizes = [288, 128], strides = [1, 1]} : vector<328x128xbf16> to vector<288x128xbf16>
    %25 = tpu.concatenate %22, %23, %24 in 1 : vector<288x128xbf16>, vector<288x128xbf16>, vector<288x128xbf16> -> vector<288x384xbf16>
    %c2 = arith.constant 2 : index
    %c0_12 = arith.constant 0 : index
    %c0_13 = arith.constant 0 : index
    %26 = vector.load %arg3[%c2, %c0_12, %c0_13] : memref<3x384x128xbf16, #tpu.memory_space<vmem>>, vector<1x384x128xbf16>
    %27 = vector.shape_cast %26 : vector<1x384x128xbf16> to vector<384x128xbf16>
    %cst_14 = arith.constant dense<0.000000e+00> : vector<288x128xf32>
    %28 = tpu.matmul %25, %27, %cst_14 {dimension_numbers = #tpu.dot_dimension_numbers<[1], [0], [0], [1], [0, 0, 1, 1], [], []>} : vector<288x384xbf16>, vector<384x128xbf16>, vector<288x128xf32> -> vector<288x128xf32>
    %29 = arith.addf %21, %28 : vector<288x128xf32>
    %c0_15 = arith.constant 0 : index
    %c0_16 = arith.constant 0 : index
    %30 = vector.load %arg4[%c0_15, %c0_16] : memref<1x128xf32, #tpu.memory_space<vmem>>, vector<1x128xf32>
    %31 = vector.broadcast %30 : vector<1x128xf32> to vector<288x128xf32>
    %32 = arith.addf %29, %31 : vector<288x128xf32>
    %cst_17 = arith.constant 0.000000e+00 : f32
    %33 = vector.broadcast %cst_17 : f32 to vector<288x128xf32>
    %34 = arith.maximumf %32, %33 : vector<288x128xf32>
    %35 = arith.truncf %34 : vector<288x128xf32> to vector<288x128xbf16>
    %c0_18 = arith.constant 0 : index
    %c0_19 = arith.constant 0 : index
    %36 = vector.load %arg5[%c0_18, %c0_19] : memref<128x128xbf16, #tpu.memory_space<vmem>>, vector<128x128xbf16>
    %cst_20 = arith.constant dense<0.000000e+00> : vector<288x128xf32>
    %37 = tpu.matmul %35, %36, %cst_20 {dimension_numbers = #tpu.dot_dimension_numbers<[1], [0], [0], [1], [0, 0, 1, 1], [], []>} : vector<288x128xbf16>, vector<128x128xbf16>, vector<288x128xf32> -> vector<288x128xf32>
    %c0_21 = arith.constant 0 : index
    %c0_22 = arith.constant 0 : index
    %38 = vector.load %arg6[%c0_21, %c0_22] : memref<1x128xf32, #tpu.memory_space<vmem>>, vector<1x128xf32>
    %39 = vector.broadcast %38 : vector<1x128xf32> to vector<288x128xf32>
    %40 = arith.addf %37, %39 : vector<288x128xf32>
    %41 = vector.extract_strided_slice %1 {offsets = [19, 0], sizes = [288, 128], strides = [1, 1]} : vector<328x128xbf16> to vector<288x128xbf16>
    %c0_23 = arith.constant 0 : index
    %c0_24 = arith.constant 0 : index
    %42 = vector.load %arg7[%c0_23, %c0_24] : memref<128x128xbf16, #tpu.memory_space<vmem>>, vector<128x128xbf16>
    %cst_25 = arith.constant dense<0.000000e+00> : vector<288x128xf32>
    %43 = tpu.matmul %41, %42, %cst_25 {dimension_numbers = #tpu.dot_dimension_numbers<[1], [0], [0], [1], [0, 0, 1, 1], [], []>} : vector<288x128xbf16>, vector<128x128xbf16>, vector<288x128xf32> -> vector<288x128xf32>
    %44 = arith.addf %40, %43 : vector<288x128xf32>
    %cst_26 = arith.constant 0.000000e+00 : f32
    %45 = vector.broadcast %cst_26 : f32 to vector<288x128xf32>
    %46 = arith.maximumf %44, %45 : vector<288x128xf32>
    %47 = vector.shape_cast %46 : vector<288x128xf32> to vector<1x288x128xf32>
    %48 = arith.truncf %47 : vector<1x288x128xf32> to vector<1x288x128xbf16>
    %c0_27 = arith.constant 0 : index
    %c0_28 = arith.constant 0 : index
    %c0_29 = arith.constant 0 : index
    %49 = vector.load %arg8[%c0_27, %c0_28, %c0_29] : memref<1x288x128xbf16, #tpu.memory_space<vmem>>, vector<1x288x128xbf16>
    tpu.vector_store %arg8[%c0_27, %c0_28, %c0_29], %48 {strides = array<i32>} : memref<1x288x128xbf16, #tpu.memory_space<vmem>>, vector<1x288x128xbf16>,
    return
  }
  func.func @transform_0(%arg0: i32) -> (i32, i32, i32) {
    %c0_i32 = arith.constant 0 : i32
    %c0_i32_0 = arith.constant 0 : i32
    %c0_i32_1 = arith.constant 0 : i32
    return %arg0, %c0_i32, %c0_i32_0 : i32, i32, i32
  }
  func.func @transform_1(%arg0: i32) -> (i32, i32) {
    %c0_i32 = arith.constant 0 : i32
    %c0_i32_0 = arith.constant 0 : i32
    %c0_i32_1 = arith.constant 0 : i32
    return %c0_i32, %c0_i32_0 : i32, i32
  }
  func.func @transform_2(%arg0: i32) -> (i32, i32, i32) {
    %c0_i32 = arith.constant 0 : i32
    %c0_i32_0 = arith.constant 0 : i32
    %c0_i32_1 = arith.constant 0 : i32
    %c0_i32_2 = arith.constant 0 : i32
    return %c0_i32, %c0_i32_0, %c0_i32_1 : i32, i32, i32
  }
  func.func @transform_3(%arg0: i32) -> (i32, i32) {
    %c0_i32 = arith.constant 0 : i32
    %c0_i32_0 = arith.constant 0 : i32
    %c0_i32_1 = arith.constant 0 : i32
    return %c0_i32, %c0_i32_0 : i32, i32
  }
  func.func @transform_4(%arg0: i32) -> (i32, i32) {
    %c0_i32 = arith.constant 0 : i32
    %c0_i32_0 = arith.constant 0 : i32
    %c0_i32_1 = arith.constant 0 : i32
    return %c0_i32, %c0_i32_0 : i32, i32
  }
  func.func @transform_5(%arg0: i32) -> (i32, i32) {
    %c0_i32 = arith.constant 0 : i32
    %c0_i32_0 = arith.constant 0 : i32
    %c0_i32_1 = arith.constant 0 : i32
    return %c0_i32, %c0_i32_0 : i32, i32
  }
  func.func @transform_6(%arg0: i32) -> (i32, i32) {
    %c0_i32 = arith.constant 0 : i32
    %c0_i32_0 = arith.constant 0 : i32
    %c0_i32_1 = arith.constant 0 : i32
    return %c0_i32, %c0_i32_0 : i32, i32
  }
  func.func @transform_7(%arg0: i32) -> (i32, i32, i32) {
    %c0_i32 = arith.constant 0 : i32
    %c0_i32_0 = arith.constant 0 : i32
    %c0_i32_1 = arith.constant 0 : i32
    return %arg0, %c0_i32, %c0_i32_0 : i32, i32, i32
  }
}

module attributes {stable_mosaic.version = 11 : i64} {
  func.func @_bottleneck_kernel(%arg0: i32, %arg1: memref<1x328x128xbf16, #tpu.memory_space<vmem>>, %arg2: memref<128x128xbf16, #tpu.memory_space<vmem>>, %arg3: memref<3x384x128xbf16, #tpu.memory_space<vmem>>, %arg4: memref<1x128xf32, #tpu.memory_space<vmem>>, %arg5: memref<128x128xbf16, #tpu.memory_space<vmem>>, %arg6: memref<1x128xf32, #tpu.memory_space<vmem>>, %arg7: memref<128x128xbf16, #tpu.memory_space<vmem>>, %arg8: memref<1x288x128xbf16, #tpu.memory_space<vmem>>) attributes {dimension_semantics = [#tpu.dimension_semantics<parallel>], iteration_bounds = array<i64: 2>, scalar_prefetch = 0 : i64, scratch_operands = 0 : i64, tpu.core_type = #tpu.core_type<tc>, window_params = [{transform_indices = @transform_0, window_bounds = array<i64: 1, 328, 128>}, {pipeline_mode = #tpu.pipeline_mode<synchronous>, transform_indices = @transform_1, window_bounds = array<i64: 128, 128>}, {pipeline_mode = #tpu.pipeline_mode<synchronous>, transform_indices = @transform_2, window_bounds = array<i64: 3, 384, 128>}, {pipeline_mode = #tpu.pipeline_mode<synchronous>, transform_indices = @transform_3, window_bounds = array<i64: 1, 128>}, {pipeline_mode = #tpu.pipeline_mode<synchronous>, transform_indices = @transform_4, window_bounds = array<i64: 128, 128>}, {pipeline_mode = #tpu.pipeline_mode<synchronous>, transform_indices = @transform_5, window_bounds = array<i64: 1, 128>}, {pipeline_mode = #tpu.pipeline_mode<synchronous>, transform_indices = @transform_6, window_bounds = array<i64: 128, 128>}, {transform_indices = @transform_7, window_bounds = array<i64: 1, 288, 128>}]} {
    %c0 = arith.constant 0 : index
    %c0_0 = arith.constant 0 : index
    %c0_1 = arith.constant 0 : index
    %0 = vector.load %arg1[%c0, %c0_0, %c0_1] : memref<1x328x128xbf16, #tpu.memory_space<vmem>>, vector<1x328x128xbf16>
    %1 = vector.shape_cast %0 : vector<1x328x128xbf16> to vector<328x128xbf16>
    %c0_2 = arith.constant 0 : index
    %c0_3 = arith.constant 0 : index
    %2 = vector.load %arg2[%c0_2, %c0_3] : memref<128x128xbf16, #tpu.memory_space<vmem>>, vector<128x128xbf16>
    %cst = arith.constant dense<0.000000e+00> : vector<328x128xf32>
    %3 = tpu.matmul %1, %2, %cst {dimension_numbers = #tpu.dot_dimension_numbers<[1], [0], [0], [1], [0, 0, 1, 1], [], []>} : vector<328x128xbf16>, vector<128x128xbf16>, vector<328x128xf32> -> vector<328x128xf32>
    %cst_4 = arith.constant 0.000000e+00 : f32
    %4 = vector.broadcast %cst_4 : f32 to vector<328x128xf32>
    %5 = arith.maximumf %3, %4 : vector<328x128xf32>
    %6 = arith.truncf %5 : vector<328x128xf32> to vector<328x128xbf16>
    %7 = vector.extract_strided_slice %6 {offsets = [0, 0], sizes = [288, 128], strides = [1, 1]} : vector<328x128xbf16> to vector<288x128xbf16>
    %8 = vector.extract_strided_slice %6 {offsets = [1, 0], sizes = [288, 128], strides = [1, 1]} : vector<328x128xbf16> to vector<288x128xbf16>
    %9 = vector.extract_strided_slice %6 {offsets = [2, 0], sizes = [288, 128], strides = [1, 1]} : vector<328x128xbf16> to vector<288x128xbf16>
    %10 = tpu.concatenate %7, %8, %9 in 1 : vector<288x128xbf16>, vector<288x128xbf16>, vector<288x128xbf16> -> vector<288x384xbf16>
    %c0_5 = arith.constant 0 : index
    %c0_6 = arith.constant 0 : index
    %c0_7 = arith.constant 0 : index
    %11 = vector.load %arg3[%c0_5, %c0_6, %c0_7] : memref<3x384x128xbf16, #tpu.memory_space<vmem>>, vector<1x384x128xbf16>
    %12 = vector.shape_cast %11 : vector<1x384x128xbf16> to vector<384x128xbf16>
    %cst_8 = arith.constant dense<0.000000e+00> : vector<288x128xf32>
    %13 = tpu.matmul %10, %12, %cst_8 {dimension_numbers = #tpu.dot_dimension_numbers<[1], [0], [0], [1], [0, 0, 1, 1], [], []>} : vector<288x384xbf16>, vector<384x128xbf16>, vector<288x128xf32> -> vector<288x128xf32>
    %14 = vector.extract_strided_slice %6 {offsets = [18, 0], sizes = [288, 128], strides = [1, 1]} : vector<328x128xbf16> to vector<288x128xbf16>
    %15 = vector.extract_strided_slice %6 {offsets = [19, 0], sizes = [288, 128], strides = [1, 1]} : vector<328x128xbf16> to vector<288x128xbf16>
    %16 = vector.extract_strided_slice %6 {offsets = [20, 0], sizes = [288, 128], strides = [1, 1]} : vector<328x128xbf16> to vector<288x128xbf16>
    %17 = tpu.concatenate %14, %15, %16 in 1 : vector<288x128xbf16>, vector<288x128xbf16>, vector<288x128xbf16> -> vector<288x384xbf16>
    %c1 = arith.constant 1 : index
    %c0_9 = arith.constant 0 : index
    %c0_10 = arith.constant 0 : index
    %18 = vector.load %arg3[%c1, %c0_9, %c0_10] : memref<3x384x128xbf16, #tpu.memory_space<vmem>>, vector<1x384x128xbf16>
    %19 = vector.shape_cast %18 : vector<1x384x128xbf16> to vector<384x128xbf16>
    %cst_11 = arith.constant dense<0.000000e+00> : vector<288x128xf32>
    %20 = tpu.matmul %17, %19, %cst_11 {dimension_numbers = #tpu.dot_dimension_numbers<[1], [0], [0], [1], [0, 0, 1, 1], [], []>} : vector<288x384xbf16>, vector<384x128xbf16>, vector<288x128xf32> -> vector<288x128xf32>
    %21 = arith.addf %13, %20 : vector<288x128xf32>
    %22 = vector.extract_strided_slice %6 {offsets = [36, 0], sizes = [288, 128], strides = [1, 1]} : vector<328x128xbf16> to vector<288x128xbf16>
    %23 = vector.extract_strided_slice %6 {offsets = [37, 0], sizes = [288, 128], strides = [1, 1]} : vector<328x128xbf16> to vector<288x128xbf16>
    %24 = vector.extract_strided_slice %6 {offsets = [38, 0], sizes = [288, 128], strides = [1, 1]} : vector<328x128xbf16> to vector<288x128xbf16>
    %25 = tpu.concatenate %22, %23, %24 in 1 : vector<288x128xbf16>, vector<288x128xbf16>, vector<288x128xbf16> -> vector<288x384xbf16>
    %c2 = arith.constant 2 : index
    %c0_12 = arith.constant 0 : index
    %c0_13 = arith.constant 0 : index
    %26 = vector.load %arg3[%c2, %c0_12, %c0_13] : memref<3x384x128xbf16, #tpu.memory_space<vmem>>, vector<1x384x128xbf16>
    %27 = vector.shape_cast %26 : vector<1x384x128xbf16> to vector<384x128xbf16>
    %cst_14 = arith.constant dense<0.000000e+00> : vector<288x128xf32>
    %28 = tpu.matmul %25, %27, %cst_14 {dimension_numbers = #tpu.dot_dimension_numbers<[1], [0], [0], [1], [0, 0, 1, 1], [], []>} : vector<288x384xbf16>, vector<384x128xbf16>, vector<288x128xf32> -> vector<288x128xf32>
    %29 = arith.addf %21, %28 : vector<288x128xf32>
    %c0_15 = arith.constant 0 : index
    %c0_16 = arith.constant 0 : index
    %30 = vector.load %arg4[%c0_15, %c0_16] : memref<1x128xf32, #tpu.memory_space<vmem>>, vector<1x128xf32>
    %31 = vector.broadcast %30 : vector<1x128xf32> to vector<288x128xf32>
    %32 = arith.addf %29, %31 : vector<288x128xf32>
    %cst_17 = arith.constant 0.000000e+00 : f32
    %33 = vector.broadcast %cst_17 : f32 to vector<288x128xf32>
    %34 = arith.maximumf %32, %33 : vector<288x128xf32>
    %35 = arith.truncf %34 : vector<288x128xf32> to vector<288x128xbf16>
    %c0_18 = arith.constant 0 : index
    %c0_19 = arith.constant 0 : index
    %36 = vector.load %arg5[%c0_18, %c0_19] : memref<128x128xbf16, #tpu.memory_space<vmem>>, vector<128x128xbf16>
    %cst_20 = arith.constant dense<0.000000e+00> : vector<288x128xf32>
    %37 = tpu.matmul %35, %36, %cst_20 {dimension_numbers = #tpu.dot_dimension_numbers<[1], [0], [0], [1], [0, 0, 1, 1], [], []>} : vector<288x128xbf16>, vector<128x128xbf16>, vector<288x128xf32> -> vector<288x128xf32>
    %c0_21 = arith.constant 0 : index
    %c0_22 = arith.constant 0 : index
    %38 = vector.load %arg6[%c0_21, %c0_22] : memref<1x128xf32, #tpu.memory_space<vmem>>, vector<1x128xf32>
    %39 = vector.broadcast %38 : vector<1x128xf32> to vector<288x128xf32>
    %40 = arith.addf %37, %39 : vector<288x128xf32>
    %41 = vector.extract_strided_slice %1 {offsets = [19, 0], sizes = [288, 128], strides = [1, 1]} : vector<328x128xbf16> to vector<288x128xbf16>
    %c0_23 = arith.constant 0 : index
    %c0_24 = arith.constant 0 : index
    %42 = vector.load %arg7[%c0_23, %c0_24] : memref<128x128xbf16, #tpu.memory_space<vmem>>, vector<128x128xbf16>
    %cst_25 = arith.constant dense<0.000000e+00> : vector<288x128xf32>
    %43 = tpu.matmul %41, %42, %cst_25 {dimension_numbers = #tpu.dot_dimension_numbers<[1], [0], [0], [1], [0, 0, 1, 1], [], []>} : vector<288x128xbf16>, vector<128x128xbf16>, vector<288x128xf32> -> vector<288x128xf32>
    %44 = arith.addf %40, %43 : vector<288x128xf32>
    %cst_26 = arith.constant 0.000000e+00 : f32
    %45 = vector.broadcast %cst_26 : f32 to vector<288x128xf32>
    %46 = arith.maximumf %44, %45 : vector<288x128xf32>
    %47 = vector.shape_cast %46 : vector<288x128xf32> to vector<1x288x128xf32>
    %48 = arith.truncf %47 : vector<1x288x128xf32> to vector<1x288x128xbf16>
    %c0_27 = arith.constant 0 : index
    %c0_28 = arith.constant 0 : index
    %c0_29 = arith.constant 0 : index
    %49 = vector.load %arg8[%c0_27, %c0_28, %c0_29] : memref<1x288x128xbf16, #tpu.memory_space<vmem>>, vector<1x288x128xbf16>
    tpu.vector_store %arg8[%c0_27, %c0_28, %c0_29], %48 {strides = array<i32>} : memref<1x288x128xbf16, #tpu.memory_space<vmem>>, vector<1x288x128xbf16>,
    return
  }
  func.func @transform_0(%arg0: i32) -> (i32, i32, i32) {
    %c0_i32 = arith.constant 0 : i32
    %c0_i32_0 = arith.constant 0 : i32
    %c0_i32_1 = arith.constant 0 : i32
    return %arg0, %c0_i32, %c0_i32_0 : i32, i32, i32
  }
  func.func @transform_1(%arg0: i32) -> (i32, i32) {
    %c0_i32 = arith.constant 0 : i32
    %c0_i32_0 = arith.constant 0 : i32
    %c0_i32_1 = arith.constant 0 : i32
    return %c0_i32, %c0_i32_0 : i32, i32
  }
  func.func @transform_2(%arg0: i32) -> (i32, i32, i32) {
    %c0_i32 = arith.constant 0 : i32
    %c0_i32_0 = arith.constant 0 : i32
    %c0_i32_1 = arith.constant 0 : i32
    %c0_i32_2 = arith.constant 0 : i32
    return %c0_i32, %c0_i32_0, %c0_i32_1 : i32, i32, i32
  }
  func.func @transform_3(%arg0: i32) -> (i32, i32) {
    %c0_i32 = arith.constant 0 : i32
    %c0_i32_0 = arith.constant 0 : i32
    %c0_i32_1 = arith.constant 0 : i32
    return %c0_i32, %c0_i32_0 : i32, i32
  }
  func.func @transform_4(%arg0: i32) -> (i32, i32) {
    %c0_i32 = arith.constant 0 : i32
    %c0_i32_0 = arith.constant 0 : i32
    %c0_i32_1 = arith.constant 0 : i32
    return %c0_i32, %c0_i32_0 : i32, i32
  }
  func.func @transform_5(%arg0: i32) -> (i32, i32) {
    %c0_i32 = arith.constant 0 : i32
    %c0_i32_0 = arith.constant 0 : i32
    %c0_i32_1 = arith.constant 0 : i32
    return %c0_i32, %c0_i32_0 : i32, i32
  }
  func.func @transform_6(%arg0: i32) -> (i32, i32) {
    %c0_i32 = arith.constant 0 : i32
    %c0_i32_0 = arith.constant 0 : i32
    %c0_i32_1 = arith.constant 0 : i32
    return %c0_i32, %c0_i32_0 : i32, i32
  }
  func.func @transform_7(%arg0: i32) -> (i32, i32, i32) {
    %c0_i32 = arith.constant 0 : i32
    %c0_i32_0 = arith.constant 0 : i32
    %c0_i32_1 = arith.constant 0 : i32
    return %arg0, %c0_i32, %c0_i32_0 : i32, i32, i32
  }
}

</mosaic_0001>

<llo_original>
// kernel: _forward_jit.1
$region0: #{_forward_jit.1}
  #allocation0 [shape = 'u32[]', space=smem, size = 0x4, offset = 0x4, fixed_abs, tag = 'smem constant byte address 0x4 - core index']
  #allocation1 [shape = 'u32[144,128]{1,0:T(1,128)}', space=vmem, size = 0x12000, scoped, tag = 'internal scratch']
  %s0 = inlined_call_operand.vmem [shape: bf16[2,328,128], index: 0, kind: input, shape index: {}]
  %s1 = inlined_call_operand.vmem [shape: bf16[128,128], index: 1, kind: input, shape index: {}]
  %s2 = inlined_call_operand.vmem [shape: bf16[3,384,128], index: 2, kind: input, shape index: {}]
  %s3 = inlined_call_operand.vmem [shape: f32[1,128], index: 3, kind: input, shape index: {}]
  %s4 = inlined_call_operand.vmem [shape: bf16[128,128], index: 4, kind: input, shape index: {}]
  %s5 = inlined_call_operand.vmem [shape: f32[1,128], index: 5, kind: input, shape index: {}]
  %s6 = inlined_call_operand.vmem [shape: bf16[128,128], index: 6, kind: input, shape index: {}]
  %s7 = inlined_call_operand.vmem [shape: bf16[2,288,128], index: 7, kind: output, shape index: {}]
  %s8 = sld [smem:[#allocation0]]
  $region61: #{_forward_jit.1} parent=0
    _
  %s10 = ssub.s32 1, %s8
  %s11 = scalar_select 0, %s10, %s8
  loop: start=0, step=1, limit=4
  $region2: #{_forward_jit.1} parent=0 // loop_pre_header
    _
  $region3: #{_forward_jit.1} parent=0 // loop_header
    %s13 = sphi 0, %s17
    %p14 = scmp.ge.s32.totalorder %s13, 4
    %s23 = sphi 0, %s25
    %s26 = sphi 0, %s23
    %s27 = sphi 0, %s26
    %s43 = sphi 0, %s27
    %s47 = sphi 0, %s47
    %s49 = sphi 0, %s47
    %s50 = sphi 0, %s49
    %s64 = sphi 0, %s50
    %s68 = sphi 0, %s68
    %s70 = sphi 0, %s68
    %s71 = sphi 0, %s70
    %s85 = sphi 0, %s71
    %s89 = sphi 0, %s89
    %s91 = sphi 0, %s89
    %s92 = sphi 0, %s91
    %s106 = sphi 0, %s92
    %s110 = sphi 0, %s110
    %s112 = sphi 0, %s110
    %s113 = sphi 0, %s112
    %s127 = sphi 0, %s113
    %s131 = sphi 0, %s131
    %s133 = sphi 0, %s131
    %s134 = sphi 0, %s133
    %s148 = sphi 0, %s134
    %s152 = sphi 0, %s152
    %s154 = sphi 0, %s152
    %s155 = sphi 0, %s154
    %s169 = sphi 0, %s155
    %s175 = sphi 0, %s177
    %s178 = sphi 0, %s175
    %s179 = sphi 0, %s178
    %s195 = sphi 0, %s179
  $region4: #{_forward_jit.1} parent=0 // loop_header_branch
    %16 = sbr.rel (%p14) target = $region8
  $region5: #{_forward_jit.1} parent=0 // loop_body
    %s18 = ssub.s32 %s13, 1
    %s19 = ssub.s32 %s13, 2
    %s20 = sadd.s32 %s13, 1
    %s21 = ssub.s32 %s13, %s20
    %p22 = scmp.eq.s32.totalorder %s21, 0
    %s24 = sadd.s32 %s23, 1
    %s25 = scalar_select %p22, %s23, %s24
    %p28 = pneg %p22
    %p29 = scmp.eq.s32.totalorder %s13, 1
    %p30 = por %p28, %p29
    %p31 = scmp.ne.s32.totalorder %s23, %s26
    %p32 = scmp.eq.s32.totalorder %s13, 0
    %p33 = por %p31, %p32
    %p34 = scmp.ne.s32.totalorder %s23, %s26
    %p35 = scmp.eq.s32.totalorder %s18, 1
    %p36 = por %p34, %p35
    %p37 = scmp.ne.s32.totalorder %s26, %s27
    %p38 = scmp.eq.s32.totalorder %s18, 0
    %p39 = por %p37, %p38
    %p40 = scmp.ne.s32.totalorder %s26, %s27
    %p41 = scmp.eq.s32.totalorder %s19, 1
    %p42 = por %p40, %p41
    %p44 = scmp.ne.s32.totalorder %s27, %s43
    %p45 = scmp.eq.s32.totalorder %s19, 0
    %p46 = por %p44, %p45
    %s48 = sadd.s32 %s47, 1
    %p51 = scmp.eq.s32.totalorder %s13, 1
    %p52 = scmp.ne.s32.totalorder %s47, %s49
    %p53 = scmp.eq.s32.totalorder %s13, 0
    %p54 = por %p52, %p53
    %p55 = scmp.ne.s32.totalorder %s47, %s49
    %p56 = scmp.eq.s32.totalorder %s18, 1
    %p57 = por %p55, %p56
    %p58 = scmp.ne.s32.totalorder %s49, %s50
    %p59 = scmp.eq.s32.totalorder %s18, 0
    %p60 = por %p58, %p59
    %p61 = scmp.ne.s32.totalorder %s49, %s50
    %p62 = scmp.eq.s32.totalorder %s19, 1
    %p63 = por %p61, %p62
    %p65 = scmp.ne.s32.totalorder %s50, %s64
    %p66 = scmp.eq.s32.totalorder %s19, 0
    %p67 = por %p65, %p66
    %s69 = sadd.s32 %s68, 1
    %p72 = scmp.eq.s32.totalorder %s13, 1
    %p73 = scmp.ne.s32.totalorder %s68, %s70
    %p74 = scmp.eq.s32.totalorder %s13, 0
    %p75 = por %p73, %p74
    %p76 = scmp.ne.s32.totalorder %s68, %s70
    %p77 = scmp.eq.s32.totalorder %s18, 1
    %p78 = por %p76, %p77
    %p79 = scmp.ne.s32.totalorder %s70, %s71
    %p80 = scmp.eq.s32.totalorder %s18, 0
    %p81 = por %p79, %p80
    %p82 = scmp.ne.s32.totalorder %s70, %s71
    %p83 = scmp.eq.s32.totalorder %s19, 1
    %p84 = por %p82, %p83
    %p86 = scmp.ne.s32.totalorder %s71, %s85
    %p87 = scmp.eq.s32.totalorder %s19, 0
    %p88 = por %p86, %p87
    %s90 = sadd.s32 %s89, 1
    %p93 = scmp.eq.s32.totalorder %s13, 1
    %p94 = scmp.ne.s32.totalorder %s89, %s91
    %p95 = scmp.eq.s32.totalorder %s13, 0
    %p96 = por %p94, %p95
    %p97 = scmp.ne.s32.totalorder %s89, %s91
    %p98 = scmp.eq.s32.totalorder %s18, 1
    %p99 = por %p97, %p98
    %p100 = scmp.ne.s32.totalorder %s91, %s92
    %p101 = scmp.eq.s32.totalorder %s18, 0
    %p102 = por %p100, %p101
    %p103 = scmp.ne.s32.totalorder %s91, %s92
    %p104 = scmp.eq.s32.totalorder %s19, 1
    %p105 = por %p103, %p104
    %p107 = scmp.ne.s32.totalorder %s92, %s106
    %p108 = scmp.eq.s32.totalorder %s19, 0
    %p109 = por %p107, %p108
    %s111 = sadd.s32 %s110, 1
    %p114 = scmp.eq.s32.totalorder %s13, 1
    %p115 = scmp.ne.s32.totalorder %s110, %s112
    %p116 = scmp.eq.s32.totalorder %s13, 0
    %p117 = por %p115, %p116
    %p118 = scmp.ne.s32.totalorder %s110, %s112
    %p119 = scmp.eq.s32.totalorder %s18, 1
    %p120 = por %p118, %p119
    %p121 = scmp.ne.s32.totalorder %s112, %s113
    %p122 = scmp.eq.s32.totalorder %s18, 0
    %p123 = por %p121, %p122
    %p124 = scmp.ne.s32.totalorder %s112, %s113
    %p125 = scmp.eq.s32.totalorder %s19, 1
    %p126 = por %p124, %p125
    %p128 = scmp.ne.s32.totalorder %s113, %s127
    %p129 = scmp.eq.s32.totalorder %s19, 0
    %p130 = por %p128, %p129
    %s132 = sadd.s32 %s131, 1
    %p135 = scmp.eq.s32.totalorder %s13, 1
    %p136 = scmp.ne.s32.totalorder %s131, %s133
    %p137 = scmp.eq.s32.totalorder %s13, 0
    %p138 = por %p136, %p137
    %p139 = scmp.ne.s32.totalorder %s131, %s133
    %p140 = scmp.eq.s32.totalorder %s18, 1
    %p141 = por %p139, %p140
    %p142 = scmp.ne.s32.totalorder %s133, %s134
    %p143 = scmp.eq.s32.totalorder %s18, 0
    %p144 = por %p142, %p143
    %p145 = scmp.ne.s32.totalorder %s133, %s134
    %p146 = scmp.eq.s32.totalorder %s19, 1
    %p147 = por %p145, %p146
    %p149 = scmp.ne.s32.totalorder %s134, %s148
    %p150 = scmp.eq.s32.totalorder %s19, 0
    %p151 = por %p149, %p150
    %s153 = sadd.s32 %s152, 1
    %p156 = scmp.eq.s32.totalorder %s13, 1
    %p157 = scmp.ne.s32.totalorder %s152, %s154
    %p158 = scmp.eq.s32.totalorder %s13, 0
    %p159 = por %p157, %p158
    %p160 = scmp.ne.s32.totalorder %s152, %s154
    %p161 = scmp.eq.s32.totalorder %s18, 1
    %p162 = por %p160, %p161
    %p163 = scmp.ne.s32.totalorder %s154, %s155
    %p164 = scmp.eq.s32.totalorder %s18, 0
    %p165 = por %p163, %p164
    %p166 = scmp.ne.s32.totalorder %s154, %s155
    %p167 = scmp.eq.s32.totalorder %s19, 1
    %p168 = por %p166, %p167
    %p170 = scmp.ne.s32.totalorder %s155, %s169
    %p171 = scmp.eq.s32.totalorder %s19, 0
    %p172 = por %p170, %p171
    %s173 = ssub.s32 %s13, %s20
    %p174 = scmp.eq.s32.totalorder %s173, 0
    %s176 = sadd.s32 %s175, 1
    %s177 = scalar_select %p174, %s175, %s176
    %p180 = pneg %p174
    %p181 = scmp.eq.s32.totalorder %s13, 1
    %p182 = por %p180, %p181
    %p183 = scmp.ne.s32.totalorder %s175, %s178
    %p184 = scmp.eq.s32.totalorder %s13, 0
    %p185 = por %p183, %p184
    %p186 = scmp.ne.s32.totalorder %s175, %s178
    %p187 = scmp.eq.s32.totalorder %s18, 1
    %p188 = por %p186, %p187
    %p189 = scmp.ne.s32.totalorder %s178, %s179
    %p190 = scmp.eq.s32.totalorder %s18, 0
    %p191 = por %p189, %p190
    %p192 = scmp.ne.s32.totalorder %s178, %s179
    %p193 = scmp.eq.s32.totalorder %s19, 1
    %p194 = por %p192, %p193
    %p196 = scmp.ne.s32.totalorder %s179, %s195
    %p197 = scmp.eq.s32.totalorder %s19, 0
    %p198 = por %p196, %p197
    %p199 = scmp.le.s32.totalorder 1, %s13
    %p200 = scmp.lt.s32.totalorder %s13, 3
    %p201 = pnand %p199, %p200
    %p202 = pneg %p201
    // Predicated region
    $region9: #{_forward_jit.1} parent=5 // pred_check
      _
    $region10: #{_forward_jit.1} parent=5 // pred_check_branch
      %204 = sbr.rel (%p201) target = $region12
    $region11: #{_forward_jit.1} parent=5 // pred_region
      %s205 = ssub.s32 %s13, 1
      // Predicated region
      $region13: #{_forward_jit.1} parent=11 // pred_check
        %p206 = pneg %p60
      $region14: #{_forward_jit.1} parent=11 // pred_check_branch
        %208 = sbr.rel (%p206) target = $region16
      $region15: #{_forward_jit.1} parent=11 // pred_region
        _
      $region16: #{_forward_jit.1} parent=11 // pred_fallthru
        _
      // Predicated region
      $region17: #{_forward_jit.1} parent=11 // pred_check
        %p209 = pneg %p81
      $region18: #{_forward_jit.1} parent=11 // pred_check_branch
        %211 = sbr.rel (%p209) target = $region20
      $region19: #{_forward_jit.1} parent=11 // pred_region
        _
      $region20: #{_forward_jit.1} parent=11 // pred_fallthru
        _
      // Predicated region
      $region21: #{_forward_jit.1} parent=11 // pred_check
        %p212 = pneg %p102
      $region22: #{_forward_jit.1} parent=11 // pred_check_branch
        %214 = sbr.rel (%p212) target = $region24
      $region23: #{_forward_jit.1} parent=11 // pred_region
        _
      $region24: #{_forward_jit.1} parent=11 // pred_fallthru
        _
      // Predicated region
      $region25: #{_forward_jit.1} parent=11 // pred_check
        %p215 = pneg %p123
      $region26: #{_forward_jit.1} parent=11 // pred_check_branch
        %217 = sbr.rel (%p215) target = $region28
      $region27: #{_forward_jit.1} parent=11 // pred_region
        _
      $region28: #{_forward_jit.1} parent=11 // pred_fallthru
        _
      // Predicated region
      $region29: #{_forward_jit.1} parent=11 // pred_check
        %p218 = pneg %p144
      $region30: #{_forward_jit.1} parent=11 // pred_check_branch
        %220 = sbr.rel (%p218) target = $region32
      $region31: #{_forward_jit.1} parent=11 // pred_region
        _
      $region32: #{_forward_jit.1} parent=11 // pred_fallthru
        _
      // Predicated region
      $region33: #{_forward_jit.1} parent=11 // pred_check
        %p221 = pneg %p165
      $region34: #{_forward_jit.1} parent=11 // pred_check_branch
        %223 = sbr.rel (%p221) target = $region36
      $region35: #{_forward_jit.1} parent=11 // pred_region
        _
      $region36: #{_forward_jit.1} parent=11 // pred_fallthru
        _
    $region12: #{_forward_jit.1} parent=5 // pred_fallthru
      _
    %p224 = scmp.lt.s32.totalorder %s13, 2
    // Predicated region
    $region37: #{_forward_jit.1} parent=5 // pred_check
      %p225 = pneg %p224
    $region38: #{_forward_jit.1} parent=5 // pred_check_branch
      %227 = sbr.rel (%p225) target = $region40
    $region39: #{_forward_jit.1} parent=5 // pred_region
      // Predicated region
      $region41: #{_forward_jit.1} parent=39 // pred_check
        %p228 = pneg %p33
      $region42: #{_forward_jit.1} parent=39 // pred_check_branch
        %230 = sbr.rel (%p228) target = $region44
      $region43: #{_forward_jit.1} parent=39 // pred_region
        %p231 = scmp.lt.s32.totalorder %s13, 1
        %s232 = scalar_select %p231, %s13, 1
        %s233 = smul.addr %s232, 41
        %s234 = smul.addr %s233, 4
        %s235 = scalar_lea.vmem %s0, %s234
      $region44: #{_forward_jit.1} parent=39 // pred_fallthru
        _
    $region40: #{_forward_jit.1} parent=5 // pred_fallthru
      _
    %p236 = scmp.le.s32.totalorder 1, %s13
    %p237 = scmp.lt.s32.totalorder %s13, 3
    %p238 = pnand %p236, %p237
    %p239 = pneg %p238
    // Predicated region
    $region45: #{_forward_jit.1} parent=5 // pred_check
      _
    $region46: #{_forward_jit.1} parent=5 // pred_check_branch
      %241 = sbr.rel (%p238) target = $region48
    $region47: #{_forward_jit.1} parent=5 // pred_region
      %s242 = ssub.s32 %s13, 1
      %p243 = scmp.lt.s32.totalorder %s18, 1
      %s244 = scalar_select %p243, %s18, 1
      %s245 = smul.addr %s244, 41
      %s246 = smul.addr %s245, 4
      %s247 = scalar_lea.vmem %s0, %s246
      %p248 = pneg %p39
      %p249 = pneg %p36
      %p250 = pneg %p60
      %p251 = pneg %p57
      %p252 = pneg %p81
      %p253 = pneg %p78
      %p254 = pneg %p102
      %p255 = pneg %p99
      %p256 = pneg %p123
      %p257 = pneg %p120
      %p258 = pneg %p144
      %p259 = pneg %p141
      %p260 = pneg %p165
      %p261 = pneg %p162
      %p262 = pneg %p191
      %p263 = pneg %p188
      %p264 = scmp.lt.s32.totalorder %s18, 1
      %s265 = scalar_select %p264, %s18, 1
      %s266 = smul.addr %s265, 36
      %s267 = smul.addr %s266, 4
      %s268 = scalar_lea.vmem %s7, %s267
      %p269 = scmp.lt.s32.totalorder %s18, 1
      %s270 = scalar_select %p269, %s18, 1
      %s271 = smul.addr %s270, 41
      %s272 = smul.addr %s271, 4
      %s273 = scalar_lea.vmem %s0, %s272
      %p274 = scmp.lt.s32.totalorder %s18, 1
      %s275 = scalar_select %p274, %s18, 1
      %s276 = smul.addr %s275, 36
      %s277 = smul.addr %s276, 4
      %s278 = scalar_lea.vmem %s7, %s277
      %v280 = vld [vmem:[%s273] sm:$0xf]
      %v281 = vld [vmem:[%s273 + $0x4] sm:$0xf]
      %v282 = vld [vmem:[%s273 + $0x8] sm:$0xf]
      %v283 = vld [vmem:[%s273 + $0xc] sm:$0xf]
      %v284 = vld [vmem:[%s273 + $0x10] sm:$0xf]
      %v285 = vld [vmem:[%s273 + $0x14] sm:$0xf]
      %v286 = vld [vmem:[%s273 + $0x18] sm:$0xf]
      %v287 = vld [vmem:[%s273 + $0x1c] sm:$0xf]
      %v288 = vld [vmem:[%s273 + $0x20] sm:$0xf]
      %v289 = vld [vmem:[%s273 + $0x24] sm:$0xf]
      %v290 = vld [vmem:[%s273 + $0x28] sm:$0xf]
      %v291 = vld [vmem:[%s273 + $0x2c] sm:$0xf]
      %v292 = vld [vmem:[%s273 + $0x30] sm:$0xf]
      %v293 = vld [vmem:[%s273 + $0x34] sm:$0xf]
      %v294 = vld [vmem:[%s273 + $0x38] sm:$0xf]
      %v295 = vld [vmem:[%s273 + $0x3c] sm:$0xf]
      %v296 = vld [vmem:[%s273 + $0x40] sm:$0xf]
      %v297 = vld [vmem:[%s273 + $0x44] sm:$0xf]
      %v298 = vld [vmem:[%s273 + $0x48] sm:$0xf]
      %v299 = vld [vmem:[%s273 + $0x4c] sm:$0xf]
      %v300 = vld [vmem:[%s273 + $0x50] sm:$0xf]
      %v301 = vld [vmem:[%s273 + $0x54] sm:$0xf]
      %v302 = vld [vmem:[%s273 + $0x58] sm:$0xf]
      %v303 = vld [vmem:[%s273 + $0x5c] sm:$0xf]
      %v304 = vld [vmem:[%s273 + $0x60] sm:$0xf]
      %v305 = vld [vmem:[%s273 + $0x64] sm:$0xf]
      %v306 = vld [vmem:[%s273 + $0x68] sm:$0xf]
      %v307 = vld [vmem:[%s273 + $0x6c] sm:$0xf]
      %v308 = vld [vmem:[%s273 + $0x70] sm:$0xf]
      %v309 = vld [vmem:[%s273 + $0x74] sm:$0xf]
      %v310 = vld [vmem:[%s273 + $0x78] sm:$0xf]
      %v311 = vld [vmem:[%s273 + $0x7c] sm:$0xf]
      %v312 = vld [vmem:[%s273 + $0x80] sm:$0xf]
      %v313 = vld [vmem:[%s273 + $0x84] sm:$0xf]
      %v314 = vld [vmem:[%s273 + $0x88] sm:$0xf]
      %v315 = vld [vmem:[%s273 + $0x8c] sm:$0xf]
      %v316 = vld [vmem:[%s273 + $0x90] sm:$0xf]
      %v317 = vld [vmem:[%s273 + $0x94] sm:$0xf]
      %v318 = vld [vmem:[%s273 + $0x98] sm:$0xf]
      %v319 = vld [vmem:[%s273 + $0x9c] sm:$0xf]
      %v320 = vld [vmem:[%s273 + $0xa0] sm:$0xf]
      %v321 = vld [vmem:[%s1] sm:$0xf]
      %v322 = vld [vmem:[%s1 + $0x4] sm:$0xf]
      %v323 = vld [vmem:[%s1 + $0x8] sm:$0xf]
      %v324 = vld [vmem:[%s1 + $0xc] sm:$0xf]
      %v325 = vld [vmem:[%s1 + $0x10] sm:$0xf]
      %v326 = vld [vmem:[%s1 + $0x14] sm:$0xf]
      %v327 = vld [vmem:[%s1 + $0x18] sm:$0xf]
      %v328 = vld [vmem:[%s1 + $0x1c] sm:$0xf]
      %v329 = vld [vmem:[%s1 + $0x20] sm:$0xf]
      %v330 = vld [vmem:[%s1 + $0x24] sm:$0xf]
      %v331 = vld [vmem:[%s1 + $0x28] sm:$0xf]
      %v332 = vld [vmem:[%s1 + $0x2c] sm:$0xf]
      %v333 = vld [vmem:[%s1 + $0x30] sm:$0xf]
      %v334 = vld [vmem:[%s1 + $0x34] sm:$0xf]
      %v335 = vld [vmem:[%s1 + $0x38] sm:$0xf]
      %v336 = vld [vmem:[%s1 + $0x3c] sm:$0xf]
      %v378 = vunpack.c.l.b16 %v280
      %v379 = vunpack.c.l.b16 %v281
      %v380 = vunpack.c.l.b16 %v282
      %v381 = vunpack.c.l.b16 %v283
      %v382 = vunpack.c.l.b16 %v284
      %v383 = vunpack.c.l.b16 %v285
      %v384 = vunpack.c.l.b16 %v286
      %v385 = vunpack.c.l.b16 %v287
      %v386 = vunpack.c.l.b16 %v288
      %v387 = vunpack.c.l.b16 %v289
      %v388 = vunpack.c.l.b16 %v290
      %v389 = vunpack.c.l.b16 %v291
      %v390 = vunpack.c.l.b16 %v292
      %v391 = vunpack.c.l.b16 %v293
      %v392 = vunpack.c.l.b16 %v294
      %v393 = vunpack.c.l.b16 %v295
      %v394 = vunpack.c.l.b16 %v296
      %v395 = vunpack.c.l.b16 %v297
      %v396 = vunpack.c.l.b16 %v298
      %v397 = vunpack.c.l.b16 %v299
      %v398 = vunpack.c.l.b16 %v300
      %v399 = vunpack.c.l.b16 %v301
      %v400 = vunpack.c.l.b16 %v302
      %v401 = vunpack.c.l.b16 %v303
      %v402 = vunpack.c.l.b16 %v304
      %v403 = vunpack.c.l.b16 %v305
      %v404 = vunpack.c.l.b16 %v306
      %v405 = vunpack.c.l.b16 %v307
      %v406 = vunpack.c.l.b16 %v308
      %v407 = vunpack.c.l.b16 %v309
      %v408 = vunpack.c.l.b16 %v310
      %v409 = vunpack.c.l.b16 %v311
      %v410 = vunpack.c.l.b16 %v312
      %v411 = vunpack.c.l.b16 %v313
      %v412 = vunpack.c.l.b16 %v314
      %v413 = vunpack.c.l.b16 %v315
      %v414 = vunpack.c.l.b16 %v316
      %v415 = vunpack.c.l.b16 %v317
      %v416 = vunpack.c.l.b16 %v318
      %v417 = vunpack.c.l.b16 %v319
      %v418 = vunpack.c.l.b16 %v320
      %v419 = vpack.c.b16 %v379, %v378
      %v420 = vpack.c.b16 %v381, %v380
      %v421 = vpack.c.b16 %v383, %v382
      %v422 = vpack.c.b16 %v385, %v384
      %v423 = vpack.c.b16 %v387, %v386
      %v424 = vpack.c.b16 %v389, %v388
      %v425 = vpack.c.b16 %v391, %v390
      %v426 = vpack.c.b16 %v393, %v392
      %v427 = vpack.c.b16 %v395, %v394
      %v428 = vpack.c.b16 %v397, %v396
      %v429 = vpack.c.b16 %v399, %v398
      %v430 = vpack.c.b16 %v401, %v400
      %v431 = vpack.c.b16 %v403, %v402
      %v432 = vpack.c.b16 %v405, %v404
      %v433 = vpack.c.b16 %v407, %v406
      %v434 = vpack.c.b16 %v409, %v408
      %v435 = vpack.c.b16 %v411, %v410
      %v436 = vpack.c.b16 %v413, %v412
      %v437 = vpack.c.b16 %v415, %v414
      %v438 = vpack.c.b16 %v417, %v416
      %v439 = vpack.c.b16 %v418, %v418
      %v477 = vunpack.c.l.b16 %v321
      %v478 = vunpack.c.l.b16 %v322
      %v479 = vunpack.c.l.b16 %v323
      %v480 = vunpack.c.l.b16 %v324
      %v481 = vunpack.c.l.b16 %v325
      %v482 = vunpack.c.l.b16 %v326
      %v483 = vunpack.c.l.b16 %v327
      %v484 = vunpack.c.l.b16 %v328
      %v485 = vunpack.c.l.b16 %v329
      %v486 = vunpack.c.l.b16 %v330
      %v487 = vunpack.c.l.b16 %v331
      %v488 = vunpack.c.l.b16 %v332
      %v489 = vunpack.c.l.b16 %v333
      %v490 = vunpack.c.l.b16 %v334
      %v491 = vunpack.c.l.b16 %v335
      %v492 = vunpack.c.l.b16 %v336
      %v493 = vpack.c.b16 %v478, %v477
      %v494 = vpack.c.b16 %v480, %v479
      %v495 = vpack.c.b16 %v482, %v481
      %v496 = vpack.c.b16 %v484, %v483
      %v497 = vpack.c.b16 %v486, %v485
      %v498 = vpack.c.b16 %v488, %v487
      %v499 = vpack.c.b16 %v490, %v489
      %v500 = vpack.c.b16 %v492, %v491
      %509 = vmatprep.subr.bf16.mxu0 0
      %510 = vmatpush1.bf16.msra.mxu0 %v500
      %511 = vmatprep.subr.bf16.mxu0 0
      %512 = vmatpush1.bf16.msra.mxu0 %v499
      %513 = vmatprep.subr.bf16.mxu0 0
      %514 = vmatpush1.bf16.msra.mxu0 %v498
      %515 = vmatprep.subr.bf16.mxu0 0
      %516 = vmatpush1.bf16.msra.mxu0 %v497
      %517 = vmatprep.subr.bf16.mxu0 0
      %518 = vmatpush1.bf16.msra.mxu0 %v496
      %519 = vmatprep.subr.bf16.mxu0 0
      %520 = vmatpush1.bf16.msra.mxu0 %v495
      %521 = vmatprep.subr.bf16.mxu0 0
      %522 = vmatpush1.bf16.msra.mxu0 %v494
      %523 = vmatprep.subr.bf16.mxu0 0
      %524 = vmatpush1.bf16.msra.mxu0 %v493
      %525 = vmatprep.subr.bf16.mxu0 0
      %526 = vmatpush2.bf16.msra.mxu0 0
      %527 = vmatprep.subr.bf16.mxu0 0
      %528 = vmatpush2.bf16.msra.mxu0 0
      %529 = vmatprep.subr.bf16.mxu0 0
      %530 = vmatpush2.bf16.msra.mxu0 0
      %531 = vmatprep.subr.bf16.mxu0 0
      %532 = vmatpush2.bf16.msra.mxu0 0
      %533 = vmatprep.subr.bf16.mxu0 0
      %534 = vmatpush2.bf16.msra.mxu0 0
      %535 = vmatprep.subr.bf16.mxu0 0
      %536 = vmatpush2.bf16.msra.mxu0 0
      %537 = vmatprep.subr.bf16.mxu0 0
      %538 = vmatpush2.bf16.msra.mxu0 0
      %539 = vmatprep.subr.bf16.mxu0 0
      %540 = vmatpush2.bf16.msra.mxu0 0
      %541 = vmatprep.mubr.bf16.mxu0 0
      %542 = vmatmul.mubr.bf16.gmra.mxu0 %v419
      %v543 = vpop.f32.mrf.mxu0
      %v544 = vadd.f32 0.0, %v543
      %v545 = vpop.f32.mrf.mxu0
      %v546 = vpop.f32.mrf.mxu0
      %v547 = vadd.f32 0.0, %v546
      %v548 = vpop.f32.mrf.mxu0
      %549 = vmatprep.mubr.bf16.mxu0 0
      %550 = vmatmul.mubr.bf16.gmra.mxu0 %v420
      %v551 = vpop.f32.mrf.mxu0
      %v552 = vadd.f32 0.0, %v551
      %v553 = vpop.f32.mrf.mxu0
      %v554 = vpop.f32.mrf.mxu0
      %v555 = vadd.f32 0.0, %v554
      %v556 = vpop.f32.mrf.mxu0
      %557 = vmatprep.mubr.bf16.mxu0 0
      %558 = vmatmul.mubr.bf16.gmra.mxu0 %v421
      %v559 = vpop.f32.mrf.mxu0
      %v560 = vadd.f32 0.0, %v559
      %v561 = vpop.f32.mrf.mxu0
      %v562 = vpop.f32.mrf.mxu0
      %v563 = vadd.f32 0.0, %v562
      %v564 = vpop.f32.mrf.mxu0
      %565 = vmatprep.mubr.bf16.mxu0 0
      %566 = vmatmul.mubr.bf16.gmra.mxu0 %v422
      %v567 = vpop.f32.mrf.mxu0
      %v568 = vadd.f32 0.0, %v567
      %v569 = vpop.f32.mrf.mxu0
      %v570 = vpop.f32.mrf.mxu0
      %v571 = vadd.f32 0.0, %v570
      %v572 = vpop.f32.mrf.mxu0
      %573 = vmatprep.mubr.bf16.mxu0 0
      %574 = vmatmul.mubr.bf16.gmra.mxu0 %v423
      %v575 = vpop.f32.mrf.mxu0
      %v576 = vadd.f32 0.0, %v575
      %v577 = vpop.f32.mrf.mxu0
      %v578 = vpop.f32.mrf.mxu0
      %v579 = vadd.f32 0.0, %v578
      %v580 = vpop.f32.mrf.mxu0
      %581 = vmatprep.mubr.bf16.mxu0 0
      %582 = vmatmul.mubr.bf16.gmra.mxu0 %v424
      %v583 = vpop.f32.mrf.mxu0
      %v584 = vadd.f32 0.0, %v583
      %v585 = vpop.f32.mrf.mxu0
      %v586 = vpop.f32.mrf.mxu0
      %v587 = vadd.f32 0.0, %v586
      %v588 = vpop.f32.mrf.mxu0
      %589 = vmatprep.mubr.bf16.mxu0 0
      %590 = vmatmul.mubr.bf16.gmra.mxu0 %v425
      %v591 = vpop.f32.mrf.mxu0
      %v592 = vadd.f32 0.0, %v591
      %v593 = vpop.f32.mrf.mxu0
      %v594 = vpop.f32.mrf.mxu0
      %v595 = vadd.f32 0.0, %v594
      %v596 = vpop.f32.mrf.mxu0
      %597 = vmatprep.mubr.bf16.mxu0 0
      %598 = vmatmul.mubr.bf16.gmra.mxu0 %v426
      %v599 = vpop.f32.mrf.mxu0
      %v600 = vadd.f32 0.0, %v599
      %v601 = vpop.f32.mrf.mxu0
      %v602 = vpop.f32.mrf.mxu0
      %v603 = vadd.f32 0.0, %v602
      %v604 = vpop.f32.mrf.mxu0
      %605 = vmatprep.mubr.bf16.mxu0 0
      %606 = vmatmul.mubr.bf16.gmra.mxu0 %v427
      %v607 = vpop.f32.mrf.mxu0
      %v608 = vadd.f32 0.0, %v607
      %v609 = vpop.f32.mrf.mxu0
      %v610 = vpop.f32.mrf.mxu0
      %v611 = vadd.f32 0.0, %v610
      %v612 = vpop.f32.mrf.mxu0
      %613 = vmatprep.mubr.bf16.mxu0 0
      %614 = vmatmul.mubr.bf16.gmra.mxu0 %v428
      %v615 = vpop.f32.mrf.mxu0
      %v616 = vadd.f32 0.0, %v615
      %v617 = vpop.f32.mrf.mxu0
      %v618 = vpop.f32.mrf.mxu0
      %v619 = vadd.f32 0.0, %v618
      %v620 = vpop.f32.mrf.mxu0
      %621 = vmatprep.mubr.bf16.mxu0 0
      %622 = vmatmul.mubr.bf16.gmra.mxu0 %v429
      %v623 = vpop.f32.mrf.mxu0
      %v624 = vadd.f32 0.0, %v623
      %v625 = vpop.f32.mrf.mxu0
      %v626 = vpop.f32.mrf.mxu0
      %v627 = vadd.f32 0.0, %v626
      %v628 = vpop.f32.mrf.mxu0
      %629 = vmatprep.mubr.bf16.mxu0 0
      %630 = vmatmul.mubr.bf16.gmra.mxu0 %v430
      %v631 = vpop.f32.mrf.mxu0
      %v632 = vadd.f32 0.0, %v631
      %v633 = vpop.f32.mrf.mxu0
      %v634 = vpop.f32.mrf.mxu0
      %v635 = vadd.f32 0.0, %v634
      %v636 = vpop.f32.mrf.mxu0
      %637 = vmatprep.mubr.bf16.mxu0 0
      %638 = vmatmul.mubr.bf16.gmra.mxu0 %v431
      %v639 = vpop.f32.mrf.mxu0
      %v640 = vadd.f32 0.0, %v639
      %v641 = vpop.f32.mrf.mxu0
      %v642 = vpop.f32.mrf.mxu0
      %v643 = vadd.f32 0.0, %v642
      %v644 = vpop.f32.mrf.mxu0
      %645 = vmatprep.mubr.bf16.mxu0 0
      %646 = vmatmul.mubr.bf16.gmra.mxu0 %v432
      %v647 = vpop.f32.mrf.mxu0
      %v648 = vadd.f32 0.0, %v647
      %v649 = vpop.f32.mrf.mxu0
      %v650 = vpop.f32.mrf.mxu0
      %v651 = vadd.f32 0.0, %v650
      %v652 = vpop.f32.mrf.mxu0
      %653 = vmatprep.mubr.bf16.mxu0 0
      %654 = vmatmul.mubr.bf16.gmra.mxu0 %v433
      %v655 = vpop.f32.mrf.mxu0
      %v656 = vadd.f32 0.0, %v655
      %v657 = vpop.f32.mrf.mxu0
      %v658 = vpop.f32.mrf.mxu0
      %v659 = vadd.f32 0.0, %v658
      %v660 = vpop.f32.mrf.mxu0
      %661 = vmatprep.mubr.bf16.mxu0 0
      %662 = vmatmul.mubr.bf16.gmra.mxu0 %v434
      %v663 = vpop.f32.mrf.mxu0
      %v664 = vadd.f32 0.0, %v663
      %v665 = vpop.f32.mrf.mxu0
      %v666 = vpop.f32.mrf.mxu0
      %v667 = vadd.f32 0.0, %v666
      %v668 = vpop.f32.mrf.mxu0
      %669 = vmatprep.mubr.bf16.mxu0 0
      %670 = vmatmul.mubr.bf16.gmra.mxu0 %v435
      %v671 = vpop.f32.mrf.mxu0
      %v672 = vadd.f32 0.0, %v671
      %v673 = vpop.f32.mrf.mxu0
      %v674 = vpop.f32.mrf.mxu0
      %v675 = vadd.f32 0.0, %v674
      %v676 = vpop.f32.mrf.mxu0
      %677 = vmatprep.mubr.bf16.mxu0 0
      %678 = vmatmul.mubr.bf16.gmra.mxu0 %v436
      %v679 = vpop.f32.mrf.mxu0
      %v680 = vadd.f32 0.0, %v679
      %v681 = vpop.f32.mrf.mxu0
      %v682 = vpop.f32.mrf.mxu0
      %v683 = vadd.f32 0.0, %v682
      %v684 = vpop.f32.mrf.mxu0
      %685 = vmatprep.mubr.bf16.mxu0 0
      %686 = vmatmul.mubr.bf16.gmra.mxu0 %v437
      %v687 = vpop.f32.mrf.mxu0
      %v688 = vadd.f32 0.0, %v687
      %v689 = vpop.f32.mrf.mxu0
      %v690 = vpop.f32.mrf.mxu0
      %v691 = vadd.f32 0.0, %v690
      %v692 = vpop.f32.mrf.mxu0
      %693 = vmatprep.mubr.bf16.mxu0 0
      %694 = vmatmul.mubr.bf16.gmra.mxu0 %v438
      %v695 = vpop.f32.mrf.mxu0
      %v696 = vadd.f32 0.0, %v695
      %v697 = vpop.f32.mrf.mxu0
      %v698 = vpop.f32.mrf.mxu0
      %v699 = vadd.f32 0.0, %v698
      %v700 = vpop.f32.mrf.mxu0
      %701 = vmatprep.mubr.bf16.mxu0 0
      %702 = vmatmul.mubr.bf16.gmra.mxu0 %v439
      %v703 = vpop.f32.mrf.mxu0
      %v704 = vadd.f32 0.0, %v703
      %v705 = vpop.f32.mrf.mxu0
      %v706 = vpop.f32.mrf.mxu0
      %v707 = vpop.f32.mrf.mxu0
      %708 = vdwg.mxu0
      %v709 = vmax.f32 %v544, 0.0
      %v710 = vmax.f32 %v547, 0.0
      %v711 = vmax.f32 %v552, 0.0
      %v712 = vmax.f32 %v555, 0.0
      %v713 = vmax.f32 %v560, 0.0
      %v714 = vmax.f32 %v563, 0.0
      %v715 = vmax.f32 %v568, 0.0
      %v716 = vmax.f32 %v571, 0.0
      %v717 = vmax.f32 %v576, 0.0
      %v718 = vmax.f32 %v579, 0.0
      %v719 = vmax.f32 %v584, 0.0
      %v720 = vmax.f32 %v587, 0.0
      %v721 = vmax.f32 %v592, 0.0
      %v722 = vmax.f32 %v595, 0.0
      %v723 = vmax.f32 %v600, 0.0
      %v724 = vmax.f32 %v603, 0.0
      %v725 = vmax.f32 %v608, 0.0
      %v726 = vmax.f32 %v611, 0.0
      %v727 = vmax.f32 %v616, 0.0
      %v728 = vmax.f32 %v619, 0.0
      %v729 = vmax.f32 %v624, 0.0
      %v730 = vmax.f32 %v627, 0.0
      %v731 = vmax.f32 %v632, 0.0
      %v732 = vmax.f32 %v635, 0.0
      %v733 = vmax.f32 %v640, 0.0
      %v734 = vmax.f32 %v643, 0.0
      %v735 = vmax.f32 %v648, 0.0
      %v736 = vmax.f32 %v651, 0.0
      %v737 = vmax.f32 %v656, 0.0
      %v738 = vmax.f32 %v659, 0.0
      %v739 = vmax.f32 %v664, 0.0
      %v740 = vmax.f32 %v667, 0.0
      %v741 = vmax.f32 %v672, 0.0
      %v742 = vmax.f32 %v675, 0.0
      %v743 = vmax.f32 %v680, 0.0
      %v744 = vmax.f32 %v683, 0.0
      %v745 = vmax.f32 %v688, 0.0
      %v746 = vmax.f32 %v691, 0.0
      %v747 = vmax.f32 %v696, 0.0
      %v748 = vmax.f32 %v699, 0.0
      %v749 = vmax.f32 %v704, 0.0
      %v750 = vpack.c.bf16 %v710, %v709
      %v751 = vpack.c.bf16 %v712, %v711
      %v752 = vpack.c.bf16 %v714, %v713
      %v753 = vpack.c.bf16 %v716, %v715
      %v754 = vpack.c.bf16 %v718, %v717
      %v755 = vpack.c.bf16 %v720, %v719
      %v756 = vpack.c.bf16 %v722, %v721
      %v757 = vpack.c.bf16 %v724, %v723
      %v758 = vpack.c.bf16 %v726, %v725
      %v759 = vpack.c.bf16 %v728, %v727
      %v760 = vpack.c.bf16 %v730, %v729
      %v761 = vpack.c.bf16 %v732, %v731
      %v762 = vpack.c.bf16 %v734, %v733
      %v763 = vpack.c.bf16 %v736, %v735
      %v764 = vpack.c.bf16 %v738, %v737
      %v765 = vpack.c.bf16 %v740, %v739
      %v766 = vpack.c.bf16 %v742, %v741
      %v767 = vpack.c.bf16 %v744, %v743
      %v768 = vpack.c.bf16 %v746, %v745
      %v769 = vpack.c.bf16 %v748, %v747
      %v770 = vpack.c.bf16 %v749, %v749
      %vm771 = vsmask.f32 7424
      %v773 = vshrl.u32 %v750, 16
      %v775 = vshll.u32 %v750, 16
      %v777 = vrot.slane %v775, 1
      %v778 = vor.u32 %v773, %v777
      %v780 = vshll.u32 %v751, 16
      %v782 = vrot.slane %v780, 1
      %v783 = vsel %vm771, %v778, %v782
      %v784 = vshrl.u32 %v751, 16
      %v786 = vor.u32 %v784, %v782
      %v788 = vshll.u32 %v752, 16
      %v790 = vrot.slane %v788, 1
      %v791 = vsel %vm771, %v786, %v790
      %v792 = vshrl.u32 %v752, 16
      %v794 = vor.u32 %v792, %v790
      %v796 = vshll.u32 %v753, 16
      %v798 = vrot.slane %v796, 1
      %v799 = vsel %vm771, %v794, %v798
      %v800 = vshrl.u32 %v753, 16
      %v802 = vor.u32 %v800, %v798
      %v804 = vshll.u32 %v754, 16
      %v806 = vrot.slane %v804, 1
      %v807 = vsel %vm771, %v802, %v806
      %v808 = vshrl.u32 %v754, 16
      %v810 = vor.u32 %v808, %v806
      %v812 = vshll.u32 %v755, 16
      %v814 = vrot.slane %v812, 1
      %v815 = vsel %vm771, %v810, %v814
      %v816 = vshrl.u32 %v755, 16
      %v818 = vor.u32 %v816, %v814
      %v820 = vshll.u32 %v756, 16
      %v822 = vrot.slane %v820, 1
      %v823 = vsel %vm771, %v818, %v822
      %v824 = vshrl.u32 %v756, 16
      %v826 = vor.u32 %v824, %v822
      %v828 = vshll.u32 %v757, 16
      %v830 = vrot.slane %v828, 1
      %v831 = vsel %vm771, %v826, %v830
      %v832 = vshrl.u32 %v757, 16
      %v834 = vor.u32 %v832, %v830
      %v836 = vshll.u32 %v758, 16
      %v838 = vrot.slane %v836, 1
      %v839 = vsel %vm771, %v834, %v838
      %v840 = vshrl.u32 %v758, 16
      %v842 = vor.u32 %v840, %v838
      %v844 = vshll.u32 %v759, 16
      %v846 = vrot.slane %v844, 1
      %v847 = vsel %vm771, %v842, %v846
      %v848 = vshrl.u32 %v759, 16
      %v850 = vor.u32 %v848, %v846
      %v852 = vshll.u32 %v760, 16
      %v854 = vrot.slane %v852, 1
      %v855 = vsel %vm771, %v850, %v854
      %v856 = vshrl.u32 %v760, 16
      %v858 = vor.u32 %v856, %v854
      %v860 = vshll.u32 %v761, 16
      %v862 = vrot.slane %v860, 1
      %v863 = vsel %vm771, %v858, %v862
      %v864 = vshrl.u32 %v761, 16
      %v866 = vor.u32 %v864, %v862
      %v868 = vshll.u32 %v762, 16
      %v870 = vrot.slane %v868, 1
      %v871 = vsel %vm771, %v866, %v870
      %v872 = vshrl.u32 %v762, 16
      %v874 = vor.u32 %v872, %v870
      %v876 = vshll.u32 %v763, 16
      %v878 = vrot.slane %v876, 1
      %v879 = vsel %vm771, %v874, %v878
      %v880 = vshrl.u32 %v763, 16
      %v882 = vor.u32 %v880, %v878
      %v884 = vshll.u32 %v764, 16
      %v886 = vrot.slane %v884, 1
      %v887 = vsel %vm771, %v882, %v886
      %v888 = vshrl.u32 %v764, 16
      %v890 = vor.u32 %v888, %v886
      %v892 = vshll.u32 %v765, 16
      %v894 = vrot.slane %v892, 1
      %v895 = vsel %vm771, %v890, %v894
      %v896 = vshrl.u32 %v765, 16
      %v898 = vor.u32 %v896, %v894
      %v900 = vshll.u32 %v766, 16
      %v902 = vrot.slane %v900, 1
      %v903 = vsel %vm771, %v898, %v902
      %v904 = vshrl.u32 %v766, 16
      %v906 = vor.u32 %v904, %v902
      %v908 = vshll.u32 %v767, 16
      %v910 = vrot.slane %v908, 1
      %v911 = vsel %vm771, %v906, %v910
      %v912 = vshrl.u32 %v767, 16
      %v914 = vor.u32 %v912, %v910
      %v916 = vshll.u32 %v768, 16
      %v918 = vrot.slane %v916, 1
      %v919 = vsel %vm771, %v914, %v918
      %vm957 = vcmask 1046528
      %v958 = vrot.slane %v750, 1
      %v959 = vrot.slane %v751, 1
      %v960 = vsel %vm957, %v958, %v959
      %v961 = vrot.slane %v752, 1
      %v962 = vsel %vm957, %v959, %v961
      %v963 = vrot.slane %v753, 1
      %v964 = vsel %vm957, %v961, %v963
      %v965 = vrot.slane %v754, 1
      %v966 = vsel %vm957, %v963, %v965
      %v967 = vrot.slane %v755, 1
      %v968 = vsel %vm957, %v965, %v967
      %v969 = vrot.slane %v756, 1
      %v970 = vsel %vm957, %v967, %v969
      %v971 = vrot.slane %v757, 1
      %v972 = vsel %vm957, %v969, %v971
      %v973 = vrot.slane %v758, 1
      %v974 = vsel %vm957, %v971, %v973
      %v975 = vrot.slane %v759, 1
      %v976 = vsel %vm957, %v973, %v975
      %v977 = vrot.slane %v760, 1
      %v978 = vsel %vm957, %v975, %v977
      %v979 = vrot.slane %v761, 1
      %v980 = vsel %vm957, %v977, %v979
      %v981 = vrot.slane %v762, 1
      %v982 = vsel %vm957, %v979, %v981
      %v983 = vrot.slane %v763, 1
      %v984 = vsel %vm957, %v981, %v983
      %v985 = vrot.slane %v764, 1
      %v986 = vsel %vm957, %v983, %v985
      %v987 = vrot.slane %v765, 1
      %v988 = vsel %vm957, %v985, %v987
      %v989 = vrot.slane %v766, 1
      %v990 = vsel %vm957, %v987, %v989
      %v991 = vrot.slane %v767, 1
      %v992 = vsel %vm957, %v989, %v991
      %v993 = vrot.slane %v768, 1
      %v994 = vsel %vm957, %v991, %v993
      %v1013 = vld [vmem:[%s2] sm:$0xf]
      %v1014 = vld [vmem:[%s2 + $0x4] sm:$0xf]
      %v1015 = vld [vmem:[%s2 + $0x8] sm:$0xf]
      %v1016 = vld [vmem:[%s2 + $0xc] sm:$0xf]
      %v1017 = vld [vmem:[%s2 + $0x10] sm:$0xf]
      %v1018 = vld [vmem:[%s2 + $0x14] sm:$0xf]
      %v1019 = vld [vmem:[%s2 + $0x18] sm:$0xf]
      %v1020 = vld [vmem:[%s2 + $0x1c] sm:$0xf]
      %v1021 = vld [vmem:[%s2 + $0x20] sm:$0xf]
      %v1022 = vld [vmem:[%s2 + $0x24] sm:$0xf]
      %v1023 = vld [vmem:[%s2 + $0x28] sm:$0xf]
      %v1024 = vld [vmem:[%s2 + $0x2c] sm:$0xf]
      %v1025 = vld [vmem:[%s2 + $0x30] sm:$0xf]
      %v1026 = vld [vmem:[%s2 + $0x34] sm:$0xf]
      %v1027 = vld [vmem:[%s2 + $0x38] sm:$0xf]
      %v1028 = vld [vmem:[%s2 + $0x3c] sm:$0xf]
      %v1029 = vld [vmem:[%s2 + $0x40] sm:$0xf]
      %v1030 = vld [vmem:[%s2 + $0x44] sm:$0xf]
      %v1031 = vld [vmem:[%s2 + $0x48] sm:$0xf]
      %v1032 = vld [vmem:[%s2 + $0x4c] sm:$0xf]
      %v1033 = vld [vmem:[%s2 + $0x50] sm:$0xf]
      %v1034 = vld [vmem:[%s2 + $0x54] sm:$0xf]
      %v1035 = vld [vmem:[%s2 + $0x58] sm:$0xf]
      %v1036 = vld [vmem:[%s2 + $0x5c] sm:$0xf]
      %v1037 = vld [vmem:[%s2 + $0x60] sm:$0xf]
      %v1038 = vld [vmem:[%s2 + $0x64] sm:$0xf]
      %v1039 = vld [vmem:[%s2 + $0x68] sm:$0xf]
      %v1040 = vld [vmem:[%s2 + $0x6c] sm:$0xf]
      %v1041 = vld [vmem:[%s2 + $0x70] sm:$0xf]
      %v1042 = vld [vmem:[%s2 + $0x74] sm:$0xf]
      %v1043 = vld [vmem:[%s2 + $0x78] sm:$0xf]
      %v1044 = vld [vmem:[%s2 + $0x7c] sm:$0xf]
      %v1045 = vld [vmem:[%s2 + $0x80] sm:$0xf]
      %v1046 = vld [vmem:[%s2 + $0x84] sm:$0xf]
      %v1047 = vld [vmem:[%s2 + $0x88] sm:$0xf]
      %v1048 = vld [vmem:[%s2 + $0x8c] sm:$0xf]
      %v1049 = vld [vmem:[%s2 + $0x90] sm:$0xf]
      %v1050 = vld [vmem:[%s2 + $0x94] sm:$0xf]
      %v1051 = vld [vmem:[%s2 + $0x98] sm:$0xf]
      %v1052 = vld [vmem:[%s2 + $0x9c] sm:$0xf]
      %v1053 = vld [vmem:[%s2 + $0xa0] sm:$0xf]
      %v1054 = vld [vmem:[%s2 + $0xa4] sm:$0xf]
      %v1055 = vld [vmem:[%s2 + $0xa8] sm:$0xf]
      %v1056 = vld [vmem:[%s2 + $0xac] sm:$0xf]
      %v1057 = vld [vmem:[%s2 + $0xb0] sm:$0xf]
      %v1058 = vld [vmem:[%s2 + $0xb4] sm:$0xf]
      %v1059 = vld [vmem:[%s2 + $0xb8] sm:$0xf]
      %v1060 = vld [vmem:[%s2 + $0xbc] sm:$0xf]
      %v1061 = vshrl.u32 %v768, 16
      %v1063 = vor.u32 %v1061, %v918
      %v1065 = vshll.u32 %v769, 16
      %v1067 = vrot.slane %v1065, 1
      %v1068 = vsel %vm771, %v1063, %v1067
      %v1069 = vshrl.u32 %v769, 16
      %v1071 = vor.u32 %v1069, %v1067
      %v1073 = vrot.slane %v769, 1
      %v1074 = vsel %vm957, %v993, %v1073
      %s1075 = scalar_lea.vmem %s2, 192
      %v1076 = vld [vmem:[%s1075] sm:$0xf]
      %v1077 = vld [vmem:[%s1075 + $0x4] sm:$0xf]
      %v1078 = vld [vmem:[%s1075 + $0x8] sm:$0xf]
      %v1079 = vld [vmem:[%s1075 + $0xc] sm:$0xf]
      %v1080 = vld [vmem:[%s1075 + $0x10] sm:$0xf]
      %v1081 = vld [vmem:[%s1075 + $0x14] sm:$0xf]
      %v1082 = vld [vmem:[%s1075 + $0x18] sm:$0xf]
      %v1083 = vld [vmem:[%s1075 + $0x1c] sm:$0xf]
      %v1084 = vld [vmem:[%s1075 + $0x20] sm:$0xf]
      %v1085 = vld [vmem:[%s1075 + $0x24] sm:$0xf]
      %v1086 = vld [vmem:[%s1075 + $0x28] sm:$0xf]
      %v1087 = vld [vmem:[%s1075 + $0x2c] sm:$0xf]
      %v1088 = vld [vmem:[%s1075 + $0x30] sm:$0xf]
      %v1089 = vld [vmem:[%s1075 + $0x34] sm:$0xf]
      %v1090 = vld [vmem:[%s1075 + $0x38] sm:$0xf]
      %v1091 = vld [vmem:[%s1075 + $0x3c] sm:$0xf]
      %v1092 = vld [vmem:[%s1075 + $0x40] sm:$0xf]
      %v1093 = vld [vmem:[%s1075 + $0x44] sm:$0xf]
      %v1094 = vld [vmem:[%s1075 + $0x48] sm:$0xf]
      %v1095 = vld [vmem:[%s1075 + $0x4c] sm:$0xf]
      %v1096 = vld [vmem:[%s1075 + $0x50] sm:$0xf]
      %v1097 = vld [vmem:[%s1075 + $0x54] sm:$0xf]
      %v1098 = vld [vmem:[%s1075 + $0x58] sm:$0xf]
      %v1099 = vld [vmem:[%s1075 + $0x5c] sm:$0xf]
      %v1100 = vld [vmem:[%s1075 + $0x60] sm:$0xf]
      %v1101 = vld [vmem:[%s1075 + $0x64] sm:$0xf]
      %v1102 = vld [vmem:[%s1075 + $0x68] sm:$0xf]
      %v1103 = vld [vmem:[%s1075 + $0x6c] sm:$0xf]
      %v1104 = vld [vmem:[%s1075 + $0x70] sm:$0xf]
      %v1105 = vld [vmem:[%s1075 + $0x74] sm:$0xf]
      %v1106 = vld [vmem:[%s1075 + $0x78] sm:$0xf]
      %v1107 = vld [vmem:[%s1075 + $0x7c] sm:$0xf]
      %v1108 = vld [vmem:[%s1075 + $0x80] sm:$0xf]
      %v1109 = vld [vmem:[%s1075 + $0x84] sm:$0xf]
      %v1110 = vld [vmem:[%s1075 + $0x88] sm:$0xf]
      %v1111 = vld [vmem:[%s1075 + $0x8c] sm:$0xf]
      %v1112 = vld [vmem:[%s1075 + $0x90] sm:$0xf]
      %v1113 = vld [vmem:[%s1075 + $0x94] sm:$0xf]
      %v1114 = vld [vmem:[%s1075 + $0x98] sm:$0xf]
      %v1115 = vld [vmem:[%s1075 + $0x9c] sm:$0xf]
      %v1116 = vld [vmem:[%s1075 + $0xa0] sm:$0xf]
      %v1117 = vld [vmem:[%s1075 + $0xa4] sm:$0xf]
      %v1118 = vld [vmem:[%s1075 + $0xa8] sm:$0xf]
      %v1119 = vld [vmem:[%s1075 + $0xac] sm:$0xf]
      %v1120 = vld [vmem:[%s1075 + $0xb0] sm:$0xf]
      %v1121 = vld [vmem:[%s1075 + $0xb4] sm:$0xf]
      %v1122 = vld [vmem:[%s1075 + $0xb8] sm:$0xf]
      %v1123 = vld [vmem:[%s1075 + $0xbc] sm:$0xf]
      %v1124 = vrot.slane %v791, 1
      %v1125 = vrot.slane %v799, 1
      %v1126 = vsel %vm957, %v1124, %v1125
      %v1127 = vrot.slane %v962, 1
      %v1128 = vrot.slane %v964, 1
      %v1129 = vsel %vm957, %v1127, %v1128
      %v1130 = vrot.slane %v807, 1
      %v1131 = vsel %vm957, %v1125, %v1130
      %v1132 = vrot.slane %v966, 1
      %v1133 = vsel %vm957, %v1128, %v1132
      %v1134 = vrot.slane %v815, 1
      %v1135 = vsel %vm957, %v1130, %v1134
      %v1136 = vrot.slane %v968, 1
      %v1137 = vsel %vm957, %v1132, %v1136
      %v1138 = vrot.slane %v823, 1
      %v1139 = vsel %vm957, %v1134, %v1138
      %v1140 = vrot.slane %v970, 1
      %v1141 = vsel %vm957, %v1136, %v1140
      %v1142 = vrot.slane %v831, 1
      %v1143 = vsel %vm957, %v1138, %v1142
      %v1144 = vrot.slane %v972, 1
      %v1145 = vsel %vm957, %v1140, %v1144
      %v1146 = vrot.slane %v839, 1
      %v1147 = vsel %vm957, %v1142, %v1146
      %v1148 = vrot.slane %v974, 1
      %v1149 = vsel %vm957, %v1144, %v1148
      %v1150 = vrot.slane %v847, 1
      %v1151 = vsel %vm957, %v1146, %v1150
      %v1152 = vrot.slane %v976, 1
      %v1153 = vsel %vm957, %v1148, %v1152
      %v1154 = vrot.slane %v855, 1
      %v1155 = vsel %vm957, %v1150, %v1154
      %v1156 = vrot.slane %v978, 1
      %v1157 = vsel %vm957, %v1152, %v1156
      %v1158 = vrot.slane %v863, 1
      %v1159 = vsel %vm957, %v1154, %v1158
      %v1160 = vrot.slane %v980, 1
      %v1161 = vsel %vm957, %v1156, %v1160
      %v1162 = vrot.slane %v871, 1
      %v1163 = vsel %vm957, %v1158, %v1162
      %v1164 = vrot.slane %v982, 1
      %v1165 = vsel %vm957, %v1160, %v1164
      %v1166 = vrot.slane %v879, 1
      %v1167 = vsel %vm957, %v1162, %v1166
      %v1168 = vrot.slane %v984, 1
      %v1169 = vsel %vm957, %v1164, %v1168
      %v1170 = vrot.slane %v887, 1
      %v1171 = vsel %vm957, %v1166, %v1170
      %v1172 = vrot.slane %v986, 1
      %v1173 = vsel %vm957, %v1168, %v1172
      %v1174 = vrot.slane %v895, 1
      %v1175 = vsel %vm957, %v1170, %v1174
      %v1176 = vrot.slane %v988, 1
      %v1177 = vsel %vm957, %v1172, %v1176
      %v1178 = vrot.slane %v903, 1
      %v1179 = vsel %vm957, %v1174, %v1178
      %v1180 = vrot.slane %v990, 1
      %v1181 = vsel %vm957, %v1176, %v1180
      %v1182 = vrot.slane %v911, 1
      %v1183 = vsel %vm957, %v1178, %v1182
      %v1184 = vrot.slane %v992, 1
      %v1185 = vsel %vm957, %v1180, %v1184
      %v1186 = vrot.slane %v919, 1
      %v1187 = vsel %vm957, %v1182, %v1186
      %v1188 = vrot.slane %v994, 1
      %v1189 = vsel %vm957, %v1184, %v1188
      %v1190 = vrot.slane %v1068, 1
      %v1191 = vsel %vm957, %v1186, %v1190
      %v1192 = vrot.slane %v1074, 1
      %v1193 = vsel %vm957, %v1188, %v1192
      %v1194 = vrot.slane %v1071, 1
      %v1195 = vsel %vm957, %v1190, %v1194
      %v1196 = vrot.slane %v1073, 1
      %v1197 = vsel %vm957, %v1192, %v1196
      %v1283 = vunpack.c.l.b16 %v1076
      %v1284 = vunpack.c.l.b16 %v1077
      %v1285 = vunpack.c.l.b16 %v1078
      %v1286 = vunpack.c.l.b16 %v1079
      %v1287 = vunpack.c.l.b16 %v1080
      %v1288 = vunpack.c.l.b16 %v1081
      %v1289 = vunpack.c.l.b16 %v1082
      %v1290 = vunpack.c.l.b16 %v1083
      %v1291 = vunpack.c.l.b16 %v1084
      %v1292 = vunpack.c.l.b16 %v1085
      %v1293 = vunpack.c.l.b16 %v1086
      %v1294 = vunpack.c.l.b16 %v1087
      %v1295 = vunpack.c.l.b16 %v1088
      %v1296 = vunpack.c.l.b16 %v1089
      %v1297 = vunpack.c.l.b16 %v1090
      %v1298 = vunpack.c.l.b16 %v1091
      %v1299 = vunpack.c.l.b16 %v1092
      %v1300 = vunpack.c.l.b16 %v1093
      %v1301 = vunpack.c.l.b16 %v1094
      %v1302 = vunpack.c.l.b16 %v1095
      %v1303 = vunpack.c.l.b16 %v1096
      %v1304 = vunpack.c.l.b16 %v1097
      %v1305 = vunpack.c.l.b16 %v1098
      %v1306 = vunpack.c.l.b16 %v1099
      %v1307 = vunpack.c.l.b16 %v1100
      %v1308 = vunpack.c.l.b16 %v1101
      %v1309 = vunpack.c.l.b16 %v1102
      %v1310 = vunpack.c.l.b16 %v1103
      %v1311 = vunpack.c.l.b16 %v1104
      %v1312 = vunpack.c.l.b16 %v1105
      %v1313 = vunpack.c.l.b16 %v1106
      %v1314 = vunpack.c.l.b16 %v1107
      %v1315 = vunpack.c.l.b16 %v1108
      %v1316 = vunpack.c.l.b16 %v1109
      %v1317 = vunpack.c.l.b16 %v1110
      %v1318 = vunpack.c.l.b16 %v1111
      %v1319 = vunpack.c.l.b16 %v1112
      %v1320 = vunpack.c.l.b16 %v1113
      %v1321 = vunpack.c.l.b16 %v1114
      %v1322 = vunpack.c.l.b16 %v1115
      %v1323 = vunpack.c.l.b16 %v1116
      %v1324 = vunpack.c.l.b16 %v1117
      %v1325 = vunpack.c.l.b16 %v1118
      %v1326 = vunpack.c.l.b16 %v1119
      %v1327 = vunpack.c.l.b16 %v1120
      %v1328 = vunpack.c.l.b16 %v1121
      %v1329 = vunpack.c.l.b16 %v1122
      %v1330 = vunpack.c.l.b16 %v1123
      %v1331 = vpack.c.b16 %v1284, %v1283
      %v1332 = vpack.c.b16 %v1286, %v1285
      %v1333 = vpack.c.b16 %v1288, %v1287
      %v1334 = vpack.c.b16 %v1290, %v1289
      %v1335 = vpack.c.b16 %v1292, %v1291
      %v1336 = vpack.c.b16 %v1294, %v1293
      %v1337 = vpack.c.b16 %v1296, %v1295
      %v1338 = vpack.c.b16 %v1298, %v1297
      %v1339 = vpack.c.b16 %v1300, %v1299
      %v1340 = vpack.c.b16 %v1302, %v1301
      %v1341 = vpack.c.b16 %v1304, %v1303
      %v1342 = vpack.c.b16 %v1306, %v1305
      %v1343 = vpack.c.b16 %v1308, %v1307
      %v1344 = vpack.c.b16 %v1310, %v1309
      %v1345 = vpack.c.b16 %v1312, %v1311
      %v1346 = vpack.c.b16 %v1314, %v1313
      %v1347 = vpack.c.b16 %v1316, %v1315
      %v1348 = vpack.c.b16 %v1318, %v1317
      %v1349 = vpack.c.b16 %v1320, %v1319
      %v1350 = vpack.c.b16 %v1322, %v1321
      %v1351 = vpack.c.b16 %v1324, %v1323
      %v1352 = vpack.c.b16 %v1326, %v1325
      %v1353 = vpack.c.b16 %v1328, %v1327
      %v1354 = vpack.c.b16 %v1330, %v1329
      %1379 = vmatprep.subr.bf16.mxu0 0
      %1380 = vmatpush1.bf16.msra.mxu0 %v1338
      %1381 = vmatprep.subr.bf16.mxu0 0
      %1382 = vmatpush1.bf16.msra.mxu0 %v1337
      %1383 = vmatprep.subr.bf16.mxu0 0
      %1384 = vmatpush1.bf16.msra.mxu0 %v1336
      %1385 = vmatprep.subr.bf16.mxu0 0
      %1386 = vmatpush1.bf16.msra.mxu0 %v1335
      %1387 = vmatprep.subr.bf16.mxu0 0
      %1388 = vmatpush1.bf16.msra.mxu0 %v1334
      %1389 = vmatprep.subr.bf16.mxu0 0
      %1390 = vmatpush1.bf16.msra.mxu0 %v1333
      %1391 = vmatprep.subr.bf16.mxu0 0
      %1392 = vmatpush1.bf16.msra.mxu0 %v1332
      %1393 = vmatprep.subr.bf16.mxu0 0
      %1394 = vmatpush1.bf16.msra.mxu0 %v1331
      %1395 = vmatprep.subr.bf16.mxu0 0
      %1396 = vmatpush2.bf16.msra.mxu0 %v1346
      %1397 = vmatprep.subr.bf16.mxu0 0
      %1398 = vmatpush2.bf16.msra.mxu0 %v1345
      %1399 = vmatprep.subr.bf16.mxu0 0
      %1400 = vmatpush2.bf16.msra.mxu0 %v1344
      %1401 = vmatprep.subr.bf16.mxu0 0
      %1402 = vmatpush2.bf16.msra.mxu0 %v1343
      %1403 = vmatprep.subr.bf16.mxu0 0
      %1404 = vmatpush2.bf16.msra.mxu0 %v1342
      %1405 = vmatprep.subr.bf16.mxu0 0
      %1406 = vmatpush2.bf16.msra.mxu0 %v1341
      %1407 = vmatprep.subr.bf16.mxu0 0
      %1408 = vmatpush2.bf16.msra.mxu0 %v1340
      %1409 = vmatprep.subr.bf16.mxu0 0
      %1410 = vmatpush2.bf16.msra.mxu0 %v1339
      %1411 = vmatprep.mubr.bf16.mxu0 %v1126
      %1412 = vmatmul.mubr.bf16.gmra.mxu0 %v962
      %v1413 = vpop.f32.mrf.mxu0
      %v1414 = vadd.f32 0.0, %v1413
      %v1415 = vpop.f32.mrf.mxu0
      %v1416 = vpop.f32.mrf.mxu0
      %v1417 = vadd.f32 0.0, %v1416
      %v1418 = vpop.f32.mrf.mxu0
      %1419 = vmatprep.mubr.bf16.mxu0 %v1131
      %1420 = vmatmul.mubr.bf16.gmra.mxu0 %v964
      %v1421 = vpop.f32.mrf.mxu0
      %v1422 = vadd.f32 0.0, %v1421
      %v1423 = vpop.f32.mrf.mxu0
      %v1424 = vpop.f32.mrf.mxu0
      %v1425 = vadd.f32 0.0, %v1424
      %v1426 = vpop.f32.mrf.mxu0
      %1427 = vmatprep.mubr.bf16.mxu0 %v1135
      %1428 = vmatmul.mubr.bf16.gmra.mxu0 %v966
      %v1429 = vpop.f32.mrf.mxu0
      %v1430 = vadd.f32 0.0, %v1429
      %v1431 = vpop.f32.mrf.mxu0
      %v1432 = vpop.f32.mrf.mxu0
      %v1433 = vadd.f32 0.0, %v1432
      %v1434 = vpop.f32.mrf.mxu0
      %1435 = vmatprep.mubr.bf16.mxu0 %v1139
      %1436 = vmatmul.mubr.bf16.gmra.mxu0 %v968
      %v1437 = vpop.f32.mrf.mxu0
      %v1438 = vadd.f32 0.0, %v1437
      %v1439 = vpop.f32.mrf.mxu0
      %v1440 = vpop.f32.mrf.mxu0
      %v1441 = vadd.f32 0.0, %v1440
      %v1442 = vpop.f32.mrf.mxu0
      %1443 = vmatprep.mubr.bf16.mxu0 %v1143
      %1444 = vmatmul.mubr.bf16.gmra.mxu0 %v970
      %v1445 = vpop.f32.mrf.mxu0
      %v1446 = vadd.f32 0.0, %v1445
      %v1447 = vpop.f32.mrf.mxu0
      %v1448 = vpop.f32.mrf.mxu0
      %v1449 = vadd.f32 0.0, %v1448
      %v1450 = vpop.f32.mrf.mxu0
      %1451 = vmatprep.mubr.bf16.mxu0 %v1147
      %1452 = vmatmul.mubr.bf16.gmra.mxu0 %v972
      %v1453 = vpop.f32.mrf.mxu0
      %v1454 = vadd.f32 0.0, %v1453
      %v1455 = vpop.f32.mrf.mxu0
      %v1456 = vpop.f32.mrf.mxu0
      %v1457 = vadd.f32 0.0, %v1456
      %v1458 = vpop.f32.mrf.mxu0
      %1459 = vmatprep.mubr.bf16.mxu0 %v1151
      %1460 = vmatmul.mubr.bf16.gmra.mxu0 %v974
      %v1461 = vpop.f32.mrf.mxu0
      %v1462 = vadd.f32 0.0, %v1461
      %v1463 = vpop.f32.mrf.mxu0
      %v1464 = vpop.f32.mrf.mxu0
      %v1465 = vadd.f32 0.0, %v1464
      %v1466 = vpop.f32.mrf.mxu0
      %1467 = vmatprep.mubr.bf16.mxu0 %v1155
      %1468 = vmatmul.mubr.bf16.gmra.mxu0 %v976
      %v1469 = vpop.f32.mrf.mxu0
      %v1470 = vadd.f32 0.0, %v1469
      %v1471 = vpop.f32.mrf.mxu0
      %v1472 = vpop.f32.mrf.mxu0
      %v1473 = vadd.f32 0.0, %v1472
      %v1474 = vpop.f32.mrf.mxu0
      %1475 = vmatprep.mubr.bf16.mxu0 %v1159
      %1476 = vmatmul.mubr.bf16.gmra.mxu0 %v978
      %v1477 = vpop.f32.mrf.mxu0
      %v1478 = vadd.f32 0.0, %v1477
      %v1479 = vpop.f32.mrf.mxu0
      %v1480 = vpop.f32.mrf.mxu0
      %v1481 = vadd.f32 0.0, %v1480
      %v1482 = vpop.f32.mrf.mxu0
      %1483 = vmatprep.mubr.bf16.mxu0 %v1163
      %1484 = vmatmul.mubr.bf16.gmra.mxu0 %v980
      %v1485 = vpop.f32.mrf.mxu0
      %v1486 = vadd.f32 0.0, %v1485
      %v1487 = vpop.f32.mrf.mxu0
      %v1488 = vpop.f32.mrf.mxu0
      %v1489 = vadd.f32 0.0, %v1488
      %v1490 = vpop.f32.mrf.mxu0
      %1491 = vmatprep.mubr.bf16.mxu0 %v1167
      %1492 = vmatmul.mubr.bf16.gmra.mxu0 %v982
      %v1493 = vpop.f32.mrf.mxu0
      %v1494 = vadd.f32 0.0, %v1493
      %v1495 = vpop.f32.mrf.mxu0
      %v1496 = vpop.f32.mrf.mxu0
      %v1497 = vadd.f32 0.0, %v1496
      %v1498 = vpop.f32.mrf.mxu0
      %1499 = vmatprep.mubr.bf16.mxu0 %v1171
      %1500 = vmatmul.mubr.bf16.gmra.mxu0 %v984
      %v1501 = vpop.f32.mrf.mxu0
      %v1502 = vadd.f32 0.0, %v1501
      %v1503 = vpop.f32.mrf.mxu0
      %v1504 = vpop.f32.mrf.mxu0
      %v1505 = vadd.f32 0.0, %v1504
      %v1506 = vpop.f32.mrf.mxu0
      %1507 = vmatprep.mubr.bf16.mxu0 %v1175
      %1508 = vmatmul.mubr.bf16.gmra.mxu0 %v986
      %v1509 = vpop.f32.mrf.mxu0
      %v1510 = vadd.f32 0.0, %v1509
      %v1511 = vpop.f32.mrf.mxu0
      %v1512 = vpop.f32.mrf.mxu0
      %v1513 = vadd.f32 0.0, %v1512
      %v1514 = vpop.f32.mrf.mxu0
      %1515 = vmatprep.mubr.bf16.mxu0 %v1179
      %1516 = vmatmul.mubr.bf16.gmra.mxu0 %v988
      %v1517 = vpop.f32.mrf.mxu0
      %v1518 = vadd.f32 0.0, %v1517
      %v1519 = vpop.f32.mrf.mxu0
      %v1520 = vpop.f32.mrf.mxu0
      %v1521 = vadd.f32 0.0, %v1520
      %v1522 = vpop.f32.mrf.mxu0
      %1523 = vmatprep.mubr.bf16.mxu0 %v1183
      %1524 = vmatmul.mubr.bf16.gmra.mxu0 %v990
      %v1525 = vpop.f32.mrf.mxu0
      %v1526 = vadd.f32 0.0, %v1525
      %v1527 = vpop.f32.mrf.mxu0
      %v1528 = vpop.f32.mrf.mxu0
      %v1529 = vadd.f32 0.0, %v1528
      %v1530 = vpop.f32.mrf.mxu0
      %1531 = vmatprep.mubr.bf16.mxu0 %v1187
      %1532 = vmatmul.mubr.bf16.gmra.mxu0 %v992
      %v1533 = vpop.f32.mrf.mxu0
      %v1534 = vadd.f32 0.0, %v1533
      %v1535 = vpop.f32.mrf.mxu0
      %v1536 = vpop.f32.mrf.mxu0
      %v1537 = vadd.f32 0.0, %v1536
      %v1538 = vpop.f32.mrf.mxu0
      %1539 = vmatprep.mubr.bf16.mxu0 %v1191
      %1540 = vmatmul.mubr.bf16.gmra.mxu0 %v994
      %v1541 = vpop.f32.mrf.mxu0
      %v1542 = vadd.f32 0.0, %v1541
      %v1543 = vpop.f32.mrf.mxu0
      %v1544 = vpop.f32.mrf.mxu0
      %v1545 = vadd.f32 0.0, %v1544
      %v1546 = vpop.f32.mrf.mxu0
      %1547 = vmatprep.mubr.bf16.mxu0 %v1195
      %1548 = vmatmul.mubr.bf16.gmra.mxu0 %v1074
      %v1549 = vpop.f32.mrf.mxu0
      %v1550 = vadd.f32 0.0, %v1549
      %v1551 = vpop.f32.mrf.mxu0
      %v1552 = vpop.f32.mrf.mxu0
      %v1553 = vadd.f32 0.0, %v1552
      %v1554 = vpop.f32.mrf.mxu0
      %1555 = vdwg.mxu0
      %1556 = vmatprep.subr.bf16.mxu0 0
      %1557 = vmatpush1.bf16.msra.mxu0 %v1354
      %1558 = vmatprep.subr.bf16.mxu0 0
      %1559 = vmatpush1.bf16.msra.mxu0 %v1353
      %1560 = vmatprep.subr.bf16.mxu0 0
      %1561 = vmatpush1.bf16.msra.mxu0 %v1352
      %1562 = vmatprep.subr.bf16.mxu0 0
      %1563 = vmatpush1.bf16.msra.mxu0 %v1351
      %1564 = vmatprep.subr.bf16.mxu0 0
      %1565 = vmatpush1.bf16.msra.mxu0 %v1350
      %1566 = vmatprep.subr.bf16.mxu0 0
      %1567 = vmatpush1.bf16.msra.mxu0 %v1349
      %1568 = vmatprep.subr.bf16.mxu0 0
      %1569 = vmatpush1.bf16.msra.mxu0 %v1348
      %1570 = vmatprep.subr.bf16.mxu0 0
      %1571 = vmatpush1.bf16.msra.mxu0 %v1347
      %1572 = vmatprep.subr.bf16.mxu0 0
      %1573 = vmatpush2.bf16.msra.mxu0 0
      %1574 = vmatprep.subr.bf16.mxu0 0
      %1575 = vmatpush2.bf16.msra.mxu0 0
      %1576 = vmatprep.subr.bf16.mxu0 0
      %1577 = vmatpush2.bf16.msra.mxu0 0
      %1578 = vmatprep.subr.bf16.mxu0 0
      %1579 = vmatpush2.bf16.msra.mxu0 0
      %1580 = vmatprep.subr.bf16.mxu0 0
      %1581 = vmatpush2.bf16.msra.mxu0 0
      %1582 = vmatprep.subr.bf16.mxu0 0
      %1583 = vmatpush2.bf16.msra.mxu0 0
      %1584 = vmatprep.subr.bf16.mxu0 0
      %1585 = vmatpush2.bf16.msra.mxu0 0
      %1586 = vmatprep.subr.bf16.mxu0 0
      %1587 = vmatpush2.bf16.msra.mxu0 0
      %1588 = vmatprep.mubr.bf16.mxu0 0
      %1589 = vmatmul.mubr.bf16.gmra.mxu0 %v1129
      %v1590 = vpop.f32.mrf.mxu0
      %v1591 = vadd.f32 %v1414, %v1590
      %v1592 = vpop.f32.mrf.mxu0
      %v1593 = vpop.f32.mrf.mxu0
      %v1594 = vadd.f32 %v1417, %v1593
      %v1595 = vpop.f32.mrf.mxu0
      %1596 = vmatprep.mubr.bf16.mxu0 0
      %1597 = vmatmul.mubr.bf16.gmra.mxu0 %v1133
      %v1598 = vpop.f32.mrf.mxu0
      %v1599 = vadd.f32 %v1422, %v1598
      %v1600 = vpop.f32.mrf.mxu0
      %v1601 = vpop.f32.mrf.mxu0
      %v1602 = vadd.f32 %v1425, %v1601
      %v1603 = vpop.f32.mrf.mxu0
      %1604 = vmatprep.mubr.bf16.mxu0 0
      %1605 = vmatmul.mubr.bf16.gmra.mxu0 %v1137
      %v1606 = vpop.f32.mrf.mxu0
      %v1607 = vadd.f32 %v1430, %v1606
      %v1608 = vpop.f32.mrf.mxu0
      %v1609 = vpop.f32.mrf.mxu0
      %v1610 = vadd.f32 %v1433, %v1609
      %v1611 = vpop.f32.mrf.mxu0
      %1612 = vmatprep.mubr.bf16.mxu0 0
      %1613 = vmatmul.mubr.bf16.gmra.mxu0 %v1141
      %v1614 = vpop.f32.mrf.mxu0
      %v1615 = vadd.f32 %v1438, %v1614
      %v1616 = vpop.f32.mrf.mxu0
      %v1617 = vpop.f32.mrf.mxu0
      %v1618 = vadd.f32 %v1441, %v1617
      %v1619 = vpop.f32.mrf.mxu0
      %1620 = vmatprep.mubr.bf16.mxu0 0
      %1621 = vmatmul.mubr.bf16.gmra.mxu0 %v1145
      %v1622 = vpop.f32.mrf.mxu0
      %v1623 = vadd.f32 %v1446, %v1622
      %v1624 = vpop.f32.mrf.mxu0
      %v1625 = vpop.f32.mrf.mxu0
      %v1626 = vadd.f32 %v1449, %v1625
      %v1627 = vpop.f32.mrf.mxu0
      %1628 = vmatprep.mubr.bf16.mxu0 0
      %1629 = vmatmul.mubr.bf16.gmra.mxu0 %v1149
      %v1630 = vpop.f32.mrf.mxu0
      %v1631 = vadd.f32 %v1454, %v1630
      %v1632 = vpop.f32.mrf.mxu0
      %v1633 = vpop.f32.mrf.mxu0
      %v1634 = vadd.f32 %v1457, %v1633
      %v1635 = vpop.f32.mrf.mxu0
      %1636 = vmatprep.mubr.bf16.mxu0 0
      %1637 = vmatmul.mubr.bf16.gmra.mxu0 %v1153
      %v1638 = vpop.f32.mrf.mxu0
      %v1639 = vadd.f32 %v1462, %v1638
      %v1640 = vpop.f32.mrf.mxu0
      %v1641 = vpop.f32.mrf.mxu0
      %v1642 = vadd.f32 %v1465, %v1641
      %v1643 = vpop.f32.mrf.mxu0
      %1644 = vmatprep.mubr.bf16.mxu0 0
      %1645 = vmatmul.mubr.bf16.gmra.mxu0 %v1157
      %v1646 = vpop.f32.mrf.mxu0
      %v1647 = vadd.f32 %v1470, %v1646
      %v1648 = vpop.f32.mrf.mxu0
      %v1649 = vpop.f32.mrf.mxu0
      %v1650 = vadd.f32 %v1473, %v1649
      %v1651 = vpop.f32.mrf.mxu0
      %1652 = vmatprep.mubr.bf16.mxu0 0
      %1653 = vmatmul.mubr.bf16.gmra.mxu0 %v1161
      %v1654 = vpop.f32.mrf.mxu0
      %v1655 = vadd.f32 %v1478, %v1654
      %v1656 = vpop.f32.mrf.mxu0
      %v1657 = vpop.f32.mrf.mxu0
      %v1658 = vadd.f32 %v1481, %v1657
      %v1659 = vpop.f32.mrf.mxu0
      %1660 = vmatprep.mubr.bf16.mxu0 0
      %1661 = vmatmul.mubr.bf16.gmra.mxu0 %v1165
      %v1662 = vpop.f32.mrf.mxu0
      %v1663 = vadd.f32 %v1486, %v1662
      %v1664 = vpop.f32.mrf.mxu0
      %v1665 = vpop.f32.mrf.mxu0
      %v1666 = vadd.f32 %v1489, %v1665
      %v1667 = vpop.f32.mrf.mxu0
      %1668 = vmatprep.mubr.bf16.mxu0 0
      %1669 = vmatmul.mubr.bf16.gmra.mxu0 %v1169
      %v1670 = vpop.f32.mrf.mxu0
      %v1671 = vadd.f32 %v1494, %v1670
      %v1672 = vpop.f32.mrf.mxu0
      %v1673 = vpop.f32.mrf.mxu0
      %v1674 = vadd.f32 %v1497, %v1673
      %v1675 = vpop.f32.mrf.mxu0
      %1676 = vmatprep.mubr.bf16.mxu0 0
      %1677 = vmatmul.mubr.bf16.gmra.mxu0 %v1173
      %v1678 = vpop.f32.mrf.mxu0
      %v1679 = vadd.f32 %v1502, %v1678
      %v1680 = vpop.f32.mrf.mxu0
      %v1681 = vpop.f32.mrf.mxu0
      %v1682 = vadd.f32 %v1505, %v1681
      %v1683 = vpop.f32.mrf.mxu0
      %1684 = vmatprep.mubr.bf16.mxu0 0
      %1685 = vmatmul.mubr.bf16.gmra.mxu0 %v1177
      %v1686 = vpop.f32.mrf.mxu0
      %v1687 = vadd.f32 %v1510, %v1686
      %v1688 = vpop.f32.mrf.mxu0
      %v1689 = vpop.f32.mrf.mxu0
      %v1690 = vadd.f32 %v1513, %v1689
      %v1691 = vpop.f32.mrf.mxu0
      %1692 = vmatprep.mubr.bf16.mxu0 0
      %1693 = vmatmul.mubr.bf16.gmra.mxu0 %v1181
      %v1694 = vpop.f32.mrf.mxu0
      %v1695 = vadd.f32 %v1518, %v1694
      %v1696 = vpop.f32.mrf.mxu0
      %v1697 = vpop.f32.mrf.mxu0
      %v1698 = vadd.f32 %v1521, %v1697
      %v1699 = vpop.f32.mrf.mxu0
      %1700 = vmatprep.mubr.bf16.mxu0 0
      %1701 = vmatmul.mubr.bf16.gmra.mxu0 %v1185
      %v1702 = vpop.f32.mrf.mxu0
      %v1703 = vadd.f32 %v1526, %v1702
      %v1704 = vpop.f32.mrf.mxu0
      %v1705 = vpop.f32.mrf.mxu0
      %v1706 = vadd.f32 %v1529, %v1705
      %v1707 = vpop.f32.mrf.mxu0
      %1708 = vmatprep.mubr.bf16.mxu0 0
      %1709 = vmatmul.mubr.bf16.gmra.mxu0 %v1189
      %v1710 = vpop.f32.mrf.mxu0
      %v1711 = vadd.f32 %v1534, %v1710
      %v1712 = vpop.f32.mrf.mxu0
      %v1713 = vpop.f32.mrf.mxu0
      %v1714 = vadd.f32 %v1537, %v1713
      %v1715 = vpop.f32.mrf.mxu0
      %1716 = vmatprep.mubr.bf16.mxu0 0
      %1717 = vmatmul.mubr.bf16.gmra.mxu0 %v1193
      %v1718 = vpop.f32.mrf.mxu0
      %v1719 = vadd.f32 %v1542, %v1718
      %v1720 = vpop.f32.mrf.mxu0
      %v1721 = vpop.f32.mrf.mxu0
      %v1722 = vadd.f32 %v1545, %v1721
      %v1723 = vpop.f32.mrf.mxu0
      %1724 = vmatprep.mubr.bf16.mxu0 0
      %1725 = vmatmul.mubr.bf16.gmra.mxu0 %v1197
      %v1726 = vpop.f32.mrf.mxu0
      %v1727 = vadd.f32 %v1550, %v1726
      %v1728 = vpop.f32.mrf.mxu0
      %v1729 = vpop.f32.mrf.mxu0
      %v1730 = vadd.f32 %v1553, %v1729
      %v1731 = vpop.f32.mrf.mxu0
      %1732 = vdwg.mxu0
      %v1781 = vunpack.c.l.b16 %v1013
      %v1782 = vunpack.c.l.b16 %v1014
      %v1783 = vunpack.c.l.b16 %v1015
      %v1784 = vunpack.c.l.b16 %v1016
      %v1785 = vunpack.c.l.b16 %v1017
      %v1786 = vunpack.c.l.b16 %v1018
      %v1787 = vunpack.c.l.b16 %v1019
      %v1788 = vunpack.c.l.b16 %v1020
      %v1789 = vunpack.c.l.b16 %v1021
      %v1790 = vunpack.c.l.b16 %v1022
      %v1791 = vunpack.c.l.b16 %v1023
      %v1792 = vunpack.c.l.b16 %v1024
      %v1793 = vunpack.c.l.b16 %v1025
      %v1794 = vunpack.c.l.b16 %v1026
      %v1795 = vunpack.c.l.b16 %v1027
      %v1796 = vunpack.c.l.b16 %v1028
      %v1797 = vunpack.c.l.b16 %v1029
      %v1798 = vunpack.c.l.b16 %v1030
      %v1799 = vunpack.c.l.b16 %v1031
      %v1800 = vunpack.c.l.b16 %v1032
      %v1801 = vunpack.c.l.b16 %v1033
      %v1802 = vunpack.c.l.b16 %v1034
      %v1803 = vunpack.c.l.b16 %v1035
      %v1804 = vunpack.c.l.b16 %v1036
      %v1805 = vunpack.c.l.b16 %v1037
      %v1806 = vunpack.c.l.b16 %v1038
      %v1807 = vunpack.c.l.b16 %v1039
      %v1808 = vunpack.c.l.b16 %v1040
      %v1809 = vunpack.c.l.b16 %v1041
      %v1810 = vunpack.c.l.b16 %v1042
      %v1811 = vunpack.c.l.b16 %v1043
      %v1812 = vunpack.c.l.b16 %v1044
      %v1813 = vunpack.c.l.b16 %v1045
      %v1814 = vunpack.c.l.b16 %v1046
      %v1815 = vunpack.c.l.b16 %v1047
      %v1816 = vunpack.c.l.b16 %v1048
      %v1817 = vunpack.c.l.b16 %v1049
      %v1818 = vunpack.c.l.b16 %v1050
      %v1819 = vunpack.c.l.b16 %v1051
      %v1820 = vunpack.c.l.b16 %v1052
      %v1821 = vunpack.c.l.b16 %v1053
      %v1822 = vunpack.c.l.b16 %v1054
      %v1823 = vunpack.c.l.b16 %v1055
      %v1824 = vunpack.c.l.b16 %v1056
      %v1825 = vunpack.c.l.b16 %v1057
      %v1826 = vunpack.c.l.b16 %v1058
      %v1827 = vunpack.c.l.b16 %v1059
      %v1828 = vunpack.c.l.b16 %v1060
      %v1829 = vpack.c.b16 %v1782, %v1781
      %v1830 = vpack.c.b16 %v1784, %v1783
      %v1831 = vpack.c.b16 %v1786, %v1785
      %v1832 = vpack.c.b16 %v1788, %v1787
      %v1833 = vpack.c.b16 %v1790, %v1789
      %v1834 = vpack.c.b16 %v1792, %v1791
      %v1835 = vpack.c.b16 %v1794, %v1793
      %v1836 = vpack.c.b16 %v1796, %v1795
      %v1837 = vpack.c.b16 %v1798, %v1797
      %v1838 = vpack.c.b16 %v1800, %v1799
      %v1839 = vpack.c.b16 %v1802, %v1801
      %v1840 = vpack.c.b16 %v1804, %v1803
      %v1841 = vpack.c.b16 %v1806, %v1805
      %v1842 = vpack.c.b16 %v1808, %v1807
      %v1843 = vpack.c.b16 %v1810, %v1809
      %v1844 = vpack.c.b16 %v1812, %v1811
      %v1845 = vpack.c.b16 %v1814, %v1813
      %v1846 = vpack.c.b16 %v1816, %v1815
      %v1847 = vpack.c.b16 %v1818, %v1817
      %v1848 = vpack.c.b16 %v1820, %v1819
      %v1849 = vpack.c.b16 %v1822, %v1821
      %v1850 = vpack.c.b16 %v1824, %v1823
      %v1851 = vpack.c.b16 %v1826, %v1825
      %v1852 = vpack.c.b16 %v1828, %v1827
      %1877 = vmatprep.subr.bf16.mxu0 0
      %1878 = vmatpush1.bf16.msra.mxu0 %v1836
      %1879 = vmatprep.subr.bf16.mxu0 0
      %1880 = vmatpush1.bf16.msra.mxu0 %v1835
      %1881 = vmatprep.subr.bf16.mxu0 0
      %1882 = vmatpush1.bf16.msra.mxu0 %v1834
      %1883 = vmatprep.subr.bf16.mxu0 0
      %1884 = vmatpush1.bf16.msra.mxu0 %v1833
      %1885 = vmatprep.subr.bf16.mxu0 0
      %1886 = vmatpush1.bf16.msra.mxu0 %v1832
      %1887 = vmatprep.subr.bf16.mxu0 0
      %1888 = vmatpush1.bf16.msra.mxu0 %v1831
      %1889 = vmatprep.subr.bf16.mxu0 0
      %1890 = vmatpush1.bf16.msra.mxu0 %v1830
      %1891 = vmatprep.subr.bf16.mxu0 0
      %1892 = vmatpush1.bf16.msra.mxu0 %v1829
      %1893 = vmatprep.subr.bf16.mxu0 0
      %1894 = vmatpush2.bf16.msra.mxu0 %v1844
      %1895 = vmatprep.subr.bf16.mxu0 0
      %1896 = vmatpush2.bf16.msra.mxu0 %v1843
      %1897 = vmatprep.subr.bf16.mxu0 0
      %1898 = vmatpush2.bf16.msra.mxu0 %v1842
      %1899 = vmatprep.subr.bf16.mxu0 0
      %1900 = vmatpush2.bf16.msra.mxu0 %v1841
      %1901 = vmatprep.subr.bf16.mxu0 0
      %1902 = vmatpush2.bf16.msra.mxu0 %v1840
      %1903 = vmatprep.subr.bf16.mxu0 0
      %1904 = vmatpush2.bf16.msra.mxu0 %v1839
      %1905 = vmatprep.subr.bf16.mxu0 0
      %1906 = vmatpush2.bf16.msra.mxu0 %v1838
      %1907 = vmatprep.subr.bf16.mxu0 0
      %1908 = vmatpush2.bf16.msra.mxu0 %v1837
      %1909 = vmatprep.mubr.bf16.mxu0 %v783
      %1910 = vmatmul.mubr.bf16.gmra.mxu0 %v750
      %v1911 = vpop.f32.mrf.mxu0
      %v1912 = vadd.f32 %v1591, %v1911
      %v1913 = vpop.f32.mrf.mxu0
      %v1914 = vpop.f32.mrf.mxu0
      %v1915 = vadd.f32 %v1594, %v1914
      %v1916 = vpop.f32.mrf.mxu0
      %1917 = vmatprep.mubr.bf16.mxu0 %v791
      %1918 = vmatmul.mubr.bf16.gmra.mxu0 %v751
      %v1919 = vpop.f32.mrf.mxu0
      %v1920 = vadd.f32 %v1599, %v1919
      %v1921 = vpop.f32.mrf.mxu0
      %v1922 = vpop.f32.mrf.mxu0
      %v1923 = vadd.f32 %v1602, %v1922
      %v1924 = vpop.f32.mrf.mxu0
      %1925 = vmatprep.mubr.bf16.mxu0 %v799
      %1926 = vmatmul.mubr.bf16.gmra.mxu0 %v752
      %v1927 = vpop.f32.mrf.mxu0
      %v1928 = vadd.f32 %v1607, %v1927
      %v1929 = vpop.f32.mrf.mxu0
      %v1930 = vpop.f32.mrf.mxu0
      %v1931 = vadd.f32 %v1610, %v1930
      %v1932 = vpop.f32.mrf.mxu0
      %1933 = vmatprep.mubr.bf16.mxu0 %v807
      %1934 = vmatmul.mubr.bf16.gmra.mxu0 %v753
      %v1935 = vpop.f32.mrf.mxu0
      %v1936 = vadd.f32 %v1615, %v1935
      %v1937 = vpop.f32.mrf.mxu0
      %v1938 = vpop.f32.mrf.mxu0
      %v1939 = vadd.f32 %v1618, %v1938
      %v1940 = vpop.f32.mrf.mxu0
      %1941 = vmatprep.mubr.bf16.mxu0 %v815
      %1942 = vmatmul.mubr.bf16.gmra.mxu0 %v754
      %v1943 = vpop.f32.mrf.mxu0
      %v1944 = vadd.f32 %v1623, %v1943
      %v1945 = vpop.f32.mrf.mxu0
      %v1946 = vpop.f32.mrf.mxu0
      %v1947 = vadd.f32 %v1626, %v1946
      %v1948 = vpop.f32.mrf.mxu0
      %1949 = vmatprep.mubr.bf16.mxu0 %v823
      %1950 = vmatmul.mubr.bf16.gmra.mxu0 %v755
      %v1951 = vpop.f32.mrf.mxu0
      %v1952 = vadd.f32 %v1631, %v1951
      %v1953 = vpop.f32.mrf.mxu0
      %v1954 = vpop.f32.mrf.mxu0
      %v1955 = vadd.f32 %v1634, %v1954
      %v1956 = vpop.f32.mrf.mxu0
      %1957 = vmatprep.mubr.bf16.mxu0 %v831
      %1958 = vmatmul.mubr.bf16.gmra.mxu0 %v756
      %v1959 = vpop.f32.mrf.mxu0
      %v1960 = vadd.f32 %v1639, %v1959
      %v1961 = vpop.f32.mrf.mxu0
      %v1962 = vpop.f32.mrf.mxu0
      %v1963 = vadd.f32 %v1642, %v1962
      %v1964 = vpop.f32.mrf.mxu0
      %1965 = vmatprep.mubr.bf16.mxu0 %v839
      %1966 = vmatmul.mubr.bf16.gmra.mxu0 %v757
      %v1967 = vpop.f32.mrf.mxu0
      %v1968 = vadd.f32 %v1647, %v1967
      %v1969 = vpop.f32.mrf.mxu0
      %v1970 = vpop.f32.mrf.mxu0
      %v1971 = vadd.f32 %v1650, %v1970
      %v1972 = vpop.f32.mrf.mxu0
      %1973 = vmatprep.mubr.bf16.mxu0 %v847
      %1974 = vmatmul.mubr.bf16.gmra.mxu0 %v758
      %v1975 = vpop.f32.mrf.mxu0
      %v1976 = vadd.f32 %v1655, %v1975
      %v1977 = vpop.f32.mrf.mxu0
      %v1978 = vpop.f32.mrf.mxu0
      %v1979 = vadd.f32 %v1658, %v1978
      %v1980 = vpop.f32.mrf.mxu0
      %1981 = vmatprep.mubr.bf16.mxu0 %v855
      %1982 = vmatmul.mubr.bf16.gmra.mxu0 %v759
      %v1983 = vpop.f32.mrf.mxu0
      %v1984 = vadd.f32 %v1663, %v1983
      %v1985 = vpop.f32.mrf.mxu0
      %v1986 = vpop.f32.mrf.mxu0
      %v1987 = vadd.f32 %v1666, %v1986
      %v1988 = vpop.f32.mrf.mxu0
      %1989 = vmatprep.mubr.bf16.mxu0 %v863
      %1990 = vmatmul.mubr.bf16.gmra.mxu0 %v760
      %v1991 = vpop.f32.mrf.mxu0
      %v1992 = vadd.f32 %v1671, %v1991
      %v1993 = vpop.f32.mrf.mxu0
      %v1994 = vpop.f32.mrf.mxu0
      %v1995 = vadd.f32 %v1674, %v1994
      %v1996 = vpop.f32.mrf.mxu0
      %1997 = vmatprep.mubr.bf16.mxu0 %v871
      %1998 = vmatmul.mubr.bf16.gmra.mxu0 %v761
      %v1999 = vpop.f32.mrf.mxu0
      %v2000 = vadd.f32 %v1679, %v1999
      %v2001 = vpop.f32.mrf.mxu0
      %v2002 = vpop.f32.mrf.mxu0
      %v2003 = vadd.f32 %v1682, %v2002
      %v2004 = vpop.f32.mrf.mxu0
      %2005 = vmatprep.mubr.bf16.mxu0 %v879
      %2006 = vmatmul.mubr.bf16.gmra.mxu0 %v762
      %v2007 = vpop.f32.mrf.mxu0
      %v2008 = vadd.f32 %v1687, %v2007
      %v2009 = vpop.f32.mrf.mxu0
      %v2010 = vpop.f32.mrf.mxu0
      %v2011 = vadd.f32 %v1690, %v2010
      %v2012 = vpop.f32.mrf.mxu0
      %2013 = vmatprep.mubr.bf16.mxu0 %v887
      %2014 = vmatmul.mubr.bf16.gmra.mxu0 %v763
      %v2015 = vpop.f32.mrf.mxu0
      %v2016 = vadd.f32 %v1695, %v2015
      %v2017 = vpop.f32.mrf.mxu0
      %v2018 = vpop.f32.mrf.mxu0
      %v2019 = vadd.f32 %v1698, %v2018
      %v2020 = vpop.f32.mrf.mxu0
      %2021 = vmatprep.mubr.bf16.mxu0 %v895
      %2022 = vmatmul.mubr.bf16.gmra.mxu0 %v764
      %v2023 = vpop.f32.mrf.mxu0
      %v2024 = vadd.f32 %v1703, %v2023
      %v2025 = vpop.f32.mrf.mxu0
      %v2026 = vpop.f32.mrf.mxu0
      %v2027 = vadd.f32 %v1706, %v2026
      %v2028 = vpop.f32.mrf.mxu0
      %2029 = vmatprep.mubr.bf16.mxu0 %v903
      %2030 = vmatmul.mubr.bf16.gmra.mxu0 %v765
      %v2031 = vpop.f32.mrf.mxu0
      %v2032 = vadd.f32 %v1711, %v2031
      %v2033 = vpop.f32.mrf.mxu0
      %v2034 = vpop.f32.mrf.mxu0
      %v2035 = vadd.f32 %v1714, %v2034
      %v2036 = vpop.f32.mrf.mxu0
      %2037 = vmatprep.mubr.bf16.mxu0 %v911
      %2038 = vmatmul.mubr.bf16.gmra.mxu0 %v766
      %v2039 = vpop.f32.mrf.mxu0
      %v2040 = vadd.f32 %v1719, %v2039
      %v2041 = vpop.f32.mrf.mxu0
      %v2042 = vpop.f32.mrf.mxu0
      %v2043 = vadd.f32 %v1722, %v2042
      %v2044 = vpop.f32.mrf.mxu0
      %2045 = vmatprep.mubr.bf16.mxu0 %v919
      %2046 = vmatmul.mubr.bf16.gmra.mxu0 %v767
      %v2047 = vpop.f32.mrf.mxu0
      %v2048 = vadd.f32 %v1727, %v2047
      %v2049 = vpop.f32.mrf.mxu0
      %v2050 = vpop.f32.mrf.mxu0
      %v2051 = vadd.f32 %v1730, %v2050
      %v2052 = vpop.f32.mrf.mxu0
      %2053 = vdwg.mxu0
      %2054 = vmatprep.subr.bf16.mxu0 0
      %2055 = vmatpush1.bf16.msra.mxu0 %v1852
      %2056 = vmatprep.subr.bf16.mxu0 0
      %2057 = vmatpush1.bf16.msra.mxu0 %v1851
      %2058 = vmatprep.subr.bf16.mxu0 0
      %2059 = vmatpush1.bf16.msra.mxu0 %v1850
      %2060 = vmatprep.subr.bf16.mxu0 0
      %2061 = vmatpush1.bf16.msra.mxu0 %v1849
      %2062 = vmatprep.subr.bf16.mxu0 0
      %2063 = vmatpush1.bf16.msra.mxu0 %v1848
      %2064 = vmatprep.subr.bf16.mxu0 0
      %2065 = vmatpush1.bf16.msra.mxu0 %v1847
      %2066 = vmatprep.subr.bf16.mxu0 0
      %2067 = vmatpush1.bf16.msra.mxu0 %v1846
      %2068 = vmatprep.subr.bf16.mxu0 0
      %2069 = vmatpush1.bf16.msra.mxu0 %v1845
      %2070 = vmatprep.subr.bf16.mxu0 0
      %2071 = vmatpush2.bf16.msra.mxu0 0
      %2072 = vmatprep.subr.bf16.mxu0 0
      %2073 = vmatpush2.bf16.msra.mxu0 0
      %2074 = vmatprep.subr.bf16.mxu0 0
      %2075 = vmatpush2.bf16.msra.mxu0 0
      %2076 = vmatprep.subr.bf16.mxu0 0
      %2077 = vmatpush2.bf16.msra.mxu0 0
      %2078 = vmatprep.subr.bf16.mxu0 0
      %2079 = vmatpush2.bf16.msra.mxu0 0
      %2080 = vmatprep.subr.bf16.mxu0 0
      %2081 = vmatpush2.bf16.msra.mxu0 0
      %2082 = vmatprep.subr.bf16.mxu0 0
      %2083 = vmatpush2.bf16.msra.mxu0 0
      %2084 = vmatprep.subr.bf16.mxu0 0
      %2085 = vmatpush2.bf16.msra.mxu0 0
      %2086 = vmatprep.mubr.bf16.mxu0 0
      %2087 = vmatmul.mubr.bf16.gmra.mxu0 %v960
      %v2088 = vpop.f32.mrf.mxu0
      %v2089 = vadd.f32 %v1912, %v2088
      %v2090 = vpop.f32.mrf.mxu0
      %v2091 = vpop.f32.mrf.mxu0
      %v2092 = vadd.f32 %v1915, %v2091
      %v2093 = vpop.f32.mrf.mxu0
      %2094 = vmatprep.mubr.bf16.mxu0 0
      %2095 = vmatmul.mubr.bf16.gmra.mxu0 %v962
      %v2096 = vpop.f32.mrf.mxu0
      %v2097 = vadd.f32 %v1920, %v2096
      %v2098 = vpop.f32.mrf.mxu0
      %v2099 = vpop.f32.mrf.mxu0
      %v2100 = vadd.f32 %v1923, %v2099
      %v2101 = vpop.f32.mrf.mxu0
      %2102 = vmatprep.mubr.bf16.mxu0 0
      %2103 = vmatmul.mubr.bf16.gmra.mxu0 %v964
      %v2104 = vpop.f32.mrf.mxu0
      %v2105 = vadd.f32 %v1928, %v2104
      %v2106 = vpop.f32.mrf.mxu0
      %v2107 = vpop.f32.mrf.mxu0
      %v2108 = vadd.f32 %v1931, %v2107
      %v2109 = vpop.f32.mrf.mxu0
      %2110 = vmatprep.mubr.bf16.mxu0 0
      %2111 = vmatmul.mubr.bf16.gmra.mxu0 %v966
      %v2112 = vpop.f32.mrf.mxu0
      %v2113 = vadd.f32 %v1936, %v2112
      %v2114 = vpop.f32.mrf.mxu0
      %v2115 = vpop.f32.mrf.mxu0
      %v2116 = vadd.f32 %v1939, %v2115
      %v2117 = vpop.f32.mrf.mxu0
      %2118 = vmatprep.mubr.bf16.mxu0 0
      %2119 = vmatmul.mubr.bf16.gmra.mxu0 %v968
      %v2120 = vpop.f32.mrf.mxu0
      %v2121 = vadd.f32 %v1944, %v2120
      %v2122 = vpop.f32.mrf.mxu0
      %v2123 = vpop.f32.mrf.mxu0
      %v2124 = vadd.f32 %v1947, %v2123
      %v2125 = vpop.f32.mrf.mxu0
      %2126 = vmatprep.mubr.bf16.mxu0 0
      %2127 = vmatmul.mubr.bf16.gmra.mxu0 %v970
      %v2128 = vpop.f32.mrf.mxu0
      %v2129 = vadd.f32 %v1952, %v2128
      %v2130 = vpop.f32.mrf.mxu0
      %v2131 = vpop.f32.mrf.mxu0
      %v2132 = vadd.f32 %v1955, %v2131
      %v2133 = vpop.f32.mrf.mxu0
      %2134 = vmatprep.mubr.bf16.mxu0 0
      %2135 = vmatmul.mubr.bf16.gmra.mxu0 %v972
      %v2136 = vpop.f32.mrf.mxu0
      %v2137 = vadd.f32 %v1960, %v2136
      %v2138 = vpop.f32.mrf.mxu0
      %v2139 = vpop.f32.mrf.mxu0
      %v2140 = vadd.f32 %v1963, %v2139
      %v2141 = vpop.f32.mrf.mxu0
      %2142 = vmatprep.mubr.bf16.mxu0 0
      %2143 = vmatmul.mubr.bf16.gmra.mxu0 %v974
      %v2144 = vpop.f32.mrf.mxu0
      %v2145 = vadd.f32 %v1968, %v2144
      %v2146 = vpop.f32.mrf.mxu0
      %v2147 = vpop.f32.mrf.mxu0
      %v2148 = vadd.f32 %v1971, %v2147
      %v2149 = vpop.f32.mrf.mxu0
      %2150 = vmatprep.mubr.bf16.mxu0 0
      %2151 = vmatmul.mubr.bf16.gmra.mxu0 %v976
      %v2152 = vpop.f32.mrf.mxu0
      %v2153 = vadd.f32 %v1976, %v2152
      %v2154 = vpop.f32.mrf.mxu0
      %v2155 = vpop.f32.mrf.mxu0
      %v2156 = vadd.f32 %v1979, %v2155
      %v2157 = vpop.f32.mrf.mxu0
      %2158 = vmatprep.mubr.bf16.mxu0 0
      %2159 = vmatmul.mubr.bf16.gmra.mxu0 %v978
      %v2160 = vpop.f32.mrf.mxu0
      %v2161 = vadd.f32 %v1984, %v2160
      %v2162 = vpop.f32.mrf.mxu0
      %v2163 = vpop.f32.mrf.mxu0
      %v2164 = vadd.f32 %v1987, %v2163
      %v2165 = vpop.f32.mrf.mxu0
      %2166 = vmatprep.mubr.bf16.mxu0 0
      %2167 = vmatmul.mubr.bf16.gmra.mxu0 %v980
      %v2168 = vpop.f32.mrf.mxu0
      %v2169 = vadd.f32 %v1992, %v2168
      %v2170 = vpop.f32.mrf.mxu0
      %v2171 = vpop.f32.mrf.mxu0
      %v2172 = vadd.f32 %v1995, %v2171
      %v2173 = vpop.f32.mrf.mxu0
      %2174 = vmatprep.mubr.bf16.mxu0 0
      %2175 = vmatmul.mubr.bf16.gmra.mxu0 %v982
      %v2176 = vpop.f32.mrf.mxu0
      %v2177 = vadd.f32 %v2000, %v2176
      %v2178 = vpop.f32.mrf.mxu0
      %v2179 = vpop.f32.mrf.mxu0
      %v2180 = vadd.f32 %v2003, %v2179
      %v2181 = vpop.f32.mrf.mxu0
      %2182 = vmatprep.mubr.bf16.mxu0 0
      %2183 = vmatmul.mubr.bf16.gmra.mxu0 %v984
      %v2184 = vpop.f32.mrf.mxu0
      %v2185 = vadd.f32 %v2008, %v2184
      %v2186 = vpop.f32.mrf.mxu0
      %v2187 = vpop.f32.mrf.mxu0
      %v2188 = vadd.f32 %v2011, %v2187
      %v2189 = vpop.f32.mrf.mxu0
      %2190 = vmatprep.mubr.bf16.mxu0 0
      %2191 = vmatmul.mubr.bf16.gmra.mxu0 %v986
      %v2192 = vpop.f32.mrf.mxu0
      %v2193 = vadd.f32 %v2016, %v2192
      %v2194 = vpop.f32.mrf.mxu0
      %v2195 = vpop.f32.mrf.mxu0
      %v2196 = vadd.f32 %v2019, %v2195
      %v2197 = vpop.f32.mrf.mxu0
      %2198 = vmatprep.mubr.bf16.mxu0 0
      %2199 = vmatmul.mubr.bf16.gmra.mxu0 %v988
      %v2200 = vpop.f32.mrf.mxu0
      %v2201 = vadd.f32 %v2024, %v2200
      %v2202 = vpop.f32.mrf.mxu0
      %v2203 = vpop.f32.mrf.mxu0
      %v2204 = vadd.f32 %v2027, %v2203
      %v2205 = vpop.f32.mrf.mxu0
      %2206 = vmatprep.mubr.bf16.mxu0 0
      %2207 = vmatmul.mubr.bf16.gmra.mxu0 %v990
      %v2208 = vpop.f32.mrf.mxu0
      %v2209 = vadd.f32 %v2032, %v2208
      %v2210 = vpop.f32.mrf.mxu0
      %v2211 = vpop.f32.mrf.mxu0
      %v2212 = vadd.f32 %v2035, %v2211
      %v2213 = vpop.f32.mrf.mxu0
      %2214 = vmatprep.mubr.bf16.mxu0 0
      %2215 = vmatmul.mubr.bf16.gmra.mxu0 %v992
      %v2216 = vpop.f32.mrf.mxu0
      %v2217 = vadd.f32 %v2040, %v2216
      %v2218 = vpop.f32.mrf.mxu0
      %v2219 = vpop.f32.mrf.mxu0
      %v2220 = vadd.f32 %v2043, %v2219
      %v2221 = vpop.f32.mrf.mxu0
      %2222 = vmatprep.mubr.bf16.mxu0 0
      %2223 = vmatmul.mubr.bf16.gmra.mxu0 %v994
      %v2224 = vpop.f32.mrf.mxu0
      %v2225 = vadd.f32 %v2048, %v2224
      %v2226 = vpop.f32.mrf.mxu0
      %v2227 = vpop.f32.mrf.mxu0
      %v2228 = vadd.f32 %v2051, %v2227
      %v2229 = vpop.f32.mrf.mxu0
      %2230 = vdwg.mxu0
      %v2232 = vshll.u32 %v770, 16
      %v2234 = vrot.slane %v2232, 1
      %v2235 = vsel %vm771, %v1071, %v2234
      %v2236 = vshrl.u32 %v770, 16
      %v2238 = vor.u32 %v2236, %v2234
      %v2240 = vrot.slane %v770, 1
      %v2241 = vsel %vm957, %v1073, %v2240
      %s2242 = scalar_lea.vmem %s2, 384
      %v2243 = vld [vmem:[%s2242] sm:$0xf]
      %v2244 = vld [vmem:[%s2242 + $0x4] sm:$0xf]
      %v2245 = vld [vmem:[%s2242 + $0x8] sm:$0xf]
      %v2246 = vld [vmem:[%s2242 + $0xc] sm:$0xf]
      %v2247 = vld [vmem:[%s2242 + $0x10] sm:$0xf]
      %v2248 = vld [vmem:[%s2242 + $0x14] sm:$0xf]
      %v2249 = vld [vmem:[%s2242 + $0x18] sm:$0xf]
      %v2250 = vld [vmem:[%s2242 + $0x1c] sm:$0xf]
      %v2251 = vld [vmem:[%s2242 + $0x20] sm:$0xf]
      %v2252 = vld [vmem:[%s2242 + $0x24] sm:$0xf]
      %v2253 = vld [vmem:[%s2242 + $0x28] sm:$0xf]
      %v2254 = vld [vmem:[%s2242 + $0x2c] sm:$0xf]
      %v2255 = vld [vmem:[%s2242 + $0x30] sm:$0xf]
      %v2256 = vld [vmem:[%s2242 + $0x34] sm:$0xf]
      %v2257 = vld [vmem:[%s2242 + $0x38] sm:$0xf]
      %v2258 = vld [vmem:[%s2242 + $0x3c] sm:$0xf]
      %v2259 = vld [vmem:[%s2242 + $0x40] sm:$0xf]
      %v2260 = vld [vmem:[%s2242 + $0x44] sm:$0xf]
      %v2261 = vld [vmem:[%s2242 + $0x48] sm:$0xf]
      %v2262 = vld [vmem:[%s2242 + $0x4c] sm:$0xf]
      %v2263 = vld [vmem:[%s2242 + $0x50] sm:$0xf]
      %v2264 = vld [vmem:[%s2242 + $0x54] sm:$0xf]
      %v2265 = vld [vmem:[%s2242 + $0x58] sm:$0xf]
      %v2266 = vld [vmem:[%s2242 + $0x5c] sm:$0xf]
      %v2267 = vld [vmem:[%s2242 + $0x60] sm:$0xf]
      %v2268 = vld [vmem:[%s2242 + $0x64] sm:$0xf]
      %v2269 = vld [vmem:[%s2242 + $0x68] sm:$0xf]
      %v2270 = vld [vmem:[%s2242 + $0x6c] sm:$0xf]
      %v2271 = vld [vmem:[%s2242 + $0x70] sm:$0xf]
      %v2272 = vld [vmem:[%s2242 + $0x74] sm:$0xf]
      %v2273 = vld [vmem:[%s2242 + $0x78] sm:$0xf]
      %v2274 = vld [vmem:[%s2242 + $0x7c] sm:$0xf]
      %v2275 = vld [vmem:[%s2242 + $0x80] sm:$0xf]
      %v2276 = vld [vmem:[%s2242 + $0x84] sm:$0xf]
      %v2277 = vld [vmem:[%s2242 + $0x88] sm:$0xf]
      %v2278 = vld [vmem:[%s2242 + $0x8c] sm:$0xf]
      %v2279 = vld [vmem:[%s2242 + $0x90] sm:$0xf]
      %v2280 = vld [vmem:[%s2242 + $0x94] sm:$0xf]
      %v2281 = vld [vmem:[%s2242 + $0x98] sm:$0xf]
      %v2282 = vld [vmem:[%s2242 + $0x9c] sm:$0xf]
      %v2283 = vld [vmem:[%s2242 + $0xa0] sm:$0xf]
      %v2284 = vld [vmem:[%s2242 + $0xa4] sm:$0xf]
      %v2285 = vld [vmem:[%s2242 + $0xa8] sm:$0xf]
      %v2286 = vld [vmem:[%s2242 + $0xac] sm:$0xf]
      %v2287 = vld [vmem:[%s2242 + $0xb0] sm:$0xf]
      %v2288 = vld [vmem:[%s2242 + $0xb4] sm:$0xf]
      %v2289 = vld [vmem:[%s2242 + $0xb8] sm:$0xf]
      %v2290 = vld [vmem:[%s2242 + $0xbc] sm:$0xf]
      %vm2291 = vcmask 1045504
      %v2292 = vrot.slane %v752, 2
      %v2293 = vrot.slane %v753, 2
      %v2294 = vsel %vm2291, %v2292, %v2293
      %v2295 = vrot.slane %v799, 2
      %v2296 = vrot.slane %v807, 2
      %v2297 = vsel %vm2291, %v2295, %v2296
      %v2298 = vrot.slane %v964, 2
      %v2299 = vrot.slane %v966, 2
      %v2300 = vsel %vm2291, %v2298, %v2299
      %v2301 = vrot.slane %v754, 2
      %v2302 = vsel %vm2291, %v2293, %v2301
      %v2303 = vrot.slane %v815, 2
      %v2304 = vsel %vm2291, %v2296, %v2303
      %v2305 = vrot.slane %v968, 2
      %v2306 = vsel %vm2291, %v2299, %v2305
      %v2307 = vrot.slane %v755, 2
      %v2308 = vsel %vm2291, %v2301, %v2307
      %v2309 = vrot.slane %v823, 2
      %v2310 = vsel %vm2291, %v2303, %v2309
      %v2311 = vrot.slane %v970, 2
      %v2312 = vsel %vm2291, %v2305, %v2311
      %v2313 = vrot.slane %v756, 2
      %v2314 = vsel %vm2291, %v2307, %v2313
      %v2315 = vrot.slane %v831, 2
      %v2316 = vsel %vm2291, %v2309, %v2315
      %v2317 = vrot.slane %v972, 2
      %v2318 = vsel %vm2291, %v2311, %v2317
      %v2319 = vrot.slane %v757, 2
      %v2320 = vsel %vm2291, %v2313, %v2319
      %v2321 = vrot.slane %v839, 2
      %v2322 = vsel %vm2291, %v2315, %v2321
      %v2323 = vrot.slane %v974, 2
      %v2324 = vsel %vm2291, %v2317, %v2323
      %v2325 = vrot.slane %v758, 2
      %v2326 = vsel %vm2291, %v2319, %v2325
      %v2327 = vrot.slane %v847, 2
      %v2328 = vsel %vm2291, %v2321, %v2327
      %v2329 = vrot.slane %v976, 2
      %v2330 = vsel %vm2291, %v2323, %v2329
      %v2331 = vrot.slane %v759, 2
      %v2332 = vsel %vm2291, %v2325, %v2331
      %v2333 = vrot.slane %v855, 2
      %v2334 = vsel %vm2291, %v2327, %v2333
      %v2335 = vrot.slane %v978, 2
      %v2336 = vsel %vm2291, %v2329, %v2335
      %v2337 = vrot.slane %v760, 2
      %v2338 = vsel %vm2291, %v2331, %v2337
      %v2339 = vrot.slane %v863, 2
      %v2340 = vsel %vm2291, %v2333, %v2339
      %v2341 = vrot.slane %v980, 2
      %v2342 = vsel %vm2291, %v2335, %v2341
      %v2343 = vrot.slane %v761, 2
      %v2344 = vsel %vm2291, %v2337, %v2343
      %v2345 = vrot.slane %v871, 2
      %v2346 = vsel %vm2291, %v2339, %v2345
      %v2347 = vrot.slane %v982, 2
      %v2348 = vsel %vm2291, %v2341, %v2347
      %v2349 = vrot.slane %v762, 2
      %v2350 = vsel %vm2291, %v2343, %v2349
      %v2351 = vrot.slane %v879, 2
      %v2352 = vsel %vm2291, %v2345, %v2351
      %v2353 = vrot.slane %v984, 2
      %v2354 = vsel %vm2291, %v2347, %v2353
      %v2355 = vrot.slane %v763, 2
      %v2356 = vsel %vm2291, %v2349, %v2355
      %v2357 = vrot.slane %v887, 2
      %v2358 = vsel %vm2291, %v2351, %v2357
      %v2359 = vrot.slane %v986, 2
      %v2360 = vsel %vm2291, %v2353, %v2359
      %v2361 = vrot.slane %v764, 2
      %v2362 = vsel %vm2291, %v2355, %v2361
      %v2363 = vrot.slane %v895, 2
      %v2364 = vsel %vm2291, %v2357, %v2363
      %v2365 = vrot.slane %v988, 2
      %v2366 = vsel %vm2291, %v2359, %v2365
      %v2367 = vrot.slane %v765, 2
      %v2368 = vsel %vm2291, %v2361, %v2367
      %v2369 = vrot.slane %v903, 2
      %v2370 = vsel %vm2291, %v2363, %v2369
      %v2371 = vrot.slane %v990, 2
      %v2372 = vsel %vm2291, %v2365, %v2371
      %v2373 = vrot.slane %v766, 2
      %v2374 = vsel %vm2291, %v2367, %v2373
      %v2375 = vrot.slane %v911, 2
      %v2376 = vsel %vm2291, %v2369, %v2375
      %v2377 = vrot.slane %v992, 2
      %v2378 = vsel %vm2291, %v2371, %v2377
      %v2379 = vrot.slane %v767, 2
      %v2380 = vsel %vm2291, %v2373, %v2379
      %v2381 = vrot.slane %v919, 2
      %v2382 = vsel %vm2291, %v2375, %v2381
      %v2383 = vrot.slane %v994, 2
      %v2384 = vsel %vm2291, %v2377, %v2383
      %v2385 = vrot.slane %v768, 2
      %v2386 = vsel %vm2291, %v2379, %v2385
      %v2387 = vrot.slane %v1068, 2
      %v2388 = vsel %vm2291, %v2381, %v2387
      %v2389 = vrot.slane %v1074, 2
      %v2390 = vsel %vm2291, %v2383, %v2389
      %v2391 = vrot.slane %v769, 2
      %v2392 = vsel %vm2291, %v2385, %v2391
      %v2393 = vrot.slane %v2235, 2
      %v2394 = vsel %vm2291, %v2387, %v2393
      %v2395 = vrot.slane %v2241, 2
      %v2396 = vsel %vm2291, %v2389, %v2395
      %v2397 = vrot.slane %v770, 2
      %v2398 = vsel %vm2291, %v2391, %v2397
      %v2399 = vrot.slane %v2238, 2
      %v2400 = vsel %vm2291, %v2393, %v2399
      %v2401 = vrot.slane %v2240, 2
      %v2402 = vsel %vm2291, %v2395, %v2401
      %v2505 = vunpack.c.l.b16 %v2243
      %v2506 = vunpack.c.l.b16 %v2244
      %v2507 = vunpack.c.l.b16 %v2245
      %v2508 = vunpack.c.l.b16 %v2246
      %v2509 = vunpack.c.l.b16 %v2247
      %v2510 = vunpack.c.l.b16 %v2248
      %v2511 = vunpack.c.l.b16 %v2249
      %v2512 = vunpack.c.l.b16 %v2250
      %v2513 = vunpack.c.l.b16 %v2251
      %v2514 = vunpack.c.l.b16 %v2252
      %v2515 = vunpack.c.l.b16 %v2253
      %v2516 = vunpack.c.l.b16 %v2254
      %v2517 = vunpack.c.l.b16 %v2255
      %v2518 = vunpack.c.l.b16 %v2256
      %v2519 = vunpack.c.l.b16 %v2257
      %v2520 = vunpack.c.l.b16 %v2258
      %v2521 = vunpack.c.l.b16 %v2259
      %v2522 = vunpack.c.l.b16 %v2260
      %v2523 = vunpack.c.l.b16 %v2261
      %v2524 = vunpack.c.l.b16 %v2262
      %v2525 = vunpack.c.l.b16 %v2263
      %v2526 = vunpack.c.l.b16 %v2264
      %v2527 = vunpack.c.l.b16 %v2265
      %v2528 = vunpack.c.l.b16 %v2266
      %v2529 = vunpack.c.l.b16 %v2267
      %v2530 = vunpack.c.l.b16 %v2268
      %v2531 = vunpack.c.l.b16 %v2269
      %v2532 = vunpack.c.l.b16 %v2270
      %v2533 = vunpack.c.l.b16 %v2271
      %v2534 = vunpack.c.l.b16 %v2272
      %v2535 = vunpack.c.l.b16 %v2273
      %v2536 = vunpack.c.l.b16 %v2274
      %v2537 = vunpack.c.l.b16 %v2275
      %v2538 = vunpack.c.l.b16 %v2276
      %v2539 = vunpack.c.l.b16 %v2277
      %v2540 = vunpack.c.l.b16 %v2278
      %v2541 = vunpack.c.l.b16 %v2279
      %v2542 = vunpack.c.l.b16 %v2280
      %v2543 = vunpack.c.l.b16 %v2281
      %v2544 = vunpack.c.l.b16 %v2282
      %v2545 = vunpack.c.l.b16 %v2283
      %v2546 = vunpack.c.l.b16 %v2284
      %v2547 = vunpack.c.l.b16 %v2285
      %v2548 = vunpack.c.l.b16 %v2286
      %v2549 = vunpack.c.l.b16 %v2287
      %v2550 = vunpack.c.l.b16 %v2288
      %v2551 = vunpack.c.l.b16 %v2289
      %v2552 = vunpack.c.l.b16 %v2290
      %v2553 = vpack.c.b16 %v2506, %v2505
      %v2554 = vpack.c.b16 %v2508, %v2507
      %v2555 = vpack.c.b16 %v2510, %v2509
      %v2556 = vpack.c.b16 %v2512, %v2511
      %v2557 = vpack.c.b16 %v2514, %v2513
      %v2558 = vpack.c.b16 %v2516, %v2515
      %v2559 = vpack.c.b16 %v2518, %v2517
      %v2560 = vpack.c.b16 %v2520, %v2519
      %v2561 = vpack.c.b16 %v2522, %v2521
      %v2562 = vpack.c.b16 %v2524, %v2523
      %v2563 = vpack.c.b16 %v2526, %v2525
      %v2564 = vpack.c.b16 %v2528, %v2527
      %v2565 = vpack.c.b16 %v2530, %v2529
      %v2566 = vpack.c.b16 %v2532, %v2531
      %v2567 = vpack.c.b16 %v2534, %v2533
      %v2568 = vpack.c.b16 %v2536, %v2535
      %v2569 = vpack.c.b16 %v2538, %v2537
      %v2570 = vpack.c.b16 %v2540, %v2539
      %v2571 = vpack.c.b16 %v2542, %v2541
      %v2572 = vpack.c.b16 %v2544, %v2543
      %v2573 = vpack.c.b16 %v2546, %v2545
      %v2574 = vpack.c.b16 %v2548, %v2547
      %v2575 = vpack.c.b16 %v2550, %v2549
      %v2576 = vpack.c.b16 %v2552, %v2551
      %2601 = vmatprep.subr.bf16.mxu0 0
      %2602 = vmatpush1.bf16.msra.mxu0 %v2560
      %2603 = vmatprep.subr.bf16.mxu0 0
      %2604 = vmatpush1.bf16.msra.mxu0 %v2559
      %2605 = vmatprep.subr.bf16.mxu0 0
      %2606 = vmatpush1.bf16.msra.mxu0 %v2558
      %2607 = vmatprep.subr.bf16.mxu0 0
      %2608 = vmatpush1.bf16.msra.mxu0 %v2557
      %2609 = vmatprep.subr.bf16.mxu0 0
      %2610 = vmatpush1.bf16.msra.mxu0 %v2556
      %2611 = vmatprep.subr.bf16.mxu0 0
      %2612 = vmatpush1.bf16.msra.mxu0 %v2555
      %2613 = vmatprep.subr.bf16.mxu0 0
      %2614 = vmatpush1.bf16.msra.mxu0 %v2554
      %2615 = vmatprep.subr.bf16.mxu0 0
      %2616 = vmatpush1.bf16.msra.mxu0 %v2553
      %2617 = vmatprep.subr.bf16.mxu0 0
      %2618 = vmatpush2.bf16.msra.mxu0 %v2568
      %2619 = vmatprep.subr.bf16.mxu0 0
      %2620 = vmatpush2.bf16.msra.mxu0 %v2567
      %2621 = vmatprep.subr.bf16.mxu0 0
      %2622 = vmatpush2.bf16.msra.mxu0 %v2566
      %2623 = vmatprep.subr.bf16.mxu0 0
      %2624 = vmatpush2.bf16.msra.mxu0 %v2565
      %2625 = vmatprep.subr.bf16.mxu0 0
      %2626 = vmatpush2.bf16.msra.mxu0 %v2564
      %2627 = vmatprep.subr.bf16.mxu0 0
      %2628 = vmatpush2.bf16.msra.mxu0 %v2563
      %2629 = vmatprep.subr.bf16.mxu0 0
      %2630 = vmatpush2.bf16.msra.mxu0 %v2562
      %2631 = vmatprep.subr.bf16.mxu0 0
      %2632 = vmatpush2.bf16.msra.mxu0 %v2561
      %2633 = vmatprep.mubr.bf16.mxu0 %v2297
      %2634 = vmatmul.mubr.bf16.gmra.mxu0 %v2294
      %v2635 = vpop.f32.mrf.mxu0
      %v2636 = vadd.f32 0.0, %v2635
      %v2637 = vpop.f32.mrf.mxu0
      %v2638 = vpop.f32.mrf.mxu0
      %v2639 = vadd.f32 0.0, %v2638
      %v2640 = vpop.f32.mrf.mxu0
      %2641 = vmatprep.mubr.bf16.mxu0 %v2304
      %2642 = vmatmul.mubr.bf16.gmra.mxu0 %v2302
      %v2643 = vpop.f32.mrf.mxu0
      %v2644 = vadd.f32 0.0, %v2643
      %v2645 = vpop.f32.mrf.mxu0
      %v2646 = vpop.f32.mrf.mxu0
      %v2647 = vadd.f32 0.0, %v2646
      %v2648 = vpop.f32.mrf.mxu0
      %2649 = vmatprep.mubr.bf16.mxu0 %v2310
      %2650 = vmatmul.mubr.bf16.gmra.mxu0 %v2308
      %v2651 = vpop.f32.mrf.mxu0
      %v2652 = vadd.f32 0.0, %v2651
      %v2653 = vpop.f32.mrf.mxu0
      %v2654 = vpop.f32.mrf.mxu0
      %v2655 = vadd.f32 0.0, %v2654
      %v2656 = vpop.f32.mrf.mxu0
      %2657 = vmatprep.mubr.bf16.mxu0 %v2316
      %2658 = vmatmul.mubr.bf16.gmra.mxu0 %v2314
      %v2659 = vpop.f32.mrf.mxu0
      %v2660 = vadd.f32 0.0, %v2659
      %v2661 = vpop.f32.mrf.mxu0
      %v2662 = vpop.f32.mrf.mxu0
      %v2663 = vadd.f32 0.0, %v2662
      %v2664 = vpop.f32.mrf.mxu0
      %2665 = vmatprep.mubr.bf16.mxu0 %v2322
      %2666 = vmatmul.mubr.bf16.gmra.mxu0 %v2320
      %v2667 = vpop.f32.mrf.mxu0
      %v2668 = vadd.f32 0.0, %v2667
      %v2669 = vpop.f32.mrf.mxu0
      %v2670 = vpop.f32.mrf.mxu0
      %v2671 = vadd.f32 0.0, %v2670
      %v2672 = vpop.f32.mrf.mxu0
      %2673 = vmatprep.mubr.bf16.mxu0 %v2328
      %2674 = vmatmul.mubr.bf16.gmra.mxu0 %v2326
      %v2675 = vpop.f32.mrf.mxu0
      %v2676 = vadd.f32 0.0, %v2675
      %v2677 = vpop.f32.mrf.mxu0
      %v2678 = vpop.f32.mrf.mxu0
      %v2679 = vadd.f32 0.0, %v2678
      %v2680 = vpop.f32.mrf.mxu0
      %2681 = vmatprep.mubr.bf16.mxu0 %v2334
      %2682 = vmatmul.mubr.bf16.gmra.mxu0 %v2332
      %v2683 = vpop.f32.mrf.mxu0
      %v2684 = vadd.f32 0.0, %v2683
      %v2685 = vpop.f32.mrf.mxu0
      %v2686 = vpop.f32.mrf.mxu0
      %v2687 = vadd.f32 0.0, %v2686
      %v2688 = vpop.f32.mrf.mxu0
      %2689 = vmatprep.mubr.bf16.mxu0 %v2340
      %2690 = vmatmul.mubr.bf16.gmra.mxu0 %v2338
      %v2691 = vpop.f32.mrf.mxu0
      %v2692 = vadd.f32 0.0, %v2691
      %v2693 = vpop.f32.mrf.mxu0
      %v2694 = vpop.f32.mrf.mxu0
      %v2695 = vadd.f32 0.0, %v2694
      %v2696 = vpop.f32.mrf.mxu0
      %2697 = vmatprep.mubr.bf16.mxu0 %v2346
      %2698 = vmatmul.mubr.bf16.gmra.mxu0 %v2344
      %v2699 = vpop.f32.mrf.mxu0
      %v2700 = vadd.f32 0.0, %v2699
      %v2701 = vpop.f32.mrf.mxu0
      %v2702 = vpop.f32.mrf.mxu0
      %v2703 = vadd.f32 0.0, %v2702
      %v2704 = vpop.f32.mrf.mxu0
      %2705 = vmatprep.mubr.bf16.mxu0 %v2352
      %2706 = vmatmul.mubr.bf16.gmra.mxu0 %v2350
      %v2707 = vpop.f32.mrf.mxu0
      %v2708 = vadd.f32 0.0, %v2707
      %v2709 = vpop.f32.mrf.mxu0
      %v2710 = vpop.f32.mrf.mxu0
      %v2711 = vadd.f32 0.0, %v2710
      %v2712 = vpop.f32.mrf.mxu0
      %2713 = vmatprep.mubr.bf16.mxu0 %v2358
      %2714 = vmatmul.mubr.bf16.gmra.mxu0 %v2356
      %v2715 = vpop.f32.mrf.mxu0
      %v2716 = vadd.f32 0.0, %v2715
      %v2717 = vpop.f32.mrf.mxu0
      %v2718 = vpop.f32.mrf.mxu0
      %v2719 = vadd.f32 0.0, %v2718
      %v2720 = vpop.f32.mrf.mxu0
      %2721 = vmatprep.mubr.bf16.mxu0 %v2364
      %2722 = vmatmul.mubr.bf16.gmra.mxu0 %v2362
      %v2723 = vpop.f32.mrf.mxu0
      %v2724 = vadd.f32 0.0, %v2723
      %v2725 = vpop.f32.mrf.mxu0
      %v2726 = vpop.f32.mrf.mxu0
      %v2727 = vadd.f32 0.0, %v2726
      %v2728 = vpop.f32.mrf.mxu0
      %2729 = vmatprep.mubr.bf16.mxu0 %v2370
      %2730 = vmatmul.mubr.bf16.gmra.mxu0 %v2368
      %v2731 = vpop.f32.mrf.mxu0
      %v2732 = vadd.f32 0.0, %v2731
      %v2733 = vpop.f32.mrf.mxu0
      %v2734 = vpop.f32.mrf.mxu0
      %v2735 = vadd.f32 0.0, %v2734
      %v2736 = vpop.f32.mrf.mxu0
      %2737 = vmatprep.mubr.bf16.mxu0 %v2376
      %2738 = vmatmul.mubr.bf16.gmra.mxu0 %v2374
      %v2739 = vpop.f32.mrf.mxu0
      %v2740 = vadd.f32 0.0, %v2739
      %v2741 = vpop.f32.mrf.mxu0
      %v2742 = vpop.f32.mrf.mxu0
      %v2743 = vadd.f32 0.0, %v2742
      %v2744 = vpop.f32.mrf.mxu0
      %2745 = vmatprep.mubr.bf16.mxu0 %v2382
      %2746 = vmatmul.mubr.bf16.gmra.mxu0 %v2380
      %v2747 = vpop.f32.mrf.mxu0
      %v2748 = vadd.f32 0.0, %v2747
      %v2749 = vpop.f32.mrf.mxu0
      %v2750 = vpop.f32.mrf.mxu0
      %v2751 = vadd.f32 0.0, %v2750
      %v2752 = vpop.f32.mrf.mxu0
      %2753 = vmatprep.mubr.bf16.mxu0 %v2388
      %2754 = vmatmul.mubr.bf16.gmra.mxu0 %v2386
      %v2755 = vpop.f32.mrf.mxu0
      %v2756 = vadd.f32 0.0, %v2755
      %v2757 = vpop.f32.mrf.mxu0
      %v2758 = vpop.f32.mrf.mxu0
      %v2759 = vadd.f32 0.0, %v2758
      %v2760 = vpop.f32.mrf.mxu0
      %2761 = vmatprep.mubr.bf16.mxu0 %v2394
      %2762 = vmatmul.mubr.bf16.gmra.mxu0 %v2392
      %v2763 = vpop.f32.mrf.mxu0
      %v2764 = vadd.f32 0.0, %v2763
      %v2765 = vpop.f32.mrf.mxu0
      %v2766 = vpop.f32.mrf.mxu0
      %v2767 = vadd.f32 0.0, %v2766
      %v2768 = vpop.f32.mrf.mxu0
      %2769 = vmatprep.mubr.bf16.mxu0 %v2400
      %2770 = vmatmul.mubr.bf16.gmra.mxu0 %v2398
      %v2771 = vpop.f32.mrf.mxu0
      %v2772 = vadd.f32 0.0, %v2771
      %v2773 = vpop.f32.mrf.mxu0
      %v2774 = vpop.f32.mrf.mxu0
      %v2775 = vadd.f32 0.0, %v2774
      %v2776 = vpop.f32.mrf.mxu0
      %2777 = vdwg.mxu0
      %2778 = vmatprep.subr.bf16.mxu0 0
      %2779 = vmatpush1.bf16.msra.mxu0 %v2576
      %2780 = vmatprep.subr.bf16.mxu0 0
      %2781 = vmatpush1.bf16.msra.mxu0 %v2575
      %2782 = vmatprep.subr.bf16.mxu0 0
      %2783 = vmatpush1.bf16.msra.mxu0 %v2574
      %2784 = vmatprep.subr.bf16.mxu0 0
      %2785 = vmatpush1.bf16.msra.mxu0 %v2573
      %2786 = vmatprep.subr.bf16.mxu0 0
      %2787 = vmatpush1.bf16.msra.mxu0 %v2572
      %2788 = vmatprep.subr.bf16.mxu0 0
      %2789 = vmatpush1.bf16.msra.mxu0 %v2571
      %2790 = vmatprep.subr.bf16.mxu0 0
      %2791 = vmatpush1.bf16.msra.mxu0 %v2570
      %2792 = vmatprep.subr.bf16.mxu0 0
      %2793 = vmatpush1.bf16.msra.mxu0 %v2569
      %2794 = vmatprep.subr.bf16.mxu0 0
      %2795 = vmatpush2.bf16.msra.mxu0 0
      %2796 = vmatprep.subr.bf16.mxu0 0
      %2797 = vmatpush2.bf16.msra.mxu0 0
      %2798 = vmatprep.subr.bf16.mxu0 0
      %2799 = vmatpush2.bf16.msra.mxu0 0
      %2800 = vmatprep.subr.bf16.mxu0 0
      %2801 = vmatpush2.bf16.msra.mxu0 0
      %2802 = vmatprep.subr.bf16.mxu0 0
      %2803 = vmatpush2.bf16.msra.mxu0 0
      %2804 = vmatprep.subr.bf16.mxu0 0
      %2805 = vmatpush2.bf16.msra.mxu0 0
      %2806 = vmatprep.subr.bf16.mxu0 0
      %2807 = vmatpush2.bf16.msra.mxu0 0
      %2808 = vmatprep.subr.bf16.mxu0 0
      %2809 = vmatpush2.bf16.msra.mxu0 0
      %2810 = vmatprep.mubr.bf16.mxu0 0
      %2811 = vmatmul.mubr.bf16.gmra.mxu0 %v2300
      %v2812 = vpop.f32.mrf.mxu0
      %v2813 = vadd.f32 %v2636, %v2812
      %v2814 = vpop.f32.mrf.mxu0
      %v2815 = vpop.f32.mrf.mxu0
      %v2816 = vadd.f32 %v2639, %v2815
      %v2817 = vpop.f32.mrf.mxu0
      %2818 = vmatprep.mubr.bf16.mxu0 0
      %2819 = vmatmul.mubr.bf16.gmra.mxu0 %v2306
      %v2820 = vpop.f32.mrf.mxu0
      %v2821 = vadd.f32 %v2644, %v2820
      %v2822 = vpop.f32.mrf.mxu0
      %v2823 = vpop.f32.mrf.mxu0
      %v2824 = vadd.f32 %v2647, %v2823
      %v2825 = vpop.f32.mrf.mxu0
      %2826 = vmatprep.mubr.bf16.mxu0 0
      %2827 = vmatmul.mubr.bf16.gmra.mxu0 %v2312
      %v2828 = vpop.f32.mrf.mxu0
      %v2829 = vadd.f32 %v2652, %v2828
      %v2830 = vpop.f32.mrf.mxu0
      %v2831 = vpop.f32.mrf.mxu0
      %v2832 = vadd.f32 %v2655, %v2831
      %v2833 = vpop.f32.mrf.mxu0
      %2834 = vmatprep.mubr.bf16.mxu0 0
      %2835 = vmatmul.mubr.bf16.gmra.mxu0 %v2318
      %v2836 = vpop.f32.mrf.mxu0
      %v2837 = vadd.f32 %v2660, %v2836
      %v2838 = vpop.f32.mrf.mxu0
      %v2839 = vpop.f32.mrf.mxu0
      %v2840 = vadd.f32 %v2663, %v2839
      %v2841 = vpop.f32.mrf.mxu0
      %2842 = vmatprep.mubr.bf16.mxu0 0
      %2843 = vmatmul.mubr.bf16.gmra.mxu0 %v2324
      %v2844 = vpop.f32.mrf.mxu0
      %v2845 = vadd.f32 %v2668, %v2844
      %v2846 = vpop.f32.mrf.mxu0
      %v2847 = vpop.f32.mrf.mxu0
      %v2848 = vadd.f32 %v2671, %v2847
      %v2849 = vpop.f32.mrf.mxu0
      %2850 = vmatprep.mubr.bf16.mxu0 0
      %2851 = vmatmul.mubr.bf16.gmra.mxu0 %v2330
      %v2852 = vpop.f32.mrf.mxu0
      %v2853 = vadd.f32 %v2676, %v2852
      %v2854 = vpop.f32.mrf.mxu0
      %v2855 = vpop.f32.mrf.mxu0
      %v2856 = vadd.f32 %v2679, %v2855
      %v2857 = vpop.f32.mrf.mxu0
      %2858 = vmatprep.mubr.bf16.mxu0 0
      %2859 = vmatmul.mubr.bf16.gmra.mxu0 %v2336
      %v2860 = vpop.f32.mrf.mxu0
      %v2861 = vadd.f32 %v2684, %v2860
      %v2862 = vpop.f32.mrf.mxu0
      %v2863 = vpop.f32.mrf.mxu0
      %v2864 = vadd.f32 %v2687, %v2863
      %v2865 = vpop.f32.mrf.mxu0
      %2866 = vmatprep.mubr.bf16.mxu0 0
      %2867 = vmatmul.mubr.bf16.gmra.mxu0 %v2342
      %v2868 = vpop.f32.mrf.mxu0
      %v2869 = vadd.f32 %v2692, %v2868
      %v2870 = vpop.f32.mrf.mxu0
      %v2871 = vpop.f32.mrf.mxu0
      %v2872 = vadd.f32 %v2695, %v2871
      %v2873 = vpop.f32.mrf.mxu0
      %2874 = vmatprep.mubr.bf16.mxu0 0
      %2875 = vmatmul.mubr.bf16.gmra.mxu0 %v2348
      %v2876 = vpop.f32.mrf.mxu0
      %v2877 = vadd.f32 %v2700, %v2876
      %v2878 = vpop.f32.mrf.mxu0
      %v2879 = vpop.f32.mrf.mxu0
      %v2880 = vadd.f32 %v2703, %v2879
      %v2881 = vpop.f32.mrf.mxu0
      %2882 = vmatprep.mubr.bf16.mxu0 0
      %2883 = vmatmul.mubr.bf16.gmra.mxu0 %v2354
      %v2884 = vpop.f32.mrf.mxu0
      %v2885 = vadd.f32 %v2708, %v2884
      %v2886 = vpop.f32.mrf.mxu0
      %v2887 = vpop.f32.mrf.mxu0
      %v2888 = vadd.f32 %v2711, %v2887
      %v2889 = vpop.f32.mrf.mxu0
      %2890 = vmatprep.mubr.bf16.mxu0 0
      %2891 = vmatmul.mubr.bf16.gmra.mxu0 %v2360
      %v2892 = vpop.f32.mrf.mxu0
      %v2893 = vadd.f32 %v2716, %v2892
      %v2894 = vpop.f32.mrf.mxu0
      %v2895 = vpop.f32.mrf.mxu0
      %v2896 = vadd.f32 %v2719, %v2895
      %v2897 = vpop.f32.mrf.mxu0
      %2898 = vmatprep.mubr.bf16.mxu0 0
      %2899 = vmatmul.mubr.bf16.gmra.mxu0 %v2366
      %v2900 = vpop.f32.mrf.mxu0
      %v2901 = vadd.f32 %v2724, %v2900
      %v2902 = vpop.f32.mrf.mxu0
      %v2903 = vpop.f32.mrf.mxu0
      %v2904 = vadd.f32 %v2727, %v2903
      %v2905 = vpop.f32.mrf.mxu0
      %2906 = vmatprep.mubr.bf16.mxu0 0
      %2907 = vmatmul.mubr.bf16.gmra.mxu0 %v2372
      %v2908 = vpop.f32.mrf.mxu0
      %v2909 = vadd.f32 %v2732, %v2908
      %v2910 = vpop.f32.mrf.mxu0
      %v2911 = vpop.f32.mrf.mxu0
      %v2912 = vadd.f32 %v2735, %v2911
      %v2913 = vpop.f32.mrf.mxu0
      %2914 = vmatprep.mubr.bf16.mxu0 0
      %2915 = vmatmul.mubr.bf16.gmra.mxu0 %v2378
      %v2916 = vpop.f32.mrf.mxu0
      %v2917 = vadd.f32 %v2740, %v2916
      %v2918 = vpop.f32.mrf.mxu0
      %v2919 = vpop.f32.mrf.mxu0
      %v2920 = vadd.f32 %v2743, %v2919
      %v2921 = vpop.f32.mrf.mxu0
      %2922 = vmatprep.mubr.bf16.mxu0 0
      %2923 = vmatmul.mubr.bf16.gmra.mxu0 %v2384
      %v2924 = vpop.f32.mrf.mxu0
      %v2925 = vadd.f32 %v2748, %v2924
      %v2926 = vpop.f32.mrf.mxu0
      %v2927 = vpop.f32.mrf.mxu0
      %v2928 = vadd.f32 %v2751, %v2927
      %v2929 = vpop.f32.mrf.mxu0
      %2930 = vmatprep.mubr.bf16.mxu0 0
      %2931 = vmatmul.mubr.bf16.gmra.mxu0 %v2390
      %v2932 = vpop.f32.mrf.mxu0
      %v2933 = vadd.f32 %v2756, %v2932
      %v2934 = vpop.f32.mrf.mxu0
      %v2935 = vpop.f32.mrf.mxu0
      %v2936 = vadd.f32 %v2759, %v2935
      %v2937 = vpop.f32.mrf.mxu0
      %2938 = vmatprep.mubr.bf16.mxu0 0
      %2939 = vmatmul.mubr.bf16.gmra.mxu0 %v2396
      %v2940 = vpop.f32.mrf.mxu0
      %v2941 = vadd.f32 %v2764, %v2940
      %v2942 = vpop.f32.mrf.mxu0
      %v2943 = vpop.f32.mrf.mxu0
      %v2944 = vadd.f32 %v2767, %v2943
      %v2945 = vpop.f32.mrf.mxu0
      %2946 = vmatprep.mubr.bf16.mxu0 0
      %2947 = vmatmul.mubr.bf16.gmra.mxu0 %v2402
      %v2948 = vpop.f32.mrf.mxu0
      %v2949 = vadd.f32 %v2772, %v2948
      %v2950 = vpop.f32.mrf.mxu0
      %v2951 = vpop.f32.mrf.mxu0
      %v2952 = vadd.f32 %v2775, %v2951
      %v2953 = vpop.f32.mrf.mxu0
      %2954 = vdwg.mxu0
      %v2955 = vadd.f32 %v2089, %v2813
      %v2956 = vadd.f32 %v2092, %v2816
      %v2957 = vadd.f32 %v2097, %v2821
      %v2958 = vadd.f32 %v2100, %v2824
      %v2959 = vadd.f32 %v2105, %v2829
      %v2960 = vadd.f32 %v2108, %v2832
      %v2961 = vadd.f32 %v2113, %v2837
      %v2962 = vadd.f32 %v2116, %v2840
      %v2963 = vadd.f32 %v2121, %v2845
      %v2964 = vadd.f32 %v2124, %v2848
      %v2965 = vadd.f32 %v2129, %v2853
      %v2966 = vadd.f32 %v2132, %v2856
      %v2967 = vadd.f32 %v2137, %v2861
      %v2968 = vadd.f32 %v2140, %v2864
      %v2969 = vadd.f32 %v2145, %v2869
      %v2970 = vadd.f32 %v2148, %v2872
      %v2971 = vadd.f32 %v2153, %v2877
      %v2972 = vadd.f32 %v2156, %v2880
      %v2973 = vadd.f32 %v2161, %v2885
      %v2974 = vadd.f32 %v2164, %v2888
      %v2975 = vadd.f32 %v2169, %v2893
      %v2976 = vadd.f32 %v2172, %v2896
      %v2977 = vadd.f32 %v2177, %v2901
      %v2978 = vadd.f32 %v2180, %v2904
      %v2979 = vadd.f32 %v2185, %v2909
      %v2980 = vadd.f32 %v2188, %v2912
      %v2981 = vadd.f32 %v2193, %v2917
      %v2982 = vadd.f32 %v2196, %v2920
      %v2983 = vadd.f32 %v2201, %v2925
      %v2984 = vadd.f32 %v2204, %v2928
      %v2985 = vadd.f32 %v2209, %v2933
      %v2986 = vadd.f32 %v2212, %v2936
      %v2987 = vadd.f32 %v2217, %v2941
      %v2988 = vadd.f32 %v2220, %v2944
      %v2989 = vadd.f32 %v2225, %v2949
      %v2990 = vadd.f32 %v2228, %v2952
      %v2991 = vld [vmem:[%s3] sm:$0x1]
      %v2993 = vlaneseq
      %v2994 = vshrl.u32 %v2993, 7
      %v2995 = vsub.s32 0, %v2994
      %v2996 = vrot.slane %v2991, %v2995
      %v2998 = vadd.f32 %v2955, %v2996
      %v2999 = vadd.f32 %v2956, %v2996
      %v3000 = vadd.f32 %v2957, %v2996
      %v3001 = vadd.f32 %v2958, %v2996
      %v3002 = vadd.f32 %v2959, %v2996
      %v3003 = vadd.f32 %v2960, %v2996
      %v3004 = vadd.f32 %v2961, %v2996
      %v3005 = vadd.f32 %v2962, %v2996
      %v3006 = vadd.f32 %v2963, %v2996
      %v3007 = vadd.f32 %v2964, %v2996
      %v3008 = vadd.f32 %v2965, %v2996
      %v3009 = vadd.f32 %v2966, %v2996
      %v3010 = vadd.f32 %v2967, %v2996
      %v3011 = vadd.f32 %v2968, %v2996
      %v3012 = vadd.f32 %v2969, %v2996
      %v3013 = vadd.f32 %v2970, %v2996
      %v3014 = vadd.f32 %v2971, %v2996
      %v3015 = vadd.f32 %v2972, %v2996
      %v3016 = vadd.f32 %v2973, %v2996
      %v3017 = vadd.f32 %v2974, %v2996
      %v3018 = vadd.f32 %v2975, %v2996
      %v3019 = vadd.f32 %v2976, %v2996
      %v3020 = vadd.f32 %v2977, %v2996
      %v3021 = vadd.f32 %v2978, %v2996
      %v3022 = vadd.f32 %v2979, %v2996
      %v3023 = vadd.f32 %v2980, %v2996
      %v3024 = vadd.f32 %v2981, %v2996
      %v3025 = vadd.f32 %v2982, %v2996
      %v3026 = vadd.f32 %v2983, %v2996
      %v3027 = vadd.f32 %v2984, %v2996
      %v3028 = vadd.f32 %v2985, %v2996
      %v3029 = vadd.f32 %v2986, %v2996
      %v3030 = vadd.f32 %v2987, %v2996
      %v3031 = vadd.f32 %v2988, %v2996
      %v3032 = vadd.f32 %v2989, %v2996
      %v3033 = vadd.f32 %v2990, %v2996
      %v3034 = vmax.f32 %v2998, 0.0
      %v3035 = vmax.f32 %v2999, 0.0
      %v3036 = vmax.f32 %v3000, 0.0
      %v3037 = vmax.f32 %v3001, 0.0
      %v3038 = vmax.f32 %v3002, 0.0
      %v3039 = vmax.f32 %v3003, 0.0
      %v3040 = vmax.f32 %v3004, 0.0
      %v3041 = vmax.f32 %v3005, 0.0
      %v3042 = vmax.f32 %v3006, 0.0
      %v3043 = vmax.f32 %v3007, 0.0
      %v3044 = vmax.f32 %v3008, 0.0
      %v3045 = vmax.f32 %v3009, 0.0
      %v3046 = vmax.f32 %v3010, 0.0
      %v3047 = vmax.f32 %v3011, 0.0
      %v3048 = vmax.f32 %v3012, 0.0
      %v3049 = vmax.f32 %v3013, 0.0
      %v3050 = vmax.f32 %v3014, 0.0
      %v3051 = vmax.f32 %v3015, 0.0
      %v3052 = vmax.f32 %v3016, 0.0
      %v3053 = vmax.f32 %v3017, 0.0
      %v3054 = vmax.f32 %v3018, 0.0
      %v3055 = vmax.f32 %v3019, 0.0
      %v3056 = vmax.f32 %v3020, 0.0
      %v3057 = vmax.f32 %v3021, 0.0
      %v3058 = vmax.f32 %v3022, 0.0
      %v3059 = vmax.f32 %v3023, 0.0
      %v3060 = vmax.f32 %v3024, 0.0
      %v3061 = vmax.f32 %v3025, 0.0
      %v3062 = vmax.f32 %v3026, 0.0
      %v3063 = vmax.f32 %v3027, 0.0
      %v3064 = vmax.f32 %v3028, 0.0
      %v3065 = vmax.f32 %v3029, 0.0
      %v3066 = vmax.f32 %v3030, 0.0
      %v3067 = vmax.f32 %v3031, 0.0
      %v3068 = vmax.f32 %v3032, 0.0
      %v3069 = vmax.f32 %v3033, 0.0
      %v3070 = vpack.c.bf16 %v3035, %v3034
      %v3071 = vpack.c.bf16 %v3037, %v3036
      %v3072 = vpack.c.bf16 %v3039, %v3038
      %v3073 = vpack.c.bf16 %v3041, %v3040
      %v3074 = vpack.c.bf16 %v3043, %v3042
      %v3075 = vpack.c.bf16 %v3045, %v3044
      %v3076 = vpack.c.bf16 %v3047, %v3046
      %v3077 = vpack.c.bf16 %v3049, %v3048
      %v3078 = vpack.c.bf16 %v3051, %v3050
      %v3079 = vpack.c.bf16 %v3053, %v3052
      %v3080 = vpack.c.bf16 %v3055, %v3054
      %v3081 = vpack.c.bf16 %v3057, %v3056
      %v3082 = vpack.c.bf16 %v3059, %v3058
      %v3083 = vpack.c.bf16 %v3061, %v3060
      %v3084 = vpack.c.bf16 %v3063, %v3062
      %v3085 = vpack.c.bf16 %v3065, %v3064
      %v3086 = vpack.c.bf16 %v3067, %v3066
      %v3087 = vpack.c.bf16 %v3069, %v3068
      %v3088 = vld [vmem:[%s4] sm:$0xf]
      %v3089 = vld [vmem:[%s4 + $0x4] sm:$0xf]
      %v3090 = vld [vmem:[%s4 + $0x8] sm:$0xf]
      %v3091 = vld [vmem:[%s4 + $0xc] sm:$0xf]
      %v3092 = vld [vmem:[%s4 + $0x10] sm:$0xf]
      %v3093 = vld [vmem:[%s4 + $0x14] sm:$0xf]
      %v3094 = vld [vmem:[%s4 + $0x18] sm:$0xf]
      %v3095 = vld [vmem:[%s4 + $0x1c] sm:$0xf]
      %v3096 = vld [vmem:[%s4 + $0x20] sm:$0xf]
      %v3097 = vld [vmem:[%s4 + $0x24] sm:$0xf]
      %v3098 = vld [vmem:[%s4 + $0x28] sm:$0xf]
      %v3099 = vld [vmem:[%s4 + $0x2c] sm:$0xf]
      %v3100 = vld [vmem:[%s4 + $0x30] sm:$0xf]
      %v3101 = vld [vmem:[%s4 + $0x34] sm:$0xf]
      %v3102 = vld [vmem:[%s4 + $0x38] sm:$0xf]
      %v3103 = vld [vmem:[%s4 + $0x3c] sm:$0xf]
      %v3104 = vld [vmem:[%s5] sm:$0x1]
      %v3106 = vlaneseq
      %v3107 = vshrl.u32 %v3106, 7
      %v3108 = vsub.s32 0, %v3107
      %v3109 = vrot.slane %v3104, %v3108
      %v3127 = vunpack.c.l.b16 %v3088
      %v3128 = vunpack.c.l.b16 %v3089
      %v3129 = vunpack.c.l.b16 %v3090
      %v3130 = vunpack.c.l.b16 %v3091
      %v3131 = vunpack.c.l.b16 %v3092
      %v3132 = vunpack.c.l.b16 %v3093
      %v3133 = vunpack.c.l.b16 %v3094
      %v3134 = vunpack.c.l.b16 %v3095
      %v3135 = vunpack.c.l.b16 %v3096
      %v3136 = vunpack.c.l.b16 %v3097
      %v3137 = vunpack.c.l.b16 %v3098
      %v3138 = vunpack.c.l.b16 %v3099
      %v3139 = vunpack.c.l.b16 %v3100
      %v3140 = vunpack.c.l.b16 %v3101
      %v3141 = vunpack.c.l.b16 %v3102
      %v3142 = vunpack.c.l.b16 %v3103
      %v3143 = vpack.c.b16 %v3128, %v3127
      %v3144 = vpack.c.b16 %v3130, %v3129
      %v3145 = vpack.c.b16 %v3132, %v3131
      %v3146 = vpack.c.b16 %v3134, %v3133
      %v3147 = vpack.c.b16 %v3136, %v3135
      %v3148 = vpack.c.b16 %v3138, %v3137
      %v3149 = vpack.c.b16 %v3140, %v3139
      %v3150 = vpack.c.b16 %v3142, %v3141
      %3159 = vmatprep.subr.bf16.mxu0 0
      %3160 = vmatpush1.bf16.msra.mxu0 %v3150
      %3161 = vmatprep.subr.bf16.mxu0 0
      %3162 = vmatpush1.bf16.msra.mxu0 %v3149
      %3163 = vmatprep.subr.bf16.mxu0 0
      %3164 = vmatpush1.bf16.msra.mxu0 %v3148
      %3165 = vmatprep.subr.bf16.mxu0 0
      %3166 = vmatpush1.bf16.msra.mxu0 %v3147
      %3167 = vmatprep.subr.bf16.mxu0 0
      %3168 = vmatpush1.bf16.msra.mxu0 %v3146
      %3169 = vmatprep.subr.bf16.mxu0 0
      %3170 = vmatpush1.bf16.msra.mxu0 %v3145
      %3171 = vmatprep.subr.bf16.mxu0 0
      %3172 = vmatpush1.bf16.msra.mxu0 %v3144
      %3173 = vmatprep.subr.bf16.mxu0 0
      %3174 = vmatpush1.bf16.msra.mxu0 %v3143
      %3175 = vmatprep.subr.bf16.mxu0 0
      %3176 = vmatpush2.bf16.msra.mxu0 0
      %3177 = vmatprep.subr.bf16.mxu0 0
      %3178 = vmatpush2.bf16.msra.mxu0 0
      %3179 = vmatprep.subr.bf16.mxu0 0
      %3180 = vmatpush2.bf16.msra.mxu0 0
      %3181 = vmatprep.subr.bf16.mxu0 0
      %3182 = vmatpush2.bf16.msra.mxu0 0
      %3183 = vmatprep.subr.bf16.mxu0 0
      %3184 = vmatpush2.bf16.msra.mxu0 0
      %3185 = vmatprep.subr.bf16.mxu0 0
      %3186 = vmatpush2.bf16.msra.mxu0 0
      %3187 = vmatprep.subr.bf16.mxu0 0
      %3188 = vmatpush2.bf16.msra.mxu0 0
      %3189 = vmatprep.subr.bf16.mxu0 0
      %3190 = vmatpush2.bf16.msra.mxu0 0
      %3191 = vmatprep.mubr.bf16.mxu0 0
      %3192 = vmatmul.mubr.bf16.gmra.mxu0 %v3070
      %v3193 = vpop.f32.mrf.mxu0
      %v3194 = vadd.f32 %v3109, %v3193
      %v3195 = vpop.f32.mrf.mxu0
      %v3196 = vpop.f32.mrf.mxu0
      %v3197 = vadd.f32 %v3109, %v3196
      %v3198 = vpop.f32.mrf.mxu0
      %3199 = vmatprep.mubr.bf16.mxu0 0
      %3200 = vmatmul.mubr.bf16.gmra.mxu0 %v3071
      %v3201 = vpop.f32.mrf.mxu0
      %v3202 = vadd.f32 %v3109, %v3201
      %v3203 = vpop.f32.mrf.mxu0
      %v3204 = vpop.f32.mrf.mxu0
      %v3205 = vadd.f32 %v3109, %v3204
      %v3206 = vpop.f32.mrf.mxu0
      %3207 = vmatprep.mubr.bf16.mxu0 0
      %3208 = vmatmul.mubr.bf16.gmra.mxu0 %v3072
      %v3209 = vpop.f32.mrf.mxu0
      %v3210 = vadd.f32 %v3109, %v3209
      %v3211 = vpop.f32.mrf.mxu0
      %v3212 = vpop.f32.mrf.mxu0
      %v3213 = vadd.f32 %v3109, %v3212
      %v3214 = vpop.f32.mrf.mxu0
      %3215 = vmatprep.mubr.bf16.mxu0 0
      %3216 = vmatmul.mubr.bf16.gmra.mxu0 %v3073
      %v3217 = vpop.f32.mrf.mxu0
      %v3218 = vadd.f32 %v3109, %v3217
      %v3219 = vpop.f32.mrf.mxu0
      %v3220 = vpop.f32.mrf.mxu0
      %v3221 = vadd.f32 %v3109, %v3220
      %v3222 = vpop.f32.mrf.mxu0
      %3223 = vmatprep.mubr.bf16.mxu0 0
      %3224 = vmatmul.mubr.bf16.gmra.mxu0 %v3074
      %v3225 = vpop.f32.mrf.mxu0
      %v3226 = vadd.f32 %v3109, %v3225
      %v3227 = vpop.f32.mrf.mxu0
      %v3228 = vpop.f32.mrf.mxu0
      %v3229 = vadd.f32 %v3109, %v3228
      %v3230 = vpop.f32.mrf.mxu0
      %3231 = vmatprep.mubr.bf16.mxu0 0
      %3232 = vmatmul.mubr.bf16.gmra.mxu0 %v3075
      %v3233 = vpop.f32.mrf.mxu0
      %v3234 = vadd.f32 %v3109, %v3233
      %v3235 = vpop.f32.mrf.mxu0
      %v3236 = vpop.f32.mrf.mxu0
      %v3237 = vadd.f32 %v3109, %v3236
      %v3238 = vpop.f32.mrf.mxu0
      %3239 = vmatprep.mubr.bf16.mxu0 0
      %3240 = vmatmul.mubr.bf16.gmra.mxu0 %v3076
      %v3241 = vpop.f32.mrf.mxu0
      %v3242 = vadd.f32 %v3109, %v3241
      %v3243 = vpop.f32.mrf.mxu0
      %v3244 = vpop.f32.mrf.mxu0
      %v3245 = vadd.f32 %v3109, %v3244
      %v3246 = vpop.f32.mrf.mxu0
      %3247 = vmatprep.mubr.bf16.mxu0 0
      %3248 = vmatmul.mubr.bf16.gmra.mxu0 %v3077
      %v3249 = vpop.f32.mrf.mxu0
      %v3250 = vadd.f32 %v3109, %v3249
      %v3251 = vpop.f32.mrf.mxu0
      %v3252 = vpop.f32.mrf.mxu0
      %v3253 = vadd.f32 %v3109, %v3252
      %v3254 = vpop.f32.mrf.mxu0
      %3255 = vmatprep.mubr.bf16.mxu0 0
      %3256 = vmatmul.mubr.bf16.gmra.mxu0 %v3078
      %v3257 = vpop.f32.mrf.mxu0
      %v3258 = vadd.f32 %v3109, %v3257
      %v3259 = vpop.f32.mrf.mxu0
      %v3260 = vpop.f32.mrf.mxu0
      %v3261 = vadd.f32 %v3109, %v3260
      %v3262 = vpop.f32.mrf.mxu0
      %3263 = vmatprep.mubr.bf16.mxu0 0
      %3264 = vmatmul.mubr.bf16.gmra.mxu0 %v3079
      %v3265 = vpop.f32.mrf.mxu0
      %v3266 = vadd.f32 %v3109, %v3265
      %v3267 = vpop.f32.mrf.mxu0
      %v3268 = vpop.f32.mrf.mxu0
      %v3269 = vadd.f32 %v3109, %v3268
      %v3270 = vpop.f32.mrf.mxu0
      %3271 = vmatprep.mubr.bf16.mxu0 0
      %3272 = vmatmul.mubr.bf16.gmra.mxu0 %v3080
      %v3273 = vpop.f32.mrf.mxu0
      %v3274 = vadd.f32 %v3109, %v3273
      %v3275 = vpop.f32.mrf.mxu0
      %v3276 = vpop.f32.mrf.mxu0
      %v3277 = vadd.f32 %v3109, %v3276
      %v3278 = vpop.f32.mrf.mxu0
      %3279 = vmatprep.mubr.bf16.mxu0 0
      %3280 = vmatmul.mubr.bf16.gmra.mxu0 %v3081
      %v3281 = vpop.f32.mrf.mxu0
      %v3282 = vadd.f32 %v3109, %v3281
      %v3283 = vpop.f32.mrf.mxu0
      %v3284 = vpop.f32.mrf.mxu0
      %v3285 = vadd.f32 %v3109, %v3284
      %v3286 = vpop.f32.mrf.mxu0
      %3287 = vmatprep.mubr.bf16.mxu0 0
      %3288 = vmatmul.mubr.bf16.gmra.mxu0 %v3082
      %v3289 = vpop.f32.mrf.mxu0
      %v3290 = vadd.f32 %v3109, %v3289
      %v3291 = vpop.f32.mrf.mxu0
      %v3292 = vpop.f32.mrf.mxu0
      %v3293 = vadd.f32 %v3109, %v3292
      %v3294 = vpop.f32.mrf.mxu0
      %3295 = vmatprep.mubr.bf16.mxu0 0
      %3296 = vmatmul.mubr.bf16.gmra.mxu0 %v3083
      %v3297 = vpop.f32.mrf.mxu0
      %v3298 = vadd.f32 %v3109, %v3297
      %v3299 = vpop.f32.mrf.mxu0
      %v3300 = vpop.f32.mrf.mxu0
      %v3301 = vadd.f32 %v3109, %v3300
      %v3302 = vpop.f32.mrf.mxu0
      %3303 = vmatprep.mubr.bf16.mxu0 0
      %3304 = vmatmul.mubr.bf16.gmra.mxu0 %v3084
      %v3305 = vpop.f32.mrf.mxu0
      %v3306 = vadd.f32 %v3109, %v3305
      %v3307 = vpop.f32.mrf.mxu0
      %v3308 = vpop.f32.mrf.mxu0
      %v3309 = vadd.f32 %v3109, %v3308
      %v3310 = vpop.f32.mrf.mxu0
      %3311 = vmatprep.mubr.bf16.mxu0 0
      %3312 = vmatmul.mubr.bf16.gmra.mxu0 %v3085
      %v3313 = vpop.f32.mrf.mxu0
      %v3314 = vadd.f32 %v3109, %v3313
      %v3315 = vpop.f32.mrf.mxu0
      %v3316 = vpop.f32.mrf.mxu0
      %v3317 = vadd.f32 %v3109, %v3316
      %v3318 = vpop.f32.mrf.mxu0
      %3319 = vmatprep.mubr.bf16.mxu0 0
      %3320 = vmatmul.mubr.bf16.gmra.mxu0 %v3086
      %v3321 = vpop.f32.mrf.mxu0
      %v3322 = vadd.f32 %v3109, %v3321
      %v3323 = vpop.f32.mrf.mxu0
      %v3324 = vpop.f32.mrf.mxu0
      %v3325 = vadd.f32 %v3109, %v3324
      %v3326 = vpop.f32.mrf.mxu0
      %3327 = vmatprep.mubr.bf16.mxu0 0
      %3328 = vmatmul.mubr.bf16.gmra.mxu0 %v3087
      %v3329 = vpop.f32.mrf.mxu0
      %v3330 = vadd.f32 %v3109, %v3329
      %v3331 = vpop.f32.mrf.mxu0
      %v3332 = vpop.f32.mrf.mxu0
      %v3333 = vadd.f32 %v3109, %v3332
      %v3334 = vpop.f32.mrf.mxu0
      %3335 = vdwg.mxu0
      %v3336 = vld [vmem:[%s6] sm:$0xf]
      %v3337 = vld [vmem:[%s6 + $0x4] sm:$0xf]
      %v3338 = vld [vmem:[%s6 + $0x8] sm:$0xf]
      %v3339 = vld [vmem:[%s6 + $0xc] sm:$0xf]
      %v3340 = vld [vmem:[%s6 + $0x10] sm:$0xf]
      %v3341 = vld [vmem:[%s6 + $0x14] sm:$0xf]
      %v3342 = vld [vmem:[%s6 + $0x18] sm:$0xf]
      %v3343 = vld [vmem:[%s6 + $0x1c] sm:$0xf]
      %v3344 = vld [vmem:[%s6 + $0x20] sm:$0xf]
      %v3345 = vld [vmem:[%s6 + $0x24] sm:$0xf]
      %v3346 = vld [vmem:[%s6 + $0x28] sm:$0xf]
      %v3347 = vld [vmem:[%s6 + $0x2c] sm:$0xf]
      %v3348 = vld [vmem:[%s6 + $0x30] sm:$0xf]
      %v3349 = vld [vmem:[%s6 + $0x34] sm:$0xf]
      %v3350 = vld [vmem:[%s6 + $0x38] sm:$0xf]
      %v3351 = vld [vmem:[%s6 + $0x3c] sm:$0xf]
      %v3352 = vpack.c.b16 %v416, %v416
      %vm3353 = vsmask.f32 6400
      %v3355 = vshrl.u32 %v420, 16
      %v3357 = vrot.slane %v3355, 1
      %v3358 = vshll.u32 %v420, 16
      %v3360 = vrot.slane %v3358, 2
      %v3361 = vor.u32 %v3357, %v3360
      %v3363 = vshrl.u32 %v421, 16
      %v3365 = vrot.slane %v3363, 1
      %v3366 = vshll.u32 %v421, 16
      %v3368 = vrot.slane %v3366, 2
      %v3369 = vor.u32 %v3365, %v3368
      %v3370 = vsel %vm3353, %v3361, %v3369
      %v3372 = vshrl.u32 %v422, 16
      %v3374 = vrot.slane %v3372, 1
      %v3375 = vshll.u32 %v422, 16
      %v3377 = vrot.slane %v3375, 2
      %v3378 = vor.u32 %v3374, %v3377
      %v3379 = vsel %vm3353, %v3369, %v3378
      %v3381 = vshrl.u32 %v423, 16
      %v3383 = vrot.slane %v3381, 1
      %v3384 = vshll.u32 %v423, 16
      %v3386 = vrot.slane %v3384, 2
      %v3387 = vor.u32 %v3383, %v3386
      %v3388 = vsel %vm3353, %v3378, %v3387
      %v3390 = vshrl.u32 %v424, 16
      %v3392 = vrot.slane %v3390, 1
      %v3393 = vshll.u32 %v424, 16
      %v3395 = vrot.slane %v3393, 2
      %v3396 = vor.u32 %v3392, %v3395
      %v3397 = vsel %vm3353, %v3387, %v3396
      %v3399 = vshrl.u32 %v425, 16
      %v3401 = vrot.slane %v3399, 1
      %v3402 = vshll.u32 %v425, 16
      %v3404 = vrot.slane %v3402, 2
      %v3405 = vor.u32 %v3401, %v3404
      %v3406 = vsel %vm3353, %v3396, %v3405
      %v3408 = vshrl.u32 %v426, 16
      %v3410 = vrot.slane %v3408, 1
      %v3411 = vshll.u32 %v426, 16
      %v3413 = vrot.slane %v3411, 2
      %v3414 = vor.u32 %v3410, %v3413
      %v3415 = vsel %vm3353, %v3405, %v3414
      %v3417 = vshrl.u32 %v427, 16
      %v3419 = vrot.slane %v3417, 1
      %v3420 = vshll.u32 %v427, 16
      %v3422 = vrot.slane %v3420, 2
      %v3423 = vor.u32 %v3419, %v3422
      %v3424 = vsel %vm3353, %v3414, %v3423
      %v3426 = vshrl.u32 %v428, 16
      %v3428 = vrot.slane %v3426, 1
      %v3429 = vshll.u32 %v428, 16
      %v3431 = vrot.slane %v3429, 2
      %v3432 = vor.u32 %v3428, %v3431
      %v3433 = vsel %vm3353, %v3423, %v3432
      %v3435 = vshrl.u32 %v429, 16
      %v3437 = vrot.slane %v3435, 1
      %v3438 = vshll.u32 %v429, 16
      %v3440 = vrot.slane %v3438, 2
      %v3441 = vor.u32 %v3437, %v3440
      %v3442 = vsel %vm3353, %v3432, %v3441
      %v3444 = vshrl.u32 %v430, 16
      %v3446 = vrot.slane %v3444, 1
      %v3447 = vshll.u32 %v430, 16
      %v3449 = vrot.slane %v3447, 2
      %v3450 = vor.u32 %v3446, %v3449
      %v3451 = vsel %vm3353, %v3441, %v3450
      %v3453 = vshrl.u32 %v431, 16
      %v3455 = vrot.slane %v3453, 1
      %v3456 = vshll.u32 %v431, 16
      %v3458 = vrot.slane %v3456, 2
      %v3459 = vor.u32 %v3455, %v3458
      %v3460 = vsel %vm3353, %v3450, %v3459
      %v3462 = vshrl.u32 %v432, 16
      %v3464 = vrot.slane %v3462, 1
      %v3465 = vshll.u32 %v432, 16
      %v3467 = vrot.slane %v3465, 2
      %v3468 = vor.u32 %v3464, %v3467
      %v3469 = vsel %vm3353, %v3459, %v3468
      %v3471 = vshrl.u32 %v433, 16
      %v3473 = vrot.slane %v3471, 1
      %v3474 = vshll.u32 %v433, 16
      %v3476 = vrot.slane %v3474, 2
      %v3477 = vor.u32 %v3473, %v3476
      %v3478 = vsel %vm3353, %v3468, %v3477
      %v3480 = vshrl.u32 %v434, 16
      %v3482 = vrot.slane %v3480, 1
      %v3483 = vshll.u32 %v434, 16
      %v3485 = vrot.slane %v3483, 2
      %v3486 = vor.u32 %v3482, %v3485
      %v3487 = vsel %vm3353, %v3477, %v3486
      %v3489 = vshrl.u32 %v435, 16
      %v3491 = vrot.slane %v3489, 1
      %v3492 = vshll.u32 %v435, 16
      %v3494 = vrot.slane %v3492, 2
      %v3495 = vor.u32 %v3491, %v3494
      %v3496 = vsel %vm3353, %v3486, %v3495
      %v3498 = vshrl.u32 %v436, 16
      %v3500 = vrot.slane %v3498, 1
      %v3501 = vshll.u32 %v436, 16
      %v3503 = vrot.slane %v3501, 2
      %v3504 = vor.u32 %v3500, %v3503
      %v3505 = vsel %vm3353, %v3495, %v3504
      %v3507 = vshrl.u32 %v437, 16
      %v3509 = vrot.slane %v3507, 1
      %v3510 = vshll.u32 %v437, 16
      %v3512 = vrot.slane %v3510, 2
      %v3513 = vor.u32 %v3509, %v3512
      %v3514 = vsel %vm3353, %v3504, %v3513
      %v3516 = vshrl.u32 %v3352, 16
      %v3518 = vrot.slane %v3516, 1
      %v3519 = vshll.u32 %v3352, 16
      %v3521 = vrot.slane %v3519, 2
      %v3522 = vor.u32 %v3518, %v3521
      %v3523 = vsel %vm3353, %v3513, %v3522
      %v3558 = vunpack.c.l.b16 %v3336
      %v3559 = vunpack.c.l.b16 %v3337
      %v3560 = vunpack.c.l.b16 %v3338
      %v3561 = vunpack.c.l.b16 %v3339
      %v3562 = vunpack.c.l.b16 %v3340
      %v3563 = vunpack.c.l.b16 %v3341
      %v3564 = vunpack.c.l.b16 %v3342
      %v3565 = vunpack.c.l.b16 %v3343
      %v3566 = vunpack.c.l.b16 %v3344
      %v3567 = vunpack.c.l.b16 %v3345
      %v3568 = vunpack.c.l.b16 %v3346
      %v3569 = vunpack.c.l.b16 %v3347
      %v3570 = vunpack.c.l.b16 %v3348
      %v3571 = vunpack.c.l.b16 %v3349
      %v3572 = vunpack.c.l.b16 %v3350
      %v3573 = vunpack.c.l.b16 %v3351
      %v3574 = vpack.c.b16 %v3559, %v3558
      %v3575 = vpack.c.b16 %v3561, %v3560
      %v3576 = vpack.c.b16 %v3563, %v3562
      %v3577 = vpack.c.b16 %v3565, %v3564
      %v3578 = vpack.c.b16 %v3567, %v3566
      %v3579 = vpack.c.b16 %v3569, %v3568
      %v3580 = vpack.c.b16 %v3571, %v3570
      %v3581 = vpack.c.b16 %v3573, %v3572
      %3590 = vmatprep.subr.bf16.mxu0 0
      %3591 = vmatpush1.bf16.msra.mxu0 %v3581
      %3592 = vmatprep.subr.bf16.mxu0 0
      %3593 = vmatpush1.bf16.msra.mxu0 %v3580
      %3594 = vmatprep.subr.bf16.mxu0 0
      %3595 = vmatpush1.bf16.msra.mxu0 %v3579
      %3596 = vmatprep.subr.bf16.mxu0 0
      %3597 = vmatpush1.bf16.msra.mxu0 %v3578
      %3598 = vmatprep.subr.bf16.mxu0 0
      %3599 = vmatpush1.bf16.msra.mxu0 %v3577
      %3600 = vmatprep.subr.bf16.mxu0 0
      %3601 = vmatpush1.bf16.msra.mxu0 %v3576
      %3602 = vmatprep.subr.bf16.mxu0 0
      %3603 = vmatpush1.bf16.msra.mxu0 %v3575
      %3604 = vmatprep.subr.bf16.mxu0 0
      %3605 = vmatpush1.bf16.msra.mxu0 %v3574
      %3606 = vmatprep.subr.bf16.mxu0 0
      %3607 = vmatpush2.bf16.msra.mxu0 0
      %3608 = vmatprep.subr.bf16.mxu0 0
      %3609 = vmatpush2.bf16.msra.mxu0 0
      %3610 = vmatprep.subr.bf16.mxu0 0
      %3611 = vmatpush2.bf16.msra.mxu0 0
      %3612 = vmatprep.subr.bf16.mxu0 0
      %3613 = vmatpush2.bf16.msra.mxu0 0
      %3614 = vmatprep.subr.bf16.mxu0 0
      %3615 = vmatpush2.bf16.msra.mxu0 0
      %3616 = vmatprep.subr.bf16.mxu0 0
      %3617 = vmatpush2.bf16.msra.mxu0 0
      %3618 = vmatprep.subr.bf16.mxu0 0
      %3619 = vmatpush2.bf16.msra.mxu0 0
      %3620 = vmatprep.subr.bf16.mxu0 0
      %3621 = vmatpush2.bf16.msra.mxu0 0
      %3622 = vmatprep.mubr.bf16.mxu0 0
      %3623 = vmatmul.mubr.bf16.gmra.mxu0 %v3370
      %v3624 = vpop.f32.mrf.mxu0
      %v3625 = vadd.f32 0.0, %v3624
      %v3626 = vpop.f32.mrf.mxu0
      %v3627 = vpop.f32.mrf.mxu0
      %v3628 = vadd.f32 0.0, %v3627
      %v3629 = vpop.f32.mrf.mxu0
      %3630 = vmatprep.mubr.bf16.mxu0 0
      %3631 = vmatmul.mubr.bf16.gmra.mxu0 %v3379
      %v3632 = vpop.f32.mrf.mxu0
      %v3633 = vadd.f32 0.0, %v3632
      %v3634 = vpop.f32.mrf.mxu0
      %v3635 = vpop.f32.mrf.mxu0
      %v3636 = vadd.f32 0.0, %v3635
      %v3637 = vpop.f32.mrf.mxu0
      %3638 = vmatprep.mubr.bf16.mxu0 0
      %3639 = vmatmul.mubr.bf16.gmra.mxu0 %v3388
      %v3640 = vpop.f32.mrf.mxu0
      %v3641 = vadd.f32 0.0, %v3640
      %v3642 = vpop.f32.mrf.mxu0
      %v3643 = vpop.f32.mrf.mxu0
      %v3644 = vadd.f32 0.0, %v3643
      %v3645 = vpop.f32.mrf.mxu0
      %3646 = vmatprep.mubr.bf16.mxu0 0
      %3647 = vmatmul.mubr.bf16.gmra.mxu0 %v3397
      %v3648 = vpop.f32.mrf.mxu0
      %v3649 = vadd.f32 0.0, %v3648
      %v3650 = vpop.f32.mrf.mxu0
      %v3651 = vpop.f32.mrf.mxu0
      %v3652 = vadd.f32 0.0, %v3651
      %v3653 = vpop.f32.mrf.mxu0
      %3654 = vmatprep.mubr.bf16.mxu0 0
      %3655 = vmatmul.mubr.bf16.gmra.mxu0 %v3406
      %v3656 = vpop.f32.mrf.mxu0
      %v3657 = vadd.f32 0.0, %v3656
      %v3658 = vpop.f32.mrf.mxu0
      %v3659 = vpop.f32.mrf.mxu0
      %v3660 = vadd.f32 0.0, %v3659
      %v3661 = vpop.f32.mrf.mxu0
      %3662 = vmatprep.mubr.bf16.mxu0 0
      %3663 = vmatmul.mubr.bf16.gmra.mxu0 %v3415
      %v3664 = vpop.f32.mrf.mxu0
      %v3665 = vadd.f32 0.0, %v3664
      %v3666 = vpop.f32.mrf.mxu0
      %v3667 = vpop.f32.mrf.mxu0
      %v3668 = vadd.f32 0.0, %v3667
      %v3669 = vpop.f32.mrf.mxu0
      %3670 = vmatprep.mubr.bf16.mxu0 0
      %3671 = vmatmul.mubr.bf16.gmra.mxu0 %v3424
      %v3672 = vpop.f32.mrf.mxu0
      %v3673 = vadd.f32 0.0, %v3672
      %v3674 = vpop.f32.mrf.mxu0
      %v3675 = vpop.f32.mrf.mxu0
      %v3676 = vadd.f32 0.0, %v3675
      %v3677 = vpop.f32.mrf.mxu0
      %3678 = vmatprep.mubr.bf16.mxu0 0
      %3679 = vmatmul.mubr.bf16.gmra.mxu0 %v3433
      %v3680 = vpop.f32.mrf.mxu0
      %v3681 = vadd.f32 0.0, %v3680
      %v3682 = vpop.f32.mrf.mxu0
      %v3683 = vpop.f32.mrf.mxu0
      %v3684 = vadd.f32 0.0, %v3683
      %v3685 = vpop.f32.mrf.mxu0
      %3686 = vmatprep.mubr.bf16.mxu0 0
      %3687 = vmatmul.mubr.bf16.gmra.mxu0 %v3442
      %v3688 = vpop.f32.mrf.mxu0
      %v3689 = vadd.f32 0.0, %v3688
      %v3690 = vpop.f32.mrf.mxu0
      %v3691 = vpop.f32.mrf.mxu0
      %v3692 = vadd.f32 0.0, %v3691
      %v3693 = vpop.f32.mrf.mxu0
      %3694 = vmatprep.mubr.bf16.mxu0 0
      %3695 = vmatmul.mubr.bf16.gmra.mxu0 %v3451
      %v3696 = vpop.f32.mrf.mxu0
      %v3697 = vadd.f32 0.0, %v3696
      %v3698 = vpop.f32.mrf.mxu0
      %v3699 = vpop.f32.mrf.mxu0
      %v3700 = vadd.f32 0.0, %v3699
      %v3701 = vpop.f32.mrf.mxu0
      %3702 = vmatprep.mubr.bf16.mxu0 0
      %3703 = vmatmul.mubr.bf16.gmra.mxu0 %v3460
      %v3704 = vpop.f32.mrf.mxu0
      %v3705 = vadd.f32 0.0, %v3704
      %v3706 = vpop.f32.mrf.mxu0
      %v3707 = vpop.f32.mrf.mxu0
      %v3708 = vadd.f32 0.0, %v3707
      %v3709 = vpop.f32.mrf.mxu0
      %3710 = vmatprep.mubr.bf16.mxu0 0
      %3711 = vmatmul.mubr.bf16.gmra.mxu0 %v3469
      %v3712 = vpop.f32.mrf.mxu0
      %v3713 = vadd.f32 0.0, %v3712
      %v3714 = vpop.f32.mrf.mxu0
      %v3715 = vpop.f32.mrf.mxu0
      %v3716 = vadd.f32 0.0, %v3715
      %v3717 = vpop.f32.mrf.mxu0
      %3718 = vmatprep.mubr.bf16.mxu0 0
      %3719 = vmatmul.mubr.bf16.gmra.mxu0 %v3478
      %v3720 = vpop.f32.mrf.mxu0
      %v3721 = vadd.f32 0.0, %v3720
      %v3722 = vpop.f32.mrf.mxu0
      %v3723 = vpop.f32.mrf.mxu0
      %v3724 = vadd.f32 0.0, %v3723
      %v3725 = vpop.f32.mrf.mxu0
      %3726 = vmatprep.mubr.bf16.mxu0 0
      %3727 = vmatmul.mubr.bf16.gmra.mxu0 %v3487
      %v3728 = vpop.f32.mrf.mxu0
      %v3729 = vadd.f32 0.0, %v3728
      %v3730 = vpop.f32.mrf.mxu0
      %v3731 = vpop.f32.mrf.mxu0
      %v3732 = vadd.f32 0.0, %v3731
      %v3733 = vpop.f32.mrf.mxu0
      %3734 = vmatprep.mubr.bf16.mxu0 0
      %3735 = vmatmul.mubr.bf16.gmra.mxu0 %v3496
      %v3736 = vpop.f32.mrf.mxu0
      %v3737 = vadd.f32 0.0, %v3736
      %v3738 = vpop.f32.mrf.mxu0
      %v3739 = vpop.f32.mrf.mxu0
      %v3740 = vadd.f32 0.0, %v3739
      %v3741 = vpop.f32.mrf.mxu0
      %3742 = vmatprep.mubr.bf16.mxu0 0
      %3743 = vmatmul.mubr.bf16.gmra.mxu0 %v3505
      %v3744 = vpop.f32.mrf.mxu0
      %v3745 = vadd.f32 0.0, %v3744
      %v3746 = vpop.f32.mrf.mxu0
      %v3747 = vpop.f32.mrf.mxu0
      %v3748 = vadd.f32 0.0, %v3747
      %v3749 = vpop.f32.mrf.mxu0
      %3750 = vmatprep.mubr.bf16.mxu0 0
      %3751 = vmatmul.mubr.bf16.gmra.mxu0 %v3514
      %v3752 = vpop.f32.mrf.mxu0
      %v3753 = vadd.f32 0.0, %v3752
      %v3754 = vpop.f32.mrf.mxu0
      %v3755 = vpop.f32.mrf.mxu0
      %v3756 = vadd.f32 0.0, %v3755
      %v3757 = vpop.f32.mrf.mxu0
      %3758 = vmatprep.mubr.bf16.mxu0 0
      %3759 = vmatmul.mubr.bf16.gmra.mxu0 %v3523
      %v3760 = vpop.f32.mrf.mxu0
      %v3761 = vadd.f32 0.0, %v3760
      %v3762 = vpop.f32.mrf.mxu0
      %v3763 = vpop.f32.mrf.mxu0
      %v3764 = vadd.f32 0.0, %v3763
      %v3765 = vpop.f32.mrf.mxu0
      %3766 = vdwg.mxu0
      %v3767 = vadd.f32 %v3194, %v3625
      %v3768 = vadd.f32 %v3197, %v3628
      %v3769 = vadd.f32 %v3202, %v3633
      %v3770 = vadd.f32 %v3205, %v3636
      %v3771 = vadd.f32 %v3210, %v3641
      %v3772 = vadd.f32 %v3213, %v3644
      %v3773 = vadd.f32 %v3218, %v3649
      %v3774 = vadd.f32 %v3221, %v3652
      %v3775 = vadd.f32 %v3226, %v3657
      %v3776 = vadd.f32 %v3229, %v3660
      %v3777 = vadd.f32 %v3234, %v3665
      %v3778 = vadd.f32 %v3237, %v3668
      %v3779 = vadd.f32 %v3242, %v3673
      %v3780 = vadd.f32 %v3245, %v3676
      %v3781 = vadd.f32 %v3250, %v3681
      %v3782 = vadd.f32 %v3253, %v3684
      %v3783 = vadd.f32 %v3258, %v3689
      %v3784 = vadd.f32 %v3261, %v3692
      %v3785 = vadd.f32 %v3266, %v3697
      %v3786 = vadd.f32 %v3269, %v3700
      %v3787 = vadd.f32 %v3274, %v3705
      %v3788 = vadd.f32 %v3277, %v3708
      %v3789 = vadd.f32 %v3282, %v3713
      %v3790 = vadd.f32 %v3285, %v3716
      %v3791 = vadd.f32 %v3290, %v3721
      %v3792 = vadd.f32 %v3293, %v3724
      %v3793 = vadd.f32 %v3298, %v3729
      %v3794 = vadd.f32 %v3301, %v3732
      %v3795 = vadd.f32 %v3306, %v3737
      %v3796 = vadd.f32 %v3309, %v3740
      %v3797 = vadd.f32 %v3314, %v3745
      %v3798 = vadd.f32 %v3317, %v3748
      %v3799 = vadd.f32 %v3322, %v3753
      %v3800 = vadd.f32 %v3325, %v3756
      %v3801 = vadd.f32 %v3330, %v3761
      %v3802 = vadd.f32 %v3333, %v3764
      %v3803 = vmax.f32 %v3767, 0.0
      %v3804 = vmax.f32 %v3768, 0.0
      %v3805 = vmax.f32 %v3769, 0.0
      %v3806 = vmax.f32 %v3770, 0.0
      %v3807 = vmax.f32 %v3771, 0.0
      %v3808 = vmax.f32 %v3772, 0.0
      %v3809 = vmax.f32 %v3773, 0.0
      %v3810 = vmax.f32 %v3774, 0.0
      %v3811 = vmax.f32 %v3775, 0.0
      %v3812 = vmax.f32 %v3776, 0.0
      %v3813 = vmax.f32 %v3777, 0.0
      %v3814 = vmax.f32 %v3778, 0.0
      %v3815 = vmax.f32 %v3779, 0.0
      %v3816 = vmax.f32 %v3780, 0.0
      %v3817 = vmax.f32 %v3781, 0.0
      %v3818 = vmax.f32 %v3782, 0.0
      %v3819 = vmax.f32 %v3783, 0.0
      %v3820 = vmax.f32 %v3784, 0.0
      %v3821 = vmax.f32 %v3785, 0.0
      %v3822 = vmax.f32 %v3786, 0.0
      %v3823 = vmax.f32 %v3787, 0.0
      %v3824 = vmax.f32 %v3788, 0.0
      %v3825 = vmax.f32 %v3789, 0.0
      %v3826 = vmax.f32 %v3790, 0.0
      %v3827 = vmax.f32 %v3791, 0.0
      %v3828 = vmax.f32 %v3792, 0.0
      %v3829 = vmax.f32 %v3793, 0.0
      %v3830 = vmax.f32 %v3794, 0.0
      %v3831 = vmax.f32 %v3795, 0.0
      %v3832 = vmax.f32 %v3796, 0.0
      %v3833 = vmax.f32 %v3797, 0.0
      %v3834 = vmax.f32 %v3798, 0.0
      %v3835 = vmax.f32 %v3799, 0.0
      %v3836 = vmax.f32 %v3800, 0.0
      %v3837 = vmax.f32 %v3801, 0.0
      %v3838 = vmax.f32 %v3802, 0.0
      %v3839 = vpack.c.bf16 %v3804, %v3803
      %v3840 = vpack.c.bf16 %v3806, %v3805
      %v3841 = vpack.c.bf16 %v3808, %v3807
      %v3842 = vpack.c.bf16 %v3810, %v3809
      %v3843 = vpack.c.bf16 %v3812, %v3811
      %v3844 = vpack.c.bf16 %v3814, %v3813
      %v3845 = vpack.c.bf16 %v3816, %v3815
      %v3846 = vpack.c.bf16 %v3818, %v3817
      %v3847 = vpack.c.bf16 %v3820, %v3819
      %v3848 = vpack.c.bf16 %v3822, %v3821
      %v3849 = vpack.c.bf16 %v3824, %v3823
      %v3850 = vpack.c.bf16 %v3826, %v3825
      %v3851 = vpack.c.bf16 %v3828, %v3827
      %v3852 = vpack.c.bf16 %v3830, %v3829
      %v3853 = vpack.c.bf16 %v3832, %v3831
      %v3854 = vpack.c.bf16 %v3834, %v3833
      %v3855 = vpack.c.bf16 %v3836, %v3835
      %v3856 = vpack.c.bf16 %v3838, %v3837
      %v3875 = vunpack.c.l.b16 %v3839
      %v3876 = vunpack.c.h.b16 %v3839
      %v3877 = vunpack.c.l.b16 %v3840
      %v3878 = vunpack.c.h.b16 %v3840
      %v3879 = vunpack.c.l.b16 %v3841
      %v3880 = vunpack.c.h.b16 %v3841
      %v3881 = vunpack.c.l.b16 %v3842
      %v3882 = vunpack.c.h.b16 %v3842
      %v3883 = vunpack.c.l.b16 %v3843
      %v3884 = vunpack.c.h.b16 %v3843
      %v3885 = vunpack.c.l.b16 %v3844
      %v3886 = vunpack.c.h.b16 %v3844
      %v3887 = vunpack.c.l.b16 %v3845
      %v3888 = vunpack.c.h.b16 %v3845
      %v3889 = vunpack.c.l.b16 %v3846
      %v3890 = vunpack.c.h.b16 %v3846
      %v3891 = vunpack.c.l.b16 %v3847
      %v3892 = vunpack.c.h.b16 %v3847
      %v3893 = vunpack.c.l.b16 %v3848
      %v3894 = vunpack.c.h.b16 %v3848
      %v3895 = vunpack.c.l.b16 %v3849
      %v3896 = vunpack.c.h.b16 %v3849
      %v3897 = vunpack.c.l.b16 %v3850
      %v3898 = vunpack.c.h.b16 %v3850
      %v3899 = vunpack.c.l.b16 %v3851
      %v3900 = vunpack.c.h.b16 %v3851
      %v3901 = vunpack.c.l.b16 %v3852
      %v3902 = vunpack.c.h.b16 %v3852
      %v3903 = vunpack.c.l.b16 %v3853
      %v3904 = vunpack.c.h.b16 %v3853
      %v3905 = vunpack.c.l.b16 %v3854
      %v3906 = vunpack.c.h.b16 %v3854
      %v3907 = vunpack.c.l.b16 %v3855
      %v3908 = vunpack.c.h.b16 %v3855
      %v3909 = vunpack.c.l.b16 %v3856
      %v3910 = vunpack.c.h.b16 %v3856
      %v3911 = vpack.c.b16 %v3875, %v3875
      %v3912 = vpack.c.b16 %v3876, %v3876
      %v3913 = vpack.c.b16 %v3877, %v3877
      %v3914 = vpack.c.b16 %v3878, %v3878
      %v3915 = vpack.c.b16 %v3879, %v3879
      %v3916 = vpack.c.b16 %v3880, %v3880
      %v3917 = vpack.c.b16 %v3881, %v3881
      %v3918 = vpack.c.b16 %v3882, %v3882
      %v3919 = vpack.c.b16 %v3883, %v3883
      %v3920 = vpack.c.b16 %v3884, %v3884
      %v3921 = vpack.c.b16 %v3885, %v3885
      %v3922 = vpack.c.b16 %v3886, %v3886
      %v3923 = vpack.c.b16 %v3887, %v3887
      %v3924 = vpack.c.b16 %v3888, %v3888
      %v3925 = vpack.c.b16 %v3889, %v3889
      %v3926 = vpack.c.b16 %v3890, %v3890
      %v3927 = vpack.c.b16 %v3891, %v3891
      %v3928 = vpack.c.b16 %v3892, %v3892
      %v3929 = vpack.c.b16 %v3893, %v3893
      %v3930 = vpack.c.b16 %v3894, %v3894
      %v3931 = vpack.c.b16 %v3895, %v3895
      %v3932 = vpack.c.b16 %v3896, %v3896
      %v3933 = vpack.c.b16 %v3897, %v3897
      %v3934 = vpack.c.b16 %v3898, %v3898
      %v3935 = vpack.c.b16 %v3899, %v3899
      %v3936 = vpack.c.b16 %v3900, %v3900
      %v3937 = vpack.c.b16 %v3901, %v3901
      %v3938 = vpack.c.b16 %v3902, %v3902
      %v3939 = vpack.c.b16 %v3903, %v3903
      %v3940 = vpack.c.b16 %v3904, %v3904
      %v3941 = vpack.c.b16 %v3905, %v3905
      %v3942 = vpack.c.b16 %v3906, %v3906
      %v3943 = vpack.c.b16 %v3907, %v3907
      %v3944 = vpack.c.b16 %v3908, %v3908
      %v3945 = vpack.c.b16 %v3909, %v3909
      %v3946 = vpack.c.b16 %v3910, %v3910
      %3983 = vst [vmem:[%s278] sm:$0xf] %v3911
      %3984 = vst [vmem:[%s278 + $0x4] sm:$0xf] %v3912
      %3985 = vst [vmem:[%s278 + $0x8] sm:$0xf] %v3913
      %3986 = vst [vmem:[%s278 + $0xc] sm:$0xf] %v3914
      %3987 = vst [vmem:[%s278 + $0x10] sm:$0xf] %v3915
      %3988 = vst [vmem:[%s278 + $0x14] sm:$0xf] %v3916
      %3989 = vst [vmem:[%s278 + $0x18] sm:$0xf] %v3917
      %3990 = vst [vmem:[%s278 + $0x1c] sm:$0xf] %v3918
      %3991 = vst [vmem:[%s278 + $0x20] sm:$0xf] %v3919
      %3992 = vst [vmem:[%s278 + $0x24] sm:$0xf] %v3920
      %3993 = vst [vmem:[%s278 + $0x28] sm:$0xf] %v3921
      %3994 = vst [vmem:[%s278 + $0x2c] sm:$0xf] %v3922
      %3995 = vst [vmem:[%s278 + $0x30] sm:$0xf] %v3923
      %3996 = vst [vmem:[%s278 + $0x34] sm:$0xf] %v3924
      %3997 = vst [vmem:[%s278 + $0x38] sm:$0xf] %v3925
      %3998 = vst [vmem:[%s278 + $0x3c] sm:$0xf] %v3926
      %3999 = vst [vmem:[%s278 + $0x40] sm:$0xf] %v3927
      %4000 = vst [vmem:[%s278 + $0x44] sm:$0xf] %v3928
      %4001 = vst [vmem:[%s278 + $0x48] sm:$0xf] %v3929
      %4002 = vst [vmem:[%s278 + $0x4c] sm:$0xf] %v3930
      %4003 = vst [vmem:[%s278 + $0x50] sm:$0xf] %v3931
      %4004 = vst [vmem:[%s278 + $0x54] sm:$0xf] %v3932
      %4005 = vst [vmem:[%s278 + $0x58] sm:$0xf] %v3933
      %4006 = vst [vmem:[%s278 + $0x5c] sm:$0xf] %v3934
      %4007 = vst [vmem:[%s278 + $0x60] sm:$0xf] %v3935
      %4008 = vst [vmem:[%s278 + $0x64] sm:$0xf] %v3936
      %4009 = vst [vmem:[%s278 + $0x68] sm:$0xf] %v3937
      %4010 = vst [vmem:[%s278 + $0x6c] sm:$0xf] %v3938
      %4011 = vst [vmem:[%s278 + $0x70] sm:$0xf] %v3939
      %4012 = vst [vmem:[%s278 + $0x74] sm:$0xf] %v3940
      %4013 = vst [vmem:[%s278 + $0x78] sm:$0xf] %v3941
      %4014 = vst [vmem:[%s278 + $0x7c] sm:$0xf] %v3942
      %4015 = vst [vmem:[%s278 + $0x80] sm:$0xf] %v3943
      %4016 = vst [vmem:[%s278 + $0x84] sm:$0xf] %v3944
      %4017 = vst [vmem:[%s278 + $0x88] sm:$0xf] %v3945
      %4018 = vst [vmem:[%s278 + $0x8c] sm:$0xf] %v3946
      %p4019 = scmp.lt.s32.totalorder %s18, 1
      %s4020 = scalar_select %p4019, %s18, 1
      %s4021 = smul.addr %s4020, 36
      %s4022 = smul.addr %s4021, 4
      %s4023 = scalar_lea.vmem %s7, %s4022
      // Predicated region
      $region49: #{_forward_jit.1} parent=47 // pred_check
        %p4024 = pneg %p188
      $region50: #{_forward_jit.1} parent=47 // pred_check_branch
        %4026 = sbr.rel (%p4024) target = $region52
      $region51: #{_forward_jit.1} parent=47 // pred_region
        _
      $region52: #{_forward_jit.1} parent=47 // pred_fallthru
        _
    $region48: #{_forward_jit.1} parent=5 // pred_fallthru
      _
    %p4027 = scmp.le.s32.totalorder 2, %s13
    // Predicated region
    $region53: #{_forward_jit.1} parent=5 // pred_check
      %p4028 = pneg %p4027
    $region54: #{_forward_jit.1} parent=5 // pred_check_branch
      %4030 = sbr.rel (%p4028) target = $region56
    $region55: #{_forward_jit.1} parent=5 // pred_region
      %s4031 = ssub.s32 %s13, 2
      // Predicated region
      $region57: #{_forward_jit.1} parent=55 // pred_check
        %p4032 = pneg %p194
      $region58: #{_forward_jit.1} parent=55 // pred_check_branch
        %4034 = sbr.rel (%p4032) target = $region60
      $region59: #{_forward_jit.1} parent=55 // pred_region
        %p4035 = scmp.lt.s32.totalorder %s19, 1
        %s4036 = scalar_select %p4035, %s19, 1
        %s4037 = smul.addr %s4036, 36
        %s4038 = smul.addr %s4037, 4
        %s4039 = scalar_lea.vmem %s7, %s4038
      $region60: #{_forward_jit.1} parent=55 // pred_fallthru
        _
    $region56: #{_forward_jit.1} parent=5 // pred_fallthru
      _
  $region6: #{_forward_jit.1} parent=0 // loop_footer
    %s17 = sadd.s32 1, %s13
  $region7: #{_forward_jit.1} parent=0 // loop_footer_branch
    %12 = sbr.rel target = $region3
  $region8: #{_forward_jit.1} parent=0 // loop_exit
    _

// kernel: _forward_jit.1
$region0: #{_forward_jit.1}
  #allocation0 [shape = 'u32[]', space=smem, size = 0x4, offset = 0x4, fixed_abs, tag = 'smem constant byte address 0x4 - core index']
  #allocation1 [shape = 'u32[144,128]{1,0:T(1,128)}', space=vmem, size = 0x12000, scoped, tag = 'internal scratch']
  %s0 = inlined_call_operand.vmem [shape: bf16[2,328,128], index: 0, kind: input, shape index: {}]
  %s1 = inlined_call_operand.vmem [shape: bf16[128,128], index: 1, kind: input, shape index: {}]
  %s2 = inlined_call_operand.vmem [shape: bf16[3,384,128], index: 2, kind: input, shape index: {}]
  %s3 = inlined_call_operand.vmem [shape: f32[1,128], index: 3, kind: input, shape index: {}]
  %s4 = inlined_call_operand.vmem [shape: bf16[128,128], index: 4, kind: input, shape index: {}]
  %s5 = inlined_call_operand.vmem [shape: f32[1,128], index: 5, kind: input, shape index: {}]
  %s6 = inlined_call_operand.vmem [shape: bf16[128,128], index: 6, kind: input, shape index: {}]
  %s7 = inlined_call_operand.vmem [shape: bf16[2,288,128], index: 7, kind: output, shape index: {}]
  %s8 = sld [smem:[#allocation0]]
  $region61: #{_forward_jit.1} parent=0
    _
  %s10 = ssub.s32 1, %s8
  %s11 = scalar_select 0, %s10, %s8
  loop: start=0, step=1, limit=4
  $region2: #{_forward_jit.1} parent=0 // loop_pre_header
    _
  $region3: #{_forward_jit.1} parent=0 // loop_header
    %s13 = sphi 0, %s17
    %p14 = scmp.ge.s32.totalorder %s13, 4
    %s23 = sphi 0, %s25
    %s26 = sphi 0, %s23
    %s27 = sphi 0, %s26
    %s43 = sphi 0, %s27
    %s47 = sphi 0, %s47
    %s49 = sphi 0, %s47
    %s50 = sphi 0, %s49
    %s64 = sphi 0, %s50
    %s68 = sphi 0, %s68
    %s70 = sphi 0, %s68
    %s71 = sphi 0, %s70
    %s85 = sphi 0, %s71
    %s89 = sphi 0, %s89
    %s91 = sphi 0, %s89
    %s92 = sphi 0, %s91
    %s106 = sphi 0, %s92
    %s110 = sphi 0, %s110
    %s112 = sphi 0, %s110
    %s113 = sphi 0, %s112
    %s127 = sphi 0, %s113
    %s131 = sphi 0, %s131
    %s133 = sphi 0, %s131
    %s134 = sphi 0, %s133
    %s148 = sphi 0, %s134
    %s152 = sphi 0, %s152
    %s154 = sphi 0, %s152
    %s155 = sphi 0, %s154
    %s169 = sphi 0, %s155
    %s175 = sphi 0, %s177
    %s178 = sphi 0, %s175
    %s179 = sphi 0, %s178
    %s195 = sphi 0, %s179
  $region4: #{_forward_jit.1} parent=0 // loop_header_branch
    %16 = sbr.rel (%p14) target = $region8
  $region5: #{_forward_jit.1} parent=0 // loop_body
    %s18 = ssub.s32 %s13, 1
    %s19 = ssub.s32 %s13, 2
    %s20 = sadd.s32 %s13, 1
    %s21 = ssub.s32 %s13, %s20
    %p22 = scmp.eq.s32.totalorder %s21, 0
    %s24 = sadd.s32 %s23, 1
    %s25 = scalar_select %p22, %s23, %s24
    %p28 = pneg %p22
    %p29 = scmp.eq.s32.totalorder %s13, 1
    %p30 = por %p28, %p29
    %p31 = scmp.ne.s32.totalorder %s23, %s26
    %p32 = scmp.eq.s32.totalorder %s13, 0
    %p33 = por %p31, %p32
    %p34 = scmp.ne.s32.totalorder %s23, %s26
    %p35 = scmp.eq.s32.totalorder %s18, 1
    %p36 = por %p34, %p35
    %p37 = scmp.ne.s32.totalorder %s26, %s27
    %p38 = scmp.eq.s32.totalorder %s18, 0
    %p39 = por %p37, %p38
    %p40 = scmp.ne.s32.totalorder %s26, %s27
    %p41 = scmp.eq.s32.totalorder %s19, 1
    %p42 = por %p40, %p41
    %p44 = scmp.ne.s32.totalorder %s27, %s43
    %p45 = scmp.eq.s32.totalorder %s19, 0
    %p46 = por %p44, %p45
    %s48 = sadd.s32 %s47, 1
    %p51 = scmp.eq.s32.totalorder %s13, 1
    %p52 = scmp.ne.s32.totalorder %s47, %s49
    %p53 = scmp.eq.s32.totalorder %s13, 0
    %p54 = por %p52, %p53
    %p55 = scmp.ne.s32.totalorder %s47, %s49
    %p56 = scmp.eq.s32.totalorder %s18, 1
    %p57 = por %p55, %p56
    %p58 = scmp.ne.s32.totalorder %s49, %s50
    %p59 = scmp.eq.s32.totalorder %s18, 0
    %p60 = por %p58, %p59
    %p61 = scmp.ne.s32.totalorder %s49, %s50
    %p62 = scmp.eq.s32.totalorder %s19, 1
    %p63 = por %p61, %p62
    %p65 = scmp.ne.s32.totalorder %s50, %s64
    %p66 = scmp.eq.s32.totalorder %s19, 0
    %p67 = por %p65, %p66
    %s69 = sadd.s32 %s68, 1
    %p72 = scmp.eq.s32.totalorder %s13, 1
    %p73 = scmp.ne.s32.totalorder %s68, %s70
    %p74 = scmp.eq.s32.totalorder %s13, 0
    %p75 = por %p73, %p74
    %p76 = scmp.ne.s32.totalorder %s68, %s70
    %p77 = scmp.eq.s32.totalorder %s18, 1
    %p78 = por %p76, %p77
    %p79 = scmp.ne.s32.totalorder %s70, %s71
    %p80 = scmp.eq.s32.totalorder %s18, 0
    %p81 = por %p79, %p80
    %p82 = scmp.ne.s32.totalorder %s70, %s71
    %p83 = scmp.eq.s32.totalorder %s19, 1
    %p84 = por %p82, %p83
    %p86 = scmp.ne.s32.totalorder %s71, %s85
    %p87 = scmp.eq.s32.totalorder %s19, 0
    %p88 = por %p86, %p87
    %s90 = sadd.s32 %s89, 1
    %p93 = scmp.eq.s32.totalorder %s13, 1
    %p94 = scmp.ne.s32.totalorder %s89, %s91
    %p95 = scmp.eq.s32.totalorder %s13, 0
    %p96 = por %p94, %p95
    %p97 = scmp.ne.s32.totalorder %s89, %s91
    %p98 = scmp.eq.s32.totalorder %s18, 1
    %p99 = por %p97, %p98
    %p100 = scmp.ne.s32.totalorder %s91, %s92
    %p101 = scmp.eq.s32.totalorder %s18, 0
    %p102 = por %p100, %p101
    %p103 = scmp.ne.s32.totalorder %s91, %s92
    %p104 = scmp.eq.s32.totalorder %s19, 1
    %p105 = por %p103, %p104
    %p107 = scmp.ne.s32.totalorder %s92, %s106
    %p108 = scmp.eq.s32.totalorder %s19, 0
    %p109 = por %p107, %p108
    %s111 = sadd.s32 %s110, 1
    %p114 = scmp.eq.s32.totalorder %s13, 1
    %p115 = scmp.ne.s32.totalorder %s110, %s112
    %p116 = scmp.eq.s32.totalorder %s13, 0
    %p117 = por %p115, %p116
    %p118 = scmp.ne.s32.totalorder %s110, %s112
    %p119 = scmp.eq.s32.totalorder %s18, 1
    %p120 = por %p118, %p119
    %p121 = scmp.ne.s32.totalorder %s112, %s113
    %p122 = scmp.eq.s32.totalorder %s18, 0
    %p123 = por %p121, %p122
    %p124 = scmp.ne.s32.totalorder %s112, %s113
    %p125 = scmp.eq.s32.totalorder %s19, 1
    %p126 = por %p124, %p125
    %p128 = scmp.ne.s32.totalorder %s113, %s127
    %p129 = scmp.eq.s32.totalorder %s19, 0
    %p130 = por %p128, %p129
    %s132 = sadd.s32 %s131, 1
    %p135 = scmp.eq.s32.totalorder %s13, 1
    %p136 = scmp.ne.s32.totalorder %s131, %s133
    %p137 = scmp.eq.s32.totalorder %s13, 0
    %p138 = por %p136, %p137
    %p139 = scmp.ne.s32.totalorder %s131, %s133
    %p140 = scmp.eq.s32.totalorder %s18, 1
    %p141 = por %p139, %p140
    %p142 = scmp.ne.s32.totalorder %s133, %s134
    %p143 = scmp.eq.s32.totalorder %s18, 0
    %p144 = por %p142, %p143
    %p145 = scmp.ne.s32.totalorder %s133, %s134
    %p146 = scmp.eq.s32.totalorder %s19, 1
    %p147 = por %p145, %p146
    %p149 = scmp.ne.s32.totalorder %s134, %s148
    %p150 = scmp.eq.s32.totalorder %s19, 0
    %p151 = por %p149, %p150
    %s153 = sadd.s32 %s152, 1
    %p156 = scmp.eq.s32.totalorder %s13, 1
    %p157 = scmp.ne.s32.totalorder %s152, %s154
    %p158 = scmp.eq.s32.totalorder %s13, 0
    %p159 = por %p157, %p158
    %p160 = scmp.ne.s32.totalorder %s152, %s154
    %p161 = scmp.eq.s32.totalorder %s18, 1
    %p162 = por %p160, %p161
    %p163 = scmp.ne.s32.totalorder %s154, %s155
    %p164 = scmp.eq.s32.totalorder %s18, 0
    %p165 = por %p163, %p164
    %p166 = scmp.ne.s32.totalorder %s154, %s155
    %p167 = scmp.eq.s32.totalorder %s19, 1
    %p168 = por %p166, %p167
    %p170 = scmp.ne.s32.totalorder %s155, %s169
    %p171 = scmp.eq.s32.totalorder %s19, 0
    %p172 = por %p170, %p171
    %s173 = ssub.s32 %s13, %s20
    %p174 = scmp.eq.s32.totalorder %s173, 0
    %s176 = sadd.s32 %s175, 1
    %s177 = scalar_select %p174, %s175, %s176
    %p180 = pneg %p174
    %p181 = scmp.eq.s32.totalorder %s13, 1
    %p182 = por %p180, %p181
    %p183 = scmp.ne.s32.totalorder %s175, %s178
    %p184 = scmp.eq.s32.totalorder %s13, 0
    %p185 = por %p183, %p184
    %p186 = scmp.ne.s32.totalorder %s175, %s178
    %p187 = scmp.eq.s32.totalorder %s18, 1
    %p188 = por %p186, %p187
    %p189 = scmp.ne.s32.totalorder %s178, %s179
    %p190 = scmp.eq.s32.totalorder %s18, 0
    %p191 = por %p189, %p190
    %p192 = scmp.ne.s32.totalorder %s178, %s179
    %p193 = scmp.eq.s32.totalorder %s19, 1
    %p194 = por %p192, %p193
    %p196 = scmp.ne.s32.totalorder %s179, %s195
    %p197 = scmp.eq.s32.totalorder %s19, 0
    %p198 = por %p196, %p197
    %p199 = scmp.le.s32.totalorder 1, %s13
    %p200 = scmp.lt.s32.totalorder %s13, 3
    %p201 = pnand %p199, %p200
    %p202 = pneg %p201
    // Predicated region
    $region9: #{_forward_jit.1} parent=5 // pred_check
      _
    $region10: #{_forward_jit.1} parent=5 // pred_check_branch
      %204 = sbr.rel (%p201) target = $region12
    $region11: #{_forward_jit.1} parent=5 // pred_region
      %s205 = ssub.s32 %s13, 1
      // Predicated region
      $region13: #{_forward_jit.1} parent=11 // pred_check
        %p206 = pneg %p60
      $region14: #{_forward_jit.1} parent=11 // pred_check_branch
        %208 = sbr.rel (%p206) target = $region16
      $region15: #{_forward_jit.1} parent=11 // pred_region
        _
      $region16: #{_forward_jit.1} parent=11 // pred_fallthru
        _
      // Predicated region
      $region17: #{_forward_jit.1} parent=11 // pred_check
        %p209 = pneg %p81
      $region18: #{_forward_jit.1} parent=11 // pred_check_branch
        %211 = sbr.rel (%p209) target = $region20
      $region19: #{_forward_jit.1} parent=11 // pred_region
        _
      $region20: #{_forward_jit.1} parent=11 // pred_fallthru
        _
      // Predicated region
      $region21: #{_forward_jit.1} parent=11 // pred_check
        %p212 = pneg %p102
      $region22: #{_forward_jit.1} parent=11 // pred_check_branch
        %214 = sbr.rel (%p212) target = $region24
      $region23: #{_forward_jit.1} parent=11 // pred_region
        _
      $region24: #{_forward_jit.1} parent=11 // pred_fallthru
        _
      // Predicated region
      $region25: #{_forward_jit.1} parent=11 // pred_check
        %p215 = pneg %p123
      $region26: #{_forward_jit.1} parent=11 // pred_check_branch
        %217 = sbr.rel (%p215) target = $region28
      $region27: #{_forward_jit.1} parent=11 // pred_region
        _
      $region28: #{_forward_jit.1} parent=11 // pred_fallthru
        _
      // Predicated region
      $region29: #{_forward_jit.1} parent=11 // pred_check
        %p218 = pneg %p144
      $region30: #{_forward_jit.1} parent=11 // pred_check_branch
        %220 = sbr.rel (%p218) target = $region32
      $region31: #{_forward_jit.1} parent=11 // pred_region
        _
      $region32: #{_forward_jit.1} parent=11 // pred_fallthru
        _
      // Predicated region
      $region33: #{_forward_jit.1} parent=11 // pred_check
        %p221 = pneg %p165
      $region34: #{_forward_jit.1} parent=11 // pred_check_branch
        %223 = sbr.rel (%p221) target = $region36
      $region35: #{_forward_jit.1} parent=11 // pred_region
        _
      $region36: #{_forward_jit.1} parent=11 // pred_fallthru
        _
    $region12: #{_forward_jit.1} parent=5 // pred_fallthru
      _
    %p224 = scmp.lt.s32.totalorder %s13, 2
    // Predicated region
    $region37: #{_forward_jit.1} parent=5 // pred_check
      %p225 = pneg %p224
    $region38: #{_forward_jit.1} parent=5 // pred_check_branch
      %227 = sbr.rel (%p225) target = $region40
    $region39: #{_forward_jit.1} parent=5 // pred_region
      // Predicated region
      $region41: #{_forward_jit.1} parent=39 // pred_check
        %p228 = pneg %p33
      $region42: #{_forward_jit.1} parent=39 // pred_check_branch
        %230 = sbr.rel (%p228) target = $region44
      $region43: #{_forward_jit.1} parent=39 // pred_region
        %p231 = scmp.lt.s32.totalorder %s13, 1
        %s232 = scalar_select %p231, %s13, 1
        %s233 = smul.addr %s232, 41
        %s234 = smul.addr %s233, 4
        %s235 = scalar_lea.vmem %s0, %s234
      $region44: #{_forward_jit.1} parent=39 // pred_fallthru
        _
    $region40: #{_forward_jit.1} parent=5 // pred_fallthru
      _
    %p236 = scmp.le.s32.totalorder 1, %s13
    %p237 = scmp.lt.s32.totalorder %s13, 3
    %p238 = pnand %p236, %p237
    %p239 = pneg %p238
    // Predicated region
    $region45: #{_forward_jit.1} parent=5 // pred_check
      _
    $region46: #{_forward_jit.1} parent=5 // pred_check_branch
      %241 = sbr.rel (%p238) target = $region48
    $region47: #{_forward_jit.1} parent=5 // pred_region
      %s242 = ssub.s32 %s13, 1
      %p243 = scmp.lt.s32.totalorder %s18, 1
      %s244 = scalar_select %p243, %s18, 1
      %s245 = smul.addr %s244, 41
      %s246 = smul.addr %s245, 4
      %s247 = scalar_lea.vmem %s0, %s246
      %p248 = pneg %p39
      %p249 = pneg %p36
      %p250 = pneg %p60
      %p251 = pneg %p57
      %p252 = pneg %p81
      %p253 = pneg %p78
      %p254 = pneg %p102
      %p255 = pneg %p99
      %p256 = pneg %p123
      %p257 = pneg %p120
      %p258 = pneg %p144
      %p259 = pneg %p141
      %p260 = pneg %p165
      %p261 = pneg %p162
      %p262 = pneg %p191
      %p263 = pneg %p188
      %p264 = scmp.lt.s32.totalorder %s18, 1
      %s265 = scalar_select %p264, %s18, 1
      %s266 = smul.addr %s265, 36
      %s267 = smul.addr %s266, 4
      %s268 = scalar_lea.vmem %s7, %s267
      %p269 = scmp.lt.s32.totalorder %s18, 1
      %s270 = scalar_select %p269, %s18, 1
      %s271 = smul.addr %s270, 41
      %s272 = smul.addr %s271, 4
      %s273 = scalar_lea.vmem %s0, %s272
      %p274 = scmp.lt.s32.totalorder %s18, 1
      %s275 = scalar_select %p274, %s18, 1
      %s276 = smul.addr %s275, 36
      %s277 = smul.addr %s276, 4
      %s278 = scalar_lea.vmem %s7, %s277
      %v280 = vld [vmem:[%s273] sm:$0xf]
      %v281 = vld [vmem:[%s273 + $0x4] sm:$0xf]
      %v282 = vld [vmem:[%s273 + $0x8] sm:$0xf]
      %v283 = vld [vmem:[%s273 + $0xc] sm:$0xf]
      %v284 = vld [vmem:[%s273 + $0x10] sm:$0xf]
      %v285 = vld [vmem:[%s273 + $0x14] sm:$0xf]
      %v286 = vld [vmem:[%s273 + $0x18] sm:$0xf]
      %v287 = vld [vmem:[%s273 + $0x1c] sm:$0xf]
      %v288 = vld [vmem:[%s273 + $0x20] sm:$0xf]
      %v289 = vld [vmem:[%s273 + $0x24] sm:$0xf]
      %v290 = vld [vmem:[%s273 + $0x28] sm:$0xf]
      %v291 = vld [vmem:[%s273 + $0x2c] sm:$0xf]
      %v292 = vld [vmem:[%s273 + $0x30] sm:$0xf]
      %v293 = vld [vmem:[%s273 + $0x34] sm:$0xf]
      %v294 = vld [vmem:[%s273 + $0x38] sm:$0xf]
      %v295 = vld [vmem:[%s273 + $0x3c] sm:$0xf]
      %v296 = vld [vmem:[%s273 + $0x40] sm:$0xf]
      %v297 = vld [vmem:[%s273 + $0x44] sm:$0xf]
      %v298 = vld [vmem:[%s273 + $0x48] sm:$0xf]
      %v299 = vld [vmem:[%s273 + $0x4c] sm:$0xf]
      %v300 = vld [vmem:[%s273 + $0x50] sm:$0xf]
      %v301 = vld [vmem:[%s273 + $0x54] sm:$0xf]
      %v302 = vld [vmem:[%s273 + $0x58] sm:$0xf]
      %v303 = vld [vmem:[%s273 + $0x5c] sm:$0xf]
      %v304 = vld [vmem:[%s273 + $0x60] sm:$0xf]
      %v305 = vld [vmem:[%s273 + $0x64] sm:$0xf]
      %v306 = vld [vmem:[%s273 + $0x68] sm:$0xf]
      %v307 = vld [vmem:[%s273 + $0x6c] sm:$0xf]
      %v308 = vld [vmem:[%s273 + $0x70] sm:$0xf]
      %v309 = vld [vmem:[%s273 + $0x74] sm:$0xf]
      %v310 = vld [vmem:[%s273 + $0x78] sm:$0xf]
      %v311 = vld [vmem:[%s273 + $0x7c] sm:$0xf]
      %v312 = vld [vmem:[%s273 + $0x80] sm:$0xf]
      %v313 = vld [vmem:[%s273 + $0x84] sm:$0xf]
      %v314 = vld [vmem:[%s273 + $0x88] sm:$0xf]
      %v315 = vld [vmem:[%s273 + $0x8c] sm:$0xf]
      %v316 = vld [vmem:[%s273 + $0x90] sm:$0xf]
      %v317 = vld [vmem:[%s273 + $0x94] sm:$0xf]
      %v318 = vld [vmem:[%s273 + $0x98] sm:$0xf]
      %v319 = vld [vmem:[%s273 + $0x9c] sm:$0xf]
      %v320 = vld [vmem:[%s273 + $0xa0] sm:$0xf]
      %v321 = vld [vmem:[%s1] sm:$0xf]
      %v322 = vld [vmem:[%s1 + $0x4] sm:$0xf]
      %v323 = vld [vmem:[%s1 + $0x8] sm:$0xf]
      %v324 = vld [vmem:[%s1 + $0xc] sm:$0xf]
      %v325 = vld [vmem:[%s1 + $0x10] sm:$0xf]
      %v326 = vld [vmem:[%s1 + $0x14] sm:$0xf]
      %v327 = vld [vmem:[%s1 + $0x18] sm:$0xf]
      %v328 = vld [vmem:[%s1 + $0x1c] sm:$0xf]
      %v329 = vld [vmem:[%s1 + $0x20] sm:$0xf]
      %v330 = vld [vmem:[%s1 + $0x24] sm:$0xf]
      %v331 = vld [vmem:[%s1 + $0x28] sm:$0xf]
      %v332 = vld [vmem:[%s1 + $0x2c] sm:$0xf]
      %v333 = vld [vmem:[%s1 + $0x30] sm:$0xf]
      %v334 = vld [vmem:[%s1 + $0x34] sm:$0xf]
      %v335 = vld [vmem:[%s1 + $0x38] sm:$0xf]
      %v336 = vld [vmem:[%s1 + $0x3c] sm:$0xf]
      %v378 = vunpack.c.l.b16 %v280
      %v379 = vunpack.c.l.b16 %v281
      %v380 = vunpack.c.l.b16 %v282
      %v381 = vunpack.c.l.b16 %v283
      %v382 = vunpack.c.l.b16 %v284
      %v383 = vunpack.c.l.b16 %v285
      %v384 = vunpack.c.l.b16 %v286
      %v385 = vunpack.c.l.b16 %v287
      %v386 = vunpack.c.l.b16 %v288
      %v387 = vunpack.c.l.b16 %v289
      %v388 = vunpack.c.l.b16 %v290
      %v389 = vunpack.c.l.b16 %v291
      %v390 = vunpack.c.l.b16 %v292
      %v391 = vunpack.c.l.b16 %v293
      %v392 = vunpack.c.l.b16 %v294
      %v393 = vunpack.c.l.b16 %v295
      %v394 = vunpack.c.l.b16 %v296
      %v395 = vunpack.c.l.b16 %v297
      %v396 = vunpack.c.l.b16 %v298
      %v397 = vunpack.c.l.b16 %v299
      %v398 = vunpack.c.l.b16 %v300
      %v399 = vunpack.c.l.b16 %v301
      %v400 = vunpack.c.l.b16 %v302
      %v401 = vunpack.c.l.b16 %v303
      %v402 = vunpack.c.l.b16 %v304
      %v403 = vunpack.c.l.b16 %v305
      %v404 = vunpack.c.l.b16 %v306
      %v405 = vunpack.c.l.b16 %v307
      %v406 = vunpack.c.l.b16 %v308
      %v407 = vunpack.c.l.b16 %v309
      %v408 = vunpack.c.l.b16 %v310
      %v409 = vunpack.c.l.b16 %v311
      %v410 = vunpack.c.l.b16 %v312
      %v411 = vunpack.c.l.b16 %v313
      %v412 = vunpack.c.l.b16 %v314
      %v413 = vunpack.c.l.b16 %v315
      %v414 = vunpack.c.l.b16 %v316
      %v415 = vunpack.c.l.b16 %v317
      %v416 = vunpack.c.l.b16 %v318
      %v417 = vunpack.c.l.b16 %v319
      %v418 = vunpack.c.l.b16 %v320
      %v419 = vpack.c.b16 %v379, %v378
      %v420 = vpack.c.b16 %v381, %v380
      %v421 = vpack.c.b16 %v383, %v382
      %v422 = vpack.c.b16 %v385, %v384
      %v423 = vpack.c.b16 %v387, %v386
      %v424 = vpack.c.b16 %v389, %v388
      %v425 = vpack.c.b16 %v391, %v390
      %v426 = vpack.c.b16 %v393, %v392
      %v427 = vpack.c.b16 %v395, %v394
      %v428 = vpack.c.b16 %v397, %v396
      %v429 = vpack.c.b16 %v399, %v398
      %v430 = vpack.c.b16 %v401, %v400
      %v431 = vpack.c.b16 %v403, %v402
      %v432 = vpack.c.b16 %v405, %v404
      %v433 = vpack.c.b16 %v407, %v406
      %v434 = vpack.c.b16 %v409, %v408
      %v435 = vpack.c.b16 %v411, %v410
      %v436 = vpack.c.b16 %v413, %v412
      %v437 = vpack.c.b16 %v415, %v414
      %v438 = vpack.c.b16 %v417, %v416
      %v439 = vpack.c.b16 %v418, %v418
      %v477 = vunpack.c.l.b16 %v321
      %v478 = vunpack.c.l.b16 %v322
      %v479 = vunpack.c.l.b16 %v323
      %v480 = vunpack.c.l.b16 %v324
      %v481 = vunpack.c.l.b16 %v325
      %v482 = vunpack.c.l.b16 %v326
      %v483 = vunpack.c.l.b16 %v327
      %v484 = vunpack.c.l.b16 %v328
      %v485 = vunpack.c.l.b16 %v329
      %v486 = vunpack.c.l.b16 %v330
      %v487 = vunpack.c.l.b16 %v331
      %v488 = vunpack.c.l.b16 %v332
      %v489 = vunpack.c.l.b16 %v333
      %v490 = vunpack.c.l.b16 %v334
      %v491 = vunpack.c.l.b16 %v335
      %v492 = vunpack.c.l.b16 %v336
      %v493 = vpack.c.b16 %v478, %v477
      %v494 = vpack.c.b16 %v480, %v479
      %v495 = vpack.c.b16 %v482, %v481
      %v496 = vpack.c.b16 %v484, %v483
      %v497 = vpack.c.b16 %v486, %v485
      %v498 = vpack.c.b16 %v488, %v487
      %v499 = vpack.c.b16 %v490, %v489
      %v500 = vpack.c.b16 %v492, %v491
      %509 = vmatprep.subr.bf16.mxu0 0
      %510 = vmatpush1.bf16.msra.mxu0 %v500
      %511 = vmatprep.subr.bf16.mxu0 0
      %512 = vmatpush1.bf16.msra.mxu0 %v499
      %513 = vmatprep.subr.bf16.mxu0 0
      %514 = vmatpush1.bf16.msra.mxu0 %v498
      %515 = vmatprep.subr.bf16.mxu0 0
      %516 = vmatpush1.bf16.msra.mxu0 %v497
      %517 = vmatprep.subr.bf16.mxu0 0
      %518 = vmatpush1.bf16.msra.mxu0 %v496
      %519 = vmatprep.subr.bf16.mxu0 0
      %520 = vmatpush1.bf16.msra.mxu0 %v495
      %521 = vmatprep.subr.bf16.mxu0 0
      %522 = vmatpush1.bf16.msra.mxu0 %v494
      %523 = vmatprep.subr.bf16.mxu0 0
      %524 = vmatpush1.bf16.msra.mxu0 %v493
      %525 = vmatprep.subr.bf16.mxu0 0
      %526 = vmatpush2.bf16.msra.mxu0 0
      %527 = vmatprep.subr.bf16.mxu0 0
      %528 = vmatpush2.bf16.msra.mxu0 0
      %529 = vmatprep.subr.bf16.mxu0 0
      %530 = vmatpush2.bf16.msra.mxu0 0
      %531 = vmatprep.subr.bf16.mxu0 0
      %532 = vmatpush2.bf16.msra.mxu0 0
      %533 = vmatprep.subr.bf16.mxu0 0
      %534 = vmatpush2.bf16.msra.mxu0 0
      %535 = vmatprep.subr.bf16.mxu0 0
      %536 = vmatpush2.bf16.msra.mxu0 0
      %537 = vmatprep.subr.bf16.mxu0 0
      %538 = vmatpush2.bf16.msra.mxu0 0
      %539 = vmatprep.subr.bf16.mxu0 0
      %540 = vmatpush2.bf16.msra.mxu0 0
      %541 = vmatprep.mubr.bf16.mxu0 0
      %542 = vmatmul.mubr.bf16.gmra.mxu0 %v419
      %v543 = vpop.f32.mrf.mxu0
      %v544 = vadd.f32 0.0, %v543
      %v545 = vpop.f32.mrf.mxu0
      %v546 = vpop.f32.mrf.mxu0
      %v547 = vadd.f32 0.0, %v546
      %v548 = vpop.f32.mrf.mxu0
      %549 = vmatprep.mubr.bf16.mxu0 0
      %550 = vmatmul.mubr.bf16.gmra.mxu0 %v420
      %v551 = vpop.f32.mrf.mxu0
      %v552 = vadd.f32 0.0, %v551
      %v553 = vpop.f32.mrf.mxu0
      %v554 = vpop.f32.mrf.mxu0
      %v555 = vadd.f32 0.0, %v554
      %v556 = vpop.f32.mrf.mxu0
      %557 = vmatprep.mubr.bf16.mxu0 0
      %558 = vmatmul.mubr.bf16.gmra.mxu0 %v421
      %v559 = vpop.f32.mrf.mxu0
      %v560 = vadd.f32 0.0, %v559
      %v561 = vpop.f32.mrf.mxu0
      %v562 = vpop.f32.mrf.mxu0
      %v563 = vadd.f32 0.0, %v562
      %v564 = vpop.f32.mrf.mxu0
      %565 = vmatprep.mubr.bf16.mxu0 0
      %566 = vmatmul.mubr.bf16.gmra.mxu0 %v422
      %v567 = vpop.f32.mrf.mxu0
      %v568 = vadd.f32 0.0, %v567
      %v569 = vpop.f32.mrf.mxu0
      %v570 = vpop.f32.mrf.mxu0
      %v571 = vadd.f32 0.0, %v570
      %v572 = vpop.f32.mrf.mxu0
      %573 = vmatprep.mubr.bf16.mxu0 0
      %574 = vmatmul.mubr.bf16.gmra.mxu0 %v423
      %v575 = vpop.f32.mrf.mxu0
      %v576 = vadd.f32 0.0, %v575
      %v577 = vpop.f32.mrf.mxu0
      %v578 = vpop.f32.mrf.mxu0
      %v579 = vadd.f32 0.0, %v578
      %v580 = vpop.f32.mrf.mxu0
      %581 = vmatprep.mubr.bf16.mxu0 0
      %582 = vmatmul.mubr.bf16.gmra.mxu0 %v424
      %v583 = vpop.f32.mrf.mxu0
      %v584 = vadd.f32 0.0, %v583
      %v585 = vpop.f32.mrf.mxu0
      %v586 = vpop.f32.mrf.mxu0
      %v587 = vadd.f32 0.0, %v586
      %v588 = vpop.f32.mrf.mxu0
      %589 = vmatprep.mubr.bf16.mxu0 0
      %590 = vmatmul.mubr.bf16.gmra.mxu0 %v425
      %v591 = vpop.f32.mrf.mxu0
      %v592 = vadd.f32 0.0, %v591
      %v593 = vpop.f32.mrf.mxu0
      %v594 = vpop.f32.mrf.mxu0
      %v595 = vadd.f32 0.0, %v594
      %v596 = vpop.f32.mrf.mxu0
      %597 = vmatprep.mubr.bf16.mxu0 0
      %598 = vmatmul.mubr.bf16.gmra.mxu0 %v426
      %v599 = vpop.f32.mrf.mxu0
      %v600 = vadd.f32 0.0, %v599
      %v601 = vpop.f32.mrf.mxu0
      %v602 = vpop.f32.mrf.mxu0
      %v603 = vadd.f32 0.0, %v602
      %v604 = vpop.f32.mrf.mxu0
      %605 = vmatprep.mubr.bf16.mxu0 0
      %606 = vmatmul.mubr.bf16.gmra.mxu0 %v427
      %v607 = vpop.f32.mrf.mxu0
      %v608 = vadd.f32 0.0, %v607
      %v609 = vpop.f32.mrf.mxu0
      %v610 = vpop.f32.mrf.mxu0
      %v611 = vadd.f32 0.0, %v610
      %v612 = vpop.f32.mrf.mxu0
      %613 = vmatprep.mubr.bf16.mxu0 0
      %614 = vmatmul.mubr.bf16.gmra.mxu0 %v428
      %v615 = vpop.f32.mrf.mxu0
      %v616 = vadd.f32 0.0, %v615
      %v617 = vpop.f32.mrf.mxu0
      %v618 = vpop.f32.mrf.mxu0
      %v619 = vadd.f32 0.0, %v618
      %v620 = vpop.f32.mrf.mxu0
      %621 = vmatprep.mubr.bf16.mxu0 0
      %622 = vmatmul.mubr.bf16.gmra.mxu0 %v429
      %v623 = vpop.f32.mrf.mxu0
      %v624 = vadd.f32 0.0, %v623
      %v625 = vpop.f32.mrf.mxu0
      %v626 = vpop.f32.mrf.mxu0
      %v627 = vadd.f32 0.0, %v626
      %v628 = vpop.f32.mrf.mxu0
      %629 = vmatprep.mubr.bf16.mxu0 0
      %630 = vmatmul.mubr.bf16.gmra.mxu0 %v430
      %v631 = vpop.f32.mrf.mxu0
      %v632 = vadd.f32 0.0, %v631
      %v633 = vpop.f32.mrf.mxu0
      %v634 = vpop.f32.mrf.mxu0
      %v635 = vadd.f32 0.0, %v634
      %v636 = vpop.f32.mrf.mxu0
      %637 = vmatprep.mubr.bf16.mxu0 0
      %638 = vmatmul.mubr.bf16.gmra.mxu0 %v431
      %v639 = vpop.f32.mrf.mxu0
      %v640 = vadd.f32 0.0, %v639
      %v641 = vpop.f32.mrf.mxu0
      %v642 = vpop.f32.mrf.mxu0
      %v643 = vadd.f32 0.0, %v642
      %v644 = vpop.f32.mrf.mxu0
      %645 = vmatprep.mubr.bf16.mxu0 0
      %646 = vmatmul.mubr.bf16.gmra.mxu0 %v432
      %v647 = vpop.f32.mrf.mxu0
      %v648 = vadd.f32 0.0, %v647
      %v649 = vpop.f32.mrf.mxu0
      %v650 = vpop.f32.mrf.mxu0
      %v651 = vadd.f32 0.0, %v650
      %v652 = vpop.f32.mrf.mxu0
      %653 = vmatprep.mubr.bf16.mxu0 0
      %654 = vmatmul.mubr.bf16.gmra.mxu0 %v433
      %v655 = vpop.f32.mrf.mxu0
      %v656 = vadd.f32 0.0, %v655
      %v657 = vpop.f32.mrf.mxu0
      %v658 = vpop.f32.mrf.mxu0
      %v659 = vadd.f32 0.0, %v658
      %v660 = vpop.f32.mrf.mxu0
      %661 = vmatprep.mubr.bf16.mxu0 0
      %662 = vmatmul.mubr.bf16.gmra.mxu0 %v434
      %v663 = vpop.f32.mrf.mxu0
      %v664 = vadd.f32 0.0, %v663
      %v665 = vpop.f32.mrf.mxu0
      %v666 = vpop.f32.mrf.mxu0
      %v667 = vadd.f32 0.0, %v666
      %v668 = vpop.f32.mrf.mxu0
      %669 = vmatprep.mubr.bf16.mxu0 0
      %670 = vmatmul.mubr.bf16.gmra.mxu0 %v435
      %v671 = vpop.f32.mrf.mxu0
      %v672 = vadd.f32 0.0, %v671
      %v673 = vpop.f32.mrf.mxu0
      %v674 = vpop.f32.mrf.mxu0
      %v675 = vadd.f32 0.0, %v674
      %v676 = vpop.f32.mrf.mxu0
      %677 = vmatprep.mubr.bf16.mxu0 0
      %678 = vmatmul.mubr.bf16.gmra.mxu0 %v436
      %v679 = vpop.f32.mrf.mxu0
      %v680 = vadd.f32 0.0, %v679
      %v681 = vpop.f32.mrf.mxu0
      %v682 = vpop.f32.mrf.mxu0
      %v683 = vadd.f32 0.0, %v682
      %v684 = vpop.f32.mrf.mxu0
      %685 = vmatprep.mubr.bf16.mxu0 0
      %686 = vmatmul.mubr.bf16.gmra.mxu0 %v437
      %v687 = vpop.f32.mrf.mxu0
      %v688 = vadd.f32 0.0, %v687
      %v689 = vpop.f32.mrf.mxu0
      %v690 = vpop.f32.mrf.mxu0
      %v691 = vadd.f32 0.0, %v690
      %v692 = vpop.f32.mrf.mxu0
      %693 = vmatprep.mubr.bf16.mxu0 0
      %694 = vmatmul.mubr.bf16.gmra.mxu0 %v438
      %v695 = vpop.f32.mrf.mxu0
      %v696 = vadd.f32 0.0, %v695
      %v697 = vpop.f32.mrf.mxu0
      %v698 = vpop.f32.mrf.mxu0
      %v699 = vadd.f32 0.0, %v698
      %v700 = vpop.f32.mrf.mxu0
      %701 = vmatprep.mubr.bf16.mxu0 0
      %702 = vmatmul.mubr.bf16.gmra.mxu0 %v439
      %v703 = vpop.f32.mrf.mxu0
      %v704 = vadd.f32 0.0, %v703
      %v705 = vpop.f32.mrf.mxu0
      %v706 = vpop.f32.mrf.mxu0
      %v707 = vpop.f32.mrf.mxu0
      %708 = vdwg.mxu0
      %v709 = vmax.f32 %v544, 0.0
      %v710 = vmax.f32 %v547, 0.0
      %v711 = vmax.f32 %v552, 0.0
      %v712 = vmax.f32 %v555, 0.0
      %v713 = vmax.f32 %v560, 0.0
      %v714 = vmax.f32 %v563, 0.0
      %v715 = vmax.f32 %v568, 0.0
      %v716 = vmax.f32 %v571, 0.0
      %v717 = vmax.f32 %v576, 0.0
      %v718 = vmax.f32 %v579, 0.0
      %v719 = vmax.f32 %v584, 0.0
      %v720 = vmax.f32 %v587, 0.0
      %v721 = vmax.f32 %v592, 0.0
      %v722 = vmax.f32 %v595, 0.0
      %v723 = vmax.f32 %v600, 0.0
      %v724 = vmax.f32 %v603, 0.0
      %v725 = vmax.f32 %v608, 0.0
      %v726 = vmax.f32 %v611, 0.0
      %v727 = vmax.f32 %v616, 0.0
      %v728 = vmax.f32 %v619, 0.0
      %v729 = vmax.f32 %v624, 0.0
      %v730 = vmax.f32 %v627, 0.0
      %v731 = vmax.f32 %v632, 0.0
      %v732 = vmax.f32 %v635, 0.0
      %v733 = vmax.f32 %v640, 0.0
      %v734 = vmax.f32 %v643, 0.0
      %v735 = vmax.f32 %v648, 0.0
      %v736 = vmax.f32 %v651, 0.0
      %v737 = vmax.f32 %v656, 0.0
      %v738 = vmax.f32 %v659, 0.0
      %v739 = vmax.f32 %v664, 0.0
      %v740 = vmax.f32 %v667, 0.0
      %v741 = vmax.f32 %v672, 0.0
      %v742 = vmax.f32 %v675, 0.0
      %v743 = vmax.f32 %v680, 0.0
      %v744 = vmax.f32 %v683, 0.0
      %v745 = vmax.f32 %v688, 0.0
      %v746 = vmax.f32 %v691, 0.0
      %v747 = vmax.f32 %v696, 0.0
      %v748 = vmax.f32 %v699, 0.0
      %v749 = vmax.f32 %v704, 0.0
      %v750 = vpack.c.bf16 %v710, %v709
      %v751 = vpack.c.bf16 %v712, %v711
      %v752 = vpack.c.bf16 %v714, %v713
      %v753 = vpack.c.bf16 %v716, %v715
      %v754 = vpack.c.bf16 %v718, %v717
      %v755 = vpack.c.bf16 %v720, %v719
      %v756 = vpack.c.bf16 %v722, %v721
      %v757 = vpack.c.bf16 %v724, %v723
      %v758 = vpack.c.bf16 %v726, %v725
      %v759 = vpack.c.bf16 %v728, %v727
      %v760 = vpack.c.bf16 %v730, %v729
      %v761 = vpack.c.bf16 %v732, %v731
      %v762 = vpack.c.bf16 %v734, %v733
      %v763 = vpack.c.bf16 %v736, %v735
      %v764 = vpack.c.bf16 %v738, %v737
      %v765 = vpack.c.bf16 %v740, %v739
      %v766 = vpack.c.bf16 %v742, %v741
      %v767 = vpack.c.bf16 %v744, %v743
      %v768 = vpack.c.bf16 %v746, %v745
      %v769 = vpack.c.bf16 %v748, %v747
      %v770 = vpack.c.bf16 %v749, %v749
      %vm771 = vsmask.f32 7424
      %v773 = vshrl.u32 %v750, 16
      %v775 = vshll.u32 %v750, 16
      %v777 = vrot.slane %v775, 1
      %v778 = vor.u32 %v773, %v777
      %v780 = vshll.u32 %v751, 16
      %v782 = vrot.slane %v780, 1
      %v783 = vsel %vm771, %v778, %v782
      %v784 = vshrl.u32 %v751, 16
      %v786 = vor.u32 %v784, %v782
      %v788 = vshll.u32 %v752, 16
      %v790 = vrot.slane %v788, 1
      %v791 = vsel %vm771, %v786, %v790
      %v792 = vshrl.u32 %v752, 16
      %v794 = vor.u32 %v792, %v790
      %v796 = vshll.u32 %v753, 16
      %v798 = vrot.slane %v796, 1
      %v799 = vsel %vm771, %v794, %v798
      %v800 = vshrl.u32 %v753, 16
      %v802 = vor.u32 %v800, %v798
      %v804 = vshll.u32 %v754, 16
      %v806 = vrot.slane %v804, 1
      %v807 = vsel %vm771, %v802, %v806
      %v808 = vshrl.u32 %v754, 16
      %v810 = vor.u32 %v808, %v806
      %v812 = vshll.u32 %v755, 16
      %v814 = vrot.slane %v812, 1
      %v815 = vsel %vm771, %v810, %v814
      %v816 = vshrl.u32 %v755, 16
      %v818 = vor.u32 %v816, %v814
      %v820 = vshll.u32 %v756, 16
      %v822 = vrot.slane %v820, 1
      %v823 = vsel %vm771, %v818, %v822
      %v824 = vshrl.u32 %v756, 16
      %v826 = vor.u32 %v824, %v822
      %v828 = vshll.u32 %v757, 16
      %v830 = vrot.slane %v828, 1
      %v831 = vsel %vm771, %v826, %v830
      %v832 = vshrl.u32 %v757, 16
      %v834 = vor.u32 %v832, %v830
      %v836 = vshll.u32 %v758, 16
      %v838 = vrot.slane %v836, 1
      %v839 = vsel %vm771, %v834, %v838
      %v840 = vshrl.u32 %v758, 16
      %v842 = vor.u32 %v840, %v838
      %v844 = vshll.u32 %v759, 16
      %v846 = vrot.slane %v844, 1
      %v847 = vsel %vm771, %v842, %v846
      %v848 = vshrl.u32 %v759, 16
      %v850 = vor.u32 %v848, %v846
      %v852 = vshll.u32 %v760, 16
      %v854 = vrot.slane %v852, 1
      %v855 = vsel %vm771, %v850, %v854
      %v856 = vshrl.u32 %v760, 16
      %v858 = vor.u32 %v856, %v854
      %v860 = vshll.u32 %v761, 16
      %v862 = vrot.slane %v860, 1
      %v863 = vsel %vm771, %v858, %v862
      %v864 = vshrl.u32 %v761, 16
      %v866 = vor.u32 %v864, %v862
      %v868 = vshll.u32 %v762, 16
      %v870 = vrot.slane %v868, 1
      %v871 = vsel %vm771, %v866, %v870
      %v872 = vshrl.u32 %v762, 16
      %v874 = vor.u32 %v872, %v870
      %v876 = vshll.u32 %v763, 16
      %v878 = vrot.slane %v876, 1
      %v879 = vsel %vm771, %v874, %v878
      %v880 = vshrl.u32 %v763, 16
      %v882 = vor.u32 %v880, %v878
      %v884 = vshll.u32 %v764, 16
      %v886 = vrot.slane %v884, 1
      %v887 = vsel %vm771, %v882, %v886
      %v888 = vshrl.u32 %v764, 16
      %v890 = vor.u32 %v888, %v886
      %v892 = vshll.u32 %v765, 16
      %v894 = vrot.slane %v892, 1
      %v895 = vsel %vm771, %v890, %v894
      %v896 = vshrl.u32 %v765, 16
      %v898 = vor.u32 %v896, %v894
      %v900 = vshll.u32 %v766, 16
      %v902 = vrot.slane %v900, 1
      %v903 = vsel %vm771, %v898, %v902
      %v904 = vshrl.u32 %v766, 16
      %v906 = vor.u32 %v904, %v902
      %v908 = vshll.u32 %v767, 16
      %v910 = vrot.slane %v908, 1
      %v911 = vsel %vm771, %v906, %v910
      %v912 = vshrl.u32 %v767, 16
      %v914 = vor.u32 %v912, %v910
      %v916 = vshll.u32 %v768, 16
      %v918 = vrot.slane %v916, 1
      %v919 = vsel %vm771, %v914, %v918
      %vm957 = vcmask 1046528
      %v958 = vrot.slane %v750, 1
      %v959 = vrot.slane %v751, 1
      %v960 = vsel %vm957, %v958, %v959
      %v961 = vrot.slane %v752, 1
      %v962 = vsel %vm957, %v959, %v961
      %v963 = vrot.slane %v753, 1
      %v964 = vsel %vm957, %v961, %v963
      %v965 = vrot.slane %v754, 1
      %v966 = vsel %vm957, %v963, %v965
      %v967 = vrot.slane %v755, 1
      %v968 = vsel %vm957, %v965, %v967
      %v969 = vrot.slane %v756, 1
      %v970 = vsel %vm957, %v967, %v969
      %v971 = vrot.slane %v757, 1
      %v972 = vsel %vm957, %v969, %v971
      %v973 = vrot.slane %v758, 1
      %v974 = vsel %vm957, %v971, %v973
      %v975 = vrot.slane %v759, 1
      %v976 = vsel %vm957, %v973, %v975
      %v977 = vrot.slane %v760, 1
      %v978 = vsel %vm957, %v975, %v977
      %v979 = vrot.slane %v761, 1
      %v980 = vsel %vm957, %v977, %v979
      %v981 = vrot.slane %v762, 1
      %v982 = vsel %vm957, %v979, %v981
      %v983 = vrot.slane %v763, 1
      %v984 = vsel %vm957, %v981, %v983
      %v985 = vrot.slane %v764, 1
      %v986 = vsel %vm957, %v983, %v985
      %v987 = vrot.slane %v765, 1
      %v988 = vsel %vm957, %v985, %v987
      %v989 = vrot.slane %v766, 1
      %v990 = vsel %vm957, %v987, %v989
      %v991 = vrot.slane %v767, 1
      %v992 = vsel %vm957, %v989, %v991
      %v993 = vrot.slane %v768, 1
      %v994 = vsel %vm957, %v991, %v993
      %v1013 = vld [vmem:[%s2] sm:$0xf]
      %v1014 = vld [vmem:[%s2 + $0x4] sm:$0xf]
      %v1015 = vld [vmem:[%s2 + $0x8] sm:$0xf]
      %v1016 = vld [vmem:[%s2 + $0xc] sm:$0xf]
      %v1017 = vld [vmem:[%s2 + $0x10] sm:$0xf]
      %v1018 = vld [vmem:[%s2 + $0x14] sm:$0xf]
      %v1019 = vld [vmem:[%s2 + $0x18] sm:$0xf]
      %v1020 = vld [vmem:[%s2 + $0x1c] sm:$0xf]
      %v1021 = vld [vmem:[%s2 + $0x20] sm:$0xf]
      %v1022 = vld [vmem:[%s2 + $0x24] sm:$0xf]
      %v1023 = vld [vmem:[%s2 + $0x28] sm:$0xf]
      %v1024 = vld [vmem:[%s2 + $0x2c] sm:$0xf]
      %v1025 = vld [vmem:[%s2 + $0x30] sm:$0xf]
      %v1026 = vld [vmem:[%s2 + $0x34] sm:$0xf]
      %v1027 = vld [vmem:[%s2 + $0x38] sm:$0xf]
      %v1028 = vld [vmem:[%s2 + $0x3c] sm:$0xf]
      %v1029 = vld [vmem:[%s2 + $0x40] sm:$0xf]
      %v1030 = vld [vmem:[%s2 + $0x44] sm:$0xf]
      %v1031 = vld [vmem:[%s2 + $0x48] sm:$0xf]
      %v1032 = vld [vmem:[%s2 + $0x4c] sm:$0xf]
      %v1033 = vld [vmem:[%s2 + $0x50] sm:$0xf]
      %v1034 = vld [vmem:[%s2 + $0x54] sm:$0xf]
      %v1035 = vld [vmem:[%s2 + $0x58] sm:$0xf]
      %v1036 = vld [vmem:[%s2 + $0x5c] sm:$0xf]
      %v1037 = vld [vmem:[%s2 + $0x60] sm:$0xf]
      %v1038 = vld [vmem:[%s2 + $0x64] sm:$0xf]
      %v1039 = vld [vmem:[%s2 + $0x68] sm:$0xf]
      %v1040 = vld [vmem:[%s2 + $0x6c] sm:$0xf]
      %v1041 = vld [vmem:[%s2 + $0x70] sm:$0xf]
      %v1042 = vld [vmem:[%s2 + $0x74] sm:$0xf]
      %v1043 = vld [vmem:[%s2 + $0x78] sm:$0xf]
      %v1044 = vld [vmem:[%s2 + $0x7c] sm:$0xf]
      %v1045 = vld [vmem:[%s2 + $0x80] sm:$0xf]
      %v1046 = vld [vmem:[%s2 + $0x84] sm:$0xf]
      %v1047 = vld [vmem:[%s2 + $0x88] sm:$0xf]
      %v1048 = vld [vmem:[%s2 + $0x8c] sm:$0xf]
      %v1049 = vld [vmem:[%s2 + $0x90] sm:$0xf]
      %v1050 = vld [vmem:[%s2 + $0x94] sm:$0xf]
      %v1051 = vld [vmem:[%s2 + $0x98] sm:$0xf]
      %v1052 = vld [vmem:[%s2 + $0x9c] sm:$0xf]
      %v1053 = vld [vmem:[%s2 + $0xa0] sm:$0xf]
      %v1054 = vld [vmem:[%s2 + $0xa4] sm:$0xf]
      %v1055 = vld [vmem:[%s2 + $0xa8] sm:$0xf]
      %v1056 = vld [vmem:[%s2 + $0xac] sm:$0xf]
      %v1057 = vld [vmem:[%s2 + $0xb0] sm:$0xf]
      %v1058 = vld [vmem:[%s2 + $0xb4] sm:$0xf]
      %v1059 = vld [vmem:[%s2 + $0xb8] sm:$0xf]
      %v1060 = vld [vmem:[%s2 + $0xbc] sm:$0xf]
      %v1061 = vshrl.u32 %v768, 16
      %v1063 = vor.u32 %v1061, %v918
      %v1065 = vshll.u32 %v769, 16
      %v1067 = vrot.slane %v1065, 1
      %v1068 = vsel %vm771, %v1063, %v1067
      %v1069 = vshrl.u32 %v769, 16
      %v1071 = vor.u32 %v1069, %v1067
      %v1073 = vrot.slane %v769, 1
      %v1074 = vsel %vm957, %v993, %v1073
      %s1075 = scalar_lea.vmem %s2, 192
      %v1076 = vld [vmem:[%s1075] sm:$0xf]
      %v1077 = vld [vmem:[%s1075 + $0x4] sm:$0xf]
      %v1078 = vld [vmem:[%s1075 + $0x8] sm:$0xf]
      %v1079 = vld [vmem:[%s1075 + $0xc] sm:$0xf]
      %v1080 = vld [vmem:[%s1075 + $0x10] sm:$0xf]
      %v1081 = vld [vmem:[%s1075 + $0x14] sm:$0xf]
      %v1082 = vld [vmem:[%s1075 + $0x18] sm:$0xf]
      %v1083 = vld [vmem:[%s1075 + $0x1c] sm:$0xf]
      %v1084 = vld [vmem:[%s1075 + $0x20] sm:$0xf]
      %v1085 = vld [vmem:[%s1075 + $0x24] sm:$0xf]
      %v1086 = vld [vmem:[%s1075 + $0x28] sm:$0xf]
      %v1087 = vld [vmem:[%s1075 + $0x2c] sm:$0xf]
      %v1088 = vld [vmem:[%s1075 + $0x30] sm:$0xf]
      %v1089 = vld [vmem:[%s1075 + $0x34] sm:$0xf]
      %v1090 = vld [vmem:[%s1075 + $0x38] sm:$0xf]
      %v1091 = vld [vmem:[%s1075 + $0x3c] sm:$0xf]
      %v1092 = vld [vmem:[%s1075 + $0x40] sm:$0xf]
      %v1093 = vld [vmem:[%s1075 + $0x44] sm:$0xf]
      %v1094 = vld [vmem:[%s1075 + $0x48] sm:$0xf]
      %v1095 = vld [vmem:[%s1075 + $0x4c] sm:$0xf]
      %v1096 = vld [vmem:[%s1075 + $0x50] sm:$0xf]
      %v1097 = vld [vmem:[%s1075 + $0x54] sm:$0xf]
      %v1098 = vld [vmem:[%s1075 + $0x58] sm:$0xf]
      %v1099 = vld [vmem:[%s1075 + $0x5c] sm:$0xf]
      %v1100 = vld [vmem:[%s1075 + $0x60] sm:$0xf]
      %v1101 = vld [vmem:[%s1075 + $0x64] sm:$0xf]
      %v1102 = vld [vmem:[%s1075 + $0x68] sm:$0xf]
      %v1103 = vld [vmem:[%s1075 + $0x6c] sm:$0xf]
      %v1104 = vld [vmem:[%s1075 + $0x70] sm:$0xf]
      %v1105 = vld [vmem:[%s1075 + $0x74] sm:$0xf]
      %v1106 = vld [vmem:[%s1075 + $0x78] sm:$0xf]
      %v1107 = vld [vmem:[%s1075 + $0x7c] sm:$0xf]
      %v1108 = vld [vmem:[%s1075 + $0x80] sm:$0xf]
      %v1109 = vld [vmem:[%s1075 + $0x84] sm:$0xf]
      %v1110 = vld [vmem:[%s1075 + $0x88] sm:$0xf]
      %v1111 = vld [vmem:[%s1075 + $0x8c] sm:$0xf]
      %v1112 = vld [vmem:[%s1075 + $0x90] sm:$0xf]
      %v1113 = vld [vmem:[%s1075 + $0x94] sm:$0xf]
      %v1114 = vld [vmem:[%s1075 + $0x98] sm:$0xf]
      %v1115 = vld [vmem:[%s1075 + $0x9c] sm:$0xf]
      %v1116 = vld [vmem:[%s1075 + $0xa0] sm:$0xf]
      %v1117 = vld [vmem:[%s1075 + $0xa4] sm:$0xf]
      %v1118 = vld [vmem:[%s1075 + $0xa8] sm:$0xf]
      %v1119 = vld [vmem:[%s1075 + $0xac] sm:$0xf]
      %v1120 = vld [vmem:[%s1075 + $0xb0] sm:$0xf]
      %v1121 = vld [vmem:[%s1075 + $0xb4] sm:$0xf]
      %v1122 = vld [vmem:[%s1075 + $0xb8] sm:$0xf]
      %v1123 = vld [vmem:[%s1075 + $0xbc] sm:$0xf]
      %v1124 = vrot.slane %v791, 1
      %v1125 = vrot.slane %v799, 1
      %v1126 = vsel %vm957, %v1124, %v1125
      %v1127 = vrot.slane %v962, 1
      %v1128 = vrot.slane %v964, 1
      %v1129 = vsel %vm957, %v1127, %v1128
      %v1130 = vrot.slane %v807, 1
      %v1131 = vsel %vm957, %v1125, %v1130
      %v1132 = vrot.slane %v966, 1
      %v1133 = vsel %vm957, %v1128, %v1132
      %v1134 = vrot.slane %v815, 1
      %v1135 = vsel %vm957, %v1130, %v1134
      %v1136 = vrot.slane %v968, 1
      %v1137 = vsel %vm957, %v1132, %v1136
      %v1138 = vrot.slane %v823, 1
      %v1139 = vsel %vm957, %v1134, %v1138
      %v1140 = vrot.slane %v970, 1
      %v1141 = vsel %vm957, %v1136, %v1140
      %v1142 = vrot.slane %v831, 1
      %v1143 = vsel %vm957, %v1138, %v1142
      %v1144 = vrot.slane %v972, 1
      %v1145 = vsel %vm957, %v1140, %v1144
      %v1146 = vrot.slane %v839, 1
      %v1147 = vsel %vm957, %v1142, %v1146
      %v1148 = vrot.slane %v974, 1
      %v1149 = vsel %vm957, %v1144, %v1148
      %v1150 = vrot.slane %v847, 1
      %v1151 = vsel %vm957, %v1146, %v1150
      %v1152 = vrot.slane %v976, 1
      %v1153 = vsel %vm957, %v1148, %v1152
      %v1154 = vrot.slane %v855, 1
      %v1155 = vsel %vm957, %v1150, %v1154
      %v1156 = vrot.slane %v978, 1
      %v1157 = vsel %vm957, %v1152, %v1156
      %v1158 = vrot.slane %v863, 1
      %v1159 = vsel %vm957, %v1154, %v1158
      %v1160 = vrot.slane %v980, 1
      %v1161 = vsel %vm957, %v1156, %v1160
      %v1162 = vrot.slane %v871, 1
      %v1163 = vsel %vm957, %v1158, %v1162
      %v1164 = vrot.slane %v982, 1
      %v1165 = vsel %vm957, %v1160, %v1164
      %v1166 = vrot.slane %v879, 1
      %v1167 = vsel %vm957, %v1162, %v1166
      %v1168 = vrot.slane %v984, 1
      %v1169 = vsel %vm957, %v1164, %v1168
      %v1170 = vrot.slane %v887, 1
      %v1171 = vsel %vm957, %v1166, %v1170
      %v1172 = vrot.slane %v986, 1
      %v1173 = vsel %vm957, %v1168, %v1172
      %v1174 = vrot.slane %v895, 1
      %v1175 = vsel %vm957, %v1170, %v1174
      %v1176 = vrot.slane %v988, 1
      %v1177 = vsel %vm957, %v1172, %v1176
      %v1178 = vrot.slane %v903, 1
      %v1179 = vsel %vm957, %v1174, %v1178
      %v1180 = vrot.slane %v990, 1
      %v1181 = vsel %vm957, %v1176, %v1180
      %v1182 = vrot.slane %v911, 1
      %v1183 = vsel %vm957, %v1178, %v1182
      %v1184 = vrot.slane %v992, 1
      %v1185 = vsel %vm957, %v1180, %v1184
      %v1186 = vrot.slane %v919, 1
      %v1187 = vsel %vm957, %v1182, %v1186
      %v1188 = vrot.slane %v994, 1
      %v1189 = vsel %vm957, %v1184, %v1188
      %v1190 = vrot.slane %v1068, 1
      %v1191 = vsel %vm957, %v1186, %v1190
      %v1192 = vrot.slane %v1074, 1
      %v1193 = vsel %vm957, %v1188, %v1192
      %v1194 = vrot.slane %v1071, 1
      %v1195 = vsel %vm957, %v1190, %v1194
      %v1196 = vrot.slane %v1073, 1
      %v1197 = vsel %vm957, %v1192, %v1196
      %v1283 = vunpack.c.l.b16 %v1076
      %v1284 = vunpack.c.l.b16 %v1077
      %v1285 = vunpack.c.l.b16 %v1078
      %v1286 = vunpack.c.l.b16 %v1079
      %v1287 = vunpack.c.l.b16 %v1080
      %v1288 = vunpack.c.l.b16 %v1081
      %v1289 = vunpack.c.l.b16 %v1082
      %v1290 = vunpack.c.l.b16 %v1083
      %v1291 = vunpack.c.l.b16 %v1084
      %v1292 = vunpack.c.l.b16 %v1085
      %v1293 = vunpack.c.l.b16 %v1086
      %v1294 = vunpack.c.l.b16 %v1087
      %v1295 = vunpack.c.l.b16 %v1088
      %v1296 = vunpack.c.l.b16 %v1089
      %v1297 = vunpack.c.l.b16 %v1090
      %v1298 = vunpack.c.l.b16 %v1091
      %v1299 = vunpack.c.l.b16 %v1092
      %v1300 = vunpack.c.l.b16 %v1093
      %v1301 = vunpack.c.l.b16 %v1094
      %v1302 = vunpack.c.l.b16 %v1095
      %v1303 = vunpack.c.l.b16 %v1096
      %v1304 = vunpack.c.l.b16 %v1097
      %v1305 = vunpack.c.l.b16 %v1098
      %v1306 = vunpack.c.l.b16 %v1099
      %v1307 = vunpack.c.l.b16 %v1100
      %v1308 = vunpack.c.l.b16 %v1101
      %v1309 = vunpack.c.l.b16 %v1102
      %v1310 = vunpack.c.l.b16 %v1103
      %v1311 = vunpack.c.l.b16 %v1104
      %v1312 = vunpack.c.l.b16 %v1105
      %v1313 = vunpack.c.l.b16 %v1106
      %v1314 = vunpack.c.l.b16 %v1107
      %v1315 = vunpack.c.l.b16 %v1108
      %v1316 = vunpack.c.l.b16 %v1109
      %v1317 = vunpack.c.l.b16 %v1110
      %v1318 = vunpack.c.l.b16 %v1111
      %v1319 = vunpack.c.l.b16 %v1112
      %v1320 = vunpack.c.l.b16 %v1113
      %v1321 = vunpack.c.l.b16 %v1114
      %v1322 = vunpack.c.l.b16 %v1115
      %v1323 = vunpack.c.l.b16 %v1116
      %v1324 = vunpack.c.l.b16 %v1117
      %v1325 = vunpack.c.l.b16 %v1118
      %v1326 = vunpack.c.l.b16 %v1119
      %v1327 = vunpack.c.l.b16 %v1120
      %v1328 = vunpack.c.l.b16 %v1121
      %v1329 = vunpack.c.l.b16 %v1122
      %v1330 = vunpack.c.l.b16 %v1123
      %v1331 = vpack.c.b16 %v1284, %v1283
      %v1332 = vpack.c.b16 %v1286, %v1285
      %v1333 = vpack.c.b16 %v1288, %v1287
      %v1334 = vpack.c.b16 %v1290, %v1289
      %v1335 = vpack.c.b16 %v1292, %v1291
      %v1336 = vpack.c.b16 %v1294, %v1293
      %v1337 = vpack.c.b16 %v1296, %v1295
      %v1338 = vpack.c.b16 %v1298, %v1297
      %v1339 = vpack.c.b16 %v1300, %v1299
      %v1340 = vpack.c.b16 %v1302, %v1301
      %v1341 = vpack.c.b16 %v1304, %v1303
      %v1342 = vpack.c.b16 %v1306, %v1305
      %v1343 = vpack.c.b16 %v1308, %v1307
      %v1344 = vpack.c.b16 %v1310, %v1309
      %v1345 = vpack.c.b16 %v1312, %v1311
      %v1346 = vpack.c.b16 %v1314, %v1313
      %v1347 = vpack.c.b16 %v1316, %v1315
      %v1348 = vpack.c.b16 %v1318, %v1317
      %v1349 = vpack.c.b16 %v1320, %v1319
      %v1350 = vpack.c.b16 %v1322, %v1321
      %v1351 = vpack.c.b16 %v1324, %v1323
      %v1352 = vpack.c.b16 %v1326, %v1325
      %v1353 = vpack.c.b16 %v1328, %v1327
      %v1354 = vpack.c.b16 %v1330, %v1329
      %1379 = vmatprep.subr.bf16.mxu0 0
      %1380 = vmatpush1.bf16.msra.mxu0 %v1338
      %1381 = vmatprep.subr.bf16.mxu0 0
      %1382 = vmatpush1.bf16.msra.mxu0 %v1337
      %1383 = vmatprep.subr.bf16.mxu0 0
      %1384 = vmatpush1.bf16.msra.mxu0 %v1336
      %1385 = vmatprep.subr.bf16.mxu0 0
      %1386 = vmatpush1.bf16.msra.mxu0 %v1335
      %1387 = vmatprep.subr.bf16.mxu0 0
      %1388 = vmatpush1.bf16.msra.mxu0 %v1334
      %1389 = vmatprep.subr.bf16.mxu0 0
      %1390 = vmatpush1.bf16.msra.mxu0 %v1333
      %1391 = vmatprep.subr.bf16.mxu0 0
      %1392 = vmatpush1.bf16.msra.mxu0 %v1332
      %1393 = vmatprep.subr.bf16.mxu0 0
      %1394 = vmatpush1.bf16.msra.mxu0 %v1331
      %1395 = vmatprep.subr.bf16.mxu0 0
      %1396 = vmatpush2.bf16.msra.mxu0 %v1346
      %1397 = vmatprep.subr.bf16.mxu0 0
      %1398 = vmatpush2.bf16.msra.mxu0 %v1345
      %1399 = vmatprep.subr.bf16.mxu0 0
      %1400 = vmatpush2.bf16.msra.mxu0 %v1344
      %1401 = vmatprep.subr.bf16.mxu0 0
      %1402 = vmatpush2.bf16.msra.mxu0 %v1343
      %1403 = vmatprep.subr.bf16.mxu0 0
      %1404 = vmatpush2.bf16.msra.mxu0 %v1342
      %1405 = vmatprep.subr.bf16.mxu0 0
      %1406 = vmatpush2.bf16.msra.mxu0 %v1341
      %1407 = vmatprep.subr.bf16.mxu0 0
      %1408 = vmatpush2.bf16.msra.mxu0 %v1340
      %1409 = vmatprep.subr.bf16.mxu0 0
      %1410 = vmatpush2.bf16.msra.mxu0 %v1339
      %1411 = vmatprep.mubr.bf16.mxu0 %v1126
      %1412 = vmatmul.mubr.bf16.gmra.mxu0 %v962
      %v1413 = vpop.f32.mrf.mxu0
      %v1414 = vadd.f32 0.0, %v1413
      %v1415 = vpop.f32.mrf.mxu0
      %v1416 = vpop.f32.mrf.mxu0
      %v1417 = vadd.f32 0.0, %v1416
      %v1418 = vpop.f32.mrf.mxu0
      %1419 = vmatprep.mubr.bf16.mxu0 %v1131
      %1420 = vmatmul.mubr.bf16.gmra.mxu0 %v964
      %v1421 = vpop.f32.mrf.mxu0
      %v1422 = vadd.f32 0.0, %v1421
      %v1423 = vpop.f32.mrf.mxu0
      %v1424 = vpop.f32.mrf.mxu0
      %v1425 = vadd.f32 0.0, %v1424
      %v1426 = vpop.f32.mrf.mxu0
      %1427 = vmatprep.mubr.bf16.mxu0 %v1135
      %1428 = vmatmul.mubr.bf16.gmra.mxu0 %v966
      %v1429 = vpop.f32.mrf.mxu0
      %v1430 = vadd.f32 0.0, %v1429
      %v1431 = vpop.f32.mrf.mxu0
      %v1432 = vpop.f32.mrf.mxu0
      %v1433 = vadd.f32 0.0, %v1432
      %v1434 = vpop.f32.mrf.mxu0
      %1435 = vmatprep.mubr.bf16.mxu0 %v1139
      %1436 = vmatmul.mubr.bf16.gmra.mxu0 %v968
      %v1437 = vpop.f32.mrf.mxu0
      %v1438 = vadd.f32 0.0, %v1437
      %v1439 = vpop.f32.mrf.mxu0
      %v1440 = vpop.f32.mrf.mxu0
      %v1441 = vadd.f32 0.0, %v1440
      %v1442 = vpop.f32.mrf.mxu0
      %1443 = vmatprep.mubr.bf16.mxu0 %v1143
      %1444 = vmatmul.mubr.bf16.gmra.mxu0 %v970
      %v1445 = vpop.f32.mrf.mxu0
      %v1446 = vadd.f32 0.0, %v1445
      %v1447 = vpop.f32.mrf.mxu0
      %v1448 = vpop.f32.mrf.mxu0
      %v1449 = vadd.f32 0.0, %v1448
      %v1450 = vpop.f32.mrf.mxu0
      %1451 = vmatprep.mubr.bf16.mxu0 %v1147
      %1452 = vmatmul.mubr.bf16.gmra.mxu0 %v972
      %v1453 = vpop.f32.mrf.mxu0
      %v1454 = vadd.f32 0.0, %v1453
      %v1455 = vpop.f32.mrf.mxu0
      %v1456 = vpop.f32.mrf.mxu0
      %v1457 = vadd.f32 0.0, %v1456
      %v1458 = vpop.f32.mrf.mxu0
      %1459 = vmatprep.mubr.bf16.mxu0 %v1151
      %1460 = vmatmul.mubr.bf16.gmra.mxu0 %v974
      %v1461 = vpop.f32.mrf.mxu0
      %v1462 = vadd.f32 0.0, %v1461
      %v1463 = vpop.f32.mrf.mxu0
      %v1464 = vpop.f32.mrf.mxu0
      %v1465 = vadd.f32 0.0, %v1464
      %v1466 = vpop.f32.mrf.mxu0
      %1467 = vmatprep.mubr.bf16.mxu0 %v1155
      %1468 = vmatmul.mubr.bf16.gmra.mxu0 %v976
      %v1469 = vpop.f32.mrf.mxu0
      %v1470 = vadd.f32 0.0, %v1469
      %v1471 = vpop.f32.mrf.mxu0
      %v1472 = vpop.f32.mrf.mxu0
      %v1473 = vadd.f32 0.0, %v1472
      %v1474 = vpop.f32.mrf.mxu0
      %1475 = vmatprep.mubr.bf16.mxu0 %v1159
      %1476 = vmatmul.mubr.bf16.gmra.mxu0 %v978
      %v1477 = vpop.f32.mrf.mxu0
      %v1478 = vadd.f32 0.0, %v1477
      %v1479 = vpop.f32.mrf.mxu0
      %v1480 = vpop.f32.mrf.mxu0
      %v1481 = vadd.f32 0.0, %v1480
      %v1482 = vpop.f32.mrf.mxu0
      %1483 = vmatprep.mubr.bf16.mxu0 %v1163
      %1484 = vmatmul.mubr.bf16.gmra.mxu0 %v980
      %v1485 = vpop.f32.mrf.mxu0
      %v1486 = vadd.f32 0.0, %v1485
      %v1487 = vpop.f32.mrf.mxu0
      %v1488 = vpop.f32.mrf.mxu0
      %v1489 = vadd.f32 0.0, %v1488
      %v1490 = vpop.f32.mrf.mxu0
      %1491 = vmatprep.mubr.bf16.mxu0 %v1167
      %1492 = vmatmul.mubr.bf16.gmra.mxu0 %v982
      %v1493 = vpop.f32.mrf.mxu0
      %v1494 = vadd.f32 0.0, %v1493
      %v1495 = vpop.f32.mrf.mxu0
      %v1496 = vpop.f32.mrf.mxu0
      %v1497 = vadd.f32 0.0, %v1496
      %v1498 = vpop.f32.mrf.mxu0
      %1499 = vmatprep.mubr.bf16.mxu0 %v1171
      %1500 = vmatmul.mubr.bf16.gmra.mxu0 %v984
      %v1501 = vpop.f32.mrf.mxu0
      %v1502 = vadd.f32 0.0, %v1501
      %v1503 = vpop.f32.mrf.mxu0
      %v1504 = vpop.f32.mrf.mxu0
      %v1505 = vadd.f32 0.0, %v1504
      %v1506 = vpop.f32.mrf.mxu0
      %1507 = vmatprep.mubr.bf16.mxu0 %v1175
      %1508 = vmatmul.mubr.bf16.gmra.mxu0 %v986
      %v1509 = vpop.f32.mrf.mxu0
      %v1510 = vadd.f32 0.0, %v1509
      %v1511 = vpop.f32.mrf.mxu0
      %v1512 = vpop.f32.mrf.mxu0
      %v1513 = vadd.f32 0.0, %v1512
      %v1514 = vpop.f32.mrf.mxu0
      %1515 = vmatprep.mubr.bf16.mxu0 %v1179
      %1516 = vmatmul.mubr.bf16.gmra.mxu0 %v988
      %v1517 = vpop.f32.mrf.mxu0
      %v1518 = vadd.f32 0.0, %v1517
      %v1519 = vpop.f32.mrf.mxu0
      %v1520 = vpop.f32.mrf.mxu0
      %v1521 = vadd.f32 0.0, %v1520
      %v1522 = vpop.f32.mrf.mxu0
      %1523 = vmatprep.mubr.bf16.mxu0 %v1183
      %1524 = vmatmul.mubr.bf16.gmra.mxu0 %v990
      %v1525 = vpop.f32.mrf.mxu0
      %v1526 = vadd.f32 0.0, %v1525
      %v1527 = vpop.f32.mrf.mxu0
      %v1528 = vpop.f32.mrf.mxu0
      %v1529 = vadd.f32 0.0, %v1528
      %v1530 = vpop.f32.mrf.mxu0
      %1531 = vmatprep.mubr.bf16.mxu0 %v1187
      %1532 = vmatmul.mubr.bf16.gmra.mxu0 %v992
      %v1533 = vpop.f32.mrf.mxu0
      %v1534 = vadd.f32 0.0, %v1533
      %v1535 = vpop.f32.mrf.mxu0
      %v1536 = vpop.f32.mrf.mxu0
      %v1537 = vadd.f32 0.0, %v1536
      %v1538 = vpop.f32.mrf.mxu0
      %1539 = vmatprep.mubr.bf16.mxu0 %v1191
      %1540 = vmatmul.mubr.bf16.gmra.mxu0 %v994
      %v1541 = vpop.f32.mrf.mxu0
      %v1542 = vadd.f32 0.0, %v1541
      %v1543 = vpop.f32.mrf.mxu0
      %v1544 = vpop.f32.mrf.mxu0
      %v1545 = vadd.f32 0.0, %v1544
      %v1546 = vpop.f32.mrf.mxu0
      %1547 = vmatprep.mubr.bf16.mxu0 %v1195
      %1548 = vmatmul.mubr.bf16.gmra.mxu0 %v1074
      %v1549 = vpop.f32.mrf.mxu0
      %v1550 = vadd.f32 0.0, %v1549
      %v1551 = vpop.f32.mrf.mxu0
      %v1552 = vpop.f32.mrf.mxu0
      %v1553 = vadd.f32 0.0, %v1552
      %v1554 = vpop.f32.mrf.mxu0
      %1555 = vdwg.mxu0
      %1556 = vmatprep.subr.bf16.mxu0 0
      %1557 = vmatpush1.bf16.msra.mxu0 %v1354
      %1558 = vmatprep.subr.bf16.mxu0 0
      %1559 = vmatpush1.bf16.msra.mxu0 %v1353
      %1560 = vmatprep.subr.bf16.mxu0 0
      %1561 = vmatpush1.bf16.msra.mxu0 %v1352
      %1562 = vmatprep.subr.bf16.mxu0 0
      %1563 = vmatpush1.bf16.msra.mxu0 %v1351
      %1564 = vmatprep.subr.bf16.mxu0 0
      %1565 = vmatpush1.bf16.msra.mxu0 %v1350
      %1566 = vmatprep.subr.bf16.mxu0 0
      %1567 = vmatpush1.bf16.msra.mxu0 %v1349
      %1568 = vmatprep.subr.bf16.mxu0 0
      %1569 = vmatpush1.bf16.msra.mxu0 %v1348
      %1570 = vmatprep.subr.bf16.mxu0 0
      %1571 = vmatpush1.bf16.msra.mxu0 %v1347
      %1572 = vmatprep.subr.bf16.mxu0 0
      %1573 = vmatpush2.bf16.msra.mxu0 0
      %1574 = vmatprep.subr.bf16.mxu0 0
      %1575 = vmatpush2.bf16.msra.mxu0 0
      %1576 = vmatprep.subr.bf16.mxu0 0
      %1577 = vmatpush2.bf16.msra.mxu0 0
      %1578 = vmatprep.subr.bf16.mxu0 0
      %1579 = vmatpush2.bf16.msra.mxu0 0
      %1580 = vmatprep.subr.bf16.mxu0 0
      %1581 = vmatpush2.bf16.msra.mxu0 0
      %1582 = vmatprep.subr.bf16.mxu0 0
      %1583 = vmatpush2.bf16.msra.mxu0 0
      %1584 = vmatprep.subr.bf16.mxu0 0
      %1585 = vmatpush2.bf16.msra.mxu0 0
      %1586 = vmatprep.subr.bf16.mxu0 0
      %1587 = vmatpush2.bf16.msra.mxu0 0
      %1588 = vmatprep.mubr.bf16.mxu0 0
      %1589 = vmatmul.mubr.bf16.gmra.mxu0 %v1129
      %v1590 = vpop.f32.mrf.mxu0
      %v1591 = vadd.f32 %v1414, %v1590
      %v1592 = vpop.f32.mrf.mxu0
      %v1593 = vpop.f32.mrf.mxu0
      %v1594 = vadd.f32 %v1417, %v1593
      %v1595 = vpop.f32.mrf.mxu0
      %1596 = vmatprep.mubr.bf16.mxu0 0
      %1597 = vmatmul.mubr.bf16.gmra.mxu0 %v1133
      %v1598 = vpop.f32.mrf.mxu0
      %v1599 = vadd.f32 %v1422, %v1598
      %v1600 = vpop.f32.mrf.mxu0
      %v1601 = vpop.f32.mrf.mxu0
      %v1602 = vadd.f32 %v1425, %v1601
      %v1603 = vpop.f32.mrf.mxu0
      %1604 = vmatprep.mubr.bf16.mxu0 0
      %1605 = vmatmul.mubr.bf16.gmra.mxu0 %v1137
      %v1606 = vpop.f32.mrf.mxu0
      %v1607 = vadd.f32 %v1430, %v1606
      %v1608 = vpop.f32.mrf.mxu0
      %v1609 = vpop.f32.mrf.mxu0
      %v1610 = vadd.f32 %v1433, %v1609
      %v1611 = vpop.f32.mrf.mxu0
      %1612 = vmatprep.mubr.bf16.mxu0 0
      %1613 = vmatmul.mubr.bf16.gmra.mxu0 %v1141
      %v1614 = vpop.f32.mrf.mxu0
      %v1615 = vadd.f32 %v1438, %v1614
      %v1616 = vpop.f32.mrf.mxu0
      %v1617 = vpop.f32.mrf.mxu0
      %v1618 = vadd.f32 %v1441, %v1617
      %v1619 = vpop.f32.mrf.mxu0
      %1620 = vmatprep.mubr.bf16.mxu0 0
      %1621 = vmatmul.mubr.bf16.gmra.mxu0 %v1145
      %v1622 = vpop.f32.mrf.mxu0
      %v1623 = vadd.f32 %v1446, %v1622
      %v1624 = vpop.f32.mrf.mxu0
      %v1625 = vpop.f32.mrf.mxu0
      %v1626 = vadd.f32 %v1449, %v1625
      %v1627 = vpop.f32.mrf.mxu0
      %1628 = vmatprep.mubr.bf16.mxu0 0
      %1629 = vmatmul.mubr.bf16.gmra.mxu0 %v1149
      %v1630 = vpop.f32.mrf.mxu0
      %v1631 = vadd.f32 %v1454, %v1630
      %v1632 = vpop.f32.mrf.mxu0
      %v1633 = vpop.f32.mrf.mxu0
      %v1634 = vadd.f32 %v1457, %v1633
      %v1635 = vpop.f32.mrf.mxu0
      %1636 = vmatprep.mubr.bf16.mxu0 0
      %1637 = vmatmul.mubr.bf16.gmra.mxu0 %v1153
      %v1638 = vpop.f32.mrf.mxu0
      %v1639 = vadd.f32 %v1462, %v1638
      %v1640 = vpop.f32.mrf.mxu0
      %v1641 = vpop.f32.mrf.mxu0
      %v1642 = vadd.f32 %v1465, %v1641
      %v1643 = vpop.f32.mrf.mxu0
      %1644 = vmatprep.mubr.bf16.mxu0 0
      %1645 = vmatmul.mubr.bf16.gmra.mxu0 %v1157
      %v1646 = vpop.f32.mrf.mxu0
      %v1647 = vadd.f32 %v1470, %v1646
      %v1648 = vpop.f32.mrf.mxu0
      %v1649 = vpop.f32.mrf.mxu0
      %v1650 = vadd.f32 %v1473, %v1649
      %v1651 = vpop.f32.mrf.mxu0
      %1652 = vmatprep.mubr.bf16.mxu0 0
      %1653 = vmatmul.mubr.bf16.gmra.mxu0 %v1161
      %v1654 = vpop.f32.mrf.mxu0
      %v1655 = vadd.f32 %v1478, %v1654
      %v1656 = vpop.f32.mrf.mxu0
      %v1657 = vpop.f32.mrf.mxu0
      %v1658 = vadd.f32 %v1481, %v1657
      %v1659 = vpop.f32.mrf.mxu0
      %1660 = vmatprep.mubr.bf16.mxu0 0
      %1661 = vmatmul.mubr.bf16.gmra.mxu0 %v1165
      %v1662 = vpop.f32.mrf.mxu0
      %v1663 = vadd.f32 %v1486, %v1662
      %v1664 = vpop.f32.mrf.mxu0
      %v1665 = vpop.f32.mrf.mxu0
      %v1666 = vadd.f32 %v1489, %v1665
      %v1667 = vpop.f32.mrf.mxu0
      %1668 = vmatprep.mubr.bf16.mxu0 0
      %1669 = vmatmul.mubr.bf16.gmra.mxu0 %v1169
      %v1670 = vpop.f32.mrf.mxu0
      %v1671 = vadd.f32 %v1494, %v1670
      %v1672 = vpop.f32.mrf.mxu0
      %v1673 = vpop.f32.mrf.mxu0
      %v1674 = vadd.f32 %v1497, %v1673
      %v1675 = vpop.f32.mrf.mxu0
      %1676 = vmatprep.mubr.bf16.mxu0 0
      %1677 = vmatmul.mubr.bf16.gmra.mxu0 %v1173
      %v1678 = vpop.f32.mrf.mxu0
      %v1679 = vadd.f32 %v1502, %v1678
      %v1680 = vpop.f32.mrf.mxu0
      %v1681 = vpop.f32.mrf.mxu0
      %v1682 = vadd.f32 %v1505, %v1681
      %v1683 = vpop.f32.mrf.mxu0
      %1684 = vmatprep.mubr.bf16.mxu0 0
      %1685 = vmatmul.mubr.bf16.gmra.mxu0 %v1177
      %v1686 = vpop.f32.mrf.mxu0
      %v1687 = vadd.f32 %v1510, %v1686
      %v1688 = vpop.f32.mrf.mxu0
      %v1689 = vpop.f32.mrf.mxu0
      %v1690 = vadd.f32 %v1513, %v1689
      %v1691 = vpop.f32.mrf.mxu0
      %1692 = vmatprep.mubr.bf16.mxu0 0
      %1693 = vmatmul.mubr.bf16.gmra.mxu0 %v1181
      %v1694 = vpop.f32.mrf.mxu0
      %v1695 = vadd.f32 %v1518, %v1694
      %v1696 = vpop.f32.mrf.mxu0
      %v1697 = vpop.f32.mrf.mxu0
      %v1698 = vadd.f32 %v1521, %v1697
      %v1699 = vpop.f32.mrf.mxu0
      %1700 = vmatprep.mubr.bf16.mxu0 0
      %1701 = vmatmul.mubr.bf16.gmra.mxu0 %v1185
      %v1702 = vpop.f32.mrf.mxu0
      %v1703 = vadd.f32 %v1526, %v1702
      %v1704 = vpop.f32.mrf.mxu0
      %v1705 = vpop.f32.mrf.mxu0
      %v1706 = vadd.f32 %v1529, %v1705
      %v1707 = vpop.f32.mrf.mxu0
      %1708 = vmatprep.mubr.bf16.mxu0 0
      %1709 = vmatmul.mubr.bf16.gmra.mxu0 %v1189
      %v1710 = vpop.f32.mrf.mxu0
      %v1711 = vadd.f32 %v1534, %v1710
      %v1712 = vpop.f32.mrf.mxu0
      %v1713 = vpop.f32.mrf.mxu0
      %v1714 = vadd.f32 %v1537, %v1713
      %v1715 = vpop.f32.mrf.mxu0
      %1716 = vmatprep.mubr.bf16.mxu0 0
      %1717 = vmatmul.mubr.bf16.gmra.mxu0 %v1193
      %v1718 = vpop.f32.mrf.mxu0
      %v1719 = vadd.f32 %v1542, %v1718
      %v1720 = vpop.f32.mrf.mxu0
      %v1721 = vpop.f32.mrf.mxu0
      %v1722 = vadd.f32 %v1545, %v1721
      %v1723 = vpop.f32.mrf.mxu0
      %1724 = vmatprep.mubr.bf16.mxu0 0
      %1725 = vmatmul.mubr.bf16.gmra.mxu0 %v1197
      %v1726 = vpop.f32.mrf.mxu0
      %v1727 = vadd.f32 %v1550, %v1726
      %v1728 = vpop.f32.mrf.mxu0
      %v1729 = vpop.f32.mrf.mxu0
      %v1730 = vadd.f32 %v1553, %v1729
      %v1731 = vpop.f32.mrf.mxu0
      %1732 = vdwg.mxu0
      %v1781 = vunpack.c.l.b16 %v1013
      %v1782 = vunpack.c.l.b16 %v1014
      %v1783 = vunpack.c.l.b16 %v1015
      %v1784 = vunpack.c.l.b16 %v1016
      %v1785 = vunpack.c.l.b16 %v1017
      %v1786 = vunpack.c.l.b16 %v1018
      %v1787 = vunpack.c.l.b16 %v1019
      %v1788 = vunpack.c.l.b16 %v1020
      %v1789 = vunpack.c.l.b16 %v1021
      %v1790 = vunpack.c.l.b16 %v1022
      %v1791 = vunpack.c.l.b16 %v1023
      %v1792 = vunpack.c.l.b16 %v1024
      %v1793 = vunpack.c.l.b16 %v1025
      %v1794 = vunpack.c.l.b16 %v1026
      %v1795 = vunpack.c.l.b16 %v1027
      %v1796 = vunpack.c.l.b16 %v1028
      %v1797 = vunpack.c.l.b16 %v1029
      %v1798 = vunpack.c.l.b16 %v1030
      %v1799 = vunpack.c.l.b16 %v1031
      %v1800 = vunpack.c.l.b16 %v1032
      %v1801 = vunpack.c.l.b16 %v1033
      %v1802 = vunpack.c.l.b16 %v1034
      %v1803 = vunpack.c.l.b16 %v1035
      %v1804 = vunpack.c.l.b16 %v1036
      %v1805 = vunpack.c.l.b16 %v1037
      %v1806 = vunpack.c.l.b16 %v1038
      %v1807 = vunpack.c.l.b16 %v1039
      %v1808 = vunpack.c.l.b16 %v1040
      %v1809 = vunpack.c.l.b16 %v1041
      %v1810 = vunpack.c.l.b16 %v1042
      %v1811 = vunpack.c.l.b16 %v1043
      %v1812 = vunpack.c.l.b16 %v1044
      %v1813 = vunpack.c.l.b16 %v1045
      %v1814 = vunpack.c.l.b16 %v1046
      %v1815 = vunpack.c.l.b16 %v1047
      %v1816 = vunpack.c.l.b16 %v1048
      %v1817 = vunpack.c.l.b16 %v1049
      %v1818 = vunpack.c.l.b16 %v1050
      %v1819 = vunpack.c.l.b16 %v1051
      %v1820 = vunpack.c.l.b16 %v1052
      %v1821 = vunpack.c.l.b16 %v1053
      %v1822 = vunpack.c.l.b16 %v1054
      %v1823 = vunpack.c.l.b16 %v1055
      %v1824 = vunpack.c.l.b16 %v1056
      %v1825 = vunpack.c.l.b16 %v1057
      %v1826 = vunpack.c.l.b16 %v1058
      %v1827 = vunpack.c.l.b16 %v1059
      %v1828 = vunpack.c.l.b16 %v1060
      %v1829 = vpack.c.b16 %v1782, %v1781
      %v1830 = vpack.c.b16 %v1784, %v1783
      %v1831 = vpack.c.b16 %v1786, %v1785
      %v1832 = vpack.c.b16 %v1788, %v1787
      %v1833 = vpack.c.b16 %v1790, %v1789
      %v1834 = vpack.c.b16 %v1792, %v1791
      %v1835 = vpack.c.b16 %v1794, %v1793
      %v1836 = vpack.c.b16 %v1796, %v1795
      %v1837 = vpack.c.b16 %v1798, %v1797
      %v1838 = vpack.c.b16 %v1800, %v1799
      %v1839 = vpack.c.b16 %v1802, %v1801
      %v1840 = vpack.c.b16 %v1804, %v1803
      %v1841 = vpack.c.b16 %v1806, %v1805
      %v1842 = vpack.c.b16 %v1808, %v1807
      %v1843 = vpack.c.b16 %v1810, %v1809
      %v1844 = vpack.c.b16 %v1812, %v1811
      %v1845 = vpack.c.b16 %v1814, %v1813
      %v1846 = vpack.c.b16 %v1816, %v1815
      %v1847 = vpack.c.b16 %v1818, %v1817
      %v1848 = vpack.c.b16 %v1820, %v1819
      %v1849 = vpack.c.b16 %v1822, %v1821
      %v1850 = vpack.c.b16 %v1824, %v1823
      %v1851 = vpack.c.b16 %v1826, %v1825
      %v1852 = vpack.c.b16 %v1828, %v1827
      %1877 = vmatprep.subr.bf16.mxu0 0
      %1878 = vmatpush1.bf16.msra.mxu0 %v1836
      %1879 = vmatprep.subr.bf16.mxu0 0
      %1880 = vmatpush1.bf16.msra.mxu0 %v1835
      %1881 = vmatprep.subr.bf16.mxu0 0
      %1882 = vmatpush1.bf16.msra.mxu0 %v1834
      %1883 = vmatprep.subr.bf16.mxu0 0
      %1884 = vmatpush1.bf16.msra.mxu0 %v1833
      %1885 = vmatprep.subr.bf16.mxu0 0
      %1886 = vmatpush1.bf16.msra.mxu0 %v1832
      %1887 = vmatprep.subr.bf16.mxu0 0
      %1888 = vmatpush1.bf16.msra.mxu0 %v1831
      %1889 = vmatprep.subr.bf16.mxu0 0
      %1890 = vmatpush1.bf16.msra.mxu0 %v1830
      %1891 = vmatprep.subr.bf16.mxu0 0
      %1892 = vmatpush1.bf16.msra.mxu0 %v1829
      %1893 = vmatprep.subr.bf16.mxu0 0
      %1894 = vmatpush2.bf16.msra.mxu0 %v1844
      %1895 = vmatprep.subr.bf16.mxu0 0
      %1896 = vmatpush2.bf16.msra.mxu0 %v1843
      %1897 = vmatprep.subr.bf16.mxu0 0
      %1898 = vmatpush2.bf16.msra.mxu0 %v1842
      %1899 = vmatprep.subr.bf16.mxu0 0
      %1900 = vmatpush2.bf16.msra.mxu0 %v1841
      %1901 = vmatprep.subr.bf16.mxu0 0
      %1902 = vmatpush2.bf16.msra.mxu0 %v1840
      %1903 = vmatprep.subr.bf16.mxu0 0
      %1904 = vmatpush2.bf16.msra.mxu0 %v1839
      %1905 = vmatprep.subr.bf16.mxu0 0
      %1906 = vmatpush2.bf16.msra.mxu0 %v1838
      %1907 = vmatprep.subr.bf16.mxu0 0
      %1908 = vmatpush2.bf16.msra.mxu0 %v1837
      %1909 = vmatprep.mubr.bf16.mxu0 %v783
      %1910 = vmatmul.mubr.bf16.gmra.mxu0 %v750
      %v1911 = vpop.f32.mrf.mxu0
      %v1912 = vadd.f32 %v1591, %v1911
      %v1913 = vpop.f32.mrf.mxu0
      %v1914 = vpop.f32.mrf.mxu0
      %v1915 = vadd.f32 %v1594, %v1914
      %v1916 = vpop.f32.mrf.mxu0
      %1917 = vmatprep.mubr.bf16.mxu0 %v791
      %1918 = vmatmul.mubr.bf16.gmra.mxu0 %v751
      %v1919 = vpop.f32.mrf.mxu0
      %v1920 = vadd.f32 %v1599, %v1919
      %v1921 = vpop.f32.mrf.mxu0
      %v1922 = vpop.f32.mrf.mxu0
      %v1923 = vadd.f32 %v1602, %v1922
      %v1924 = vpop.f32.mrf.mxu0
      %1925 = vmatprep.mubr.bf16.mxu0 %v799
      %1926 = vmatmul.mubr.bf16.gmra.mxu0 %v752
      %v1927 = vpop.f32.mrf.mxu0
      %v1928 = vadd.f32 %v1607, %v1927
      %v1929 = vpop.f32.mrf.mxu0
      %v1930 = vpop.f32.mrf.mxu0
      %v1931 = vadd.f32 %v1610, %v1930
      %v1932 = vpop.f32.mrf.mxu0
      %1933 = vmatprep.mubr.bf16.mxu0 %v807
      %1934 = vmatmul.mubr.bf16.gmra.mxu0 %v753
      %v1935 = vpop.f32.mrf.mxu0
      %v1936 = vadd.f32 %v1615, %v1935
      %v1937 = vpop.f32.mrf.mxu0
      %v1938 = vpop.f32.mrf.mxu0
      %v1939 = vadd.f32 %v1618, %v1938
      %v1940 = vpop.f32.mrf.mxu0
      %1941 = vmatprep.mubr.bf16.mxu0 %v815
      %1942 = vmatmul.mubr.bf16.gmra.mxu0 %v754
      %v1943 = vpop.f32.mrf.mxu0
      %v1944 = vadd.f32 %v1623, %v1943
      %v1945 = vpop.f32.mrf.mxu0
      %v1946 = vpop.f32.mrf.mxu0
      %v1947 = vadd.f32 %v1626, %v1946
      %v1948 = vpop.f32.mrf.mxu0
      %1949 = vmatprep.mubr.bf16.mxu0 %v823
      %1950 = vmatmul.mubr.bf16.gmra.mxu0 %v755
      %v1951 = vpop.f32.mrf.mxu0
      %v1952 = vadd.f32 %v1631, %v1951
      %v1953 = vpop.f32.mrf.mxu0
      %v1954 = vpop.f32.mrf.mxu0
      %v1955 = vadd.f32 %v1634, %v1954
      %v1956 = vpop.f32.mrf.mxu0
      %1957 = vmatprep.mubr.bf16.mxu0 %v831
      %1958 = vmatmul.mubr.bf16.gmra.mxu0 %v756
      %v1959 = vpop.f32.mrf.mxu0
      %v1960 = vadd.f32 %v1639, %v1959
      %v1961 = vpop.f32.mrf.mxu0
      %v1962 = vpop.f32.mrf.mxu0
      %v1963 = vadd.f32 %v1642, %v1962
      %v1964 = vpop.f32.mrf.mxu0
      %1965 = vmatprep.mubr.bf16.mxu0 %v839
      %1966 = vmatmul.mubr.bf16.gmra.mxu0 %v757
      %v1967 = vpop.f32.mrf.mxu0
      %v1968 = vadd.f32 %v1647, %v1967
      %v1969 = vpop.f32.mrf.mxu0
      %v1970 = vpop.f32.mrf.mxu0
      %v1971 = vadd.f32 %v1650, %v1970
      %v1972 = vpop.f32.mrf.mxu0
      %1973 = vmatprep.mubr.bf16.mxu0 %v847
      %1974 = vmatmul.mubr.bf16.gmra.mxu0 %v758
      %v1975 = vpop.f32.mrf.mxu0
      %v1976 = vadd.f32 %v1655, %v1975
      %v1977 = vpop.f32.mrf.mxu0
      %v1978 = vpop.f32.mrf.mxu0
      %v1979 = vadd.f32 %v1658, %v1978
      %v1980 = vpop.f32.mrf.mxu0
      %1981 = vmatprep.mubr.bf16.mxu0 %v855
      %1982 = vmatmul.mubr.bf16.gmra.mxu0 %v759
      %v1983 = vpop.f32.mrf.mxu0
      %v1984 = vadd.f32 %v1663, %v1983
      %v1985 = vpop.f32.mrf.mxu0
      %v1986 = vpop.f32.mrf.mxu0
      %v1987 = vadd.f32 %v1666, %v1986
      %v1988 = vpop.f32.mrf.mxu0
      %1989 = vmatprep.mubr.bf16.mxu0 %v863
      %1990 = vmatmul.mubr.bf16.gmra.mxu0 %v760
      %v1991 = vpop.f32.mrf.mxu0
      %v1992 = vadd.f32 %v1671, %v1991
      %v1993 = vpop.f32.mrf.mxu0
      %v1994 = vpop.f32.mrf.mxu0
      %v1995 = vadd.f32 %v1674, %v1994
      %v1996 = vpop.f32.mrf.mxu0
      %1997 = vmatprep.mubr.bf16.mxu0 %v871
      %1998 = vmatmul.mubr.bf16.gmra.mxu0 %v761
      %v1999 = vpop.f32.mrf.mxu0
      %v2000 = vadd.f32 %v1679, %v1999
      %v2001 = vpop.f32.mrf.mxu0
      %v2002 = vpop.f32.mrf.mxu0
      %v2003 = vadd.f32 %v1682, %v2002
      %v2004 = vpop.f32.mrf.mxu0
      %2005 = vmatprep.mubr.bf16.mxu0 %v879
      %2006 = vmatmul.mubr.bf16.gmra.mxu0 %v762
      %v2007 = vpop.f32.mrf.mxu0
      %v2008 = vadd.f32 %v1687, %v2007
      %v2009 = vpop.f32.mrf.mxu0
      %v2010 = vpop.f32.mrf.mxu0
      %v2011 = vadd.f32 %v1690, %v2010
      %v2012 = vpop.f32.mrf.mxu0
      %2013 = vmatprep.mubr.bf16.mxu0 %v887
      %2014 = vmatmul.mubr.bf16.gmra.mxu0 %v763
      %v2015 = vpop.f32.mrf.mxu0
      %v2016 = vadd.f32 %v1695, %v2015
      %v2017 = vpop.f32.mrf.mxu0
      %v2018 = vpop.f32.mrf.mxu0
      %v2019 = vadd.f32 %v1698, %v2018
      %v2020 = vpop.f32.mrf.mxu0
      %2021 = vmatprep.mubr.bf16.mxu0 %v895
      %2022 = vmatmul.mubr.bf16.gmra.mxu0 %v764
      %v2023 = vpop.f32.mrf.mxu0
      %v2024 = vadd.f32 %v1703, %v2023
      %v2025 = vpop.f32.mrf.mxu0
      %v2026 = vpop.f32.mrf.mxu0
      %v2027 = vadd.f32 %v1706, %v2026
      %v2028 = vpop.f32.mrf.mxu0
      %2029 = vmatprep.mubr.bf16.mxu0 %v903
      %2030 = vmatmul.mubr.bf16.gmra.mxu0 %v765
      %v2031 = vpop.f32.mrf.mxu0
      %v2032 = vadd.f32 %v1711, %v2031
      %v2033 = vpop.f32.mrf.mxu0
      %v2034 = vpop.f32.mrf.mxu0
      %v2035 = vadd.f32 %v1714, %v2034
      %v2036 = vpop.f32.mrf.mxu0
      %2037 = vmatprep.mubr.bf16.mxu0 %v911
      %2038 = vmatmul.mubr.bf16.gmra.mxu0 %v766
      %v2039 = vpop.f32.mrf.mxu0
      %v2040 = vadd.f32 %v1719, %v2039
      %v2041 = vpop.f32.mrf.mxu0
      %v2042 = vpop.f32.mrf.mxu0
      %v2043 = vadd.f32 %v1722, %v2042
      %v2044 = vpop.f32.mrf.mxu0
      %2045 = vmatprep.mubr.bf16.mxu0 %v919
      %2046 = vmatmul.mubr.bf16.gmra.mxu0 %v767
      %v2047 = vpop.f32.mrf.mxu0
      %v2048 = vadd.f32 %v1727, %v2047
      %v2049 = vpop.f32.mrf.mxu0
      %v2050 = vpop.f32.mrf.mxu0
      %v2051 = vadd.f32 %v1730, %v2050
      %v2052 = vpop.f32.mrf.mxu0
      %2053 = vdwg.mxu0
      %2054 = vmatprep.subr.bf16.mxu0 0
      %2055 = vmatpush1.bf16.msra.mxu0 %v1852
      %2056 = vmatprep.subr.bf16.mxu0 0
      %2057 = vmatpush1.bf16.msra.mxu0 %v1851
      %2058 = vmatprep.subr.bf16.mxu0 0
      %2059 = vmatpush1.bf16.msra.mxu0 %v1850
      %2060 = vmatprep.subr.bf16.mxu0 0
      %2061 = vmatpush1.bf16.msra.mxu0 %v1849
      %2062 = vmatprep.subr.bf16.mxu0 0
      %2063 = vmatpush1.bf16.msra.mxu0 %v1848
      %2064 = vmatprep.subr.bf16.mxu0 0
      %2065 = vmatpush1.bf16.msra.mxu0 %v1847
      %2066 = vmatprep.subr.bf16.mxu0 0
      %2067 = vmatpush1.bf16.msra.mxu0 %v1846
      %2068 = vmatprep.subr.bf16.mxu0 0
      %2069 = vmatpush1.bf16.msra.mxu0 %v1845
      %2070 = vmatprep.subr.bf16.mxu0 0
      %2071 = vmatpush2.bf16.msra.mxu0 0
      %2072 = vmatprep.subr.bf16.mxu0 0
      %2073 = vmatpush2.bf16.msra.mxu0 0
      %2074 = vmatprep.subr.bf16.mxu0 0
      %2075 = vmatpush2.bf16.msra.mxu0 0
      %2076 = vmatprep.subr.bf16.mxu0 0
      %2077 = vmatpush2.bf16.msra.mxu0 0
      %2078 = vmatprep.subr.bf16.mxu0 0
      %2079 = vmatpush2.bf16.msra.mxu0 0
      %2080 = vmatprep.subr.bf16.mxu0 0
      %2081 = vmatpush2.bf16.msra.mxu0 0
      %2082 = vmatprep.subr.bf16.mxu0 0
      %2083 = vmatpush2.bf16.msra.mxu0 0
      %2084 = vmatprep.subr.bf16.mxu0 0
      %2085 = vmatpush2.bf16.msra.mxu0 0
      %2086 = vmatprep.mubr.bf16.mxu0 0
      %2087 = vmatmul.mubr.bf16.gmra.mxu0 %v960
      %v2088 = vpop.f32.mrf.mxu0
      %v2089 = vadd.f32 %v1912, %v2088
      %v2090 = vpop.f32.mrf.mxu0
      %v2091 = vpop.f32.mrf.mxu0
      %v2092 = vadd.f32 %v1915, %v2091
      %v2093 = vpop.f32.mrf.mxu0
      %2094 = vmatprep.mubr.bf16.mxu0 0
      %2095 = vmatmul.mubr.bf16.gmra.mxu0 %v962
      %v2096 = vpop.f32.mrf.mxu0
      %v2097 = vadd.f32 %v1920, %v2096
      %v2098 = vpop.f32.mrf.mxu0
      %v2099 = vpop.f32.mrf.mxu0
      %v2100 = vadd.f32 %v1923, %v2099
      %v2101 = vpop.f32.mrf.mxu0
      %2102 = vmatprep.mubr.bf16.mxu0 0
      %2103 = vmatmul.mubr.bf16.gmra.mxu0 %v964
      %v2104 = vpop.f32.mrf.mxu0
      %v2105 = vadd.f32 %v1928, %v2104
      %v2106 = vpop.f32.mrf.mxu0
      %v2107 = vpop.f32.mrf.mxu0
      %v2108 = vadd.f32 %v1931, %v2107
      %v2109 = vpop.f32.mrf.mxu0
      %2110 = vmatprep.mubr.bf16.mxu0 0
      %2111 = vmatmul.mubr.bf16.gmra.mxu0 %v966
      %v2112 = vpop.f32.mrf.mxu0
      %v2113 = vadd.f32 %v1936, %v2112
      %v2114 = vpop.f32.mrf.mxu0
      %v2115 = vpop.f32.mrf.mxu0
      %v2116 = vadd.f32 %v1939, %v2115
      %v2117 = vpop.f32.mrf.mxu0
      %2118 = vmatprep.mubr.bf16.mxu0 0
      %2119 = vmatmul.mubr.bf16.gmra.mxu0 %v968
      %v2120 = vpop.f32.mrf.mxu0
      %v2121 = vadd.f32 %v1944, %v2120
      %v2122 = vpop.f32.mrf.mxu0
      %v2123 = vpop.f32.mrf.mxu0
      %v2124 = vadd.f32 %v1947, %v2123
      %v2125 = vpop.f32.mrf.mxu0
      %2126 = vmatprep.mubr.bf16.mxu0 0
      %2127 = vmatmul.mubr.bf16.gmra.mxu0 %v970
      %v2128 = vpop.f32.mrf.mxu0
      %v2129 = vadd.f32 %v1952, %v2128
      %v2130 = vpop.f32.mrf.mxu0
      %v2131 = vpop.f32.mrf.mxu0
      %v2132 = vadd.f32 %v1955, %v2131
      %v2133 = vpop.f32.mrf.mxu0
      %2134 = vmatprep.mubr.bf16.mxu0 0
      %2135 = vmatmul.mubr.bf16.gmra.mxu0 %v972
      %v2136 = vpop.f32.mrf.mxu0
      %v2137 = vadd.f32 %v1960, %v2136
      %v2138 = vpop.f32.mrf.mxu0
      %v2139 = vpop.f32.mrf.mxu0
      %v2140 = vadd.f32 %v1963, %v2139
      %v2141 = vpop.f32.mrf.mxu0
      %2142 = vmatprep.mubr.bf16.mxu0 0
      %2143 = vmatmul.mubr.bf16.gmra.mxu0 %v974
      %v2144 = vpop.f32.mrf.mxu0
      %v2145 = vadd.f32 %v1968, %v2144
      %v2146 = vpop.f32.mrf.mxu0
      %v2147 = vpop.f32.mrf.mxu0
      %v2148 = vadd.f32 %v1971, %v2147
      %v2149 = vpop.f32.mrf.mxu0
      %2150 = vmatprep.mubr.bf16.mxu0 0
      %2151 = vmatmul.mubr.bf16.gmra.mxu0 %v976
      %v2152 = vpop.f32.mrf.mxu0
      %v2153 = vadd.f32 %v1976, %v2152
      %v2154 = vpop.f32.mrf.mxu0
      %v2155 = vpop.f32.mrf.mxu0
      %v2156 = vadd.f32 %v1979, %v2155
      %v2157 = vpop.f32.mrf.mxu0
      %2158 = vmatprep.mubr.bf16.mxu0 0
      %2159 = vmatmul.mubr.bf16.gmra.mxu0 %v978
      %v2160 = vpop.f32.mrf.mxu0
      %v2161 = vadd.f32 %v1984, %v2160
      %v2162 = vpop.f32.mrf.mxu0
      %v2163 = vpop.f32.mrf.mxu0
      %v2164 = vadd.f32 %v1987, %v2163
      %v2165 = vpop.f32.mrf.mxu0
      %2166 = vmatprep.mubr.bf16.mxu0 0
      %2167 = vmatmul.mubr.bf16.gmra.mxu0 %v980
      %v2168 = vpop.f32.mrf.mxu0
      %v2169 = vadd.f32 %v1992, %v2168
      %v2170 = vpop.f32.mrf.mxu0
      %v2171 = vpop.f32.mrf.mxu0
      %v2172 = vadd.f32 %v1995, %v2171
      %v2173 = vpop.f32.mrf.mxu0
      %2174 = vmatprep.mubr.bf16.mxu0 0
      %2175 = vmatmul.mubr.bf16.gmra.mxu0 %v982
      %v2176 = vpop.f32.mrf.mxu0
      %v2177 = vadd.f32 %v2000, %v2176
      %v2178 = vpop.f32.mrf.mxu0
      %v2179 = vpop.f32.mrf.mxu0
      %v2180 = vadd.f32 %v2003, %v2179
      %v2181 = vpop.f32.mrf.mxu0
      %2182 = vmatprep.mubr.bf16.mxu0 0
      %2183 = vmatmul.mubr.bf16.gmra.mxu0 %v984
      %v2184 = vpop.f32.mrf.mxu0
      %v2185 = vadd.f32 %v2008, %v2184
      %v2186 = vpop.f32.mrf.mxu0
      %v2187 = vpop.f32.mrf.mxu0
      %v2188 = vadd.f32 %v2011, %v2187
      %v2189 = vpop.f32.mrf.mxu0
      %2190 = vmatprep.mubr.bf16.mxu0 0
      %2191 = vmatmul.mubr.bf16.gmra.mxu0 %v986
      %v2192 = vpop.f32.mrf.mxu0
      %v2193 = vadd.f32 %v2016, %v2192
      %v2194 = vpop.f32.mrf.mxu0
      %v2195 = vpop.f32.mrf.mxu0
      %v2196 = vadd.f32 %v2019, %v2195
      %v2197 = vpop.f32.mrf.mxu0
      %2198 = vmatprep.mubr.bf16.mxu0 0
      %2199 = vmatmul.mubr.bf16.gmra.mxu0 %v988
      %v2200 = vpop.f32.mrf.mxu0
      %v2201 = vadd.f32 %v2024, %v2200
      %v2202 = vpop.f32.mrf.mxu0
      %v2203 = vpop.f32.mrf.mxu0
      %v2204 = vadd.f32 %v2027, %v2203
      %v2205 = vpop.f32.mrf.mxu0
      %2206 = vmatprep.mubr.bf16.mxu0 0
      %2207 = vmatmul.mubr.bf16.gmra.mxu0 %v990
      %v2208 = vpop.f32.mrf.mxu0
      %v2209 = vadd.f32 %v2032, %v2208
      %v2210 = vpop.f32.mrf.mxu0
      %v2211 = vpop.f32.mrf.mxu0
      %v2212 = vadd.f32 %v2035, %v2211
      %v2213 = vpop.f32.mrf.mxu0
      %2214 = vmatprep.mubr.bf16.mxu0 0
      %2215 = vmatmul.mubr.bf16.gmra.mxu0 %v992
      %v2216 = vpop.f32.mrf.mxu0
      %v2217 = vadd.f32 %v2040, %v2216
      %v2218 = vpop.f32.mrf.mxu0
      %v2219 = vpop.f32.mrf.mxu0
      %v2220 = vadd.f32 %v2043, %v2219
      %v2221 = vpop.f32.mrf.mxu0
      %2222 = vmatprep.mubr.bf16.mxu0 0
      %2223 = vmatmul.mubr.bf16.gmra.mxu0 %v994
      %v2224 = vpop.f32.mrf.mxu0
      %v2225 = vadd.f32 %v2048, %v2224
      %v2226 = vpop.f32.mrf.mxu0
      %v2227 = vpop.f32.mrf.mxu0
      %v2228 = vadd.f32 %v2051, %v2227
      %v2229 = vpop.f32.mrf.mxu0
      %2230 = vdwg.mxu0
      %v2232 = vshll.u32 %v770, 16
      %v2234 = vrot.slane %v2232, 1
      %v2235 = vsel %vm771, %v1071, %v2234
      %v2236 = vshrl.u32 %v770, 16
      %v2238 = vor.u32 %v2236, %v2234
      %v2240 = vrot.slane %v770, 1
      %v2241 = vsel %vm957, %v1073, %v2240
      %s2242 = scalar_lea.vmem %s2, 384
      %v2243 = vld [vmem:[%s2242] sm:$0xf]
      %v2244 = vld [vmem:[%s2242 + $0x4] sm:$0xf]
      %v2245 = vld [vmem:[%s2242 + $0x8] sm:$0xf]
      %v2246 = vld [vmem:[%s2242 + $0xc] sm:$0xf]
      %v2247 = vld [vmem:[%s2242 + $0x10] sm:$0xf]
      %v2248 = vld [vmem:[%s2242 + $0x14] sm:$0xf]
      %v2249 = vld [vmem:[%s2242 + $0x18] sm:$0xf]
      %v2250 = vld [vmem:[%s2242 + $0x1c] sm:$0xf]
      %v2251 = vld [vmem:[%s2242 + $0x20] sm:$0xf]
      %v2252 = vld [vmem:[%s2242 + $0x24] sm:$0xf]
      %v2253 = vld [vmem:[%s2242 + $0x28] sm:$0xf]
      %v2254 = vld [vmem:[%s2242 + $0x2c] sm:$0xf]
      %v2255 = vld [vmem:[%s2242 + $0x30] sm:$0xf]
      %v2256 = vld [vmem:[%s2242 + $0x34] sm:$0xf]
      %v2257 = vld [vmem:[%s2242 + $0x38] sm:$0xf]
      %v2258 = vld [vmem:[%s2242 + $0x3c] sm:$0xf]
      %v2259 = vld [vmem:[%s2242 + $0x40] sm:$0xf]
      %v2260 = vld [vmem:[%s2242 + $0x44] sm:$0xf]
      %v2261 = vld [vmem:[%s2242 + $0x48] sm:$0xf]
      %v2262 = vld [vmem:[%s2242 + $0x4c] sm:$0xf]
      %v2263 = vld [vmem:[%s2242 + $0x50] sm:$0xf]
      %v2264 = vld [vmem:[%s2242 + $0x54] sm:$0xf]
      %v2265 = vld [vmem:[%s2242 + $0x58] sm:$0xf]
      %v2266 = vld [vmem:[%s2242 + $0x5c] sm:$0xf]
      %v2267 = vld [vmem:[%s2242 + $0x60] sm:$0xf]
      %v2268 = vld [vmem:[%s2242 + $0x64] sm:$0xf]
      %v2269 = vld [vmem:[%s2242 + $0x68] sm:$0xf]
      %v2270 = vld [vmem:[%s2242 + $0x6c] sm:$0xf]
      %v2271 = vld [vmem:[%s2242 + $0x70] sm:$0xf]
      %v2272 = vld [vmem:[%s2242 + $0x74] sm:$0xf]
      %v2273 = vld [vmem:[%s2242 + $0x78] sm:$0xf]
      %v2274 = vld [vmem:[%s2242 + $0x7c] sm:$0xf]
      %v2275 = vld [vmem:[%s2242 + $0x80] sm:$0xf]
      %v2276 = vld [vmem:[%s2242 + $0x84] sm:$0xf]
      %v2277 = vld [vmem:[%s2242 + $0x88] sm:$0xf]
      %v2278 = vld [vmem:[%s2242 + $0x8c] sm:$0xf]
      %v2279 = vld [vmem:[%s2242 + $0x90] sm:$0xf]
      %v2280 = vld [vmem:[%s2242 + $0x94] sm:$0xf]
      %v2281 = vld [vmem:[%s2242 + $0x98] sm:$0xf]
      %v2282 = vld [vmem:[%s2242 + $0x9c] sm:$0xf]
      %v2283 = vld [vmem:[%s2242 + $0xa0] sm:$0xf]
      %v2284 = vld [vmem:[%s2242 + $0xa4] sm:$0xf]
      %v2285 = vld [vmem:[%s2242 + $0xa8] sm:$0xf]
      %v2286 = vld [vmem:[%s2242 + $0xac] sm:$0xf]
      %v2287 = vld [vmem:[%s2242 + $0xb0] sm:$0xf]
      %v2288 = vld [vmem:[%s2242 + $0xb4] sm:$0xf]
      %v2289 = vld [vmem:[%s2242 + $0xb8] sm:$0xf]
      %v2290 = vld [vmem:[%s2242 + $0xbc] sm:$0xf]
      %vm2291 = vcmask 1045504
      %v2292 = vrot.slane %v752, 2
      %v2293 = vrot.slane %v753, 2
      %v2294 = vsel %vm2291, %v2292, %v2293
      %v2295 = vrot.slane %v799, 2
      %v2296 = vrot.slane %v807, 2
      %v2297 = vsel %vm2291, %v2295, %v2296
      %v2298 = vrot.slane %v964, 2
      %v2299 = vrot.slane %v966, 2
      %v2300 = vsel %vm2291, %v2298, %v2299
      %v2301 = vrot.slane %v754, 2
      %v2302 = vsel %vm2291, %v2293, %v2301
      %v2303 = vrot.slane %v815, 2
      %v2304 = vsel %vm2291, %v2296, %v2303
      %v2305 = vrot.slane %v968, 2
      %v2306 = vsel %vm2291, %v2299, %v2305
      %v2307 = vrot.slane %v755, 2
      %v2308 = vsel %vm2291, %v2301, %v2307
      %v2309 = vrot.slane %v823, 2
      %v2310 = vsel %vm2291, %v2303, %v2309
      %v2311 = vrot.slane %v970, 2
      %v2312 = vsel %vm2291, %v2305, %v2311
      %v2313 = vrot.slane %v756, 2
      %v2314 = vsel %vm2291, %v2307, %v2313
      %v2315 = vrot.slane %v831, 2
      %v2316 = vsel %vm2291, %v2309, %v2315
      %v2317 = vrot.slane %v972, 2
      %v2318 = vsel %vm2291, %v2311, %v2317
      %v2319 = vrot.slane %v757, 2
      %v2320 = vsel %vm2291, %v2313, %v2319
      %v2321 = vrot.slane %v839, 2
      %v2322 = vsel %vm2291, %v2315, %v2321
      %v2323 = vrot.slane %v974, 2
      %v2324 = vsel %vm2291, %v2317, %v2323
      %v2325 = vrot.slane %v758, 2
      %v2326 = vsel %vm2291, %v2319, %v2325
      %v2327 = vrot.slane %v847, 2
      %v2328 = vsel %vm2291, %v2321, %v2327
      %v2329 = vrot.slane %v976, 2
      %v2330 = vsel %vm2291, %v2323, %v2329
      %v2331 = vrot.slane %v759, 2
      %v2332 = vsel %vm2291, %v2325, %v2331
      %v2333 = vrot.slane %v855, 2
      %v2334 = vsel %vm2291, %v2327, %v2333
      %v2335 = vrot.slane %v978, 2
      %v2336 = vsel %vm2291, %v2329, %v2335
      %v2337 = vrot.slane %v760, 2
      %v2338 = vsel %vm2291, %v2331, %v2337
      %v2339 = vrot.slane %v863, 2
      %v2340 = vsel %vm2291, %v2333, %v2339
      %v2341 = vrot.slane %v980, 2
      %v2342 = vsel %vm2291, %v2335, %v2341
      %v2343 = vrot.slane %v761, 2
      %v2344 = vsel %vm2291, %v2337, %v2343
      %v2345 = vrot.slane %v871, 2
      %v2346 = vsel %vm2291, %v2339, %v2345
      %v2347 = vrot.slane %v982, 2
      %v2348 = vsel %vm2291, %v2341, %v2347
      %v2349 = vrot.slane %v762, 2
      %v2350 = vsel %vm2291, %v2343, %v2349
      %v2351 = vrot.slane %v879, 2
      %v2352 = vsel %vm2291, %v2345, %v2351
      %v2353 = vrot.slane %v984, 2
      %v2354 = vsel %vm2291, %v2347, %v2353
      %v2355 = vrot.slane %v763, 2
      %v2356 = vsel %vm2291, %v2349, %v2355
      %v2357 = vrot.slane %v887, 2
      %v2358 = vsel %vm2291, %v2351, %v2357
      %v2359 = vrot.slane %v986, 2
      %v2360 = vsel %vm2291, %v2353, %v2359
      %v2361 = vrot.slane %v764, 2
      %v2362 = vsel %vm2291, %v2355, %v2361
      %v2363 = vrot.slane %v895, 2
      %v2364 = vsel %vm2291, %v2357, %v2363
      %v2365 = vrot.slane %v988, 2
      %v2366 = vsel %vm2291, %v2359, %v2365
      %v2367 = vrot.slane %v765, 2
      %v2368 = vsel %vm2291, %v2361, %v2367
      %v2369 = vrot.slane %v903, 2
      %v2370 = vsel %vm2291, %v2363, %v2369
      %v2371 = vrot.slane %v990, 2
      %v2372 = vsel %vm2291, %v2365, %v2371
      %v2373 = vrot.slane %v766, 2
      %v2374 = vsel %vm2291, %v2367, %v2373
      %v2375 = vrot.slane %v911, 2
      %v2376 = vsel %vm2291, %v2369, %v2375
      %v2377 = vrot.slane %v992, 2
      %v2378 = vsel %vm2291, %v2371, %v2377
      %v2379 = vrot.slane %v767, 2
      %v2380 = vsel %vm2291, %v2373, %v2379
      %v2381 = vrot.slane %v919, 2
      %v2382 = vsel %vm2291, %v2375, %v2381
      %v2383 = vrot.slane %v994, 2
      %v2384 = vsel %vm2291, %v2377, %v2383
      %v2385 = vrot.slane %v768, 2
      %v2386 = vsel %vm2291, %v2379, %v2385
      %v2387 = vrot.slane %v1068, 2
      %v2388 = vsel %vm2291, %v2381, %v2387
      %v2389 = vrot.slane %v1074, 2
      %v2390 = vsel %vm2291, %v2383, %v2389
      %v2391 = vrot.slane %v769, 2
      %v2392 = vsel %vm2291, %v2385, %v2391
      %v2393 = vrot.slane %v2235, 2
      %v2394 = vsel %vm2291, %v2387, %v2393
      %v2395 = vrot.slane %v2241, 2
      %v2396 = vsel %vm2291, %v2389, %v2395
      %v2397 = vrot.slane %v770, 2
      %v2398 = vsel %vm2291, %v2391, %v2397
      %v2399 = vrot.slane %v2238, 2
      %v2400 = vsel %vm2291, %v2393, %v2399
      %v2401 = vrot.slane %v2240, 2
      %v2402 = vsel %vm2291, %v2395, %v2401
      %v2505 = vunpack.c.l.b16 %v2243
      %v2506 = vunpack.c.l.b16 %v2244
      %v2507 = vunpack.c.l.b16 %v2245
      %v2508 = vunpack.c.l.b16 %v2246
      %v2509 = vunpack.c.l.b16 %v2247
      %v2510 = vunpack.c.l.b16 %v2248
      %v2511 = vunpack.c.l.b16 %v2249
      %v2512 = vunpack.c.l.b16 %v2250
      %v2513 = vunpack.c.l.b16 %v2251
      %v2514 = vunpack.c.l.b16 %v2252
      %v2515 = vunpack.c.l.b16 %v2253
      %v2516 = vunpack.c.l.b16 %v2254
      %v2517 = vunpack.c.l.b16 %v2255
      %v2518 = vunpack.c.l.b16 %v2256
      %v2519 = vunpack.c.l.b16 %v2257
      %v2520 = vunpack.c.l.b16 %v2258
      %v2521 = vunpack.c.l.b16 %v2259
      %v2522 = vunpack.c.l.b16 %v2260
      %v2523 = vunpack.c.l.b16 %v2261
      %v2524 = vunpack.c.l.b16 %v2262
      %v2525 = vunpack.c.l.b16 %v2263
      %v2526 = vunpack.c.l.b16 %v2264
      %v2527 = vunpack.c.l.b16 %v2265
      %v2528 = vunpack.c.l.b16 %v2266
      %v2529 = vunpack.c.l.b16 %v2267
      %v2530 = vunpack.c.l.b16 %v2268
      %v2531 = vunpack.c.l.b16 %v2269
      %v2532 = vunpack.c.l.b16 %v2270
      %v2533 = vunpack.c.l.b16 %v2271
      %v2534 = vunpack.c.l.b16 %v2272
      %v2535 = vunpack.c.l.b16 %v2273
      %v2536 = vunpack.c.l.b16 %v2274
      %v2537 = vunpack.c.l.b16 %v2275
      %v2538 = vunpack.c.l.b16 %v2276
      %v2539 = vunpack.c.l.b16 %v2277
      %v2540 = vunpack.c.l.b16 %v2278
      %v2541 = vunpack.c.l.b16 %v2279
      %v2542 = vunpack.c.l.b16 %v2280
      %v2543 = vunpack.c.l.b16 %v2281
      %v2544 = vunpack.c.l.b16 %v2282
      %v2545 = vunpack.c.l.b16 %v2283
      %v2546 = vunpack.c.l.b16 %v2284
      %v2547 = vunpack.c.l.b16 %v2285
      %v2548 = vunpack.c.l.b16 %v2286
      %v2549 = vunpack.c.l.b16 %v2287
      %v2550 = vunpack.c.l.b16 %v2288
      %v2551 = vunpack.c.l.b16 %v2289
      %v2552 = vunpack.c.l.b16 %v2290
      %v2553 = vpack.c.b16 %v2506, %v2505
      %v2554 = vpack.c.b16 %v2508, %v2507
      %v2555 = vpack.c.b16 %v2510, %v2509
      %v2556 = vpack.c.b16 %v2512, %v2511
      %v2557 = vpack.c.b16 %v2514, %v2513
      %v2558 = vpack.c.b16 %v2516, %v2515
      %v2559 = vpack.c.b16 %v2518, %v2517
      %v2560 = vpack.c.b16 %v2520, %v2519
      %v2561 = vpack.c.b16 %v2522, %v2521
      %v2562 = vpack.c.b16 %v2524, %v2523
      %v2563 = vpack.c.b16 %v2526, %v2525
      %v2564 = vpack.c.b16 %v2528, %v2527
      %v2565 = vpack.c.b16 %v2530, %v2529
      %v2566 = vpack.c.b16 %v2532, %v2531
      %v2567 = vpack.c.b16 %v2534, %v2533
      %v2568 = vpack.c.b16 %v2536, %v2535
      %v2569 = vpack.c.b16 %v2538, %v2537
      %v2570 = vpack.c.b16 %v2540, %v2539
      %v2571 = vpack.c.b16 %v2542, %v2541
      %v2572 = vpack.c.b16 %v2544, %v2543
      %v2573 = vpack.c.b16 %v2546, %v2545
      %v2574 = vpack.c.b16 %v2548, %v2547
      %v2575 = vpack.c.b16 %v2550, %v2549
      %v2576 = vpack.c.b16 %v2552, %v2551
      %2601 = vmatprep.subr.bf16.mxu0 0
      %2602 = vmatpush1.bf16.msra.mxu0 %v2560
      %2603 = vmatprep.subr.bf16.mxu0 0
      %2604 = vmatpush1.bf16.msra.mxu0 %v2559
      %2605 = vmatprep.subr.bf16.mxu0 0
      %2606 = vmatpush1.bf16.msra.mxu0 %v2558
      %2607 = vmatprep.subr.bf16.mxu0 0
      %2608 = vmatpush1.bf16.msra.mxu0 %v2557
      %2609 = vmatprep.subr.bf16.mxu0 0
      %2610 = vmatpush1.bf16.msra.mxu0 %v2556
      %2611 = vmatprep.subr.bf16.mxu0 0
      %2612 = vmatpush1.bf16.msra.mxu0 %v2555
      %2613 = vmatprep.subr.bf16.mxu0 0
      %2614 = vmatpush1.bf16.msra.mxu0 %v2554
      %2615 = vmatprep.subr.bf16.mxu0 0
      %2616 = vmatpush1.bf16.msra.mxu0 %v2553
      %2617 = vmatprep.subr.bf16.mxu0 0
      %2618 = vmatpush2.bf16.msra.mxu0 %v2568
      %2619 = vmatprep.subr.bf16.mxu0 0
      %2620 = vmatpush2.bf16.msra.mxu0 %v2567
      %2621 = vmatprep.subr.bf16.mxu0 0
      %2622 = vmatpush2.bf16.msra.mxu0 %v2566
      %2623 = vmatprep.subr.bf16.mxu0 0
      %2624 = vmatpush2.bf16.msra.mxu0 %v2565
      %2625 = vmatprep.subr.bf16.mxu0 0
      %2626 = vmatpush2.bf16.msra.mxu0 %v2564
      %2627 = vmatprep.subr.bf16.mxu0 0
      %2628 = vmatpush2.bf16.msra.mxu0 %v2563
      %2629 = vmatprep.subr.bf16.mxu0 0
      %2630 = vmatpush2.bf16.msra.mxu0 %v2562
      %2631 = vmatprep.subr.bf16.mxu0 0
      %2632 = vmatpush2.bf16.msra.mxu0 %v2561
      %2633 = vmatprep.mubr.bf16.mxu0 %v2297
      %2634 = vmatmul.mubr.bf16.gmra.mxu0 %v2294
      %v2635 = vpop.f32.mrf.mxu0
      %v2636 = vadd.f32 0.0, %v2635
      %v2637 = vpop.f32.mrf.mxu0
      %v2638 = vpop.f32.mrf.mxu0
      %v2639 = vadd.f32 0.0, %v2638
      %v2640 = vpop.f32.mrf.mxu0
      %2641 = vmatprep.mubr.bf16.mxu0 %v2304
      %2642 = vmatmul.mubr.bf16.gmra.mxu0 %v2302
      %v2643 = vpop.f32.mrf.mxu0
      %v2644 = vadd.f32 0.0, %v2643
      %v2645 = vpop.f32.mrf.mxu0
      %v2646 = vpop.f32.mrf.mxu0
      %v2647 = vadd.f32 0.0, %v2646
      %v2648 = vpop.f32.mrf.mxu0
      %2649 = vmatprep.mubr.bf16.mxu0 %v2310
      %2650 = vmatmul.mubr.bf16.gmra.mxu0 %v2308
      %v2651 = vpop.f32.mrf.mxu0
      %v2652 = vadd.f32 0.0, %v2651
      %v2653 = vpop.f32.mrf.mxu0
      %v2654 = vpop.f32.mrf.mxu0
      %v2655 = vadd.f32 0.0, %v2654
      %v2656 = vpop.f32.mrf.mxu0
      %2657 = vmatprep.mubr.bf16.mxu0 %v2316
      %2658 = vmatmul.mubr.bf16.gmra.mxu0 %v2314
      %v2659 = vpop.f32.mrf.mxu0
      %v2660 = vadd.f32 0.0, %v2659
      %v2661 = vpop.f32.mrf.mxu0
      %v2662 = vpop.f32.mrf.mxu0
      %v2663 = vadd.f32 0.0, %v2662
      %v2664 = vpop.f32.mrf.mxu0
      %2665 = vmatprep.mubr.bf16.mxu0 %v2322
      %2666 = vmatmul.mubr.bf16.gmra.mxu0 %v2320
      %v2667 = vpop.f32.mrf.mxu0
      %v2668 = vadd.f32 0.0, %v2667
      %v2669 = vpop.f32.mrf.mxu0
      %v2670 = vpop.f32.mrf.mxu0
      %v2671 = vadd.f32 0.0, %v2670
      %v2672 = vpop.f32.mrf.mxu0
      %2673 = vmatprep.mubr.bf16.mxu0 %v2328
      %2674 = vmatmul.mubr.bf16.gmra.mxu0 %v2326
      %v2675 = vpop.f32.mrf.mxu0
      %v2676 = vadd.f32 0.0, %v2675
      %v2677 = vpop.f32.mrf.mxu0
      %v2678 = vpop.f32.mrf.mxu0
      %v2679 = vadd.f32 0.0, %v2678
      %v2680 = vpop.f32.mrf.mxu0
      %2681 = vmatprep.mubr.bf16.mxu0 %v2334
      %2682 = vmatmul.mubr.bf16.gmra.mxu0 %v2332
      %v2683 = vpop.f32.mrf.mxu0
      %v2684 = vadd.f32 0.0, %v2683
      %v2685 = vpop.f32.mrf.mxu0
      %v2686 = vpop.f32.mrf.mxu0
      %v2687 = vadd.f32 0.0, %v2686
      %v2688 = vpop.f32.mrf.mxu0
      %2689 = vmatprep.mubr.bf16.mxu0 %v2340
      %2690 = vmatmul.mubr.bf16.gmra.mxu0 %v2338
      %v2691 = vpop.f32.mrf.mxu0
      %v2692 = vadd.f32 0.0, %v2691
      %v2693 = vpop.f32.mrf.mxu0
      %v2694 = vpop.f32.mrf.mxu0
      %v2695 = vadd.f32 0.0, %v2694
      %v2696 = vpop.f32.mrf.mxu0
      %2697 = vmatprep.mubr.bf16.mxu0 %v2346
      %2698 = vmatmul.mubr.bf16.gmra.mxu0 %v2344
      %v2699 = vpop.f32.mrf.mxu0
      %v2700 = vadd.f32 0.0, %v2699
      %v2701 = vpop.f32.mrf.mxu0
      %v2702 = vpop.f32.mrf.mxu0
      %v2703 = vadd.f32 0.0, %v2702
      %v2704 = vpop.f32.mrf.mxu0
      %2705 = vmatprep.mubr.bf16.mxu0 %v2352
      %2706 = vmatmul.mubr.bf16.gmra.mxu0 %v2350
      %v2707 = vpop.f32.mrf.mxu0
      %v2708 = vadd.f32 0.0, %v2707
      %v2709 = vpop.f32.mrf.mxu0
      %v2710 = vpop.f32.mrf.mxu0
      %v2711 = vadd.f32 0.0, %v2710
      %v2712 = vpop.f32.mrf.mxu0
      %2713 = vmatprep.mubr.bf16.mxu0 %v2358
      %2714 = vmatmul.mubr.bf16.gmra.mxu0 %v2356
      %v2715 = vpop.f32.mrf.mxu0
      %v2716 = vadd.f32 0.0, %v2715
      %v2717 = vpop.f32.mrf.mxu0
      %v2718 = vpop.f32.mrf.mxu0
      %v2719 = vadd.f32 0.0, %v2718
      %v2720 = vpop.f32.mrf.mxu0
      %2721 = vmatprep.mubr.bf16.mxu0 %v2364
      %2722 = vmatmul.mubr.bf16.gmra.mxu0 %v2362
      %v2723 = vpop.f32.mrf.mxu0
      %v2724 = vadd.f32 0.0, %v2723
      %v2725 = vpop.f32.mrf.mxu0
      %v2726 = vpop.f32.mrf.mxu0
      %v2727 = vadd.f32 0.0, %v2726
      %v2728 = vpop.f32.mrf.mxu0
      %2729 = vmatprep.mubr.bf16.mxu0 %v2370
      %2730 = vmatmul.mubr.bf16.gmra.mxu0 %v2368
      %v2731 = vpop.f32.mrf.mxu0
      %v2732 = vadd.f32 0.0, %v2731
      %v2733 = vpop.f32.mrf.mxu0
      %v2734 = vpop.f32.mrf.mxu0
      %v2735 = vadd.f32 0.0, %v2734
      %v2736 = vpop.f32.mrf.mxu0
      %2737 = vmatprep.mubr.bf16.mxu0 %v2376
      %2738 = vmatmul.mubr.bf16.gmra.mxu0 %v2374
      %v2739 = vpop.f32.mrf.mxu0
      %v2740 = vadd.f32 0.0, %v2739
      %v2741 = vpop.f32.mrf.mxu0
      %v2742 = vpop.f32.mrf.mxu0
      %v2743 = vadd.f32 0.0, %v2742
      %v2744 = vpop.f32.mrf.mxu0
      %2745 = vmatprep.mubr.bf16.mxu0 %v2382
      %2746 = vmatmul.mubr.bf16.gmra.mxu0 %v2380
      %v2747 = vpop.f32.mrf.mxu0
      %v2748 = vadd.f32 0.0, %v2747
      %v2749 = vpop.f32.mrf.mxu0
      %v2750 = vpop.f32.mrf.mxu0
      %v2751 = vadd.f32 0.0, %v2750
      %v2752 = vpop.f32.mrf.mxu0
      %2753 = vmatprep.mubr.bf16.mxu0 %v2388
      %2754 = vmatmul.mubr.bf16.gmra.mxu0 %v2386
      %v2755 = vpop.f32.mrf.mxu0
      %v2756 = vadd.f32 0.0, %v2755
      %v2757 = vpop.f32.mrf.mxu0
      %v2758 = vpop.f32.mrf.mxu0
      %v2759 = vadd.f32 0.0, %v2758
      %v2760 = vpop.f32.mrf.mxu0
      %2761 = vmatprep.mubr.bf16.mxu0 %v2394
      %2762 = vmatmul.mubr.bf16.gmra.mxu0 %v2392
      %v2763 = vpop.f32.mrf.mxu0
      %v2764 = vadd.f32 0.0, %v2763
      %v2765 = vpop.f32.mrf.mxu0
      %v2766 = vpop.f32.mrf.mxu0
      %v2767 = vadd.f32 0.0, %v2766
      %v2768 = vpop.f32.mrf.mxu0
      %2769 = vmatprep.mubr.bf16.mxu0 %v2400
      %2770 = vmatmul.mubr.bf16.gmra.mxu0 %v2398
      %v2771 = vpop.f32.mrf.mxu0
      %v2772 = vadd.f32 0.0, %v2771
      %v2773 = vpop.f32.mrf.mxu0
      %v2774 = vpop.f32.mrf.mxu0
      %v2775 = vadd.f32 0.0, %v2774
      %v2776 = vpop.f32.mrf.mxu0
      %2777 = vdwg.mxu0
      %2778 = vmatprep.subr.bf16.mxu0 0
      %2779 = vmatpush1.bf16.msra.mxu0 %v2576
      %2780 = vmatprep.subr.bf16.mxu0 0
      %2781 = vmatpush1.bf16.msra.mxu0 %v2575
      %2782 = vmatprep.subr.bf16.mxu0 0
      %2783 = vmatpush1.bf16.msra.mxu0 %v2574
      %2784 = vmatprep.subr.bf16.mxu0 0
      %2785 = vmatpush1.bf16.msra.mxu0 %v2573
      %2786 = vmatprep.subr.bf16.mxu0 0
      %2787 = vmatpush1.bf16.msra.mxu0 %v2572
      %2788 = vmatprep.subr.bf16.mxu0 0
      %2789 = vmatpush1.bf16.msra.mxu0 %v2571
      %2790 = vmatprep.subr.bf16.mxu0 0
      %2791 = vmatpush1.bf16.msra.mxu0 %v2570
      %2792 = vmatprep.subr.bf16.mxu0 0
      %2793 = vmatpush1.bf16.msra.mxu0 %v2569
      %2794 = vmatprep.subr.bf16.mxu0 0
      %2795 = vmatpush2.bf16.msra.mxu0 0
      %2796 = vmatprep.subr.bf16.mxu0 0
      %2797 = vmatpush2.bf16.msra.mxu0 0
      %2798 = vmatprep.subr.bf16.mxu0 0
      %2799 = vmatpush2.bf16.msra.mxu0 0
      %2800 = vmatprep.subr.bf16.mxu0 0
      %2801 = vmatpush2.bf16.msra.mxu0 0
      %2802 = vmatprep.subr.bf16.mxu0 0
      %2803 = vmatpush2.bf16.msra.mxu0 0
      %2804 = vmatprep.subr.bf16.mxu0 0
      %2805 = vmatpush2.bf16.msra.mxu0 0
      %2806 = vmatprep.subr.bf16.mxu0 0
      %2807 = vmatpush2.bf16.msra.mxu0 0
      %2808 = vmatprep.subr.bf16.mxu0 0
      %2809 = vmatpush2.bf16.msra.mxu0 0
      %2810 = vmatprep.mubr.bf16.mxu0 0
      %2811 = vmatmul.mubr.bf16.gmra.mxu0 %v2300
      %v2812 = vpop.f32.mrf.mxu0
      %v2813 = vadd.f32 %v2636, %v2812
      %v2814 = vpop.f32.mrf.mxu0
      %v2815 = vpop.f32.mrf.mxu0
      %v2816 = vadd.f32 %v2639, %v2815
      %v2817 = vpop.f32.mrf.mxu0
      %2818 = vmatprep.mubr.bf16.mxu0 0
      %2819 = vmatmul.mubr.bf16.gmra.mxu0 %v2306
      %v2820 = vpop.f32.mrf.mxu0
      %v2821 = vadd.f32 %v2644, %v2820
      %v2822 = vpop.f32.mrf.mxu0
      %v2823 = vpop.f32.mrf.mxu0
      %v2824 = vadd.f32 %v2647, %v2823
      %v2825 = vpop.f32.mrf.mxu0
      %2826 = vmatprep.mubr.bf16.mxu0 0
      %2827 = vmatmul.mubr.bf16.gmra.mxu0 %v2312
      %v2828 = vpop.f32.mrf.mxu0
      %v2829 = vadd.f32 %v2652, %v2828
      %v2830 = vpop.f32.mrf.mxu0
      %v2831 = vpop.f32.mrf.mxu0
      %v2832 = vadd.f32 %v2655, %v2831
      %v2833 = vpop.f32.mrf.mxu0
      %2834 = vmatprep.mubr.bf16.mxu0 0
      %2835 = vmatmul.mubr.bf16.gmra.mxu0 %v2318
      %v2836 = vpop.f32.mrf.mxu0
      %v2837 = vadd.f32 %v2660, %v2836
      %v2838 = vpop.f32.mrf.mxu0
      %v2839 = vpop.f32.mrf.mxu0
      %v2840 = vadd.f32 %v2663, %v2839
      %v2841 = vpop.f32.mrf.mxu0
      %2842 = vmatprep.mubr.bf16.mxu0 0
      %2843 = vmatmul.mubr.bf16.gmra.mxu0 %v2324
      %v2844 = vpop.f32.mrf.mxu0
      %v2845 = vadd.f32 %v2668, %v2844
      %v2846 = vpop.f32.mrf.mxu0
      %v2847 = vpop.f32.mrf.mxu0
      %v2848 = vadd.f32 %v2671, %v2847
      %v2849 = vpop.f32.mrf.mxu0
      %2850 = vmatprep.mubr.bf16.mxu0 0
      %2851 = vmatmul.mubr.bf16.gmra.mxu0 %v2330
      %v2852 = vpop.f32.mrf.mxu0
      %v2853 = vadd.f32 %v2676, %v2852
      %v2854 = vpop.f32.mrf.mxu0
      %v2855 = vpop.f32.mrf.mxu0
      %v2856 = vadd.f32 %v2679, %v2855
      %v2857 = vpop.f32.mrf.mxu0
      %2858 = vmatprep.mubr.bf16.mxu0 0
      %2859 = vmatmul.mubr.bf16.gmra.mxu0 %v2336
      %v2860 = vpop.f32.mrf.mxu0
      %v2861 = vadd.f32 %v2684, %v2860
      %v2862 = vpop.f32.mrf.mxu0
      %v2863 = vpop.f32.mrf.mxu0
      %v2864 = vadd.f32 %v2687, %v2863
      %v2865 = vpop.f32.mrf.mxu0
      %2866 = vmatprep.mubr.bf16.mxu0 0
      %2867 = vmatmul.mubr.bf16.gmra.mxu0 %v2342
      %v2868 = vpop.f32.mrf.mxu0
      %v2869 = vadd.f32 %v2692, %v2868
      %v2870 = vpop.f32.mrf.mxu0
      %v2871 = vpop.f32.mrf.mxu0
      %v2872 = vadd.f32 %v2695, %v2871
      %v2873 = vpop.f32.mrf.mxu0
      %2874 = vmatprep.mubr.bf16.mxu0 0
      %2875 = vmatmul.mubr.bf16.gmra.mxu0 %v2348
      %v2876 = vpop.f32.mrf.mxu0
      %v2877 = vadd.f32 %v2700, %v2876
      %v2878 = vpop.f32.mrf.mxu0
      %v2879 = vpop.f32.mrf.mxu0
      %v2880 = vadd.f32 %v2703, %v2879
      %v2881 = vpop.f32.mrf.mxu0
      %2882 = vmatprep.mubr.bf16.mxu0 0
      %2883 = vmatmul.mubr.bf16.gmra.mxu0 %v2354
      %v2884 = vpop.f32.mrf.mxu0
      %v2885 = vadd.f32 %v2708, %v2884
      %v2886 = vpop.f32.mrf.mxu0
      %v2887 = vpop.f32.mrf.mxu0
      %v2888 = vadd.f32 %v2711, %v2887
      %v2889 = vpop.f32.mrf.mxu0
      %2890 = vmatprep.mubr.bf16.mxu0 0
      %2891 = vmatmul.mubr.bf16.gmra.mxu0 %v2360
      %v2892 = vpop.f32.mrf.mxu0
      %v2893 = vadd.f32 %v2716, %v2892
      %v2894 = vpop.f32.mrf.mxu0
      %v2895 = vpop.f32.mrf.mxu0
      %v2896 = vadd.f32 %v2719, %v2895
      %v2897 = vpop.f32.mrf.mxu0
      %2898 = vmatprep.mubr.bf16.mxu0 0
      %2899 = vmatmul.mubr.bf16.gmra.mxu0 %v2366
      %v2900 = vpop.f32.mrf.mxu0
      %v2901 = vadd.f32 %v2724, %v2900
      %v2902 = vpop.f32.mrf.mxu0
      %v2903 = vpop.f32.mrf.mxu0
      %v2904 = vadd.f32 %v2727, %v2903
      %v2905 = vpop.f32.mrf.mxu0
      %2906 = vmatprep.mubr.bf16.mxu0 0
      %2907 = vmatmul.mubr.bf16.gmra.mxu0 %v2372
      %v2908 = vpop.f32.mrf.mxu0
      %v2909 = vadd.f32 %v2732, %v2908
      %v2910 = vpop.f32.mrf.mxu0
      %v2911 = vpop.f32.mrf.mxu0
      %v2912 = vadd.f32 %v2735, %v2911
      %v2913 = vpop.f32.mrf.mxu0
      %2914 = vmatprep.mubr.bf16.mxu0 0
      %2915 = vmatmul.mubr.bf16.gmra.mxu0 %v2378
      %v2916 = vpop.f32.mrf.mxu0
      %v2917 = vadd.f32 %v2740, %v2916
      %v2918 = vpop.f32.mrf.mxu0
      %v2919 = vpop.f32.mrf.mxu0
      %v2920 = vadd.f32 %v2743, %v2919
      %v2921 = vpop.f32.mrf.mxu0
      %2922 = vmatprep.mubr.bf16.mxu0 0
      %2923 = vmatmul.mubr.bf16.gmra.mxu0 %v2384
      %v2924 = vpop.f32.mrf.mxu0
      %v2925 = vadd.f32 %v2748, %v2924
      %v2926 = vpop.f32.mrf.mxu0
      %v2927 = vpop.f32.mrf.mxu0
      %v2928 = vadd.f32 %v2751, %v2927
      %v2929 = vpop.f32.mrf.mxu0
      %2930 = vmatprep.mubr.bf16.mxu0 0
      %2931 = vmatmul.mubr.bf16.gmra.mxu0 %v2390
      %v2932 = vpop.f32.mrf.mxu0
      %v2933 = vadd.f32 %v2756, %v2932
      %v2934 = vpop.f32.mrf.mxu0
      %v2935 = vpop.f32.mrf.mxu0
      %v2936 = vadd.f32 %v2759, %v2935
      %v2937 = vpop.f32.mrf.mxu0
      %2938 = vmatprep.mubr.bf16.mxu0 0
      %2939 = vmatmul.mubr.bf16.gmra.mxu0 %v2396
      %v2940 = vpop.f32.mrf.mxu0
      %v2941 = vadd.f32 %v2764, %v2940
      %v2942 = vpop.f32.mrf.mxu0
      %v2943 = vpop.f32.mrf.mxu0
      %v2944 = vadd.f32 %v2767, %v2943
      %v2945 = vpop.f32.mrf.mxu0
      %2946 = vmatprep.mubr.bf16.mxu0 0
      %2947 = vmatmul.mubr.bf16.gmra.mxu0 %v2402
      %v2948 = vpop.f32.mrf.mxu0
      %v2949 = vadd.f32 %v2772, %v2948
      %v2950 = vpop.f32.mrf.mxu0
      %v2951 = vpop.f32.mrf.mxu0
      %v2952 = vadd.f32 %v2775, %v2951
      %v2953 = vpop.f32.mrf.mxu0
      %2954 = vdwg.mxu0
      %v2955 = vadd.f32 %v2089, %v2813
      %v2956 = vadd.f32 %v2092, %v2816
      %v2957 = vadd.f32 %v2097, %v2821
      %v2958 = vadd.f32 %v2100, %v2824
      %v2959 = vadd.f32 %v2105, %v2829
      %v2960 = vadd.f32 %v2108, %v2832
      %v2961 = vadd.f32 %v2113, %v2837
      %v2962 = vadd.f32 %v2116, %v2840
      %v2963 = vadd.f32 %v2121, %v2845
      %v2964 = vadd.f32 %v2124, %v2848
      %v2965 = vadd.f32 %v2129, %v2853
      %v2966 = vadd.f32 %v2132, %v2856
      %v2967 = vadd.f32 %v2137, %v2861
      %v2968 = vadd.f32 %v2140, %v2864
      %v2969 = vadd.f32 %v2145, %v2869
      %v2970 = vadd.f32 %v2148, %v2872
      %v2971 = vadd.f32 %v2153, %v2877
      %v2972 = vadd.f32 %v2156, %v2880
      %v2973 = vadd.f32 %v2161, %v2885
      %v2974 = vadd.f32 %v2164, %v2888
      %v2975 = vadd.f32 %v2169, %v2893
      %v2976 = vadd.f32 %v2172, %v2896
      %v2977 = vadd.f32 %v2177, %v2901
      %v2978 = vadd.f32 %v2180, %v2904
      %v2979 = vadd.f32 %v2185, %v2909
      %v2980 = vadd.f32 %v2188, %v2912
      %v2981 = vadd.f32 %v2193, %v2917
      %v2982 = vadd.f32 %v2196, %v2920
      %v2983 = vadd.f32 %v2201, %v2925
      %v2984 = vadd.f32 %v2204, %v2928
      %v2985 = vadd.f32 %v2209, %v2933
      %v2986 = vadd.f32 %v2212, %v2936
      %v2987 = vadd.f32 %v2217, %v2941
      %v2988 = vadd.f32 %v2220, %v2944
      %v2989 = vadd.f32 %v2225, %v2949
      %v2990 = vadd.f32 %v2228, %v2952
      %v2991 = vld [vmem:[%s3] sm:$0x1]
      %v2993 = vlaneseq
      %v2994 = vshrl.u32 %v2993, 7
      %v2995 = vsub.s32 0, %v2994
      %v2996 = vrot.slane %v2991, %v2995
      %v2998 = vadd.f32 %v2955, %v2996
      %v2999 = vadd.f32 %v2956, %v2996
      %v3000 = vadd.f32 %v2957, %v2996
      %v3001 = vadd.f32 %v2958, %v2996
      %v3002 = vadd.f32 %v2959, %v2996
      %v3003 = vadd.f32 %v2960, %v2996
      %v3004 = vadd.f32 %v2961, %v2996
      %v3005 = vadd.f32 %v2962, %v2996
      %v3006 = vadd.f32 %v2963, %v2996
      %v3007 = vadd.f32 %v2964, %v2996
      %v3008 = vadd.f32 %v2965, %v2996
      %v3009 = vadd.f32 %v2966, %v2996
      %v3010 = vadd.f32 %v2967, %v2996
      %v3011 = vadd.f32 %v2968, %v2996
      %v3012 = vadd.f32 %v2969, %v2996
      %v3013 = vadd.f32 %v2970, %v2996
      %v3014 = vadd.f32 %v2971, %v2996
      %v3015 = vadd.f32 %v2972, %v2996
      %v3016 = vadd.f32 %v2973, %v2996
      %v3017 = vadd.f32 %v2974, %v2996
      %v3018 = vadd.f32 %v2975, %v2996
      %v3019 = vadd.f32 %v2976, %v2996
      %v3020 = vadd.f32 %v2977, %v2996
      %v3021 = vadd.f32 %v2978, %v2996
      %v3022 = vadd.f32 %v2979, %v2996
      %v3023 = vadd.f32 %v2980, %v2996
      %v3024 = vadd.f32 %v2981, %v2996
      %v3025 = vadd.f32 %v2982, %v2996
      %v3026 = vadd.f32 %v2983, %v2996
      %v3027 = vadd.f32 %v2984, %v2996
      %v3028 = vadd.f32 %v2985, %v2996
      %v3029 = vadd.f32 %v2986, %v2996
      %v3030 = vadd.f32 %v2987, %v2996
      %v3031 = vadd.f32 %v2988, %v2996
      %v3032 = vadd.f32 %v2989, %v2996
      %v3033 = vadd.f32 %v2990, %v2996
      %v3034 = vmax.f32 %v2998, 0.0
      %v3035 = vmax.f32 %v2999, 0.0
      %v3036 = vmax.f32 %v3000, 0.0
      %v3037 = vmax.f32 %v3001, 0.0
      %v3038 = vmax.f32 %v3002, 0.0
      %v3039 = vmax.f32 %v3003, 0.0
      %v3040 = vmax.f32 %v3004, 0.0
      %v3041 = vmax.f32 %v3005, 0.0
      %v3042 = vmax.f32 %v3006, 0.0
      %v3043 = vmax.f32 %v3007, 0.0
      %v3044 = vmax.f32 %v3008, 0.0
      %v3045 = vmax.f32 %v3009, 0.0
      %v3046 = vmax.f32 %v3010, 0.0
      %v3047 = vmax.f32 %v3011, 0.0
      %v3048 = vmax.f32 %v3012, 0.0
      %v3049 = vmax.f32 %v3013, 0.0
      %v3050 = vmax.f32 %v3014, 0.0
      %v3051 = vmax.f32 %v3015, 0.0
      %v3052 = vmax.f32 %v3016, 0.0
      %v3053 = vmax.f32 %v3017, 0.0
      %v3054 = vmax.f32 %v3018, 0.0
      %v3055 = vmax.f32 %v3019, 0.0
      %v3056 = vmax.f32 %v3020, 0.0
      %v3057 = vmax.f32 %v3021, 0.0
      %v3058 = vmax.f32 %v3022, 0.0
      %v3059 = vmax.f32 %v3023, 0.0
      %v3060 = vmax.f32 %v3024, 0.0
      %v3061 = vmax.f32 %v3025, 0.0
      %v3062 = vmax.f32 %v3026, 0.0
      %v3063 = vmax.f32 %v3027, 0.0
      %v3064 = vmax.f32 %v3028, 0.0
      %v3065 = vmax.f32 %v3029, 0.0
      %v3066 = vmax.f32 %v3030, 0.0
      %v3067 = vmax.f32 %v3031, 0.0
      %v3068 = vmax.f32 %v3032, 0.0
      %v3069 = vmax.f32 %v3033, 0.0
      %v3070 = vpack.c.bf16 %v3035, %v3034
      %v3071 = vpack.c.bf16 %v3037, %v3036
      %v3072 = vpack.c.bf16 %v3039, %v3038
      %v3073 = vpack.c.bf16 %v3041, %v3040
      %v3074 = vpack.c.bf16 %v3043, %v3042
      %v3075 = vpack.c.bf16 %v3045, %v3044
      %v3076 = vpack.c.bf16 %v3047, %v3046
      %v3077 = vpack.c.bf16 %v3049, %v3048
      %v3078 = vpack.c.bf16 %v3051, %v3050
      %v3079 = vpack.c.bf16 %v3053, %v3052
      %v3080 = vpack.c.bf16 %v3055, %v3054
      %v3081 = vpack.c.bf16 %v3057, %v3056
      %v3082 = vpack.c.bf16 %v3059, %v3058
      %v3083 = vpack.c.bf16 %v3061, %v3060
      %v3084 = vpack.c.bf16 %v3063, %v3062
      %v3085 = vpack.c.bf16 %v3065, %v3064
      %v3086 = vpack.c.bf16 %v3067, %v3066
      %v3087 = vpack.c.bf16 %v3069, %v3068
      %v3088 = vld [vmem:[%s4] sm:$0xf]
      %v3089 = vld [vmem:[%s4 + $0x4] sm:$0xf]
      %v3090 = vld [vmem:[%s4 + $0x8] sm:$0xf]
      %v3091 = vld [vmem:[%s4 + $0xc] sm:$0xf]
      %v3092 = vld [vmem:[%s4 + $0x10] sm:$0xf]
      %v3093 = vld [vmem:[%s4 + $0x14] sm:$0xf]
      %v3094 = vld [vmem:[%s4 + $0x18] sm:$0xf]
      %v3095 = vld [vmem:[%s4 + $0x1c] sm:$0xf]
      %v3096 = vld [vmem:[%s4 + $0x20] sm:$0xf]
      %v3097 = vld [vmem:[%s4 + $0x24] sm:$0xf]
      %v3098 = vld [vmem:[%s4 + $0x28] sm:$0xf]
      %v3099 = vld [vmem:[%s4 + $0x2c] sm:$0xf]
      %v3100 = vld [vmem:[%s4 + $0x30] sm:$0xf]
      %v3101 = vld [vmem:[%s4 + $0x34] sm:$0xf]
      %v3102 = vld [vmem:[%s4 + $0x38] sm:$0xf]
      %v3103 = vld [vmem:[%s4 + $0x3c] sm:$0xf]
      %v3104 = vld [vmem:[%s5] sm:$0x1]
      %v3106 = vlaneseq
      %v3107 = vshrl.u32 %v3106, 7
      %v3108 = vsub.s32 0, %v3107
      %v3109 = vrot.slane %v3104, %v3108
      %v3127 = vunpack.c.l.b16 %v3088
      %v3128 = vunpack.c.l.b16 %v3089
      %v3129 = vunpack.c.l.b16 %v3090
      %v3130 = vunpack.c.l.b16 %v3091
      %v3131 = vunpack.c.l.b16 %v3092
      %v3132 = vunpack.c.l.b16 %v3093
      %v3133 = vunpack.c.l.b16 %v3094
      %v3134 = vunpack.c.l.b16 %v3095
      %v3135 = vunpack.c.l.b16 %v3096
      %v3136 = vunpack.c.l.b16 %v3097
      %v3137 = vunpack.c.l.b16 %v3098
      %v3138 = vunpack.c.l.b16 %v3099
      %v3139 = vunpack.c.l.b16 %v3100
      %v3140 = vunpack.c.l.b16 %v3101
      %v3141 = vunpack.c.l.b16 %v3102
      %v3142 = vunpack.c.l.b16 %v3103
      %v3143 = vpack.c.b16 %v3128, %v3127
      %v3144 = vpack.c.b16 %v3130, %v3129
      %v3145 = vpack.c.b16 %v3132, %v3131
      %v3146 = vpack.c.b16 %v3134, %v3133
      %v3147 = vpack.c.b16 %v3136, %v3135
      %v3148 = vpack.c.b16 %v3138, %v3137
      %v3149 = vpack.c.b16 %v3140, %v3139
      %v3150 = vpack.c.b16 %v3142, %v3141
      %3159 = vmatprep.subr.bf16.mxu0 0
      %3160 = vmatpush1.bf16.msra.mxu0 %v3150
      %3161 = vmatprep.subr.bf16.mxu0 0
      %3162 = vmatpush1.bf16.msra.mxu0 %v3149
      %3163 = vmatprep.subr.bf16.mxu0 0
      %3164 = vmatpush1.bf16.msra.mxu0 %v3148
      %3165 = vmatprep.subr.bf16.mxu0 0
      %3166 = vmatpush1.bf16.msra.mxu0 %v3147
      %3167 = vmatprep.subr.bf16.mxu0 0
      %3168 = vmatpush1.bf16.msra.mxu0 %v3146
      %3169 = vmatprep.subr.bf16.mxu0 0
      %3170 = vmatpush1.bf16.msra.mxu0 %v3145
      %3171 = vmatprep.subr.bf16.mxu0 0
      %3172 = vmatpush1.bf16.msra.mxu0 %v3144
      %3173 = vmatprep.subr.bf16.mxu0 0
      %3174 = vmatpush1.bf16.msra.mxu0 %v3143
      %3175 = vmatprep.subr.bf16.mxu0 0
      %3176 = vmatpush2.bf16.msra.mxu0 0
      %3177 = vmatprep.subr.bf16.mxu0 0
      %3178 = vmatpush2.bf16.msra.mxu0 0
      %3179 = vmatprep.subr.bf16.mxu0 0
      %3180 = vmatpush2.bf16.msra.mxu0 0
      %3181 = vmatprep.subr.bf16.mxu0 0
      %3182 = vmatpush2.bf16.msra.mxu0 0
      %3183 = vmatprep.subr.bf16.mxu0 0
      %3184 = vmatpush2.bf16.msra.mxu0 0
      %3185 = vmatprep.subr.bf16.mxu0 0
      %3186 = vmatpush2.bf16.msra.mxu0 0
      %3187 = vmatprep.subr.bf16.mxu0 0
      %3188 = vmatpush2.bf16.msra.mxu0 0
      %3189 = vmatprep.subr.bf16.mxu0 0
      %3190 = vmatpush2.bf16.msra.mxu0 0
      %3191 = vmatprep.mubr.bf16.mxu0 0
      %3192 = vmatmul.mubr.bf16.gmra.mxu0 %v3070
      %v3193 = vpop.f32.mrf.mxu0
      %v3194 = vadd.f32 %v3109, %v3193
      %v3195 = vpop.f32.mrf.mxu0
      %v3196 = vpop.f32.mrf.mxu0
      %v3197 = vadd.f32 %v3109, %v3196
      %v3198 = vpop.f32.mrf.mxu0
      %3199 = vmatprep.mubr.bf16.mxu0 0
      %3200 = vmatmul.mubr.bf16.gmra.mxu0 %v3071
      %v3201 = vpop.f32.mrf.mxu0
      %v3202 = vadd.f32 %v3109, %v3201
      %v3203 = vpop.f32.mrf.mxu0
      %v3204 = vpop.f32.mrf.mxu0
      %v3205 = vadd.f32 %v3109, %v3204
      %v3206 = vpop.f32.mrf.mxu0
      %3207 = vmatprep.mubr.bf16.mxu0 0
      %3208 = vmatmul.mubr.bf16.gmra.mxu0 %v3072
      %v3209 = vpop.f32.mrf.mxu0
      %v3210 = vadd.f32 %v3109, %v3209
      %v3211 = vpop.f32.mrf.mxu0
      %v3212 = vpop.f32.mrf.mxu0
      %v3213 = vadd.f32 %v3109, %v3212
      %v3214 = vpop.f32.mrf.mxu0
      %3215 = vmatprep.mubr.bf16.mxu0 0
      %3216 = vmatmul.mubr.bf16.gmra.mxu0 %v3073
      %v3217 = vpop.f32.mrf.mxu0
      %v3218 = vadd.f32 %v3109, %v3217
      %v3219 = vpop.f32.mrf.mxu0
      %v3220 = vpop.f32.mrf.mxu0
      %v3221 = vadd.f32 %v3109, %v3220
      %v3222 = vpop.f32.mrf.mxu0
      %3223 = vmatprep.mubr.bf16.mxu0 0
      %3224 = vmatmul.mubr.bf16.gmra.mxu0 %v3074
      %v3225 = vpop.f32.mrf.mxu0
      %v3226 = vadd.f32 %v3109, %v3225
      %v3227 = vpop.f32.mrf.mxu0
      %v3228 = vpop.f32.mrf.mxu0
      %v3229 = vadd.f32 %v3109, %v3228
      %v3230 = vpop.f32.mrf.mxu0
      %3231 = vmatprep.mubr.bf16.mxu0 0
      %3232 = vmatmul.mubr.bf16.gmra.mxu0 %v3075
      %v3233 = vpop.f32.mrf.mxu0
      %v3234 = vadd.f32 %v3109, %v3233
      %v3235 = vpop.f32.mrf.mxu0
      %v3236 = vpop.f32.mrf.mxu0
      %v3237 = vadd.f32 %v3109, %v3236
      %v3238 = vpop.f32.mrf.mxu0
      %3239 = vmatprep.mubr.bf16.mxu0 0
      %3240 = vmatmul.mubr.bf16.gmra.mxu0 %v3076
      %v3241 = vpop.f32.mrf.mxu0
      %v3242 = vadd.f32 %v3109, %v3241
      %v3243 = vpop.f32.mrf.mxu0
      %v3244 = vpop.f32.mrf.mxu0
      %v3245 = vadd.f32 %v3109, %v3244
      %v3246 = vpop.f32.mrf.mxu0
      %3247 = vmatprep.mubr.bf16.mxu0 0
      %3248 = vmatmul.mubr.bf16.gmra.mxu0 %v3077
      %v3249 = vpop.f32.mrf.mxu0
      %v3250 = vadd.f32 %v3109, %v3249
      %v3251 = vpop.f32.mrf.mxu0
      %v3252 = vpop.f32.mrf.mxu0
      %v3253 = vadd.f32 %v3109, %v3252
      %v3254 = vpop.f32.mrf.mxu0
      %3255 = vmatprep.mubr.bf16.mxu0 0
      %3256 = vmatmul.mubr.bf16.gmra.mxu0 %v3078
      %v3257 = vpop.f32.mrf.mxu0
      %v3258 = vadd.f32 %v3109, %v3257
      %v3259 = vpop.f32.mrf.mxu0
      %v3260 = vpop.f32.mrf.mxu0
      %v3261 = vadd.f32 %v3109, %v3260
      %v3262 = vpop.f32.mrf.mxu0
      %3263 = vmatprep.mubr.bf16.mxu0 0
      %3264 = vmatmul.mubr.bf16.gmra.mxu0 %v3079
      %v3265 = vpop.f32.mrf.mxu0
      %v3266 = vadd.f32 %v3109, %v3265
      %v3267 = vpop.f32.mrf.mxu0
      %v3268 = vpop.f32.mrf.mxu0
      %v3269 = vadd.f32 %v3109, %v3268
      %v3270 = vpop.f32.mrf.mxu0
      %3271 = vmatprep.mubr.bf16.mxu0 0
      %3272 = vmatmul.mubr.bf16.gmra.mxu0 %v3080
      %v3273 = vpop.f32.mrf.mxu0
      %v3274 = vadd.f32 %v3109, %v3273
      %v3275 = vpop.f32.mrf.mxu0
      %v3276 = vpop.f32.mrf.mxu0
      %v3277 = vadd.f32 %v3109, %v3276
      %v3278 = vpop.f32.mrf.mxu0
      %3279 = vmatprep.mubr.bf16.mxu0 0
      %3280 = vmatmul.mubr.bf16.gmra.mxu0 %v3081
      %v3281 = vpop.f32.mrf.mxu0
      %v3282 = vadd.f32 %v3109, %v3281
      %v3283 = vpop.f32.mrf.mxu0
      %v3284 = vpop.f32.mrf.mxu0
      %v3285 = vadd.f32 %v3109, %v3284
      %v3286 = vpop.f32.mrf.mxu0
      %3287 = vmatprep.mubr.bf16.mxu0 0
      %3288 = vmatmul.mubr.bf16.gmra.mxu0 %v3082
      %v3289 = vpop.f32.mrf.mxu0
      %v3290 = vadd.f32 %v3109, %v3289
      %v3291 = vpop.f32.mrf.mxu0
      %v3292 = vpop.f32.mrf.mxu0
      %v3293 = vadd.f32 %v3109, %v3292
      %v3294 = vpop.f32.mrf.mxu0
      %3295 = vmatprep.mubr.bf16.mxu0 0
      %3296 = vmatmul.mubr.bf16.gmra.mxu0 %v3083
      %v3297 = vpop.f32.mrf.mxu0
      %v3298 = vadd.f32 %v3109, %v3297
      %v3299 = vpop.f32.mrf.mxu0
      %v3300 = vpop.f32.mrf.mxu0
      %v3301 = vadd.f32 %v3109, %v3300
      %v3302 = vpop.f32.mrf.mxu0
      %3303 = vmatprep.mubr.bf16.mxu0 0
      %3304 = vmatmul.mubr.bf16.gmra.mxu0 %v3084
      %v3305 = vpop.f32.mrf.mxu0
      %v3306 = vadd.f32 %v3109, %v3305
      %v3307 = vpop.f32.mrf.mxu0
      %v3308 = vpop.f32.mrf.mxu0
      %v3309 = vadd.f32 %v3109, %v3308
      %v3310 = vpop.f32.mrf.mxu0
      %3311 = vmatprep.mubr.bf16.mxu0 0
      %3312 = vmatmul.mubr.bf16.gmra.mxu0 %v3085
      %v3313 = vpop.f32.mrf.mxu0
      %v3314 = vadd.f32 %v3109, %v3313
      %v3315 = vpop.f32.mrf.mxu0
      %v3316 = vpop.f32.mrf.mxu0
      %v3317 = vadd.f32 %v3109, %v3316
      %v3318 = vpop.f32.mrf.mxu0
      %3319 = vmatprep.mubr.bf16.mxu0 0
      %3320 = vmatmul.mubr.bf16.gmra.mxu0 %v3086
      %v3321 = vpop.f32.mrf.mxu0
      %v3322 = vadd.f32 %v3109, %v3321
      %v3323 = vpop.f32.mrf.mxu0
      %v3324 = vpop.f32.mrf.mxu0
      %v3325 = vadd.f32 %v3109, %v3324
      %v3326 = vpop.f32.mrf.mxu0
      %3327 = vmatprep.mubr.bf16.mxu0 0
      %3328 = vmatmul.mubr.bf16.gmra.mxu0 %v3087
      %v3329 = vpop.f32.mrf.mxu0
      %v3330 = vadd.f32 %v3109, %v3329
      %v3331 = vpop.f32.mrf.mxu0
      %v3332 = vpop.f32.mrf.mxu0
      %v3333 = vadd.f32 %v3109, %v3332
      %v3334 = vpop.f32.mrf.mxu0
      %3335 = vdwg.mxu0
      %v3336 = vld [vmem:[%s6] sm:$0xf]
      %v3337 = vld [vmem:[%s6 + $0x4] sm:$0xf]
      %v3338 = vld [vmem:[%s6 + $0x8] sm:$0xf]
      %v3339 = vld [vmem:[%s6 + $0xc] sm:$0xf]
      %v3340 = vld [vmem:[%s6 + $0x10] sm:$0xf]
      %v3341 = vld [vmem:[%s6 + $0x14] sm:$0xf]
      %v3342 = vld [vmem:[%s6 + $0x18] sm:$0xf]
      %v3343 = vld [vmem:[%s6 + $0x1c] sm:$0xf]
      %v3344 = vld [vmem:[%s6 + $0x20] sm:$0xf]
      %v3345 = vld [vmem:[%s6 + $0x24] sm:$0xf]
      %v3346 = vld [vmem:[%s6 + $0x28] sm:$0xf]
      %v3347 = vld [vmem:[%s6 + $0x2c] sm:$0xf]
      %v3348 = vld [vmem:[%s6 + $0x30] sm:$0xf]
      %v3349 = vld [vmem:[%s6 + $0x34] sm:$0xf]
      %v3350 = vld [vmem:[%s6 + $0x38] sm:$0xf]
      %v3351 = vld [vmem:[%s6 + $0x3c] sm:$0xf]
      %v3352 = vpack.c.b16 %v416, %v416
      %vm3353 = vsmask.f32 6400
      %v3355 = vshrl.u32 %v420, 16
      %v3357 = vrot.slane %v3355, 1
      %v3358 = vshll.u32 %v420, 16
      %v3360 = vrot.slane %v3358, 2
      %v3361 = vor.u32 %v3357, %v3360
      %v3363 = vshrl.u32 %v421, 16
      %v3365 = vrot.slane %v3363, 1
      %v3366 = vshll.u32 %v421, 16
      %v3368 = vrot.slane %v3366, 2
      %v3369 = vor.u32 %v3365, %v3368
      %v3370 = vsel %vm3353, %v3361, %v3369
      %v3372 = vshrl.u32 %v422, 16
      %v3374 = vrot.slane %v3372, 1
      %v3375 = vshll.u32 %v422, 16
      %v3377 = vrot.slane %v3375, 2
      %v3378 = vor.u32 %v3374, %v3377
      %v3379 = vsel %vm3353, %v3369, %v3378
      %v3381 = vshrl.u32 %v423, 16
      %v3383 = vrot.slane %v3381, 1
      %v3384 = vshll.u32 %v423, 16
      %v3386 = vrot.slane %v3384, 2
      %v3387 = vor.u32 %v3383, %v3386
      %v3388 = vsel %vm3353, %v3378, %v3387
      %v3390 = vshrl.u32 %v424, 16
      %v3392 = vrot.slane %v3390, 1
      %v3393 = vshll.u32 %v424, 16
      %v3395 = vrot.slane %v3393, 2
      %v3396 = vor.u32 %v3392, %v3395
      %v3397 = vsel %vm3353, %v3387, %v3396
      %v3399 = vshrl.u32 %v425, 16
      %v3401 = vrot.slane %v3399, 1
      %v3402 = vshll.u32 %v425, 16
      %v3404 = vrot.slane %v3402, 2
      %v3405 = vor.u32 %v3401, %v3404
      %v3406 = vsel %vm3353, %v3396, %v3405
      %v3408 = vshrl.u32 %v426, 16
      %v3410 = vrot.slane %v3408, 1
      %v3411 = vshll.u32 %v426, 16
      %v3413 = vrot.slane %v3411, 2
      %v3414 = vor.u32 %v3410, %v3413
      %v3415 = vsel %vm3353, %v3405, %v3414
      %v3417 = vshrl.u32 %v427, 16
      %v3419 = vrot.slane %v3417, 1
      %v3420 = vshll.u32 %v427, 16
      %v3422 = vrot.slane %v3420, 2
      %v3423 = vor.u32 %v3419, %v3422
      %v3424 = vsel %vm3353, %v3414, %v3423
      %v3426 = vshrl.u32 %v428, 16
      %v3428 = vrot.slane %v3426, 1
      %v3429 = vshll.u32 %v428, 16
      %v3431 = vrot.slane %v3429, 2
      %v3432 = vor.u32 %v3428, %v3431
      %v3433 = vsel %vm3353, %v3423, %v3432
      %v3435 = vshrl.u32 %v429, 16
      %v3437 = vrot.slane %v3435, 1
      %v3438 = vshll.u32 %v429, 16
      %v3440 = vrot.slane %v3438, 2
      %v3441 = vor.u32 %v3437, %v3440
      %v3442 = vsel %vm3353, %v3432, %v3441
      %v3444 = vshrl.u32 %v430, 16
      %v3446 = vrot.slane %v3444, 1
      %v3447 = vshll.u32 %v430, 16
      %v3449 = vrot.slane %v3447, 2
      %v3450 = vor.u32 %v3446, %v3449
      %v3451 = vsel %vm3353, %v3441, %v3450
      %v3453 = vshrl.u32 %v431, 16
      %v3455 = vrot.slane %v3453, 1
      %v3456 = vshll.u32 %v431, 16
      %v3458 = vrot.slane %v3456, 2
      %v3459 = vor.u32 %v3455, %v3458
      %v3460 = vsel %vm3353, %v3450, %v3459
      %v3462 = vshrl.u32 %v432, 16
      %v3464 = vrot.slane %v3462, 1
      %v3465 = vshll.u32 %v432, 16
      %v3467 = vrot.slane %v3465, 2
      %v3468 = vor.u32 %v3464, %v3467
      %v3469 = vsel %vm3353, %v3459, %v3468
      %v3471 = vshrl.u32 %v433, 16
      %v3473 = vrot.slane %v3471, 1
      %v3474 = vshll.u32 %v433, 16
      %v3476 = vrot.slane %v3474, 2
      %v3477 = vor.u32 %v3473, %v3476
      %v3478 = vsel %vm3353, %v3468, %v3477
      %v3480 = vshrl.u32 %v434, 16
      %v3482 = vrot.slane %v3480, 1
      %v3483 = vshll.u32 %v434, 16
      %v3485 = vrot.slane %v3483, 2
      %v3486 = vor.u32 %v3482, %v3485
      %v3487 = vsel %vm3353, %v3477, %v3486
      %v3489 = vshrl.u32 %v435, 16
      %v3491 = vrot.slane %v3489, 1
      %v3492 = vshll.u32 %v435, 16
      %v3494 = vrot.slane %v3492, 2
      %v3495 = vor.u32 %v3491, %v3494
      %v3496 = vsel %vm3353, %v3486, %v3495
      %v3498 = vshrl.u32 %v436, 16
      %v3500 = vrot.slane %v3498, 1
      %v3501 = vshll.u32 %v436, 16
      %v3503 = vrot.slane %v3501, 2
      %v3504 = vor.u32 %v3500, %v3503
      %v3505 = vsel %vm3353, %v3495, %v3504
      %v3507 = vshrl.u32 %v437, 16
      %v3509 = vrot.slane %v3507, 1
      %v3510 = vshll.u32 %v437, 16
      %v3512 = vrot.slane %v3510, 2
      %v3513 = vor.u32 %v3509, %v3512
      %v3514 = vsel %vm3353, %v3504, %v3513
      %v3516 = vshrl.u32 %v3352, 16
      %v3518 = vrot.slane %v3516, 1
      %v3519 = vshll.u32 %v3352, 16
      %v3521 = vrot.slane %v3519, 2
      %v3522 = vor.u32 %v3518, %v3521
      %v3523 = vsel %vm3353, %v3513, %v3522
      %v3558 = vunpack.c.l.b16 %v3336
      %v3559 = vunpack.c.l.b16 %v3337
      %v3560 = vunpack.c.l.b16 %v3338
      %v3561 = vunpack.c.l.b16 %v3339
      %v3562 = vunpack.c.l.b16 %v3340
      %v3563 = vunpack.c.l.b16 %v3341
      %v3564 = vunpack.c.l.b16 %v3342
      %v3565 = vunpack.c.l.b16 %v3343
      %v3566 = vunpack.c.l.b16 %v3344
      %v3567 = vunpack.c.l.b16 %v3345
      %v3568 = vunpack.c.l.b16 %v3346
      %v3569 = vunpack.c.l.b16 %v3347
      %v3570 = vunpack.c.l.b16 %v3348
      %v3571 = vunpack.c.l.b16 %v3349
      %v3572 = vunpack.c.l.b16 %v3350
      %v3573 = vunpack.c.l.b16 %v3351
      %v3574 = vpack.c.b16 %v3559, %v3558
      %v3575 = vpack.c.b16 %v3561, %v3560
      %v3576 = vpack.c.b16 %v3563, %v3562
      %v3577 = vpack.c.b16 %v3565, %v3564
      %v3578 = vpack.c.b16 %v3567, %v3566
      %v3579 = vpack.c.b16 %v3569, %v3568
      %v3580 = vpack.c.b16 %v3571, %v3570
      %v3581 = vpack.c.b16 %v3573, %v3572
      %3590 = vmatprep.subr.bf16.mxu0 0
      %3591 = vmatpush1.bf16.msra.mxu0 %v3581
      %3592 = vmatprep.subr.bf16.mxu0 0
      %3593 = vmatpush1.bf16.msra.mxu0 %v3580
      %3594 = vmatprep.subr.bf16.mxu0 0
      %3595 = vmatpush1.bf16.msra.mxu0 %v3579
      %3596 = vmatprep.subr.bf16.mxu0 0
      %3597 = vmatpush1.bf16.msra.mxu0 %v3578
      %3598 = vmatprep.subr.bf16.mxu0 0
      %3599 = vmatpush1.bf16.msra.mxu0 %v3577
      %3600 = vmatprep.subr.bf16.mxu0 0
      %3601 = vmatpush1.bf16.msra.mxu0 %v3576
      %3602 = vmatprep.subr.bf16.mxu0 0
      %3603 = vmatpush1.bf16.msra.mxu0 %v3575
      %3604 = vmatprep.subr.bf16.mxu0 0
      %3605 = vmatpush1.bf16.msra.mxu0 %v3574
      %3606 = vmatprep.subr.bf16.mxu0 0
      %3607 = vmatpush2.bf16.msra.mxu0 0
      %3608 = vmatprep.subr.bf16.mxu0 0
      %3609 = vmatpush2.bf16.msra.mxu0 0
      %3610 = vmatprep.subr.bf16.mxu0 0
      %3611 = vmatpush2.bf16.msra.mxu0 0
      %3612 = vmatprep.subr.bf16.mxu0 0
      %3613 = vmatpush2.bf16.msra.mxu0 0
      %3614 = vmatprep.subr.bf16.mxu0 0
      %3615 = vmatpush2.bf16.msra.mxu0 0
      %3616 = vmatprep.subr.bf16.mxu0 0
      %3617 = vmatpush2.bf16.msra.mxu0 0
      %3618 = vmatprep.subr.bf16.mxu0 0
      %3619 = vmatpush2.bf16.msra.mxu0 0
      %3620 = vmatprep.subr.bf16.mxu0 0
      %3621 = vmatpush2.bf16.msra.mxu0 0
      %3622 = vmatprep.mubr.bf16.mxu0 0
      %3623 = vmatmul.mubr.bf16.gmra.mxu0 %v3370
      %v3624 = vpop.f32.mrf.mxu0
      %v3625 = vadd.f32 0.0, %v3624
      %v3626 = vpop.f32.mrf.mxu0
      %v3627 = vpop.f32.mrf.mxu0
      %v3628 = vadd.f32 0.0, %v3627
      %v3629 = vpop.f32.mrf.mxu0
      %3630 = vmatprep.mubr.bf16.mxu0 0
      %3631 = vmatmul.mubr.bf16.gmra.mxu0 %v3379
      %v3632 = vpop.f32.mrf.mxu0
      %v3633 = vadd.f32 0.0, %v3632
      %v3634 = vpop.f32.mrf.mxu0
      %v3635 = vpop.f32.mrf.mxu0
      %v3636 = vadd.f32 0.0, %v3635
      %v3637 = vpop.f32.mrf.mxu0
      %3638 = vmatprep.mubr.bf16.mxu0 0
      %3639 = vmatmul.mubr.bf16.gmra.mxu0 %v3388
      %v3640 = vpop.f32.mrf.mxu0
      %v3641 = vadd.f32 0.0, %v3640
      %v3642 = vpop.f32.mrf.mxu0
      %v3643 = vpop.f32.mrf.mxu0
      %v3644 = vadd.f32 0.0, %v3643
      %v3645 = vpop.f32.mrf.mxu0
      %3646 = vmatprep.mubr.bf16.mxu0 0
      %3647 = vmatmul.mubr.bf16.gmra.mxu0 %v3397
      %v3648 = vpop.f32.mrf.mxu0
      %v3649 = vadd.f32 0.0, %v3648
      %v3650 = vpop.f32.mrf.mxu0
      %v3651 = vpop.f32.mrf.mxu0
      %v3652 = vadd.f32 0.0, %v3651
      %v3653 = vpop.f32.mrf.mxu0
      %3654 = vmatprep.mubr.bf16.mxu0 0
      %3655 = vmatmul.mubr.bf16.gmra.mxu0 %v3406
      %v3656 = vpop.f32.mrf.mxu0
      %v3657 = vadd.f32 0.0, %v3656
      %v3658 = vpop.f32.mrf.mxu0
      %v3659 = vpop.f32.mrf.mxu0
      %v3660 = vadd.f32 0.0, %v3659
      %v3661 = vpop.f32.mrf.mxu0
      %3662 = vmatprep.mubr.bf16.mxu0 0
      %3663 = vmatmul.mubr.bf16.gmra.mxu0 %v3415
      %v3664 = vpop.f32.mrf.mxu0
      %v3665 = vadd.f32 0.0, %v3664
      %v3666 = vpop.f32.mrf.mxu0
      %v3667 = vpop.f32.mrf.mxu0
      %v3668 = vadd.f32 0.0, %v3667
      %v3669 = vpop.f32.mrf.mxu0
      %3670 = vmatprep.mubr.bf16.mxu0 0
      %3671 = vmatmul.mubr.bf16.gmra.mxu0 %v3424
      %v3672 = vpop.f32.mrf.mxu0
      %v3673 = vadd.f32 0.0, %v3672
      %v3674 = vpop.f32.mrf.mxu0
      %v3675 = vpop.f32.mrf.mxu0
      %v3676 = vadd.f32 0.0, %v3675
      %v3677 = vpop.f32.mrf.mxu0
      %3678 = vmatprep.mubr.bf16.mxu0 0
      %3679 = vmatmul.mubr.bf16.gmra.mxu0 %v3433
      %v3680 = vpop.f32.mrf.mxu0
      %v3681 = vadd.f32 0.0, %v3680
      %v3682 = vpop.f32.mrf.mxu0
      %v3683 = vpop.f32.mrf.mxu0
      %v3684 = vadd.f32 0.0, %v3683
      %v3685 = vpop.f32.mrf.mxu0
      %3686 = vmatprep.mubr.bf16.mxu0 0
      %3687 = vmatmul.mubr.bf16.gmra.mxu0 %v3442
      %v3688 = vpop.f32.mrf.mxu0
      %v3689 = vadd.f32 0.0, %v3688
      %v3690 = vpop.f32.mrf.mxu0
      %v3691 = vpop.f32.mrf.mxu0
      %v3692 = vadd.f32 0.0, %v3691
      %v3693 = vpop.f32.mrf.mxu0
      %3694 = vmatprep.mubr.bf16.mxu0 0
      %3695 = vmatmul.mubr.bf16.gmra.mxu0 %v3451
      %v3696 = vpop.f32.mrf.mxu0
      %v3697 = vadd.f32 0.0, %v3696
      %v3698 = vpop.f32.mrf.mxu0
      %v3699 = vpop.f32.mrf.mxu0
      %v3700 = vadd.f32 0.0, %v3699
      %v3701 = vpop.f32.mrf.mxu0
      %3702 = vmatprep.mubr.bf16.mxu0 0
      %3703 = vmatmul.mubr.bf16.gmra.mxu0 %v3460
      %v3704 = vpop.f32.mrf.mxu0
      %v3705 = vadd.f32 0.0, %v3704
      %v3706 = vpop.f32.mrf.mxu0
      %v3707 = vpop.f32.mrf.mxu0
      %v3708 = vadd.f32 0.0, %v3707
      %v3709 = vpop.f32.mrf.mxu0
      %3710 = vmatprep.mubr.bf16.mxu0 0
      %3711 = vmatmul.mubr.bf16.gmra.mxu0 %v3469
      %v3712 = vpop.f32.mrf.mxu0
      %v3713 = vadd.f32 0.0, %v3712
      %v3714 = vpop.f32.mrf.mxu0
      %v3715 = vpop.f32.mrf.mxu0
      %v3716 = vadd.f32 0.0, %v3715
      %v3717 = vpop.f32.mrf.mxu0
      %3718 = vmatprep.mubr.bf16.mxu0 0
      %3719 = vmatmul.mubr.bf16.gmra.mxu0 %v3478
      %v3720 = vpop.f32.mrf.mxu0
      %v3721 = vadd.f32 0.0, %v3720
      %v3722 = vpop.f32.mrf.mxu0
      %v3723 = vpop.f32.mrf.mxu0
      %v3724 = vadd.f32 0.0, %v3723
      %v3725 = vpop.f32.mrf.mxu0
      %3726 = vmatprep.mubr.bf16.mxu0 0
      %3727 = vmatmul.mubr.bf16.gmra.mxu0 %v3487
      %v3728 = vpop.f32.mrf.mxu0
      %v3729 = vadd.f32 0.0, %v3728
      %v3730 = vpop.f32.mrf.mxu0
      %v3731 = vpop.f32.mrf.mxu0
      %v3732 = vadd.f32 0.0, %v3731
      %v3733 = vpop.f32.mrf.mxu0
      %3734 = vmatprep.mubr.bf16.mxu0 0
      %3735 = vmatmul.mubr.bf16.gmra.mxu0 %v3496
      %v3736 = vpop.f32.mrf.mxu0
      %v3737 = vadd.f32 0.0, %v3736
      %v3738 = vpop.f32.mrf.mxu0
      %v3739 = vpop.f32.mrf.mxu0
      %v3740 = vadd.f32 0.0, %v3739
      %v3741 = vpop.f32.mrf.mxu0
      %3742 = vmatprep.mubr.bf16.mxu0 0
      %3743 = vmatmul.mubr.bf16.gmra.mxu0 %v3505
      %v3744 = vpop.f32.mrf.mxu0
      %v3745 = vadd.f32 0.0, %v3744
      %v3746 = vpop.f32.mrf.mxu0
      %v3747 = vpop.f32.mrf.mxu0
      %v3748 = vadd.f32 0.0, %v3747
      %v3749 = vpop.f32.mrf.mxu0
      %3750 = vmatprep.mubr.bf16.mxu0 0
      %3751 = vmatmul.mubr.bf16.gmra.mxu0 %v3514
      %v3752 = vpop.f32.mrf.mxu0
      %v3753 = vadd.f32 0.0, %v3752
      %v3754 = vpop.f32.mrf.mxu0
      %v3755 = vpop.f32.mrf.mxu0
      %v3756 = vadd.f32 0.0, %v3755
      %v3757 = vpop.f32.mrf.mxu0
      %3758 = vmatprep.mubr.bf16.mxu0 0
      %3759 = vmatmul.mubr.bf16.gmra.mxu0 %v3523
      %v3760 = vpop.f32.mrf.mxu0
      %v3761 = vadd.f32 0.0, %v3760
      %v3762 = vpop.f32.mrf.mxu0
      %v3763 = vpop.f32.mrf.mxu0
      %v3764 = vadd.f32 0.0, %v3763
      %v3765 = vpop.f32.mrf.mxu0
      %3766 = vdwg.mxu0
      %v3767 = vadd.f32 %v3194, %v3625
      %v3768 = vadd.f32 %v3197, %v3628
      %v3769 = vadd.f32 %v3202, %v3633
      %v3770 = vadd.f32 %v3205, %v3636
      %v3771 = vadd.f32 %v3210, %v3641
      %v3772 = vadd.f32 %v3213, %v3644
      %v3773 = vadd.f32 %v3218, %v3649
      %v3774 = vadd.f32 %v3221, %v3652
      %v3775 = vadd.f32 %v3226, %v3657
      %v3776 = vadd.f32 %v3229, %v3660
      %v3777 = vadd.f32 %v3234, %v3665
      %v3778 = vadd.f32 %v3237, %v3668
      %v3779 = vadd.f32 %v3242, %v3673
      %v3780 = vadd.f32 %v3245, %v3676
      %v3781 = vadd.f32 %v3250, %v3681
      %v3782 = vadd.f32 %v3253, %v3684
      %v3783 = vadd.f32 %v3258, %v3689
      %v3784 = vadd.f32 %v3261, %v3692
      %v3785 = vadd.f32 %v3266, %v3697
      %v3786 = vadd.f32 %v3269, %v3700
      %v3787 = vadd.f32 %v3274, %v3705
      %v3788 = vadd.f32 %v3277, %v3708
      %v3789 = vadd.f32 %v3282, %v3713
      %v3790 = vadd.f32 %v3285, %v3716
      %v3791 = vadd.f32 %v3290, %v3721
      %v3792 = vadd.f32 %v3293, %v3724
      %v3793 = vadd.f32 %v3298, %v3729
      %v3794 = vadd.f32 %v3301, %v3732
      %v3795 = vadd.f32 %v3306, %v3737
      %v3796 = vadd.f32 %v3309, %v3740
      %v3797 = vadd.f32 %v3314, %v3745
      %v3798 = vadd.f32 %v3317, %v3748
      %v3799 = vadd.f32 %v3322, %v3753
      %v3800 = vadd.f32 %v3325, %v3756
      %v3801 = vadd.f32 %v3330, %v3761
      %v3802 = vadd.f32 %v3333, %v3764
      %v3803 = vmax.f32 %v3767, 0.0
      %v3804 = vmax.f32 %v3768, 0.0
      %v3805 = vmax.f32 %v3769, 0.0
      %v3806 = vmax.f32 %v3770, 0.0
      %v3807 = vmax.f32 %v3771, 0.0
      %v3808 = vmax.f32 %v3772, 0.0
      %v3809 = vmax.f32 %v3773, 0.0
      %v3810 = vmax.f32 %v3774, 0.0
      %v3811 = vmax.f32 %v3775, 0.0
      %v3812 = vmax.f32 %v3776, 0.0
      %v3813 = vmax.f32 %v3777, 0.0
      %v3814 = vmax.f32 %v3778, 0.0
      %v3815 = vmax.f32 %v3779, 0.0
      %v3816 = vmax.f32 %v3780, 0.0
      %v3817 = vmax.f32 %v3781, 0.0
      %v3818 = vmax.f32 %v3782, 0.0
      %v3819 = vmax.f32 %v3783, 0.0
      %v3820 = vmax.f32 %v3784, 0.0
      %v3821 = vmax.f32 %v3785, 0.0
      %v3822 = vmax.f32 %v3786, 0.0
      %v3823 = vmax.f32 %v3787, 0.0
      %v3824 = vmax.f32 %v3788, 0.0
      %v3825 = vmax.f32 %v3789, 0.0
      %v3826 = vmax.f32 %v3790, 0.0
      %v3827 = vmax.f32 %v3791, 0.0
      %v3828 = vmax.f32 %v3792, 0.0
      %v3829 = vmax.f32 %v3793, 0.0
      %v3830 = vmax.f32 %v3794, 0.0
      %v3831 = vmax.f32 %v3795, 0.0
      %v3832 = vmax.f32 %v3796, 0.0
      %v3833 = vmax.f32 %v3797, 0.0
      %v3834 = vmax.f32 %v3798, 0.0
      %v3835 = vmax.f32 %v3799, 0.0
      %v3836 = vmax.f32 %v3800, 0.0
      %v3837 = vmax.f32 %v3801, 0.0
      %v3838 = vmax.f32 %v3802, 0.0
      %v3839 = vpack.c.bf16 %v3804, %v3803
      %v3840 = vpack.c.bf16 %v3806, %v3805
      %v3841 = vpack.c.bf16 %v3808, %v3807
      %v3842 = vpack.c.bf16 %v3810, %v3809
      %v3843 = vpack.c.bf16 %v3812, %v3811
      %v3844 = vpack.c.bf16 %v3814, %v3813
      %v3845 = vpack.c.bf16 %v3816, %v3815
      %v3846 = vpack.c.bf16 %v3818, %v3817
      %v3847 = vpack.c.bf16 %v3820, %v3819
      %v3848 = vpack.c.bf16 %v3822, %v3821
      %v3849 = vpack.c.bf16 %v3824, %v3823
      %v3850 = vpack.c.bf16 %v3826, %v3825
      %v3851 = vpack.c.bf16 %v3828, %v3827
      %v3852 = vpack.c.bf16 %v3830, %v3829
      %v3853 = vpack.c.bf16 %v3832, %v3831
      %v3854 = vpack.c.bf16 %v3834, %v3833
      %v3855 = vpack.c.bf16 %v3836, %v3835
      %v3856 = vpack.c.bf16 %v3838, %v3837
      %v3875 = vunpack.c.l.b16 %v3839
      %v3876 = vunpack.c.h.b16 %v3839
      %v3877 = vunpack.c.l.b16 %v3840
      %v3878 = vunpack.c.h.b16 %v3840
      %v3879 = vunpack.c.l.b16 %v3841
      %v3880 = vunpack.c.h.b16 %v3841
      %v3881 = vunpack.c.l.b16 %v3842
      %v3882 = vunpack.c.h.b16 %v3842
      %v3883 = vunpack.c.l.b16 %v3843
      %v3884 = vunpack.c.h.b16 %v3843
      %v3885 = vunpack.c.l.b16 %v3844
      %v3886 = vunpack.c.h.b16 %v3844
      %v3887 = vunpack.c.l.b16 %v3845
      %v3888 = vunpack.c.h.b16 %v3845
      %v3889 = vunpack.c.l.b16 %v3846
      %v3890 = vunpack.c.h.b16 %v3846
      %v3891 = vunpack.c.l.b16 %v3847
      %v3892 = vunpack.c.h.b16 %v3847
      %v3893 = vunpack.c.l.b16 %v3848
      %v3894 = vunpack.c.h.b16 %v3848
      %v3895 = vunpack.c.l.b16 %v3849
      %v3896 = vunpack.c.h.b16 %v3849
      %v3897 = vunpack.c.l.b16 %v3850
      %v3898 = vunpack.c.h.b16 %v3850
      %v3899 = vunpack.c.l.b16 %v3851
      %v3900 = vunpack.c.h.b16 %v3851
      %v3901 = vunpack.c.l.b16 %v3852
      %v3902 = vunpack.c.h.b16 %v3852
      %v3903 = vunpack.c.l.b16 %v3853
      %v3904 = vunpack.c.h.b16 %v3853
      %v3905 = vunpack.c.l.b16 %v3854
      %v3906 = vunpack.c.h.b16 %v3854
      %v3907 = vunpack.c.l.b16 %v3855
      %v3908 = vunpack.c.h.b16 %v3855
      %v3909 = vunpack.c.l.b16 %v3856
      %v3910 = vunpack.c.h.b16 %v3856
      %v3911 = vpack.c.b16 %v3875, %v3875
      %v3912 = vpack.c.b16 %v3876, %v3876
      %v3913 = vpack.c.b16 %v3877, %v3877
      %v3914 = vpack.c.b16 %v3878, %v3878
      %v3915 = vpack.c.b16 %v3879, %v3879
      %v3916 = vpack.c.b16 %v3880, %v3880
      %v3917 = vpack.c.b16 %v3881, %v3881
      %v3918 = vpack.c.b16 %v3882, %v3882
      %v3919 = vpack.c.b16 %v3883, %v3883
      %v3920 = vpack.c.b16 %v3884, %v3884
      %v3921 = vpack.c.b16 %v3885, %v3885
      %v3922 = vpack.c.b16 %v3886, %v3886
      %v3923 = vpack.c.b16 %v3887, %v3887
      %v3924 = vpack.c.b16 %v3888, %v3888
      %v3925 = vpack.c.b16 %v3889, %v3889
      %v3926 = vpack.c.b16 %v3890, %v3890
      %v3927 = vpack.c.b16 %v3891, %v3891
      %v3928 = vpack.c.b16 %v3892, %v3892
      %v3929 = vpack.c.b16 %v3893, %v3893
      %v3930 = vpack.c.b16 %v3894, %v3894
      %v3931 = vpack.c.b16 %v3895, %v3895
      %v3932 = vpack.c.b16 %v3896, %v3896
      %v3933 = vpack.c.b16 %v3897, %v3897
      %v3934 = vpack.c.b16 %v3898, %v3898
      %v3935 = vpack.c.b16 %v3899, %v3899
      %v3936 = vpack.c.b16 %v3900, %v3900
      %v3937 = vpack.c.b16 %v3901, %v3901
      %v3938 = vpack.c.b16 %v3902, %v3902
      %v3939 = vpack.c.b16 %v3903, %v3903
      %v3940 = vpack.c.b16 %v3904, %v3904
      %v3941 = vpack.c.b16 %v3905, %v3905
      %v3942 = vpack.c.b16 %v3906, %v3906
      %v3943 = vpack.c.b16 %v3907, %v3907
      %v3944 = vpack.c.b16 %v3908, %v3908
      %v3945 = vpack.c.b16 %v3909, %v3909
      %v3946 = vpack.c.b16 %v3910, %v3910
      %3983 = vst [vmem:[%s278] sm:$0xf] %v3911
      %3984 = vst [vmem:[%s278 + $0x4] sm:$0xf] %v3912
      %3985 = vst [vmem:[%s278 + $0x8] sm:$0xf] %v3913
      %3986 = vst [vmem:[%s278 + $0xc] sm:$0xf] %v3914
      %3987 = vst [vmem:[%s278 + $0x10] sm:$0xf] %v3915
      %3988 = vst [vmem:[%s278 + $0x14] sm:$0xf] %v3916
      %3989 = vst [vmem:[%s278 + $0x18] sm:$0xf] %v3917
      %3990 = vst [vmem:[%s278 + $0x1c] sm:$0xf] %v3918
      %3991 = vst [vmem:[%s278 + $0x20] sm:$0xf] %v3919
      %3992 = vst [vmem:[%s278 + $0x24] sm:$0xf] %v3920
      %3993 = vst [vmem:[%s278 + $0x28] sm:$0xf] %v3921
      %3994 = vst [vmem:[%s278 + $0x2c] sm:$0xf] %v3922
      %3995 = vst [vmem:[%s278 + $0x30] sm:$0xf] %v3923
      %3996 = vst [vmem:[%s278 + $0x34] sm:$0xf] %v3924
      %3997 = vst [vmem:[%s278 + $0x38] sm:$0xf] %v3925
      %3998 = vst [vmem:[%s278 + $0x3c] sm:$0xf] %v3926
      %3999 = vst [vmem:[%s278 + $0x40] sm:$0xf] %v3927
      %4000 = vst [vmem:[%s278 + $0x44] sm:$0xf] %v3928
      %4001 = vst [vmem:[%s278 + $0x48] sm:$0xf] %v3929
      %4002 = vst [vmem:[%s278 + $0x4c] sm:$0xf] %v3930
      %4003 = vst [vmem:[%s278 + $0x50] sm:$0xf] %v3931
      %4004 = vst [vmem:[%s278 + $0x54] sm:$0xf] %v3932
      %4005 = vst [vmem:[%s278 + $0x58] sm:$0xf] %v3933
      %4006 = vst [vmem:[%s278 + $0x5c] sm:$0xf] %v3934
      %4007 = vst [vmem:[%s278 + $0x60] sm:$0xf] %v3935
      %4008 = vst [vmem:[%s278 + $0x64] sm:$0xf] %v3936
      %4009 = vst [vmem:[%s278 + $0x68] sm:$0xf] %v3937
      %4010 = vst [vmem:[%s278 + $0x6c] sm:$0xf] %v3938
      %4011 = vst [vmem:[%s278 + $0x70] sm:$0xf] %v3939
      %4012 = vst [vmem:[%s278 + $0x74] sm:$0xf] %v3940
      %4013 = vst [vmem:[%s278 + $0x78] sm:$0xf] %v3941
      %4014 = vst [vmem:[%s278 + $0x7c] sm:$0xf] %v3942
      %4015 = vst [vmem:[%s278 + $0x80] sm:$0xf] %v3943
      %4016 = vst [vmem:[%s278 + $0x84] sm:$0xf] %v3944
      %4017 = vst [vmem:[%s278 + $0x88] sm:$0xf] %v3945
      %4018 = vst [vmem:[%s278 + $0x8c] sm:$0xf] %v3946
      %p4019 = scmp.lt.s32.totalorder %s18, 1
      %s4020 = scalar_select %p4019, %s18, 1
      %s4021 = smul.addr %s4020, 36
      %s4022 = smul.addr %s4021, 4
      %s4023 = scalar_lea.vmem %s7, %s4022
      // Predicated region
      $region49: #{_forward_jit.1} parent=47 // pred_check
        %p4024 = pneg %p188
      $region50: #{_forward_jit.1} parent=47 // pred_check_branch
        %4026 = sbr.rel (%p4024) target = $region52
      $region51: #{_forward_jit.1} parent=47 // pred_region
        _
      $region52: #{_forward_jit.1} parent=47 // pred_fallthru
        _
    $region48: #{_forward_jit.1} parent=5 // pred_fallthru
      _
    %p4027 = scmp.le.s32.totalorder 2, %s13
    // Predicated region
    $region53: #{_forward_jit.1} parent=5 // pred_check
      %p4028 = pneg %p4027
    $region54: #{_forward_jit.1} parent=5 // pred_check_branch
      %4030 = sbr.rel (%p4028) target = $region56
    $region55: #{_forward_jit.1} parent=5 // pred_region
      %s4031 = ssub.s32 %s13, 2
      // Predicated region
      $region57: #{_forward_jit.1} parent=55 // pred_check
        %p4032 = pneg %p194
      $region58: #{_forward_jit.1} parent=55 // pred_check_branch
        %4034 = sbr.rel (%p4032) target = $region60
      $region59: #{_forward_jit.1} parent=55 // pred_region
        %p4035 = scmp.lt.s32.totalorder %s19, 1
        %s4036 = scalar_select %p4035, %s19, 1
        %s4037 = smul.addr %s4036, 36
        %s4038 = smul.addr %s4037, 4
        %s4039 = scalar_lea.vmem %s7, %s4038
      $region60: #{_forward_jit.1} parent=55 // pred_fallthru
        _
    $region56: #{_forward_jit.1} parent=5 // pred_fallthru
      _
  $region6: #{_forward_jit.1} parent=0 // loop_footer
    %s17 = sadd.s32 1, %s13
  $region7: #{_forward_jit.1} parent=0 // loop_footer_branch
    %12 = sbr.rel target = $region3
  $region8: #{_forward_jit.1} parent=0 // loop_exit
    _

</llo_original>
